<compile_context>
chip_gen: v7x
topology: tpu7x:2x2x1
jax: 0.10.0
libtpu: 0.0.40
codegen_flags: <defaults>
</compile_context>

<pallas_src>
import functools

import jax
import jax.numpy as jnp
from jax import lax
from jax.experimental import pallas as pl
from jax.experimental.pallas import tpu as pltpu


def _round_up(x, m):
    return ((x + m - 1) // m) * m


# ----------------------------------------------------------------------------
# Kernel 1: fused conv (in-kernel tap loop) + bias + activation.
#   One batch item per grid step.  The KH*KW taps are static slices of the
#   padded input block resident in VMEM; accumulation is f32 on the MXU.
# ----------------------------------------------------------------------------
def _conv_act_kernel(x_ref, w_ref, b_ref, o_ref, *, ksize, ho, wo, cin, cout,
                     slope, leaky):
    # x_ref: (Hp, Wp, Cin) padded input (batch dim squeezed)
    # w_ref: (ksize*ksize, Cin, Cout)   tap-major packed weight
    # b_ref: (1, Cout)
    # o_ref: (Ho*Wo, Cout)
    acc = jnp.zeros((ho * wo, cout), jnp.float32) + b_ref[...]  # bias added once
    for i in range(ksize):
        for j in range(ksize):
            patch = x_ref[i:i + ho, j:j + wo, :].reshape(ho * wo, cin)
            acc = acc + jnp.dot(patch, w_ref[i * ksize + j],
                                preferred_element_type=jnp.float32)
    if leaky:
        acc = jnp.where(acc > 0, acc, slope * acc)
    else:
        acc = jnp.maximum(acc, 0.0)
    o_ref[...] = acc.astype(o_ref.dtype)


def conv2d_act_pallas(x_nhwc, w_packed, b2, *, ksize, pad, slope, leaky):
    """x_nhwc: (N,H,W,Cin); w_packed: (ksize*ksize, Cin, Cout); b2: (1, Cout)."""
    # TODO(synk): the fused tap-loop kernel assumes conv stride == 1 (the
    # module's default); strided conv would need strided in-kernel tap reads.
    Nb, H, W, Cin = x_nhwc.shape
    kk, cin_w, Cout = w_packed.shape
    assert cin_w == Cin and kk == ksize * ksize
    Ho = H + 2 * pad - ksize + 1
    Wo = W + 2 * pad - ksize + 1
    Hp, Wp = H + 2 * pad, W + 2 * pad
    xpad = jnp.pad(x_nhwc.astype(jnp.float32),
                   ((0, 0), (pad, pad), (pad, pad), (0, 0)))
    kernel = functools.partial(_conv_act_kernel, ksize=ksize, ho=Ho, wo=Wo,
                               cin=Cin, cout=Cout, slope=slope, leaky=leaky)
    out = pl.pallas_call(
        kernel,
        out_shape=jax.ShapeDtypeStruct((Nb, Ho * Wo, Cout), jnp.float32),
        grid=(Nb,),
        in_specs=[
            pl.BlockSpec((None, Hp, Wp, Cin), lambda n: (n, 0, 0, 0)),
            pl.BlockSpec((kk, Cin, Cout), lambda n: (0, 0, 0)),
            pl.BlockSpec((1, Cout), lambda n: (0, 0)),
        ],
        out_specs=pl.BlockSpec((None, Ho * Wo, Cout), lambda n: (n, 0, 0)),
        compiler_params=pltpu.CompilerParams(dimension_semantics=("parallel",)),
    )(xpad, w_packed.astype(jnp.float32), b2.astype(jnp.float32))
    return out.reshape(Nb, Ho, Wo, Cout)


# ----------------------------------------------------------------------------
# Kernel 2: pooling as an elementwise reduce of the k*k strided window taps
#   (the taps are passed as separate inputs; no (kk, M, C) HBM stack).
# ----------------------------------------------------------------------------
def _pool_kernel(*refs, kk, pooling_type):
    taps = refs[:kk]
    o_ref = refs[kk]
    acc = taps[0][...].astype(jnp.float32)
    for t in range(1, kk):
        v = taps[t][...].astype(jnp.float32)
        acc = jnp.maximum(acc, v) if pooling_type == "max" else acc + v
    if pooling_type == "avg":
        acc = acc * (1.0 / kk)
    o_ref[...] = acc.astype(o_ref.dtype)


def pool2d_pallas(x_nhwc, k, pooling_type):
    """Pooling with kernel_size=k, stride=k, no padding (PyTorch defaults)."""
    Nb, H, W, C = x_nhwc.shape
    Ho = (H - k) // k + 1
    Wo = (W - k) // k + 1
    taps = [x_nhwc[:, a:a + k * Ho:k, b:b + k * Wo:k, :]
            for a in range(k) for b in range(k)]
    kernel = functools.partial(_pool_kernel, kk=k * k, pooling_type=pooling_type)
    return pl.pallas_call(
        kernel,
        out_shape=jax.ShapeDtypeStruct((Nb, Ho, Wo, C), jnp.float32),
        grid=(Nb,),
        in_specs=[pl.BlockSpec((None, Ho, Wo, C), lambda n: (n, 0, 0, 0))] * (k * k),
        out_specs=pl.BlockSpec((None, Ho, Wo, C), lambda n: (n, 0, 0, 0)),
        compiler_params=pltpu.CompilerParams(dimension_semantics=("parallel",)),
    )(*[t.astype(jnp.float32) for t in taps])


# ----------------------------------------------------------------------------
# Kernel 3: tiled matmul + bias + activation for the FC layers.
#   grid=(M/tm, N/tn, K/tk); K (reduction) is the last, "arbitrary" axis;
#   f32 VMEM accumulator; bias folded into the k==0 init.
# ----------------------------------------------------------------------------
def _matmul_bias_act_kernel(x_ref, w_ref, b_ref, o_ref, acc_ref, *,
                            apply_act, leaky, slope):
    @pl.when(pl.program_id(2) == 0)
    def _init():
        acc_ref[...] = jnp.zeros_like(acc_ref) + b_ref[...]

    acc_ref[...] += jnp.dot(x_ref[...], w_ref[...],
                            preferred_element_type=jnp.float32)

    @pl.when(pl.program_id(2) == pl.num_programs(2) - 1)
    def _finalize():
        acc = acc_ref[...]
        if apply_act:
            if leaky:
                acc = jnp.where(acc > 0, acc, slope * acc)
            else:
                acc = jnp.maximum(acc, 0.0)
        o_ref[...] = acc.astype(o_ref.dtype)


def linear_pallas(x, w, b, *, apply_act, leaky=False, slope=0.0,
                  tm_max=256, tn_max=256, tk_max=512):
    """x: (M, K); w: (K, N) (already pre-transposed); b: (N,) -> (M, N)."""
    M, K = x.shape
    K2, N = w.shape
    assert K == K2 and b.shape == (N,)
    tm = min(tm_max, _round_up(M, 8))
    tn = min(tn_max, _round_up(N, 128))
    tk = min(tk_max, _round_up(K, 128))
    Mp, Kp, Np = _round_up(M, tm), _round_up(K, tk), _round_up(N, tn)
    xp = jnp.pad(x.astype(jnp.float32), ((0, Mp - M), (0, Kp - K)))
    wp = jnp.pad(w.astype(jnp.float32), ((0, Kp - K), (0, Np - N)))
    bp = jnp.pad(b.astype(jnp.float32), (0, Np - N)).reshape(1, Np)
    kernel = functools.partial(_matmul_bias_act_kernel, apply_act=apply_act,
                               leaky=leaky, slope=slope)
    out = pl.pallas_call(
        kernel,
        out_shape=jax.ShapeDtypeStruct((Mp, Np), jnp.float32),
        grid=(Mp // tm, Np // tn, Kp // tk),
        in_specs=[
            pl.BlockSpec((tm, tk), lambda i, j, k: (i, k)),
            pl.BlockSpec((tk, tn), lambda i, j, k: (k, j)),
            pl.BlockSpec((1, tn), lambda i, j, k: (0, j)),
        ],
        out_specs=pl.BlockSpec((tm, tn), lambda i, j, k: (i, j)),
        scratch_shapes=[pltpu.VMEM((tm, tn), jnp.float32)],
        compiler_params=pltpu.CompilerParams(
            dimension_semantics=("parallel", "parallel", "arbitrary"),
            vmem_limit_bytes=48 * 1024 * 1024),
    )(xp, wp, bp)
    return out[:M, :N]


# ----------------------------------------------------------------------------
# One-time parameter repacking (PyTorch layout -> kernel-ready layout).
# ----------------------------------------------------------------------------
def prepare_params(params, *, in_size, channels, pool_every, hidden_dims,
                   conv_kernel=3, conv_pad=1, conv_stride=1, pool_kernel=1):
    Cin, H, W = in_size
    prep = {}
    in_c = Cin
    for i, ch in enumerate(channels):
        w = params[f"conv{i}_w"]                          # (Cout, Cin, KH, KW)
        prep[f"conv{i}_w"] = jnp.transpose(w, (2, 3, 1, 0)).reshape(
            conv_kernel * conv_kernel, in_c, ch).astype(jnp.float32)
        prep[f"conv{i}_b"] = params[f"conv{i}_b"].reshape(1, ch).astype(jnp.float32)
        H = (H + 2 * conv_pad - conv_kernel) // conv_stride + 1
        W = (W + 2 * conv_pad - conv_kernel) // conv_stride + 1
        in_c = ch
        if (i + 1) % pool_every == 0:
            H = (H - pool_kernel) // pool_kernel + 1
            W = (W - pool_kernel) // pool_kernel + 1
    # First FC layer: permute its (C*H*W)-ordered input columns to (H*W*C)
    # order so the forward pass can flatten NHWC features directly (no runtime
    # NCHW transpose of the feature map) and pre-transpose to (K, N).
    C = channels[-1]
    w0 = params["fc0_w"]                                  # (out, C*H*W)
    w0 = w0.reshape(w0.shape[0], C, H, W).transpose(0, 2, 3, 1).reshape(
        w0.shape[0], H * W * C)
    prep["fc0_w"] = jnp.asarray(w0.T, jnp.float32)        # (H*W*C, out)
    prep["fc0_b"] = params["fc0_b"].astype(jnp.float32)
    for j in range(1, len(hidden_dims)):
        prep[f"fc{j}_w"] = jnp.asarray(params[f"fc{j}_w"].T, jnp.float32)
        prep[f"fc{j}_b"] = params[f"fc{j}_b"].astype(jnp.float32)
    prep["fc_out_w"] = jnp.asarray(params["fc_out_w"].T, jnp.float32)
    prep["fc_out_b"] = params["fc_out_b"].astype(jnp.float32)
    return prep


# ----------------------------------------------------------------------------
# Forward pass.
# ----------------------------------------------------------------------------
def conv_classifier_forward(x_nchw, prepared, *, channels, pool_every,
                            hidden_dims, conv_kernel=3, conv_pad=1,
                            conv_stride=1, activation_type="relu",
                            activation_slope=0.01, pooling_type="max",
                            pool_kernel=1):
    assert conv_stride == 1, "fused conv kernel assumes stride=1 (module default)"
    leaky = activation_type == "lrelu"
    slope = activation_slope if leaky else 0.0
    Nb = x_nchw.shape[0]
    x = jnp.transpose(x_nchw, (0, 2, 3, 1)).astype(jnp.float32)  # NCHW -> NHWC once

    # -------- feature extractor: [(CONV->ACT)*P -> POOL]*(N/P) --------------
    for i in range(len(channels)):
        x = conv2d_act_pallas(x, prepared[f"conv{i}_w"], prepared[f"conv{i}_b"],
                              ksize=conv_kernel, pad=conv_pad,
                              slope=slope, leaky=leaky)
        if (i + 1) % pool_every == 0:
            x = pool2d_pallas(x, pool_kernel, pooling_type)

    # -------- classifier: (FC -> ACT)*M -> FC --------------------------------
    # NHWC flatten; the first FC weight's columns were pre-permuted to match.
    h = x.reshape(Nb, -1)
    for j in range(len(hidden_dims)):
        h = linear_pallas(h, prepared[f"fc{j}_w"], prepared[f"fc{j}_b"],
                          apply_act=True, leaky=leaky, slope=slope)
    return linear_pallas(h, prepared["fc_out_w"], prepared["fc_out_b"],
                         apply_act=False)


# ----------------------------------------------------------------------------
# Pure-JAX reference (uses the original PyTorch-layout parameters).
# ----------------------------------------------------------------------------
def reference_forward(x_nchw, params, *, channels, pool_every, hidden_dims,
                      conv_kernel=3, conv_pad=1, conv_stride=1,
                      activation_type="relu", activation_slope=0.01,
                      pooling_type="max", pool_kernel=1):
    def act(v):
        if activation_type == "lrelu":
            return jnp.where(v > 0, v, activation_slope * v)
        return jnp.maximum(v, 0.0)

    x = x_nchw.astype(jnp.float32)
    for i in range(len(channels)):
        w = params[f"conv{i}_w"]
        b = params[f"conv{i}_b"]
        x = lax.conv_general_dilated(
            x, w, window_strides=(conv_stride, conv_stride),
            padding=((conv_pad, conv_pad), (conv_pad, conv_pad)),
            dimension_numbers=("NCHW", "OIHW", "NCHW"),
            precision=lax.Precision.HIGHEST)
        x = act(x + b[None, :, None, None])
        if (i + 1) % pool_every == 0:
            k = pool_kernel
            if pooling_type == "max":
                x = lax.reduce_window(x, -jnp.inf, lax.max,
                                      (1, 1, k, k), (1, 1, k, k), "VALID")
            else:
                x = lax.reduce_window(x, 0.0, lax.add,
                                      (1, 1, k, k), (1, 1, k, k), "VALID") / (k * k)
    h = x.reshape(x.shape[0], -1)
    for j in range(len(hidden_dims)):
        h = act(jnp.dot(h, params[f"fc{j}_w"].T, precision=lax.Precision.HIGHEST)
                + params[f"fc{j}_b"])
    return (jnp.dot(h, params["fc_out_w"].T, precision=lax.Precision.HIGHEST)
            + params["fc_out_b"])


# ----------------------------------------------------------------------------
# Main
# ----------------------------------------------------------------------------
if __name__ == "__main__":
    # Config consistent with the module defaults:
    #   in_size=(4,16,16), channels=[8,8], pool_every=2, hidden_dims=[32],
    #   out_classes=10, conv k=3/pad=1/stride=1, max-pool kernel=2, relu.
    in_size = (4, 16, 16)
    out_classes = 10
    channels = [8, 8]
    pool_every = 2
    hidden_dims = [32]
    conv_kernel, conv_pad, conv_stride = 3, 1, 1
    pool_kernel = 2
    pooling_type = "max"
    activation_type = "relu"
    batch = 2

    key = jax.random.PRNGKey(0)
    key, kx = jax.random.split(key)
    x = jax.random.normal(kx, (batch,) + in_size, jnp.float32)   # NCHW input

    # PyTorch-layout parameters (deterministic synthetic values).
    params = {}
    in_c = in_size[0]
    for i, ch in enumerate(channels):
        key, k1, k2 = jax.random.split(key, 3)
        params[f"conv{i}_w"] = 0.1 * jax.random.normal(
            k1, (ch, in_c, conv_kernel, conv_kernel), jnp.float32)
        params[f"conv{i}_b"] = 0.1 * jax.random.normal(k2, (ch,), jnp.float32)
        in_c = ch

    # Derive the flattened feature dim exactly as the torch module does.
    Hf, Wf = in_size[1], in_size[2]
    for i in range(len(channels)):
        Hf = (Hf + 2 * conv_pad - conv_kernel) // conv_stride + 1
        Wf = (Wf + 2 * conv_pad - conv_kernel) // conv_stride + 1
        if (i + 1) % pool_every == 0:
            Hf = (Hf - pool_kernel) // pool_kernel + 1
            Wf = (Wf - pool_kernel) // pool_kernel + 1
    first_in = channels[-1] * Hf * Wf

    dims = [first_in] + hidden_dims
    for j, (din, dout) in enumerate(zip(dims[:-1], dims[1:])):
        key, k1, k2 = jax.random.split(key, 3)
        params[f"fc{j}_w"] = 0.1 * jax.random.normal(k1, (dout, din), jnp.float32)
        params[f"fc{j}_b"] = 0.1 * jax.random.normal(k2, (dout,), jnp.float32)
    key, k1, k2 = jax.random.split(key, 3)
    params["fc_out_w"] = 0.1 * jax.random.normal(
        k1, (out_classes, hidden_dims[-1]), jnp.float32)
    params["fc_out_b"] = 0.1 * jax.random.normal(k2, (out_classes,), jnp.float32)

    # One-time repacking (no per-forward transposes).
    prepared = prepare_params(
        params, in_size=in_size, channels=channels, pool_every=pool_every,
        hidden_dims=hidden_dims, conv_kernel=conv_kernel, conv_pad=conv_pad,
        conv_stride=conv_stride, pool_kernel=pool_kernel)

    fwd = jax.jit(functools.partial(
        conv_classifier_forward,
        channels=channels, pool_every=pool_every, hidden_dims=hidden_dims,
        conv_kernel=conv_kernel, conv_pad=conv_pad, conv_stride=conv_stride,
        activation_type=activation_type, pooling_type=pooling_type,
        pool_kernel=pool_kernel))

    out = jax.block_until_ready(fwd(x, prepared))
    assert out.shape == (batch, out_classes), out.shape

    ref = reference_forward(
        x, params, channels=channels, pool_every=pool_every,
        hidden_dims=hidden_dims, conv_kernel=conv_kernel, conv_pad=conv_pad,
        conv_stride=conv_stride, activation_type=activation_type,
        pooling_type=pooling_type, pool_kernel=pool_kernel)
    err = float(jnp.max(jnp.abs(out - ref)))
    assert jnp.allclose(out, ref, atol=1e-2, rtol=1e-2), err

    print("KERNEL_OK")
</pallas_src>

<mosaic_0001>
module attributes {stable_mosaic.version = 11 : i64} {
  func.func @_conv_act_kernel(%arg0: i32, %arg1: memref<1x18x18x4xf32, #tpu.memory_space<vmem>>, %arg2: memref<9x4x8xf32, #tpu.memory_space<vmem>>, %arg3: memref<1x8xf32, #tpu.memory_space<vmem>>, %arg4: memref<1x256x8xf32, #tpu.memory_space<vmem>>) attributes {dimension_semantics = [#tpu.dimension_semantics<parallel>], iteration_bounds = array<i64: 2>, scalar_prefetch = 0 : i64, scratch_operands = 0 : i64, tpu.core_type = #tpu.core_type<tc>, window_params = [{transform_indices = @transform_0, window_bounds = array<i64: 1, 18, 18, 4>}, {pipeline_mode = #tpu.pipeline_mode<synchronous>, transform_indices = @transform_1, window_bounds = array<i64: 9, 4, 8>}, {pipeline_mode = #tpu.pipeline_mode<synchronous>, transform_indices = @transform_2, window_bounds = array<i64: 1, 8>}, {transform_indices = @transform_3, window_bounds = array<i64: 1, 256, 8>}]} {
    %cst = arith.constant 0.000000e+00 : f32
    %0 = vector.broadcast %cst : f32 to vector<256x8xf32>
    %c0 = arith.constant 0 : index
    %c0_0 = arith.constant 0 : index
    %1 = vector.load %arg3[%c0, %c0_0] : memref<1x8xf32, #tpu.memory_space<vmem>>, vector<1x8xf32>
    %2 = vector.broadcast %1 : vector<1x8xf32> to vector<256x8xf32>
    %3 = arith.addf %0, %2 : vector<256x8xf32>
    %c0_1 = arith.constant 0 : index
    %c0_2 = arith.constant 0 : index
    %c0_3 = arith.constant 0 : index
    %c0_4 = arith.constant 0 : index
    %4 = vector.load %arg1[%c0_1, %c0_2, %c0_3, %c0_4] : memref<1x18x18x4xf32, #tpu.memory_space<vmem>>, vector<1x16x16x4xf32>
    %5 = vector.shape_cast %4 : vector<1x16x16x4xf32> to vector<16x16x4xf32>
    %6 = vector.shape_cast %5 : vector<16x16x4xf32> to vector<256x4xf32>
    %c0_5 = arith.constant 0 : index
    %c0_6 = arith.constant 0 : index
    %c0_7 = arith.constant 0 : index
    %7 = vector.load %arg2[%c0_5, %c0_6, %c0_7] : memref<9x4x8xf32, #tpu.memory_space<vmem>>, vector<1x4x8xf32>
    %8 = vector.shape_cast %7 : vector<1x4x8xf32> to vector<4x8xf32>
    %cst_8 = arith.constant dense<0.000000e+00> : vector<256x8xf32>
    %9 = tpu.matmul %6, %8, %cst_8 {dimension_numbers = #tpu.dot_dimension_numbers<[1], [0], [0], [1], [0, 0, 1, 1], [], []>} : vector<256x4xf32>, vector<4x8xf32>, vector<256x8xf32> -> vector<256x8xf32>
    %10 = arith.addf %3, %9 : vector<256x8xf32>
    %c0_9 = arith.constant 0 : index
    %c0_10 = arith.constant 0 : index
    %c1 = arith.constant 1 : index
    %c0_11 = arith.constant 0 : index
    %11 = vector.load %arg1[%c0_9, %c0_10, %c1, %c0_11] : memref<1x18x18x4xf32, #tpu.memory_space<vmem>>, vector<1x16x16x4xf32>
    %12 = vector.shape_cast %11 : vector<1x16x16x4xf32> to vector<16x16x4xf32>
    %13 = vector.shape_cast %12 : vector<16x16x4xf32> to vector<256x4xf32>
    %c1_12 = arith.constant 1 : index
    %c0_13 = arith.constant 0 : index
    %c0_14 = arith.constant 0 : index
    %14 = vector.load %arg2[%c1_12, %c0_13, %c0_14] : memref<9x4x8xf32, #tpu.memory_space<vmem>>, vector<1x4x8xf32>
    %15 = vector.shape_cast %14 : vector<1x4x8xf32> to vector<4x8xf32>
    %cst_15 = arith.constant dense<0.000000e+00> : vector<256x8xf32>
    %16 = tpu.matmul %13, %15, %cst_15 {dimension_numbers = #tpu.dot_dimension_numbers<[1], [0], [0], [1], [0, 0, 1, 1], [], []>} : vector<256x4xf32>, vector<4x8xf32>, vector<256x8xf32> -> vector<256x8xf32>
    %17 = arith.addf %10, %16 : vector<256x8xf32>
    %c0_16 = arith.constant 0 : index
    %c0_17 = arith.constant 0 : index
    %c2 = arith.constant 2 : index
    %c0_18 = arith.constant 0 : index
    %18 = vector.load %arg1[%c0_16, %c0_17, %c2, %c0_18] : memref<1x18x18x4xf32, #tpu.memory_space<vmem>>, vector<1x16x16x4xf32>
    %19 = vector.shape_cast %18 : vector<1x16x16x4xf32> to vector<16x16x4xf32>
    %20 = vector.shape_cast %19 : vector<16x16x4xf32> to vector<256x4xf32>
    %c2_19 = arith.constant 2 : index
    %c0_20 = arith.constant 0 : index
    %c0_21 = arith.constant 0 : index
    %21 = vector.load %arg2[%c2_19, %c0_20, %c0_21] : memref<9x4x8xf32, #tpu.memory_space<vmem>>, vector<1x4x8xf32>
    %22 = vector.shape_cast %21 : vector<1x4x8xf32> to vector<4x8xf32>
    %cst_22 = arith.constant dense<0.000000e+00> : vector<256x8xf32>
    %23 = tpu.matmul %20, %22, %cst_22 {dimension_numbers = #tpu.dot_dimension_numbers<[1], [0], [0], [1], [0, 0, 1, 1], [], []>} : vector<256x4xf32>, vector<4x8xf32>, vector<256x8xf32> -> vector<256x8xf32>
    %24 = arith.addf %17, %23 : vector<256x8xf32>
    %c0_23 = arith.constant 0 : index
    %c1_24 = arith.constant 1 : index
    %c0_25 = arith.constant 0 : index
    %c0_26 = arith.constant 0 : index
    %25 = vector.load %arg1[%c0_23, %c1_24, %c0_25, %c0_26] : memref<1x18x18x4xf32, #tpu.memory_space<vmem>>, vector<1x16x16x4xf32>
    %26 = vector.shape_cast %25 : vector<1x16x16x4xf32> to vector<16x16x4xf32>
    %27 = vector.shape_cast %26 : vector<16x16x4xf32> to vector<256x4xf32>
    %c3 = arith.constant 3 : index
    %c0_27 = arith.constant 0 : index
    %c0_28 = arith.constant 0 : index
    %28 = vector.load %arg2[%c3, %c0_27, %c0_28] : memref<9x4x8xf32, #tpu.memory_space<vmem>>, vector<1x4x8xf32>
    %29 = vector.shape_cast %28 : vector<1x4x8xf32> to vector<4x8xf32>
    %cst_29 = arith.constant dense<0.000000e+00> : vector<256x8xf32>
    %30 = tpu.matmul %27, %29, %cst_29 {dimension_numbers = #tpu.dot_dimension_numbers<[1], [0], [0], [1], [0, 0, 1, 1], [], []>} : vector<256x4xf32>, vector<4x8xf32>, vector<256x8xf32> -> vector<256x8xf32>
    %31 = arith.addf %24, %30 : vector<256x8xf32>
    %c0_30 = arith.constant 0 : index
    %c1_31 = arith.constant 1 : index
    %c1_32 = arith.constant 1 : index
    %c0_33 = arith.constant 0 : index
    %32 = vector.load %arg1[%c0_30, %c1_31, %c1_32, %c0_33] : memref<1x18x18x4xf32, #tpu.memory_space<vmem>>, vector<1x16x16x4xf32>
    %33 = vector.shape_cast %32 : vector<1x16x16x4xf32> to vector<16x16x4xf32>
    %34 = vector.shape_cast %33 : vector<16x16x4xf32> to vector<256x4xf32>
    %c4 = arith.constant 4 : index
    %c0_34 = arith.constant 0 : index
    %c0_35 = arith.constant 0 : index
    %35 = vector.load %arg2[%c4, %c0_34, %c0_35] : memref<9x4x8xf32, #tpu.memory_space<vmem>>, vector<1x4x8xf32>
    %36 = vector.shape_cast %35 : vector<1x4x8xf32> to vector<4x8xf32>
    %cst_36 = arith.constant dense<0.000000e+00> : vector<256x8xf32>
    %37 = tpu.matmul %34, %36, %cst_36 {dimension_numbers = #tpu.dot_dimension_numbers<[1], [0], [0], [1], [0, 0, 1, 1], [], []>} : vector<256x4xf32>, vector<4x8xf32>, vector<256x8xf32> -> vector<256x8xf32>
    %38 = arith.addf %31, %37 : vector<256x8xf32>
    %c0_37 = arith.constant 0 : index
    %c1_38 = arith.constant 1 : index
    %c2_39 = arith.constant 2 : index
    %c0_40 = arith.constant 0 : index
    %39 = vector.load %arg1[%c0_37, %c1_38, %c2_39, %c0_40] : memref<1x18x18x4xf32, #tpu.memory_space<vmem>>, vector<1x16x16x4xf32>
    %40 = vector.shape_cast %39 : vector<1x16x16x4xf32> to vector<16x16x4xf32>
    %41 = vector.shape_cast %40 : vector<16x16x4xf32> to vector<256x4xf32>
    %c5 = arith.constant 5 : index
    %c0_41 = arith.constant 0 : index
    %c0_42 = arith.constant 0 : index
    %42 = vector.load %arg2[%c5, %c0_41, %c0_42] : memref<9x4x8xf32, #tpu.memory_space<vmem>>, vector<1x4x8xf32>
    %43 = vector.shape_cast %42 : vector<1x4x8xf32> to vector<4x8xf32>
    %cst_43 = arith.constant dense<0.000000e+00> : vector<256x8xf32>
    %44 = tpu.matmul %41, %43, %cst_43 {dimension_numbers = #tpu.dot_dimension_numbers<[1], [0], [0], [1], [0, 0, 1, 1], [], []>} : vector<256x4xf32>, vector<4x8xf32>, vector<256x8xf32> -> vector<256x8xf32>
    %45 = arith.addf %38, %44 : vector<256x8xf32>
    %c0_44 = arith.constant 0 : index
    %c2_45 = arith.constant 2 : index
    %c0_46 = arith.constant 0 : index
    %c0_47 = arith.constant 0 : index
    %46 = vector.load %arg1[%c0_44, %c2_45, %c0_46, %c0_47] : memref<1x18x18x4xf32, #tpu.memory_space<vmem>>, vector<1x16x16x4xf32>
    %47 = vector.shape_cast %46 : vector<1x16x16x4xf32> to vector<16x16x4xf32>
    %48 = vector.shape_cast %47 : vector<16x16x4xf32> to vector<256x4xf32>
    %c6 = arith.constant 6 : index
    %c0_48 = arith.constant 0 : index
    %c0_49 = arith.constant 0 : index
    %49 = vector.load %arg2[%c6, %c0_48, %c0_49] : memref<9x4x8xf32, #tpu.memory_space<vmem>>, vector<1x4x8xf32>
    %50 = vector.shape_cast %49 : vector<1x4x8xf32> to vector<4x8xf32>
    %cst_50 = arith.constant dense<0.000000e+00> : vector<256x8xf32>
    %51 = tpu.matmul %48, %50, %cst_50 {dimension_numbers = #tpu.dot_dimension_numbers<[1], [0], [0], [1], [0, 0, 1, 1], [], []>} : vector<256x4xf32>, vector<4x8xf32>, vector<256x8xf32> -> vector<256x8xf32>
    %52 = arith.addf %45, %51 : vector<256x8xf32>
    %c0_51 = arith.constant 0 : index
    %c2_52 = arith.constant 2 : index
    %c1_53 = arith.constant 1 : index
    %c0_54 = arith.constant 0 : index
    %53 = vector.load %arg1[%c0_51, %c2_52, %c1_53, %c0_54] : memref<1x18x18x4xf32, #tpu.memory_space<vmem>>, vector<1x16x16x4xf32>
    %54 = vector.shape_cast %53 : vector<1x16x16x4xf32> to vector<16x16x4xf32>
    %55 = vector.shape_cast %54 : vector<16x16x4xf32> to vector<256x4xf32>
    %c7 = arith.constant 7 : index
    %c0_55 = arith.constant 0 : index
    %c0_56 = arith.constant 0 : index
    %56 = vector.load %arg2[%c7, %c0_55, %c0_56] : memref<9x4x8xf32, #tpu.memory_space<vmem>>, vector<1x4x8xf32>
    %57 = vector.shape_cast %56 : vector<1x4x8xf32> to vector<4x8xf32>
    %cst_57 = arith.constant dense<0.000000e+00> : vector<256x8xf32>
    %58 = tpu.matmul %55, %57, %cst_57 {dimension_numbers = #tpu.dot_dimension_numbers<[1], [0], [0], [1], [0, 0, 1, 1], [], []>} : vector<256x4xf32>, vector<4x8xf32>, vector<256x8xf32> -> vector<256x8xf32>
    %59 = arith.addf %52, %58 : vector<256x8xf32>
    %c0_58 = arith.constant 0 : index
    %c2_59 = arith.constant 2 : index
    %c2_60 = arith.constant 2 : index
    %c0_61 = arith.constant 0 : index
    %60 = vector.load %arg1[%c0_58, %c2_59, %c2_60, %c0_61] : memref<1x18x18x4xf32, #tpu.memory_space<vmem>>, vector<1x16x16x4xf32>
    %61 = vector.shape_cast %60 : vector<1x16x16x4xf32> to vector<16x16x4xf32>
    %62 = vector.shape_cast %61 : vector<16x16x4xf32> to vector<256x4xf32>
    %c8 = arith.constant 8 : index
    %c0_62 = arith.constant 0 : index
    %c0_63 = arith.constant 0 : index
    %63 = vector.load %arg2[%c8, %c0_62, %c0_63] : memref<9x4x8xf32, #tpu.memory_space<vmem>>, vector<1x4x8xf32>
    %64 = vector.shape_cast %63 : vector<1x4x8xf32> to vector<4x8xf32>
    %cst_64 = arith.constant dense<0.000000e+00> : vector<256x8xf32>
    %65 = tpu.matmul %62, %64, %cst_64 {dimension_numbers = #tpu.dot_dimension_numbers<[1], [0], [0], [1], [0, 0, 1, 1], [], []>} : vector<256x4xf32>, vector<4x8xf32>, vector<256x8xf32> -> vector<256x8xf32>
    %66 = arith.addf %59, %65 : vector<256x8xf32>
    %cst_65 = arith.constant 0.000000e+00 : f32
    %67 = vector.broadcast %cst_65 : f32 to vector<256x8xf32>
    %68 = arith.maximumf %66, %67 : vector<256x8xf32>
    %c0_66 = arith.constant 0 : index
    %c0_67 = arith.constant 0 : index
    %c0_68 = arith.constant 0 : index
    %69 = vector.load %arg4[%c0_66, %c0_67, %c0_68] : memref<1x256x8xf32, #tpu.memory_space<vmem>>, vector<1x256x8xf32>
    %70 = vector.shape_cast %69 : vector<1x256x8xf32> to vector<256x8xf32>
    %71 = vector.shape_cast %68 : vector<256x8xf32> to vector<1x256x8xf32>
    tpu.vector_store %arg4[%c0_66, %c0_67, %c0_68], %71 {strides = array<i32>} : memref<1x256x8xf32, #tpu.memory_space<vmem>>, vector<1x256x8xf32>,
    return
  }
  func.func @transform_0(%arg0: i32) -> (i32, i32, i32, i32) {
    %c0_i32 = arith.constant 0 : i32
    %c0_i32_0 = arith.constant 0 : i32
    %c0_i32_1 = arith.constant 0 : i32
    %c0_i32_2 = arith.constant 0 : i32
    return %arg0, %c0_i32, %c0_i32_0, %c0_i32_1 : i32, i32, i32, i32
  }
  func.func @transform_1(%arg0: i32) -> (i32, i32, i32) {
    %c0_i32 = arith.constant 0 : i32
    %c0_i32_0 = arith.constant 0 : i32
    %c0_i32_1 = arith.constant 0 : i32
    %c0_i32_2 = arith.constant 0 : i32
    return %c0_i32, %c0_i32_0, %c0_i32_1 : i32, i32, i32
  }
  func.func @transform_2(%arg0: i32) -> (i32, i32) {
    %c0_i32 = arith.constant 0 : i32
    %c0_i32_0 = arith.constant 0 : i32
    %c0_i32_1 = arith.constant 0 : i32
    return %c0_i32, %c0_i32_0 : i32, i32
  }
  func.func @transform_3(%arg0: i32) -> (i32, i32, i32) {
    %c0_i32 = arith.constant 0 : i32
    %c0_i32_0 = arith.constant 0 : i32
    %c0_i32_1 = arith.constant 0 : i32
    return %arg0, %c0_i32, %c0_i32_0 : i32, i32, i32
  }
}

module attributes {stable_mosaic.version = 11 : i64} {
  func.func @_conv_act_kernel(%arg0: i32, %arg1: memref<1x18x18x8xf32, #tpu.memory_space<vmem>>, %arg2: memref<9x8x8xf32, #tpu.memory_space<vmem>>, %arg3: memref<1x8xf32, #tpu.memory_space<vmem>>, %arg4: memref<1x256x8xf32, #tpu.memory_space<vmem>>) attributes {dimension_semantics = [#tpu.dimension_semantics<parallel>], iteration_bounds = array<i64: 2>, scalar_prefetch = 0 : i64, scratch_operands = 0 : i64, tpu.core_type = #tpu.core_type<tc>, window_params = [{transform_indices = @transform_0, window_bounds = array<i64: 1, 18, 18, 8>}, {pipeline_mode = #tpu.pipeline_mode<synchronous>, transform_indices = @transform_1, window_bounds = array<i64: 9, 8, 8>}, {pipeline_mode = #tpu.pipeline_mode<synchronous>, transform_indices = @transform_2, window_bounds = array<i64: 1, 8>}, {transform_indices = @transform_3, window_bounds = array<i64: 1, 256, 8>}]} {
    %cst = arith.constant 0.000000e+00 : f32
    %0 = vector.broadcast %cst : f32 to vector<256x8xf32>
    %c0 = arith.constant 0 : index
    %c0_0 = arith.constant 0 : index
    %1 = vector.load %arg3[%c0, %c0_0] : memref<1x8xf32, #tpu.memory_space<vmem>>, vector<1x8xf32>
    %2 = vector.broadcast %1 : vector<1x8xf32> to vector<256x8xf32>
    %3 = arith.addf %0, %2 : vector<256x8xf32>
    %c0_1 = arith.constant 0 : index
    %c0_2 = arith.constant 0 : index
    %c0_3 = arith.constant 0 : index
    %c0_4 = arith.constant 0 : index
    %4 = vector.load %arg1[%c0_1, %c0_2, %c0_3, %c0_4] : memref<1x18x18x8xf32, #tpu.memory_space<vmem>>, vector<1x16x16x8xf32>
    %5 = vector.shape_cast %4 : vector<1x16x16x8xf32> to vector<16x16x8xf32>
    %6 = vector.shape_cast %5 : vector<16x16x8xf32> to vector<256x8xf32>
    %c0_5 = arith.constant 0 : index
    %c0_6 = arith.constant 0 : index
    %c0_7 = arith.constant 0 : index
    %7 = vector.load %arg2[%c0_5, %c0_6, %c0_7] : memref<9x8x8xf32, #tpu.memory_space<vmem>>, vector<1x8x8xf32>
    %8 = vector.shape_cast %7 : vector<1x8x8xf32> to vector<8x8xf32>
    %cst_8 = arith.constant dense<0.000000e+00> : vector<256x8xf32>
    %9 = tpu.matmul %6, %8, %cst_8 {dimension_numbers = #tpu.dot_dimension_numbers<[1], [0], [0], [1], [0, 0, 1, 1], [], []>} : vector<256x8xf32>, vector<8x8xf32>, vector<256x8xf32> -> vector<256x8xf32>
    %10 = arith.addf %3, %9 : vector<256x8xf32>
    %c0_9 = arith.constant 0 : index
    %c0_10 = arith.constant 0 : index
    %c1 = arith.constant 1 : index
    %c0_11 = arith.constant 0 : index
    %11 = vector.load %arg1[%c0_9, %c0_10, %c1, %c0_11] : memref<1x18x18x8xf32, #tpu.memory_space<vmem>>, vector<1x16x16x8xf32>
    %12 = vector.shape_cast %11 : vector<1x16x16x8xf32> to vector<16x16x8xf32>
    %13 = vector.shape_cast %12 : vector<16x16x8xf32> to vector<256x8xf32>
    %c1_12 = arith.constant 1 : index
    %c0_13 = arith.constant 0 : index
    %c0_14 = arith.constant 0 : index
    %14 = vector.load %arg2[%c1_12, %c0_13, %c0_14] : memref<9x8x8xf32, #tpu.memory_space<vmem>>, vector<1x8x8xf32>
    %15 = vector.shape_cast %14 : vector<1x8x8xf32> to vector<8x8xf32>
    %cst_15 = arith.constant dense<0.000000e+00> : vector<256x8xf32>
    %16 = tpu.matmul %13, %15, %cst_15 {dimension_numbers = #tpu.dot_dimension_numbers<[1], [0], [0], [1], [0, 0, 1, 1], [], []>} : vector<256x8xf32>, vector<8x8xf32>, vector<256x8xf32> -> vector<256x8xf32>
    %17 = arith.addf %10, %16 : vector<256x8xf32>
    %c0_16 = arith.constant 0 : index
    %c0_17 = arith.constant 0 : index
    %c2 = arith.constant 2 : index
    %c0_18 = arith.constant 0 : index
    %18 = vector.load %arg1[%c0_16, %c0_17, %c2, %c0_18] : memref<1x18x18x8xf32, #tpu.memory_space<vmem>>, vector<1x16x16x8xf32>
    %19 = vector.shape_cast %18 : vector<1x16x16x8xf32> to vector<16x16x8xf32>
    %20 = vector.shape_cast %19 : vector<16x16x8xf32> to vector<256x8xf32>
    %c2_19 = arith.constant 2 : index
    %c0_20 = arith.constant 0 : index
    %c0_21 = arith.constant 0 : index
    %21 = vector.load %arg2[%c2_19, %c0_20, %c0_21] : memref<9x8x8xf32, #tpu.memory_space<vmem>>, vector<1x8x8xf32>
    %22 = vector.shape_cast %21 : vector<1x8x8xf32> to vector<8x8xf32>
    %cst_22 = arith.constant dense<0.000000e+00> : vector<256x8xf32>
    %23 = tpu.matmul %20, %22, %cst_22 {dimension_numbers = #tpu.dot_dimension_numbers<[1], [0], [0], [1], [0, 0, 1, 1], [], []>} : vector<256x8xf32>, vector<8x8xf32>, vector<256x8xf32> -> vector<256x8xf32>
    %24 = arith.addf %17, %23 : vector<256x8xf32>
    %c0_23 = arith.constant 0 : index
    %c1_24 = arith.constant 1 : index
    %c0_25 = arith.constant 0 : index
    %c0_26 = arith.constant 0 : index
    %25 = vector.load %arg1[%c0_23, %c1_24, %c0_25, %c0_26] : memref<1x18x18x8xf32, #tpu.memory_space<vmem>>, vector<1x16x16x8xf32>
    %26 = vector.shape_cast %25 : vector<1x16x16x8xf32> to vector<16x16x8xf32>
    %27 = vector.shape_cast %26 : vector<16x16x8xf32> to vector<256x8xf32>
    %c3 = arith.constant 3 : index
    %c0_27 = arith.constant 0 : index
    %c0_28 = arith.constant 0 : index
    %28 = vector.load %arg2[%c3, %c0_27, %c0_28] : memref<9x8x8xf32, #tpu.memory_space<vmem>>, vector<1x8x8xf32>
    %29 = vector.shape_cast %28 : vector<1x8x8xf32> to vector<8x8xf32>
    %cst_29 = arith.constant dense<0.000000e+00> : vector<256x8xf32>
    %30 = tpu.matmul %27, %29, %cst_29 {dimension_numbers = #tpu.dot_dimension_numbers<[1], [0], [0], [1], [0, 0, 1, 1], [], []>} : vector<256x8xf32>, vector<8x8xf32>, vector<256x8xf32> -> vector<256x8xf32>
    %31 = arith.addf %24, %30 : vector<256x8xf32>
    %c0_30 = arith.constant 0 : index
    %c1_31 = arith.constant 1 : index
    %c1_32 = arith.constant 1 : index
    %c0_33 = arith.constant 0 : index
    %32 = vector.load %arg1[%c0_30, %c1_31, %c1_32, %c0_33] : memref<1x18x18x8xf32, #tpu.memory_space<vmem>>, vector<1x16x16x8xf32>
    %33 = vector.shape_cast %32 : vector<1x16x16x8xf32> to vector<16x16x8xf32>
    %34 = vector.shape_cast %33 : vector<16x16x8xf32> to vector<256x8xf32>
    %c4 = arith.constant 4 : index
    %c0_34 = arith.constant 0 : index
    %c0_35 = arith.constant 0 : index
    %35 = vector.load %arg2[%c4, %c0_34, %c0_35] : memref<9x8x8xf32, #tpu.memory_space<vmem>>, vector<1x8x8xf32>
    %36 = vector.shape_cast %35 : vector<1x8x8xf32> to vector<8x8xf32>
    %cst_36 = arith.constant dense<0.000000e+00> : vector<256x8xf32>
    %37 = tpu.matmul %34, %36, %cst_36 {dimension_numbers = #tpu.dot_dimension_numbers<[1], [0], [0], [1], [0, 0, 1, 1], [], []>} : vector<256x8xf32>, vector<8x8xf32>, vector<256x8xf32> -> vector<256x8xf32>
    %38 = arith.addf %31, %37 : vector<256x8xf32>
    %c0_37 = arith.constant 0 : index
    %c1_38 = arith.constant 1 : index
    %c2_39 = arith.constant 2 : index
    %c0_40 = arith.constant 0 : index
    %39 = vector.load %arg1[%c0_37, %c1_38, %c2_39, %c0_40] : memref<1x18x18x8xf32, #tpu.memory_space<vmem>>, vector<1x16x16x8xf32>
    %40 = vector.shape_cast %39 : vector<1x16x16x8xf32> to vector<16x16x8xf32>
    %41 = vector.shape_cast %40 : vector<16x16x8xf32> to vector<256x8xf32>
    %c5 = arith.constant 5 : index
    %c0_41 = arith.constant 0 : index
    %c0_42 = arith.constant 0 : index
    %42 = vector.load %arg2[%c5, %c0_41, %c0_42] : memref<9x8x8xf32, #tpu.memory_space<vmem>>, vector<1x8x8xf32>
    %43 = vector.shape_cast %42 : vector<1x8x8xf32> to vector<8x8xf32>
    %cst_43 = arith.constant dense<0.000000e+00> : vector<256x8xf32>
    %44 = tpu.matmul %41, %43, %cst_43 {dimension_numbers = #tpu.dot_dimension_numbers<[1], [0], [0], [1], [0, 0, 1, 1], [], []>} : vector<256x8xf32>, vector<8x8xf32>, vector<256x8xf32> -> vector<256x8xf32>
    %45 = arith.addf %38, %44 : vector<256x8xf32>
    %c0_44 = arith.constant 0 : index
    %c2_45 = arith.constant 2 : index
    %c0_46 = arith.constant 0 : index
    %c0_47 = arith.constant 0 : index
    %46 = vector.load %arg1[%c0_44, %c2_45, %c0_46, %c0_47] : memref<1x18x18x8xf32, #tpu.memory_space<vmem>>, vector<1x16x16x8xf32>
    %47 = vector.shape_cast %46 : vector<1x16x16x8xf32> to vector<16x16x8xf32>
    %48 = vector.shape_cast %47 : vector<16x16x8xf32> to vector<256x8xf32>
    %c6 = arith.constant 6 : index
    %c0_48 = arith.constant 0 : index
    %c0_49 = arith.constant 0 : index
    %49 = vector.load %arg2[%c6, %c0_48, %c0_49] : memref<9x8x8xf32, #tpu.memory_space<vmem>>, vector<1x8x8xf32>
    %50 = vector.shape_cast %49 : vector<1x8x8xf32> to vector<8x8xf32>
    %cst_50 = arith.constant dense<0.000000e+00> : vector<256x8xf32>
    %51 = tpu.matmul %48, %50, %cst_50 {dimension_numbers = #tpu.dot_dimension_numbers<[1], [0], [0], [1], [0, 0, 1, 1], [], []>} : vector<256x8xf32>, vector<8x8xf32>, vector<256x8xf32> -> vector<256x8xf32>
    %52 = arith.addf %45, %51 : vector<256x8xf32>
    %c0_51 = arith.constant 0 : index
    %c2_52 = arith.constant 2 : index
    %c1_53 = arith.constant 1 : index
    %c0_54 = arith.constant 0 : index
    %53 = vector.load %arg1[%c0_51, %c2_52, %c1_53, %c0_54] : memref<1x18x18x8xf32, #tpu.memory_space<vmem>>, vector<1x16x16x8xf32>
    %54 = vector.shape_cast %53 : vector<1x16x16x8xf32> to vector<16x16x8xf32>
    %55 = vector.shape_cast %54 : vector<16x16x8xf32> to vector<256x8xf32>
    %c7 = arith.constant 7 : index
    %c0_55 = arith.constant 0 : index
    %c0_56 = arith.constant 0 : index
    %56 = vector.load %arg2[%c7, %c0_55, %c0_56] : memref<9x8x8xf32, #tpu.memory_space<vmem>>, vector<1x8x8xf32>
    %57 = vector.shape_cast %56 : vector<1x8x8xf32> to vector<8x8xf32>
    %cst_57 = arith.constant dense<0.000000e+00> : vector<256x8xf32>
    %58 = tpu.matmul %55, %57, %cst_57 {dimension_numbers = #tpu.dot_dimension_numbers<[1], [0], [0], [1], [0, 0, 1, 1], [], []>} : vector<256x8xf32>, vector<8x8xf32>, vector<256x8xf32> -> vector<256x8xf32>
    %59 = arith.addf %52, %58 : vector<256x8xf32>
    %c0_58 = arith.constant 0 : index
    %c2_59 = arith.constant 2 : index
    %c2_60 = arith.constant 2 : index
    %c0_61 = arith.constant 0 : index
    %60 = vector.load %arg1[%c0_58, %c2_59, %c2_60, %c0_61] : memref<1x18x18x8xf32, #tpu.memory_space<vmem>>, vector<1x16x16x8xf32>
    %61 = vector.shape_cast %60 : vector<1x16x16x8xf32> to vector<16x16x8xf32>
    %62 = vector.shape_cast %61 : vector<16x16x8xf32> to vector<256x8xf32>
    %c8 = arith.constant 8 : index
    %c0_62 = arith.constant 0 : index
    %c0_63 = arith.constant 0 : index
    %63 = vector.load %arg2[%c8, %c0_62, %c0_63] : memref<9x8x8xf32, #tpu.memory_space<vmem>>, vector<1x8x8xf32>
    %64 = vector.shape_cast %63 : vector<1x8x8xf32> to vector<8x8xf32>
    %cst_64 = arith.constant dense<0.000000e+00> : vector<256x8xf32>
    %65 = tpu.matmul %62, %64, %cst_64 {dimension_numbers = #tpu.dot_dimension_numbers<[1], [0], [0], [1], [0, 0, 1, 1], [], []>} : vector<256x8xf32>, vector<8x8xf32>, vector<256x8xf32> -> vector<256x8xf32>
    %66 = arith.addf %59, %65 : vector<256x8xf32>
    %cst_65 = arith.constant 0.000000e+00 : f32
    %67 = vector.broadcast %cst_65 : f32 to vector<256x8xf32>
    %68 = arith.maximumf %66, %67 : vector<256x8xf32>
    %c0_66 = arith.constant 0 : index
    %c0_67 = arith.constant 0 : index
    %c0_68 = arith.constant 0 : index
    %69 = vector.load %arg4[%c0_66, %c0_67, %c0_68] : memref<1x256x8xf32, #tpu.memory_space<vmem>>, vector<1x256x8xf32>
    %70 = vector.shape_cast %69 : vector<1x256x8xf32> to vector<256x8xf32>
    %71 = vector.shape_cast %68 : vector<256x8xf32> to vector<1x256x8xf32>
    tpu.vector_store %arg4[%c0_66, %c0_67, %c0_68], %71 {strides = array<i32>} : memref<1x256x8xf32, #tpu.memory_space<vmem>>, vector<1x256x8xf32>,
    return
  }
  func.func @transform_0(%arg0: i32) -> (i32, i32, i32, i32) {
    %c0_i32 = arith.constant 0 : i32
    %c0_i32_0 = arith.constant 0 : i32
    %c0_i32_1 = arith.constant 0 : i32
    %c0_i32_2 = arith.constant 0 : i32
    return %arg0, %c0_i32, %c0_i32_0, %c0_i32_1 : i32, i32, i32, i32
  }
  func.func @transform_1(%arg0: i32) -> (i32, i32, i32) {
    %c0_i32 = arith.constant 0 : i32
    %c0_i32_0 = arith.constant 0 : i32
    %c0_i32_1 = arith.constant 0 : i32
    %c0_i32_2 = arith.constant 0 : i32
    return %c0_i32, %c0_i32_0, %c0_i32_1 : i32, i32, i32
  }
  func.func @transform_2(%arg0: i32) -> (i32, i32) {
    %c0_i32 = arith.constant 0 : i32
    %c0_i32_0 = arith.constant 0 : i32
    %c0_i32_1 = arith.constant 0 : i32
    return %c0_i32, %c0_i32_0 : i32, i32
  }
  func.func @transform_3(%arg0: i32) -> (i32, i32, i32) {
    %c0_i32 = arith.constant 0 : i32
    %c0_i32_0 = arith.constant 0 : i32
    %c0_i32_1 = arith.constant 0 : i32
    return %arg0, %c0_i32, %c0_i32_0 : i32, i32, i32
  }
}

module attributes {stable_mosaic.version = 11 : i64} {
  func.func @_pool_kernel(%arg0: i32, %arg1: memref<1x8x8x8xf32, #tpu.memory_space<vmem>>, %arg2: memref<1x8x8x8xf32, #tpu.memory_space<vmem>>, %arg3: memref<1x8x8x8xf32, #tpu.memory_space<vmem>>, %arg4: memref<1x8x8x8xf32, #tpu.memory_space<vmem>>, %arg5: memref<1x8x8x8xf32, #tpu.memory_space<vmem>>) attributes {dimension_semantics = [#tpu.dimension_semantics<parallel>], iteration_bounds = array<i64: 2>, scalar_prefetch = 0 : i64, scratch_operands = 0 : i64, tpu.core_type = #tpu.core_type<tc>, window_params = [{transform_indices = @transform_0, window_bounds = array<i64: 1, 8, 8, 8>}, {transform_indices = @transform_1, window_bounds = array<i64: 1, 8, 8, 8>}, {transform_indices = @transform_2, window_bounds = array<i64: 1, 8, 8, 8>}, {transform_indices = @transform_3, window_bounds = array<i64: 1, 8, 8, 8>}, {transform_indices = @transform_4, window_bounds = array<i64: 1, 8, 8, 8>}]} {
    %c0 = arith.constant 0 : index
    %c0_0 = arith.constant 0 : index
    %c0_1 = arith.constant 0 : index
    %c0_2 = arith.constant 0 : index
    %0 = vector.load %arg1[%c0, %c0_0, %c0_1, %c0_2] : memref<1x8x8x8xf32, #tpu.memory_space<vmem>>, vector<1x8x8x8xf32>
    %1 = vector.shape_cast %0 : vector<1x8x8x8xf32> to vector<8x8x8xf32>
    %c0_3 = arith.constant 0 : index
    %c0_4 = arith.constant 0 : index
    %c0_5 = arith.constant 0 : index
    %c0_6 = arith.constant 0 : index
    %2 = vector.load %arg2[%c0_3, %c0_4, %c0_5, %c0_6] : memref<1x8x8x8xf32, #tpu.memory_space<vmem>>, vector<1x8x8x8xf32>
    %3 = vector.shape_cast %2 : vector<1x8x8x8xf32> to vector<8x8x8xf32>
    %4 = arith.maximumf %1, %3 : vector<8x8x8xf32>
    %c0_7 = arith.constant 0 : index
    %c0_8 = arith.constant 0 : index
    %c0_9 = arith.constant 0 : index
    %c0_10 = arith.constant 0 : index
    %5 = vector.load %arg3[%c0_7, %c0_8, %c0_9, %c0_10] : memref<1x8x8x8xf32, #tpu.memory_space<vmem>>, vector<1x8x8x8xf32>
    %6 = vector.shape_cast %5 : vector<1x8x8x8xf32> to vector<8x8x8xf32>
    %7 = arith.maximumf %4, %6 : vector<8x8x8xf32>
    %c0_11 = arith.constant 0 : index
    %c0_12 = arith.constant 0 : index
    %c0_13 = arith.constant 0 : index
    %c0_14 = arith.constant 0 : index
    %8 = vector.load %arg4[%c0_11, %c0_12, %c0_13, %c0_14] : memref<1x8x8x8xf32, #tpu.memory_space<vmem>>, vector<1x8x8x8xf32>
    %9 = vector.shape_cast %8 : vector<1x8x8x8xf32> to vector<8x8x8xf32>
    %10 = arith.maximumf %7, %9 : vector<8x8x8xf32>
    %c0_15 = arith.constant 0 : index
    %c0_16 = arith.constant 0 : index
    %c0_17 = arith.constant 0 : index
    %c0_18 = arith.constant 0 : index
    %11 = vector.load %arg5[%c0_15, %c0_16, %c0_17, %c0_18] : memref<1x8x8x8xf32, #tpu.memory_space<vmem>>, vector<1x8x8x8xf32>
    %12 = vector.shape_cast %11 : vector<1x8x8x8xf32> to vector<8x8x8xf32>
    %13 = vector.shape_cast %10 : vector<8x8x8xf32> to vector<1x8x8x8xf32>
    tpu.vector_store %arg5[%c0_15, %c0_16, %c0_17, %c0_18], %13 {strides = array<i32>} : memref<1x8x8x8xf32, #tpu.memory_space<vmem>>, vector<1x8x8x8xf32>,
    return
  }
  func.func @transform_0(%arg0: i32) -> (i32, i32, i32, i32) {
    %c0_i32 = arith.constant 0 : i32
    %c0_i32_0 = arith.constant 0 : i32
    %c0_i32_1 = arith.constant 0 : i32
    %c0_i32_2 = arith.constant 0 : i32
    return %arg0, %c0_i32, %c0_i32_0, %c0_i32_1 : i32, i32, i32, i32
  }
  func.func @transform_1(%arg0: i32) -> (i32, i32, i32, i32) {
    %c0_i32 = arith.constant 0 : i32
    %c0_i32_0 = arith.constant 0 : i32
    %c0_i32_1 = arith.constant 0 : i32
    %c0_i32_2 = arith.constant 0 : i32
    return %arg0, %c0_i32, %c0_i32_0, %c0_i32_1 : i32, i32, i32, i32
  }
  func.func @transform_2(%arg0: i32) -> (i32, i32, i32, i32) {
    %c0_i32 = arith.constant 0 : i32
    %c0_i32_0 = arith.constant 0 : i32
    %c0_i32_1 = arith.constant 0 : i32
    %c0_i32_2 = arith.constant 0 : i32
    return %arg0, %c0_i32, %c0_i32_0, %c0_i32_1 : i32, i32, i32, i32
  }
  func.func @transform_3(%arg0: i32) -> (i32, i32, i32, i32) {
    %c0_i32 = arith.constant 0 : i32
    %c0_i32_0 = arith.constant 0 : i32
    %c0_i32_1 = arith.constant 0 : i32
    %c0_i32_2 = arith.constant 0 : i32
    return %arg0, %c0_i32, %c0_i32_0, %c0_i32_1 : i32, i32, i32, i32
  }
  func.func @transform_4(%arg0: i32) -> (i32, i32, i32, i32) {
    %c0_i32 = arith.constant 0 : i32
    %c0_i32_0 = arith.constant 0 : i32
    %c0_i32_1 = arith.constant 0 : i32
    %c0_i32_2 = arith.constant 0 : i32
    return %arg0, %c0_i32, %c0_i32_0, %c0_i32_1 : i32, i32, i32, i32
  }
}

module attributes {stable_mosaic.version = 11 : i64} {
  func.func @_matmul_bias_act_kernel(%arg0: i32, %arg1: i32, %arg2: i32, %arg3: memref<8x512xf32, #tpu.memory_space<vmem>>, %arg4: memref<512x128xf32, #tpu.memory_space<vmem>>, %arg5: memref<1x128xf32, #tpu.memory_space<vmem>>, %arg6: memref<8x128xf32, #tpu.memory_space<vmem>>, %arg7: memref<8x128xf32, #tpu.memory_space<vmem>>) attributes {dimension_semantics = [#tpu.dimension_semantics<parallel>, #tpu.dimension_semantics<parallel>, #tpu.dimension_semantics<arbitrary>], iteration_bounds = array<i64: 1, 1, 1>, scalar_prefetch = 0 : i64, scratch_operands = 1 : i64, tpu.core_type = #tpu.core_type<tc>, window_params = [{transform_indices = @transform_0, window_bounds = array<i64: 8, 512>}, {transform_indices = @transform_1, window_bounds = array<i64: 512, 128>}, {transform_indices = @transform_2, window_bounds = array<i64: 1, 128>}, {transform_indices = @transform_3, window_bounds = array<i64: 8, 128>}]} {
    %c0_i32 = arith.constant 0 : i32
    %0 = arith.cmpi eq, %arg2, %c0_i32 : i32
    %1 = arith.extui %0 : i1 to i32
    %c0_i32_0 = arith.constant 0 : i32
    %2 = arith.cmpi ne, %1, %c0_i32_0 : i32
    scf.if %2 {
      %cst_10 = arith.constant 0.000000e+00 : f32
      %12 = vector.broadcast %cst_10 : f32 to vector<8x128xf32>
      %c0_11 = arith.constant 0 : index
      %c0_12 = arith.constant 0 : index
      %13 = vector.load %arg5[%c0_11, %c0_12] : memref<1x128xf32, #tpu.memory_space<vmem>>, vector<1x128xf32>
      %14 = vector.broadcast %13 : vector<1x128xf32> to vector<8x128xf32>
      %15 = arith.addf %12, %14 : vector<8x128xf32>
      %c0_13 = arith.constant 0 : index
      %c0_14 = arith.constant 0 : index
      %16 = vector.load %arg7[%c0_13, %c0_14] : memref<8x128xf32, #tpu.memory_space<vmem>>, vector<8x128xf32>
      tpu.vector_store %arg7[%c0_13, %c0_14], %15 {strides = array<i32>} : memref<8x128xf32, #tpu.memory_space<vmem>>, vector<8x128xf32>,
    } else {
    }
    %c0 = arith.constant 0 : index
    %c0_1 = arith.constant 0 : index
    %3 = vector.load %arg7[%c0, %c0_1] : memref<8x128xf32, #tpu.memory_space<vmem>>, vector<8x128xf32>
    %c0_2 = arith.constant 0 : index
    %c0_3 = arith.constant 0 : index
    %4 = vector.load %arg3[%c0_2, %c0_3] : memref<8x512xf32, #tpu.memory_space<vmem>>, vector<8x512xf32>
    %c0_4 = arith.constant 0 : index
    %c0_5 = arith.constant 0 : index
    %5 = vector.load %arg4[%c0_4, %c0_5] : memref<512x128xf32, #tpu.memory_space<vmem>>, vector<512x128xf32>
    %cst = arith.constant dense<0.000000e+00> : vector<8x128xf32>
    %6 = tpu.matmul %4, %5, %cst {dimension_numbers = #tpu.dot_dimension_numbers<[1], [0], [0], [1], [0, 0, 1, 1], [], []>} : vector<8x512xf32>, vector<512x128xf32>, vector<8x128xf32> -> vector<8x128xf32>
    %7 = arith.addf %3, %6 : vector<8x128xf32>
    %c0_6 = arith.constant 0 : index
    %c0_7 = arith.constant 0 : index
    %8 = vector.load %arg7[%c0_6, %c0_7] : memref<8x128xf32, #tpu.memory_space<vmem>>, vector<8x128xf32>
    tpu.vector_store %arg7[%c0_6, %c0_7], %7 {strides = array<i32>} : memref<8x128xf32, #tpu.memory_space<vmem>>, vector<8x128xf32>,
    %c0_i32_8 = arith.constant 0 : i32
    %9 = arith.cmpi eq, %arg2, %c0_i32_8 : i32
    %10 = arith.extui %9 : i1 to i32
    %c0_i32_9 = arith.constant 0 : i32
    %11 = arith.cmpi ne, %10, %c0_i32_9 : i32
    scf.if %11 {
      %c0_10 = arith.constant 0 : index
      %c0_11 = arith.constant 0 : index
      %12 = vector.load %arg7[%c0_10, %c0_11] : memref<8x128xf32, #tpu.memory_space<vmem>>, vector<8x128xf32>
      %cst_12 = arith.constant 0.000000e+00 : f32
      %13 = vector.broadcast %cst_12 : f32 to vector<8x128xf32>
      %14 = arith.maximumf %12, %13 : vector<8x128xf32>
      %c0_13 = arith.constant 0 : index
      %c0_14 = arith.constant 0 : index
      %15 = vector.load %arg6[%c0_13, %c0_14] : memref<8x128xf32, #tpu.memory_space<vmem>>, vector<8x128xf32>
      tpu.vector_store %arg6[%c0_13, %c0_14], %14 {strides = array<i32>} : memref<8x128xf32, #tpu.memory_space<vmem>>, vector<8x128xf32>,
    } else {
    }
    return
  }
  func.func @transform_0(%arg0: i32, %arg1: i32, %arg2: i32) -> (i32, i32) {
    %c0_i32 = arith.constant 0 : i32
    return %arg0, %arg2 : i32, i32
  }
  func.func @transform_1(%arg0: i32, %arg1: i32, %arg2: i32) -> (i32, i32) {
    %c0_i32 = arith.constant 0 : i32
    return %arg2, %arg1 : i32, i32
  }
  func.func @transform_2(%arg0: i32, %arg1: i32, %arg2: i32) -> (i32, i32) {
    %c0_i32 = arith.constant 0 : i32
    %c0_i32_0 = arith.constant 0 : i32
    return %c0_i32, %arg1 : i32, i32
  }
  func.func @transform_3(%arg0: i32, %arg1: i32, %arg2: i32) -> (i32, i32) {
    %c0_i32 = arith.constant 0 : i32
    return %arg0, %arg1 : i32, i32
  }
}

module attributes {stable_mosaic.version = 11 : i64} {
  func.func @_matmul_bias_act_kernel(%arg0: i32, %arg1: i32, %arg2: i32, %arg3: memref<8x128xf32, #tpu.memory_space<vmem>>, %arg4: memref<128x128xf32, #tpu.memory_space<vmem>>, %arg5: memref<1x128xf32, #tpu.memory_space<vmem>>, %arg6: memref<8x128xf32, #tpu.memory_space<vmem>>, %arg7: memref<8x128xf32, #tpu.memory_space<vmem>>) attributes {dimension_semantics = [#tpu.dimension_semantics<parallel>, #tpu.dimension_semantics<parallel>, #tpu.dimension_semantics<arbitrary>], iteration_bounds = array<i64: 1, 1, 1>, scalar_prefetch = 0 : i64, scratch_operands = 1 : i64, tpu.core_type = #tpu.core_type<tc>, window_params = [{transform_indices = @transform_0, window_bounds = array<i64: 8, 128>}, {transform_indices = @transform_1, window_bounds = array<i64: 128, 128>}, {transform_indices = @transform_2, window_bounds = array<i64: 1, 128>}, {transform_indices = @transform_3, window_bounds = array<i64: 8, 128>}]} {
    %c0_i32 = arith.constant 0 : i32
    %0 = arith.cmpi eq, %arg2, %c0_i32 : i32
    %1 = arith.extui %0 : i1 to i32
    %c0_i32_0 = arith.constant 0 : i32
    %2 = arith.cmpi ne, %1, %c0_i32_0 : i32
    scf.if %2 {
      %cst_10 = arith.constant 0.000000e+00 : f32
      %12 = vector.broadcast %cst_10 : f32 to vector<8x128xf32>
      %c0_11 = arith.constant 0 : index
      %c0_12 = arith.constant 0 : index
      %13 = vector.load %arg5[%c0_11, %c0_12] : memref<1x128xf32, #tpu.memory_space<vmem>>, vector<1x128xf32>
      %14 = vector.broadcast %13 : vector<1x128xf32> to vector<8x128xf32>
      %15 = arith.addf %12, %14 : vector<8x128xf32>
      %c0_13 = arith.constant 0 : index
      %c0_14 = arith.constant 0 : index
      %16 = vector.load %arg7[%c0_13, %c0_14] : memref<8x128xf32, #tpu.memory_space<vmem>>, vector<8x128xf32>
      tpu.vector_store %arg7[%c0_13, %c0_14], %15 {strides = array<i32>} : memref<8x128xf32, #tpu.memory_space<vmem>>, vector<8x128xf32>,
    } else {
    }
    %c0 = arith.constant 0 : index
    %c0_1 = arith.constant 0 : index
    %3 = vector.load %arg7[%c0, %c0_1] : memref<8x128xf32, #tpu.memory_space<vmem>>, vector<8x128xf32>
    %c0_2 = arith.constant 0 : index
    %c0_3 = arith.constant 0 : index
    %4 = vector.load %arg3[%c0_2, %c0_3] : memref<8x128xf32, #tpu.memory_space<vmem>>, vector<8x128xf32>
    %c0_4 = arith.constant 0 : index
    %c0_5 = arith.constant 0 : index
    %5 = vector.load %arg4[%c0_4, %c0_5] : memref<128x128xf32, #tpu.memory_space<vmem>>, vector<128x128xf32>
    %cst = arith.constant dense<0.000000e+00> : vector<8x128xf32>
    %6 = tpu.matmul %4, %5, %cst {dimension_numbers = #tpu.dot_dimension_numbers<[1], [0], [0], [1], [0, 0, 1, 1], [], []>} : vector<8x128xf32>, vector<128x128xf32>, vector<8x128xf32> -> vector<8x128xf32>
    %7 = arith.addf %3, %6 : vector<8x128xf32>
    %c0_6 = arith.constant 0 : index
    %c0_7 = arith.constant 0 : index
    %8 = vector.load %arg7[%c0_6, %c0_7] : memref<8x128xf32, #tpu.memory_space<vmem>>, vector<8x128xf32>
    tpu.vector_store %arg7[%c0_6, %c0_7], %7 {strides = array<i32>} : memref<8x128xf32, #tpu.memory_space<vmem>>, vector<8x128xf32>,
    %c0_i32_8 = arith.constant 0 : i32
    %9 = arith.cmpi eq, %arg2, %c0_i32_8 : i32
    %10 = arith.extui %9 : i1 to i32
    %c0_i32_9 = arith.constant 0 : i32
    %11 = arith.cmpi ne, %10, %c0_i32_9 : i32
    scf.if %11 {
      %c0_10 = arith.constant 0 : index
      %c0_11 = arith.constant 0 : index
      %12 = vector.load %arg7[%c0_10, %c0_11] : memref<8x128xf32, #tpu.memory_space<vmem>>, vector<8x128xf32>
      %c0_12 = arith.constant 0 : index
      %c0_13 = arith.constant 0 : index
      %13 = vector.load %arg6[%c0_12, %c0_13] : memref<8x128xf32, #tpu.memory_space<vmem>>, vector<8x128xf32>
      tpu.vector_store %arg6[%c0_12, %c0_13], %12 {strides = array<i32>} : memref<8x128xf32, #tpu.memory_space<vmem>>, vector<8x128xf32>,
    } else {
    }
    return
  }
  func.func @transform_0(%arg0: i32, %arg1: i32, %arg2: i32) -> (i32, i32) {
    %c0_i32 = arith.constant 0 : i32
    return %arg0, %arg2 : i32, i32
  }
  func.func @transform_1(%arg0: i32, %arg1: i32, %arg2: i32) -> (i32, i32) {
    %c0_i32 = arith.constant 0 : i32
    return %arg2, %arg1 : i32, i32
  }
  func.func @transform_2(%arg0: i32, %arg1: i32, %arg2: i32) -> (i32, i32) {
    %c0_i32 = arith.constant 0 : i32
    %c0_i32_0 = arith.constant 0 : i32
    return %c0_i32, %arg1 : i32, i32
  }
  func.func @transform_3(%arg0: i32, %arg1: i32, %arg2: i32) -> (i32, i32) {
    %c0_i32 = arith.constant 0 : i32
    return %arg0, %arg1 : i32, i32
  }
}

</mosaic_0001>

<llo_original>
// kernel: conv_classifier_forward.7
$region0: #{conv_classifier_forward.7}
  #allocation0 [shape = 'u32[]', space=smem, size = 0x4, offset = 0x4, fixed_abs, tag = 'smem constant byte address 0x4 - core index']
  #allocation1 [shape = 'u32[144,128]{1,0:T(1,128)}', space=vmem, size = 0x12000, scoped, tag = 'internal scratch']
  %s0 = inlined_call_operand.vmem [shape: f32[2,8,8,8], index: 0, kind: input, shape index: {}]
  %s1 = inlined_call_operand.vmem [shape: f32[2,8,8,8], index: 1, kind: input, shape index: {}]
  %s2 = inlined_call_operand.vmem [shape: f32[2,8,8,8], index: 2, kind: input, shape index: {}]
  %s3 = inlined_call_operand.vmem [shape: f32[2,8,8,8], index: 3, kind: input, shape index: {}]
  %s4 = inlined_call_operand.vmem [shape: f32[2,8,8,8], index: 4, kind: output, shape index: {}]
  %s5 = sld [smem:[#allocation0]]
  $region49: #{conv_classifier_forward.7} parent=0
    _
  %s7 = ssub.s32 1, %s5
  %s8 = scalar_select 0, %s7, %s5
  loop: start=0, step=1, limit=4
  $region2: #{conv_classifier_forward.7} parent=0 // loop_pre_header
    _
  $region3: #{conv_classifier_forward.7} parent=0 // loop_header
    %s10 = sphi 0, %s14
    %p11 = scmp.ge.s32.totalorder %s10, 4
    %s20 = sphi 0, %s22
    %s23 = sphi 0, %s20
    %s24 = sphi 0, %s23
    %s40 = sphi 0, %s24
    %s46 = sphi 0, %s48
    %s49 = sphi 0, %s46
    %s50 = sphi 0, %s49
    %s66 = sphi 0, %s50
    %s72 = sphi 0, %s74
    %s75 = sphi 0, %s72
    %s76 = sphi 0, %s75
    %s92 = sphi 0, %s76
    %s98 = sphi 0, %s100
    %s101 = sphi 0, %s98
    %s102 = sphi 0, %s101
    %s118 = sphi 0, %s102
    %s124 = sphi 0, %s126
    %s127 = sphi 0, %s124
    %s128 = sphi 0, %s127
    %s144 = sphi 0, %s128
  $region4: #{conv_classifier_forward.7} parent=0 // loop_header_branch
    %13 = sbr.rel (%p11) target = $region8
  $region5: #{conv_classifier_forward.7} parent=0 // loop_body
    %s15 = ssub.s32 %s10, 1
    %s16 = ssub.s32 %s10, 2
    %s17 = sadd.s32 %s10, 1
    %s18 = ssub.s32 %s10, %s17
    %p19 = scmp.eq.s32.totalorder %s18, 0
    %s21 = sadd.s32 %s20, 1
    %s22 = scalar_select %p19, %s20, %s21
    %p25 = pneg %p19
    %p26 = scmp.eq.s32.totalorder %s10, 1
    %p27 = por %p25, %p26
    %p28 = scmp.ne.s32.totalorder %s20, %s23
    %p29 = scmp.eq.s32.totalorder %s10, 0
    %p30 = por %p28, %p29
    %p31 = scmp.ne.s32.totalorder %s20, %s23
    %p32 = scmp.eq.s32.totalorder %s15, 1
    %p33 = por %p31, %p32
    %p34 = scmp.ne.s32.totalorder %s23, %s24
    %p35 = scmp.eq.s32.totalorder %s15, 0
    %p36 = por %p34, %p35
    %p37 = scmp.ne.s32.totalorder %s23, %s24
    %p38 = scmp.eq.s32.totalorder %s16, 1
    %p39 = por %p37, %p38
    %p41 = scmp.ne.s32.totalorder %s24, %s40
    %p42 = scmp.eq.s32.totalorder %s16, 0
    %p43 = por %p41, %p42
    %s44 = ssub.s32 %s10, %s17
    %p45 = scmp.eq.s32.totalorder %s44, 0
    %s47 = sadd.s32 %s46, 1
    %s48 = scalar_select %p45, %s46, %s47
    %p51 = pneg %p45
    %p52 = scmp.eq.s32.totalorder %s10, 1
    %p53 = por %p51, %p52
    %p54 = scmp.ne.s32.totalorder %s46, %s49
    %p55 = scmp.eq.s32.totalorder %s10, 0
    %p56 = por %p54, %p55
    %p57 = scmp.ne.s32.totalorder %s46, %s49
    %p58 = scmp.eq.s32.totalorder %s15, 1
    %p59 = por %p57, %p58
    %p60 = scmp.ne.s32.totalorder %s49, %s50
    %p61 = scmp.eq.s32.totalorder %s15, 0
    %p62 = por %p60, %p61
    %p63 = scmp.ne.s32.totalorder %s49, %s50
    %p64 = scmp.eq.s32.totalorder %s16, 1
    %p65 = por %p63, %p64
    %p67 = scmp.ne.s32.totalorder %s50, %s66
    %p68 = scmp.eq.s32.totalorder %s16, 0
    %p69 = por %p67, %p68
    %s70 = ssub.s32 %s10, %s17
    %p71 = scmp.eq.s32.totalorder %s70, 0
    %s73 = sadd.s32 %s72, 1
    %s74 = scalar_select %p71, %s72, %s73
    %p77 = pneg %p71
    %p78 = scmp.eq.s32.totalorder %s10, 1
    %p79 = por %p77, %p78
    %p80 = scmp.ne.s32.totalorder %s72, %s75
    %p81 = scmp.eq.s32.totalorder %s10, 0
    %p82 = por %p80, %p81
    %p83 = scmp.ne.s32.totalorder %s72, %s75
    %p84 = scmp.eq.s32.totalorder %s15, 1
    %p85 = por %p83, %p84
    %p86 = scmp.ne.s32.totalorder %s75, %s76
    %p87 = scmp.eq.s32.totalorder %s15, 0
    %p88 = por %p86, %p87
    %p89 = scmp.ne.s32.totalorder %s75, %s76
    %p90 = scmp.eq.s32.totalorder %s16, 1
    %p91 = por %p89, %p90
    %p93 = scmp.ne.s32.totalorder %s76, %s92
    %p94 = scmp.eq.s32.totalorder %s16, 0
    %p95 = por %p93, %p94
    %s96 = ssub.s32 %s10, %s17
    %p97 = scmp.eq.s32.totalorder %s96, 0
    %s99 = sadd.s32 %s98, 1
    %s100 = scalar_select %p97, %s98, %s99
    %p103 = pneg %p97
    %p104 = scmp.eq.s32.totalorder %s10, 1
    %p105 = por %p103, %p104
    %p106 = scmp.ne.s32.totalorder %s98, %s101
    %p107 = scmp.eq.s32.totalorder %s10, 0
    %p108 = por %p106, %p107
    %p109 = scmp.ne.s32.totalorder %s98, %s101
    %p110 = scmp.eq.s32.totalorder %s15, 1
    %p111 = por %p109, %p110
    %p112 = scmp.ne.s32.totalorder %s101, %s102
    %p113 = scmp.eq.s32.totalorder %s15, 0
    %p114 = por %p112, %p113
    %p115 = scmp.ne.s32.totalorder %s101, %s102
    %p116 = scmp.eq.s32.totalorder %s16, 1
    %p117 = por %p115, %p116
    %p119 = scmp.ne.s32.totalorder %s102, %s118
    %p120 = scmp.eq.s32.totalorder %s16, 0
    %p121 = por %p119, %p120
    %s122 = ssub.s32 %s10, %s17
    %p123 = scmp.eq.s32.totalorder %s122, 0
    %s125 = sadd.s32 %s124, 1
    %s126 = scalar_select %p123, %s124, %s125
    %p129 = pneg %p123
    %p130 = scmp.eq.s32.totalorder %s10, 1
    %p131 = por %p129, %p130
    %p132 = scmp.ne.s32.totalorder %s124, %s127
    %p133 = scmp.eq.s32.totalorder %s10, 0
    %p134 = por %p132, %p133
    %p135 = scmp.ne.s32.totalorder %s124, %s127
    %p136 = scmp.eq.s32.totalorder %s15, 1
    %p137 = por %p135, %p136
    %p138 = scmp.ne.s32.totalorder %s127, %s128
    %p139 = scmp.eq.s32.totalorder %s15, 0
    %p140 = por %p138, %p139
    %p141 = scmp.ne.s32.totalorder %s127, %s128
    %p142 = scmp.eq.s32.totalorder %s16, 1
    %p143 = por %p141, %p142
    %p145 = scmp.ne.s32.totalorder %s128, %s144
    %p146 = scmp.eq.s32.totalorder %s16, 0
    %p147 = por %p145, %p146
    %p148 = scmp.le.s32.totalorder 1, %s10
    %p149 = scmp.lt.s32.totalorder %s10, 3
    %p150 = pnand %p148, %p149
    %p151 = pneg %p150
    // Predicated region
    $region9: #{conv_classifier_forward.7} parent=5 // pred_check
      _
    $region10: #{conv_classifier_forward.7} parent=5 // pred_check_branch
      %153 = sbr.rel (%p150) target = $region12
    $region11: #{conv_classifier_forward.7} parent=5 // pred_region
      %s154 = ssub.s32 %s10, 1
    $region12: #{conv_classifier_forward.7} parent=5 // pred_fallthru
      _
    %p155 = scmp.lt.s32.totalorder %s10, 2
    // Predicated region
    $region13: #{conv_classifier_forward.7} parent=5 // pred_check
      %p156 = pneg %p155
    $region14: #{conv_classifier_forward.7} parent=5 // pred_check_branch
      %158 = sbr.rel (%p156) target = $region16
    $region15: #{conv_classifier_forward.7} parent=5 // pred_region
      // Predicated region
      $region17: #{conv_classifier_forward.7} parent=15 // pred_check
        %p159 = pneg %p30
      $region18: #{conv_classifier_forward.7} parent=15 // pred_check_branch
        %161 = sbr.rel (%p159) target = $region20
      $region19: #{conv_classifier_forward.7} parent=15 // pred_region
        %p162 = scmp.lt.s32.totalorder %s10, 1
        %s163 = scalar_select %p162, %s10, 1
        %s164 = smul.addr %s163, 8
        %s165 = smul.addr %s164, 8
        %s166 = scalar_lea.vmem %s0, %s165
      $region20: #{conv_classifier_forward.7} parent=15 // pred_fallthru
        _
      // Predicated region
      $region21: #{conv_classifier_forward.7} parent=15 // pred_check
        %p167 = pneg %p56
      $region22: #{conv_classifier_forward.7} parent=15 // pred_check_branch
        %169 = sbr.rel (%p167) target = $region24
      $region23: #{conv_classifier_forward.7} parent=15 // pred_region
        %p170 = scmp.lt.s32.totalorder %s10, 1
        %s171 = scalar_select %p170, %s10, 1
        %s172 = smul.addr %s171, 8
        %s173 = smul.addr %s172, 8
        %s174 = scalar_lea.vmem %s1, %s173
      $region24: #{conv_classifier_forward.7} parent=15 // pred_fallthru
        _
      // Predicated region
      $region25: #{conv_classifier_forward.7} parent=15 // pred_check
        %p175 = pneg %p82
      $region26: #{conv_classifier_forward.7} parent=15 // pred_check_branch
        %177 = sbr.rel (%p175) target = $region28
      $region27: #{conv_classifier_forward.7} parent=15 // pred_region
        %p178 = scmp.lt.s32.totalorder %s10, 1
        %s179 = scalar_select %p178, %s10, 1
        %s180 = smul.addr %s179, 8
        %s181 = smul.addr %s180, 8
        %s182 = scalar_lea.vmem %s2, %s181
      $region28: #{conv_classifier_forward.7} parent=15 // pred_fallthru
        _
      // Predicated region
      $region29: #{conv_classifier_forward.7} parent=15 // pred_check
        %p183 = pneg %p108
      $region30: #{conv_classifier_forward.7} parent=15 // pred_check_branch
        %185 = sbr.rel (%p183) target = $region32
      $region31: #{conv_classifier_forward.7} parent=15 // pred_region
        %p186 = scmp.lt.s32.totalorder %s10, 1
        %s187 = scalar_select %p186, %s10, 1
        %s188 = smul.addr %s187, 8
        %s189 = smul.addr %s188, 8
        %s190 = scalar_lea.vmem %s3, %s189
      $region32: #{conv_classifier_forward.7} parent=15 // pred_fallthru
        _
    $region16: #{conv_classifier_forward.7} parent=5 // pred_fallthru
      _
    %p191 = scmp.le.s32.totalorder 1, %s10
    %p192 = scmp.lt.s32.totalorder %s10, 3
    %p193 = pnand %p191, %p192
    %p194 = pneg %p193
    // Predicated region
    $region33: #{conv_classifier_forward.7} parent=5 // pred_check
      _
    $region34: #{conv_classifier_forward.7} parent=5 // pred_check_branch
      %196 = sbr.rel (%p193) target = $region36
    $region35: #{conv_classifier_forward.7} parent=5 // pred_region
      %s197 = ssub.s32 %s10, 1
      %p198 = scmp.lt.s32.totalorder %s15, 1
      %s199 = scalar_select %p198, %s15, 1
      %s200 = smul.addr %s199, 8
      %s201 = smul.addr %s200, 8
      %s202 = scalar_lea.vmem %s0, %s201
      %p203 = pneg %p36
      %p204 = pneg %p33
      %p205 = scmp.lt.s32.totalorder %s15, 1
      %s206 = scalar_select %p205, %s15, 1
      %s207 = smul.addr %s206, 8
      %s208 = smul.addr %s207, 8
      %s209 = scalar_lea.vmem %s1, %s208
      %p210 = pneg %p62
      %p211 = pneg %p59
      %p212 = scmp.lt.s32.totalorder %s15, 1
      %s213 = scalar_select %p212, %s15, 1
      %s214 = smul.addr %s213, 8
      %s215 = smul.addr %s214, 8
      %s216 = scalar_lea.vmem %s2, %s215
      %p217 = pneg %p88
      %p218 = pneg %p85
      %p219 = scmp.lt.s32.totalorder %s15, 1
      %s220 = scalar_select %p219, %s15, 1
      %s221 = smul.addr %s220, 8
      %s222 = smul.addr %s221, 8
      %s223 = scalar_lea.vmem %s3, %s222
      %p224 = pneg %p114
      %p225 = pneg %p111
      %p226 = pneg %p140
      %p227 = pneg %p137
      %p228 = scmp.lt.s32.totalorder %s15, 1
      %s229 = scalar_select %p228, %s15, 1
      %s230 = smul.addr %s229, 8
      %s231 = smul.addr %s230, 8
      %s232 = scalar_lea.vmem %s4, %s231
      %p233 = scmp.lt.s32.totalorder %s15, 1
      %s234 = scalar_select %p233, %s15, 1
      %s235 = smul.addr %s234, 8
      %s236 = smul.addr %s235, 8
      %s237 = scalar_lea.vmem %s0, %s236
      %p238 = scmp.lt.s32.totalorder %s15, 1
      %s239 = scalar_select %p238, %s15, 1
      %s240 = smul.addr %s239, 8
      %s241 = smul.addr %s240, 8
      %s242 = scalar_lea.vmem %s1, %s241
      %p243 = scmp.lt.s32.totalorder %s15, 1
      %s244 = scalar_select %p243, %s15, 1
      %s245 = smul.addr %s244, 8
      %s246 = smul.addr %s245, 8
      %s247 = scalar_lea.vmem %s2, %s246
      %p248 = scmp.lt.s32.totalorder %s15, 1
      %s249 = scalar_select %p248, %s15, 1
      %s250 = smul.addr %s249, 8
      %s251 = smul.addr %s250, 8
      %s252 = scalar_lea.vmem %s3, %s251
      %p253 = scmp.lt.s32.totalorder %s15, 1
      %s254 = scalar_select %p253, %s15, 1
      %s255 = smul.addr %s254, 8
      %s256 = smul.addr %s255, 8
      %s257 = scalar_lea.vmem %s4, %s256
      %v258 = vld [vmem:[%s237] sm:$0xff]
      %v259 = vld [vmem:[%s237 + $0x8] sm:$0xff]
      %v260 = vld [vmem:[%s237 + $0x10] sm:$0xff]
      %v261 = vld [vmem:[%s237 + $0x18] sm:$0xff]
      %v262 = vld [vmem:[%s237 + $0x20] sm:$0xff]
      %v263 = vld [vmem:[%s237 + $0x28] sm:$0xff]
      %v264 = vld [vmem:[%s237 + $0x30] sm:$0xff]
      %v265 = vld [vmem:[%s237 + $0x38] sm:$0xff]
      %v266 = vld [vmem:[%s242] sm:$0xff]
      %v267 = vld [vmem:[%s242 + $0x8] sm:$0xff]
      %v268 = vld [vmem:[%s242 + $0x10] sm:$0xff]
      %v269 = vld [vmem:[%s242 + $0x18] sm:$0xff]
      %v270 = vld [vmem:[%s242 + $0x20] sm:$0xff]
      %v271 = vld [vmem:[%s242 + $0x28] sm:$0xff]
      %v272 = vld [vmem:[%s242 + $0x30] sm:$0xff]
      %v273 = vld [vmem:[%s242 + $0x38] sm:$0xff]
      %v274 = vmax.f32 %v258, %v266
      %v275 = vmax.f32 %v259, %v267
      %v276 = vmax.f32 %v260, %v268
      %v277 = vmax.f32 %v261, %v269
      %v278 = vmax.f32 %v262, %v270
      %v279 = vmax.f32 %v263, %v271
      %v280 = vmax.f32 %v264, %v272
      %v281 = vmax.f32 %v265, %v273
      %v282 = vld [vmem:[%s247] sm:$0xff]
      %v283 = vld [vmem:[%s247 + $0x8] sm:$0xff]
      %v284 = vld [vmem:[%s247 + $0x10] sm:$0xff]
      %v285 = vld [vmem:[%s247 + $0x18] sm:$0xff]
      %v286 = vld [vmem:[%s247 + $0x20] sm:$0xff]
      %v287 = vld [vmem:[%s247 + $0x28] sm:$0xff]
      %v288 = vld [vmem:[%s247 + $0x30] sm:$0xff]
      %v289 = vld [vmem:[%s247 + $0x38] sm:$0xff]
      %v290 = vmax.f32 %v274, %v282
      %v291 = vmax.f32 %v275, %v283
      %v292 = vmax.f32 %v276, %v284
      %v293 = vmax.f32 %v277, %v285
      %v294 = vmax.f32 %v278, %v286
      %v295 = vmax.f32 %v279, %v287
      %v296 = vmax.f32 %v280, %v288
      %v297 = vmax.f32 %v281, %v289
      %v298 = vld [vmem:[%s252] sm:$0xff]
      %v299 = vld [vmem:[%s252 + $0x8] sm:$0xff]
      %v300 = vld [vmem:[%s252 + $0x10] sm:$0xff]
      %v301 = vld [vmem:[%s252 + $0x18] sm:$0xff]
      %v302 = vld [vmem:[%s252 + $0x20] sm:$0xff]
      %v303 = vld [vmem:[%s252 + $0x28] sm:$0xff]
      %v304 = vld [vmem:[%s252 + $0x30] sm:$0xff]
      %v305 = vld [vmem:[%s252 + $0x38] sm:$0xff]
      %v306 = vmax.f32 %v290, %v298
      %v307 = vmax.f32 %v291, %v299
      %v308 = vmax.f32 %v292, %v300
      %v309 = vmax.f32 %v293, %v301
      %v310 = vmax.f32 %v294, %v302
      %v311 = vmax.f32 %v295, %v303
      %v312 = vmax.f32 %v296, %v304
      %v313 = vmax.f32 %v297, %v305
      %vm314 = vcmask 64512
      %315 = vst.msk [vmem:[%s257] sm:$0xff] %vm314, %v306
      %316 = vst.msk [vmem:[%s257 + $0x8] sm:$0xff] %vm314, %v307
      %317 = vst.msk [vmem:[%s257 + $0x10] sm:$0xff] %vm314, %v308
      %318 = vst.msk [vmem:[%s257 + $0x18] sm:$0xff] %vm314, %v309
      %319 = vst.msk [vmem:[%s257 + $0x20] sm:$0xff] %vm314, %v310
      %320 = vst.msk [vmem:[%s257 + $0x28] sm:$0xff] %vm314, %v311
      %321 = vst.msk [vmem:[%s257 + $0x30] sm:$0xff] %vm314, %v312
      %322 = vst.msk [vmem:[%s257 + $0x38] sm:$0xff] %vm314, %v313
      %p323 = scmp.lt.s32.totalorder %s15, 1
      %s324 = scalar_select %p323, %s15, 1
      %s325 = smul.addr %s324, 8
      %s326 = smul.addr %s325, 8
      %s327 = scalar_lea.vmem %s4, %s326
      // Predicated region
      $region37: #{conv_classifier_forward.7} parent=35 // pred_check
        %p328 = pneg %p137
      $region38: #{conv_classifier_forward.7} parent=35 // pred_check_branch
        %330 = sbr.rel (%p328) target = $region40
      $region39: #{conv_classifier_forward.7} parent=35 // pred_region
        _
      $region40: #{conv_classifier_forward.7} parent=35 // pred_fallthru
        _
    $region36: #{conv_classifier_forward.7} parent=5 // pred_fallthru
      _
    %p331 = scmp.le.s32.totalorder 2, %s10
    // Predicated region
    $region41: #{conv_classifier_forward.7} parent=5 // pred_check
      %p332 = pneg %p331
    $region42: #{conv_classifier_forward.7} parent=5 // pred_check_branch
      %334 = sbr.rel (%p332) target = $region44
    $region43: #{conv_classifier_forward.7} parent=5 // pred_region
      %s335 = ssub.s32 %s10, 2
      // Predicated region
      $region45: #{conv_classifier_forward.7} parent=43 // pred_check
        %p336 = pneg %p143
      $region46: #{conv_classifier_forward.7} parent=43 // pred_check_branch
        %338 = sbr.rel (%p336) target = $region48
      $region47: #{conv_classifier_forward.7} parent=43 // pred_region
        %p339 = scmp.lt.s32.totalorder %s16, 1
        %s340 = scalar_select %p339, %s16, 1
        %s341 = smul.addr %s340, 8
        %s342 = smul.addr %s341, 8
        %s343 = scalar_lea.vmem %s4, %s342
      $region48: #{conv_classifier_forward.7} parent=43 // pred_fallthru
        _
    $region44: #{conv_classifier_forward.7} parent=5 // pred_fallthru
      _
  $region6: #{conv_classifier_forward.7} parent=0 // loop_footer
    %s14 = sadd.s32 1, %s10
  $region7: #{conv_classifier_forward.7} parent=0 // loop_footer_branch
    %9 = sbr.rel target = $region3
  $region8: #{conv_classifier_forward.7} parent=0 // loop_exit
    _

// kernel: conv_classifier_forward.5
$region0: #{conv_classifier_forward.5}
  #allocation0 [shape = 'u32[]', space=smem, size = 0x4, offset = 0x4, fixed_abs, tag = 'smem constant byte address 0x4 - core index']
  #allocation1 [shape = 'u32[144,128]{1,0:T(1,128)}', space=vmem, size = 0x12000, scoped, tag = 'internal scratch']
  %s0 = inlined_call_operand.vmem [shape: f32[2,18,18,4], index: 0, kind: input, shape index: {}]
  %s1 = inlined_call_operand.vmem [shape: f32[9,4,8], index: 1, kind: input, shape index: {}]
  %s2 = inlined_call_operand.vmem [shape: f32[1,8], index: 2, kind: input, shape index: {}]
  %s3 = inlined_call_operand.vmem [shape: f32[2,256,8], index: 3, kind: output, shape index: {}]
  %s4 = sld [smem:[#allocation0]]
  $region45: #{conv_classifier_forward.5} parent=0
    _
  %s6 = ssub.s32 1, %s4
  %s7 = scalar_select 0, %s6, %s4
  loop: start=0, step=1, limit=4
  $region2: #{conv_classifier_forward.5} parent=0 // loop_pre_header
    _
  $region3: #{conv_classifier_forward.5} parent=0 // loop_header
    %s9 = sphi 0, %s13
    %p10 = scmp.ge.s32.totalorder %s9, 4
    %s19 = sphi 0, %s21
    %s22 = sphi 0, %s19
    %s23 = sphi 0, %s22
    %s39 = sphi 0, %s23
    %s43 = sphi 0, %s43
    %s45 = sphi 0, %s43
    %s46 = sphi 0, %s45
    %s60 = sphi 0, %s46
    %s64 = sphi 0, %s64
    %s66 = sphi 0, %s64
    %s67 = sphi 0, %s66
    %s81 = sphi 0, %s67
    %s87 = sphi 0, %s89
    %s90 = sphi 0, %s87
    %s91 = sphi 0, %s90
    %s107 = sphi 0, %s91
  $region4: #{conv_classifier_forward.5} parent=0 // loop_header_branch
    %12 = sbr.rel (%p10) target = $region8
  $region5: #{conv_classifier_forward.5} parent=0 // loop_body
    %s14 = ssub.s32 %s9, 1
    %s15 = ssub.s32 %s9, 2
    %s16 = sadd.s32 %s9, 1
    %s17 = ssub.s32 %s9, %s16
    %p18 = scmp.eq.s32.totalorder %s17, 0
    %s20 = sadd.s32 %s19, 1
    %s21 = scalar_select %p18, %s19, %s20
    %p24 = pneg %p18
    %p25 = scmp.eq.s32.totalorder %s9, 1
    %p26 = por %p24, %p25
    %p27 = scmp.ne.s32.totalorder %s19, %s22
    %p28 = scmp.eq.s32.totalorder %s9, 0
    %p29 = por %p27, %p28
    %p30 = scmp.ne.s32.totalorder %s19, %s22
    %p31 = scmp.eq.s32.totalorder %s14, 1
    %p32 = por %p30, %p31
    %p33 = scmp.ne.s32.totalorder %s22, %s23
    %p34 = scmp.eq.s32.totalorder %s14, 0
    %p35 = por %p33, %p34
    %p36 = scmp.ne.s32.totalorder %s22, %s23
    %p37 = scmp.eq.s32.totalorder %s15, 1
    %p38 = por %p36, %p37
    %p40 = scmp.ne.s32.totalorder %s23, %s39
    %p41 = scmp.eq.s32.totalorder %s15, 0
    %p42 = por %p40, %p41
    %s44 = sadd.s32 %s43, 1
    %p47 = scmp.eq.s32.totalorder %s9, 1
    %p48 = scmp.ne.s32.totalorder %s43, %s45
    %p49 = scmp.eq.s32.totalorder %s9, 0
    %p50 = por %p48, %p49
    %p51 = scmp.ne.s32.totalorder %s43, %s45
    %p52 = scmp.eq.s32.totalorder %s14, 1
    %p53 = por %p51, %p52
    %p54 = scmp.ne.s32.totalorder %s45, %s46
    %p55 = scmp.eq.s32.totalorder %s14, 0
    %p56 = por %p54, %p55
    %p57 = scmp.ne.s32.totalorder %s45, %s46
    %p58 = scmp.eq.s32.totalorder %s15, 1
    %p59 = por %p57, %p58
    %p61 = scmp.ne.s32.totalorder %s46, %s60
    %p62 = scmp.eq.s32.totalorder %s15, 0
    %p63 = por %p61, %p62
    %s65 = sadd.s32 %s64, 1
    %p68 = scmp.eq.s32.totalorder %s9, 1
    %p69 = scmp.ne.s32.totalorder %s64, %s66
    %p70 = scmp.eq.s32.totalorder %s9, 0
    %p71 = por %p69, %p70
    %p72 = scmp.ne.s32.totalorder %s64, %s66
    %p73 = scmp.eq.s32.totalorder %s14, 1
    %p74 = por %p72, %p73
    %p75 = scmp.ne.s32.totalorder %s66, %s67
    %p76 = scmp.eq.s32.totalorder %s14, 0
    %p77 = por %p75, %p76
    %p78 = scmp.ne.s32.totalorder %s66, %s67
    %p79 = scmp.eq.s32.totalorder %s15, 1
    %p80 = por %p78, %p79
    %p82 = scmp.ne.s32.totalorder %s67, %s81
    %p83 = scmp.eq.s32.totalorder %s15, 0
    %p84 = por %p82, %p83
    %s85 = ssub.s32 %s9, %s16
    %p86 = scmp.eq.s32.totalorder %s85, 0
    %s88 = sadd.s32 %s87, 1
    %s89 = scalar_select %p86, %s87, %s88
    %p92 = pneg %p86
    %p93 = scmp.eq.s32.totalorder %s9, 1
    %p94 = por %p92, %p93
    %p95 = scmp.ne.s32.totalorder %s87, %s90
    %p96 = scmp.eq.s32.totalorder %s9, 0
    %p97 = por %p95, %p96
    %p98 = scmp.ne.s32.totalorder %s87, %s90
    %p99 = scmp.eq.s32.totalorder %s14, 1
    %p100 = por %p98, %p99
    %p101 = scmp.ne.s32.totalorder %s90, %s91
    %p102 = scmp.eq.s32.totalorder %s14, 0
    %p103 = por %p101, %p102
    %p104 = scmp.ne.s32.totalorder %s90, %s91
    %p105 = scmp.eq.s32.totalorder %s15, 1
    %p106 = por %p104, %p105
    %p108 = scmp.ne.s32.totalorder %s91, %s107
    %p109 = scmp.eq.s32.totalorder %s15, 0
    %p110 = por %p108, %p109
    %p111 = scmp.le.s32.totalorder 1, %s9
    %p112 = scmp.lt.s32.totalorder %s9, 3
    %p113 = pnand %p111, %p112
    %p114 = pneg %p113
    // Predicated region
    $region9: #{conv_classifier_forward.5} parent=5 // pred_check
      _
    $region10: #{conv_classifier_forward.5} parent=5 // pred_check_branch
      %116 = sbr.rel (%p113) target = $region12
    $region11: #{conv_classifier_forward.5} parent=5 // pred_region
      %s117 = ssub.s32 %s9, 1
      // Predicated region
      $region13: #{conv_classifier_forward.5} parent=11 // pred_check
        %p118 = pneg %p56
      $region14: #{conv_classifier_forward.5} parent=11 // pred_check_branch
        %120 = sbr.rel (%p118) target = $region16
      $region15: #{conv_classifier_forward.5} parent=11 // pred_region
        _
      $region16: #{conv_classifier_forward.5} parent=11 // pred_fallthru
        _
      // Predicated region
      $region17: #{conv_classifier_forward.5} parent=11 // pred_check
        %p121 = pneg %p77
      $region18: #{conv_classifier_forward.5} parent=11 // pred_check_branch
        %123 = sbr.rel (%p121) target = $region20
      $region19: #{conv_classifier_forward.5} parent=11 // pred_region
        _
      $region20: #{conv_classifier_forward.5} parent=11 // pred_fallthru
        _
    $region12: #{conv_classifier_forward.5} parent=5 // pred_fallthru
      _
    %p124 = scmp.lt.s32.totalorder %s9, 2
    // Predicated region
    $region21: #{conv_classifier_forward.5} parent=5 // pred_check
      %p125 = pneg %p124
    $region22: #{conv_classifier_forward.5} parent=5 // pred_check_branch
      %127 = sbr.rel (%p125) target = $region24
    $region23: #{conv_classifier_forward.5} parent=5 // pred_region
      // Predicated region
      $region25: #{conv_classifier_forward.5} parent=23 // pred_check
        %p128 = pneg %p29
      $region26: #{conv_classifier_forward.5} parent=23 // pred_check_branch
        %130 = sbr.rel (%p128) target = $region28
      $region27: #{conv_classifier_forward.5} parent=23 // pred_region
        %p131 = scmp.lt.s32.totalorder %s9, 1
        %s132 = scalar_select %p131, %s9, 1
        %s133 = smul.addr %s132, 54
        %s134 = smul.addr %s133, 8
        %s135 = scalar_lea.vmem %s0, %s134
      $region28: #{conv_classifier_forward.5} parent=23 // pred_fallthru
        _
    $region24: #{conv_classifier_forward.5} parent=5 // pred_fallthru
      _
    %p136 = scmp.le.s32.totalorder 1, %s9
    %p137 = scmp.lt.s32.totalorder %s9, 3
    %p138 = pnand %p136, %p137
    %p139 = pneg %p138
    // Predicated region
    $region29: #{conv_classifier_forward.5} parent=5 // pred_check
      _
    $region30: #{conv_classifier_forward.5} parent=5 // pred_check_branch
      %141 = sbr.rel (%p138) target = $region32
    $region31: #{conv_classifier_forward.5} parent=5 // pred_region
      %s142 = ssub.s32 %s9, 1
      %p143 = scmp.lt.s32.totalorder %s14, 1
      %s144 = scalar_select %p143, %s14, 1
      %s145 = smul.addr %s144, 54
      %s146 = smul.addr %s145, 8
      %s147 = scalar_lea.vmem %s0, %s146
      %p148 = pneg %p35
      %p149 = pneg %p32
      %p150 = pneg %p56
      %p151 = pneg %p53
      %p152 = pneg %p77
      %p153 = pneg %p74
      %p154 = pneg %p103
      %p155 = pneg %p100
      %p156 = scmp.lt.s32.totalorder %s14, 1
      %s157 = scalar_select %p156, %s14, 1
      %s158 = smul.addr %s157, 32
      %s159 = smul.addr %s158, 8
      %s160 = scalar_lea.vmem %s3, %s159
      %p161 = scmp.lt.s32.totalorder %s14, 1
      %s162 = scalar_select %p161, %s14, 1
      %s163 = smul.addr %s162, 54
      %s164 = smul.addr %s163, 8
      %s165 = scalar_lea.vmem %s0, %s164
      %p166 = scmp.lt.s32.totalorder %s14, 1
      %s167 = scalar_select %p166, %s14, 1
      %s168 = smul.addr %s167, 32
      %s169 = smul.addr %s168, 8
      %s170 = scalar_lea.vmem %s3, %s169
      %v171 = vld [vmem:[%s2] sm:$0x1]
      %v173 = vlaneseq
      %v174 = vshrl.u32 %v173, 7
      %v175 = vsub.s32 0, %v174
      %v176 = vrot.slane %v171, %v175
      %v178 = vadd.f32 %v176, 0.0
      %v179 = vld [vmem:[%s165] sm:$0xff]
      %v180 = vld [vmem:[%s165 + $0x8] sm:$0xff]
      %v181 = vld [vmem:[%s165 + $0x18] sm:$0xff]
      %v182 = vld [vmem:[%s165 + $0x20] sm:$0xff]
      %v183 = vld [vmem:[%s165 + $0x30] sm:$0xff]
      %v184 = vld [vmem:[%s165 + $0x38] sm:$0xff]
      %v185 = vld [vmem:[%s165 + $0x48] sm:$0xff]
      %v186 = vld [vmem:[%s165 + $0x50] sm:$0xff]
      %v187 = vld [vmem:[%s165 + $0x60] sm:$0xff]
      %v188 = vld [vmem:[%s165 + $0x68] sm:$0xff]
      %v189 = vld [vmem:[%s165 + $0x78] sm:$0xff]
      %v190 = vld [vmem:[%s165 + $0x80] sm:$0xff]
      %v191 = vld [vmem:[%s165 + $0x90] sm:$0xff]
      %v192 = vld [vmem:[%s165 + $0x98] sm:$0xff]
      %v193 = vld [vmem:[%s165 + $0xa8] sm:$0xff]
      %v194 = vld [vmem:[%s165 + $0xb0] sm:$0xff]
      %v195 = vld [vmem:[%s165 + $0xc0] sm:$0xff]
      %v196 = vld [vmem:[%s165 + $0xc8] sm:$0xff]
      %v197 = vld [vmem:[%s165 + $0xd8] sm:$0xff]
      %v198 = vld [vmem:[%s165 + $0xe0] sm:$0xff]
      %v199 = vld [vmem:[%s165 + $0xf0] sm:$0xff]
      %v200 = vld [vmem:[%s165 + $0xf8] sm:$0xff]
      %v201 = vld [vmem:[%s165 + $0x108] sm:$0xff]
      %v202 = vld [vmem:[%s165 + $0x110] sm:$0xff]
      %v203 = vld [vmem:[%s165 + $0x120] sm:$0xff]
      %v204 = vld [vmem:[%s165 + $0x128] sm:$0xff]
      %v205 = vld [vmem:[%s165 + $0x138] sm:$0xff]
      %v206 = vld [vmem:[%s165 + $0x140] sm:$0xff]
      %v207 = vld [vmem:[%s165 + $0x150] sm:$0xff]
      %v208 = vld [vmem:[%s165 + $0x158] sm:$0xff]
      %v209 = vld [vmem:[%s165 + $0x168] sm:$0xff]
      %v210 = vld [vmem:[%s165 + $0x170] sm:$0xff]
      %v211 = vld [vmem:[%s1] sm:$0xf]
      %vm212 = vcmask 31744
      %v214 = vsel %vm212, %v179, 0
      %v217 = vsel %vm212, %v180, 0
      %v220 = vsel %vm212, %v181, 0
      %v223 = vsel %vm212, %v182, 0
      %v226 = vsel %vm212, %v183, 0
      %v229 = vsel %vm212, %v184, 0
      %v232 = vsel %vm212, %v185, 0
      %v235 = vsel %vm212, %v186, 0
      %v238 = vsel %vm212, %v187, 0
      %v241 = vsel %vm212, %v188, 0
      %v244 = vsel %vm212, %v189, 0
      %v247 = vsel %vm212, %v190, 0
      %v250 = vsel %vm212, %v191, 0
      %v253 = vsel %vm212, %v192, 0
      %v256 = vsel %vm212, %v193, 0
      %v259 = vsel %vm212, %v194, 0
      %v262 = vsel %vm212, %v195, 0
      %v265 = vsel %vm212, %v196, 0
      %v268 = vsel %vm212, %v197, 0
      %v271 = vsel %vm212, %v198, 0
      %v274 = vsel %vm212, %v199, 0
      %v277 = vsel %vm212, %v200, 0
      %v280 = vsel %vm212, %v201, 0
      %v283 = vsel %vm212, %v202, 0
      %v286 = vsel %vm212, %v203, 0
      %v289 = vsel %vm212, %v204, 0
      %v292 = vsel %vm212, %v205, 0
      %v295 = vsel %vm212, %v206, 0
      %v298 = vsel %vm212, %v207, 0
      %v301 = vsel %vm212, %v208, 0
      %v304 = vsel %vm212, %v209, 0
      %v307 = vsel %vm212, %v210, 0
      %vm309 = vcmask 1043456
      %v311 = vsel %vm309, %v211, 0
      %313 = vmatprep.subr.mxu0 0.0
      %314 = vmatpush1.msra.mxu0 %v311
      %315 = vmatprep.subr.mxu0 0.0
      %316 = vmatpush1.msra.mxu0 0.0
      %317 = vmatprep.subr.mxu0 0.0
      %318 = vmatpush1.msra.mxu0 0.0
      %319 = vmatprep.subr.mxu0 0.0
      %320 = vmatpush1.msra.mxu0 0.0
      %321 = vmatprep.subr.mxu0 0.0
      %322 = vmatpush1.msra.mxu0 0.0
      %323 = vmatprep.subr.mxu0 0.0
      %324 = vmatpush1.msra.mxu0 0.0
      %325 = vmatprep.subr.mxu0 0.0
      %326 = vmatpush1.msra.mxu0 0.0
      %327 = vmatprep.subr.mxu0 0.0
      %328 = vmatpush1.msra.mxu0 0.0
      %329 = vmatprep.subr.mxu0 0.0
      %330 = vmatpush1.msra.mxu0 0.0
      %331 = vmatprep.subr.mxu0 0.0
      %332 = vmatpush1.msra.mxu0 0.0
      %333 = vmatprep.subr.mxu0 0.0
      %334 = vmatpush1.msra.mxu0 0.0
      %335 = vmatprep.subr.mxu0 0.0
      %336 = vmatpush1.msra.mxu0 0.0
      %337 = vmatprep.subr.mxu0 0.0
      %338 = vmatpush1.msra.mxu0 0.0
      %339 = vmatprep.subr.mxu0 0.0
      %340 = vmatpush1.msra.mxu0 0.0
      %341 = vmatprep.subr.mxu0 0.0
      %342 = vmatpush1.msra.mxu0 0.0
      %343 = vmatprep.subr.mxu0 0.0
      %344 = vmatpush1.msra.mxu0 0.0
      %345 = vmatprep.subr.mxu0 0.0
      %346 = vmatpush1.msra.mxu0 0.0
      %347 = vmatprep.subr.mxu0 0.0
      %348 = vmatpush1.msra.mxu0 0.0
      %349 = vmatprep.subr.mxu0 0.0
      %350 = vmatpush1.msra.mxu0 0.0
      %351 = vmatprep.subr.mxu0 0.0
      %352 = vmatpush1.msra.mxu0 0.0
      %353 = vmatprep.subr.mxu0 0.0
      %354 = vmatpush1.msra.mxu0 0.0
      %355 = vmatprep.subr.mxu0 0.0
      %356 = vmatpush1.msra.mxu0 0.0
      %357 = vmatprep.subr.mxu0 0.0
      %358 = vmatpush1.msra.mxu0 0.0
      %359 = vmatprep.subr.mxu0 0.0
      %360 = vmatpush1.msra.mxu0 0.0
      %361 = vmatprep.subr.mxu0 0.0
      %362 = vmatpush1.msra.mxu0 0.0
      %363 = vmatprep.subr.mxu0 0.0
      %364 = vmatpush1.msra.mxu0 0.0
      %365 = vmatprep.subr.mxu0 0.0
      %366 = vmatpush1.msra.mxu0 0.0
      %367 = vmatprep.subr.mxu0 0.0
      %368 = vmatpush1.msra.mxu0 0.0
      %369 = vmatprep.subr.mxu0 0.0
      %370 = vmatpush1.msra.mxu0 0.0
      %371 = vmatprep.subr.mxu0 0.0
      %372 = vmatpush1.msra.mxu0 0.0
      %373 = vmatprep.subr.mxu0 0.0
      %374 = vmatpush1.msra.mxu0 0.0
      %375 = vmatprep.subr.mxu0 0.0
      %376 = vmatpush1.msra.mxu0 0.0
      %377 = vmatprep.mubr.f32.mxu0 0.0
      %378 = vmatmul.mubr.f32.gmra.mrb[0].mxu0 %v214
      %v379 = vpop.f32.mrb[0].mxu0
      %v380 = vadd.f32 0.0, %v379
      %v381 = vpop.f32.mrb[0].mxu0
      %382 = vmatprep.mubr.f32.mxu0 0.0
      %383 = vmatmul.mubr.f32.gmra.mrb[0].mxu0 %v217
      %v384 = vpop.f32.mrb[0].mxu0
      %v385 = vadd.f32 0.0, %v384
      %v386 = vpop.f32.mrb[0].mxu0
      %387 = vmatprep.mubr.f32.mxu0 0.0
      %388 = vmatmul.mubr.f32.gmra.mrb[0].mxu0 %v220
      %v389 = vpop.f32.mrb[0].mxu0
      %v390 = vadd.f32 0.0, %v389
      %v391 = vpop.f32.mrb[0].mxu0
      %392 = vmatprep.mubr.f32.mxu0 0.0
      %393 = vmatmul.mubr.f32.gmra.mrb[0].mxu0 %v223
      %v394 = vpop.f32.mrb[0].mxu0
      %v395 = vadd.f32 0.0, %v394
      %v396 = vpop.f32.mrb[0].mxu0
      %397 = vmatprep.mubr.f32.mxu0 0.0
      %398 = vmatmul.mubr.f32.gmra.mrb[0].mxu0 %v226
      %v399 = vpop.f32.mrb[0].mxu0
      %v400 = vadd.f32 0.0, %v399
      %v401 = vpop.f32.mrb[0].mxu0
      %402 = vmatprep.mubr.f32.mxu0 0.0
      %403 = vmatmul.mubr.f32.gmra.mrb[0].mxu0 %v229
      %v404 = vpop.f32.mrb[0].mxu0
      %v405 = vadd.f32 0.0, %v404
      %v406 = vpop.f32.mrb[0].mxu0
      %407 = vmatprep.mubr.f32.mxu0 0.0
      %408 = vmatmul.mubr.f32.gmra.mrb[0].mxu0 %v232
      %v409 = vpop.f32.mrb[0].mxu0
      %v410 = vadd.f32 0.0, %v409
      %v411 = vpop.f32.mrb[0].mxu0
      %412 = vmatprep.mubr.f32.mxu0 0.0
      %413 = vmatmul.mubr.f32.gmra.mrb[0].mxu0 %v235
      %v414 = vpop.f32.mrb[0].mxu0
      %v415 = vadd.f32 0.0, %v414
      %v416 = vpop.f32.mrb[0].mxu0
      %417 = vmatprep.mubr.f32.mxu0 0.0
      %418 = vmatmul.mubr.f32.gmra.mrb[0].mxu0 %v238
      %v419 = vpop.f32.mrb[0].mxu0
      %v420 = vadd.f32 0.0, %v419
      %v421 = vpop.f32.mrb[0].mxu0
      %422 = vmatprep.mubr.f32.mxu0 0.0
      %423 = vmatmul.mubr.f32.gmra.mrb[0].mxu0 %v241
      %v424 = vpop.f32.mrb[0].mxu0
      %v425 = vadd.f32 0.0, %v424
      %v426 = vpop.f32.mrb[0].mxu0
      %427 = vmatprep.mubr.f32.mxu0 0.0
      %428 = vmatmul.mubr.f32.gmra.mrb[0].mxu0 %v244
      %v429 = vpop.f32.mrb[0].mxu0
      %v430 = vadd.f32 0.0, %v429
      %v431 = vpop.f32.mrb[0].mxu0
      %432 = vmatprep.mubr.f32.mxu0 0.0
      %433 = vmatmul.mubr.f32.gmra.mrb[0].mxu0 %v247
      %v434 = vpop.f32.mrb[0].mxu0
      %v435 = vadd.f32 0.0, %v434
      %v436 = vpop.f32.mrb[0].mxu0
      %437 = vmatprep.mubr.f32.mxu0 0.0
      %438 = vmatmul.mubr.f32.gmra.mrb[0].mxu0 %v250
      %v439 = vpop.f32.mrb[0].mxu0
      %v440 = vadd.f32 0.0, %v439
      %v441 = vpop.f32.mrb[0].mxu0
      %442 = vmatprep.mubr.f32.mxu0 0.0
      %443 = vmatmul.mubr.f32.gmra.mrb[0].mxu0 %v253
      %v444 = vpop.f32.mrb[0].mxu0
      %v445 = vadd.f32 0.0, %v444
      %v446 = vpop.f32.mrb[0].mxu0
      %447 = vmatprep.mubr.f32.mxu0 0.0
      %448 = vmatmul.mubr.f32.gmra.mrb[0].mxu0 %v256
      %v449 = vpop.f32.mrb[0].mxu0
      %v450 = vadd.f32 0.0, %v449
      %v451 = vpop.f32.mrb[0].mxu0
      %452 = vmatprep.mubr.f32.mxu0 0.0
      %453 = vmatmul.mubr.f32.gmra.mrb[0].mxu0 %v259
      %v454 = vpop.f32.mrb[0].mxu0
      %v455 = vadd.f32 0.0, %v454
      %v456 = vpop.f32.mrb[0].mxu0
      %457 = vmatprep.mubr.f32.mxu0 0.0
      %458 = vmatmul.mubr.f32.gmra.mrb[0].mxu0 %v262
      %v459 = vpop.f32.mrb[0].mxu0
      %v460 = vadd.f32 0.0, %v459
      %v461 = vpop.f32.mrb[0].mxu0
      %462 = vmatprep.mubr.f32.mxu0 0.0
      %463 = vmatmul.mubr.f32.gmra.mrb[0].mxu0 %v265
      %v464 = vpop.f32.mrb[0].mxu0
      %v465 = vadd.f32 0.0, %v464
      %v466 = vpop.f32.mrb[0].mxu0
      %467 = vmatprep.mubr.f32.mxu0 0.0
      %468 = vmatmul.mubr.f32.gmra.mrb[0].mxu0 %v268
      %v469 = vpop.f32.mrb[0].mxu0
      %v470 = vadd.f32 0.0, %v469
      %v471 = vpop.f32.mrb[0].mxu0
      %472 = vmatprep.mubr.f32.mxu0 0.0
      %473 = vmatmul.mubr.f32.gmra.mrb[0].mxu0 %v271
      %v474 = vpop.f32.mrb[0].mxu0
      %v475 = vadd.f32 0.0, %v474
      %v476 = vpop.f32.mrb[0].mxu0
      %477 = vmatprep.mubr.f32.mxu0 0.0
      %478 = vmatmul.mubr.f32.gmra.mrb[0].mxu0 %v274
      %v479 = vpop.f32.mrb[0].mxu0
      %v480 = vadd.f32 0.0, %v479
      %v481 = vpop.f32.mrb[0].mxu0
      %482 = vmatprep.mubr.f32.mxu0 0.0
      %483 = vmatmul.mubr.f32.gmra.mrb[0].mxu0 %v277
      %v484 = vpop.f32.mrb[0].mxu0
      %v485 = vadd.f32 0.0, %v484
      %v486 = vpop.f32.mrb[0].mxu0
      %487 = vmatprep.mubr.f32.mxu0 0.0
      %488 = vmatmul.mubr.f32.gmra.mrb[0].mxu0 %v280
      %v489 = vpop.f32.mrb[0].mxu0
      %v490 = vadd.f32 0.0, %v489
      %v491 = vpop.f32.mrb[0].mxu0
      %492 = vmatprep.mubr.f32.mxu0 0.0
      %493 = vmatmul.mubr.f32.gmra.mrb[0].mxu0 %v283
      %v494 = vpop.f32.mrb[0].mxu0
      %v495 = vadd.f32 0.0, %v494
      %v496 = vpop.f32.mrb[0].mxu0
      %497 = vmatprep.mubr.f32.mxu0 0.0
      %498 = vmatmul.mubr.f32.gmra.mrb[0].mxu0 %v286
      %v499 = vpop.f32.mrb[0].mxu0
      %v500 = vadd.f32 0.0, %v499
      %v501 = vpop.f32.mrb[0].mxu0
      %502 = vmatprep.mubr.f32.mxu0 0.0
      %503 = vmatmul.mubr.f32.gmra.mrb[0].mxu0 %v289
      %v504 = vpop.f32.mrb[0].mxu0
      %v505 = vadd.f32 0.0, %v504
      %v506 = vpop.f32.mrb[0].mxu0
      %507 = vmatprep.mubr.f32.mxu0 0.0
      %508 = vmatmul.mubr.f32.gmra.mrb[0].mxu0 %v292
      %v509 = vpop.f32.mrb[0].mxu0
      %v510 = vadd.f32 0.0, %v509
      %v511 = vpop.f32.mrb[0].mxu0
      %512 = vmatprep.mubr.f32.mxu0 0.0
      %513 = vmatmul.mubr.f32.gmra.mrb[0].mxu0 %v295
      %v514 = vpop.f32.mrb[0].mxu0
      %v515 = vadd.f32 0.0, %v514
      %v516 = vpop.f32.mrb[0].mxu0
      %517 = vmatprep.mubr.f32.mxu0 0.0
      %518 = vmatmul.mubr.f32.gmra.mrb[0].mxu0 %v298
      %v519 = vpop.f32.mrb[0].mxu0
      %v520 = vadd.f32 0.0, %v519
      %v521 = vpop.f32.mrb[0].mxu0
      %522 = vmatprep.mubr.f32.mxu0 0.0
      %523 = vmatmul.mubr.f32.gmra.mrb[0].mxu0 %v301
      %v524 = vpop.f32.mrb[0].mxu0
      %v525 = vadd.f32 0.0, %v524
      %v526 = vpop.f32.mrb[0].mxu0
      %527 = vmatprep.mubr.f32.mxu0 0.0
      %528 = vmatmul.mubr.f32.gmra.mrb[0].mxu0 %v304
      %v529 = vpop.f32.mrb[0].mxu0
      %v530 = vadd.f32 0.0, %v529
      %v531 = vpop.f32.mrb[0].mxu0
      %532 = vmatprep.mubr.f32.mxu0 0.0
      %533 = vmatmul.mubr.f32.gmra.mrb[0].mxu0 %v307
      %v534 = vpop.f32.mrb[0].mxu0
      %v535 = vadd.f32 0.0, %v534
      %v536 = vpop.f32.mrb[0].mxu0
      %537 = vdwg.mxu0
      %v538 = vadd.f32 %v178, %v380
      %v539 = vadd.f32 %v178, %v385
      %v540 = vadd.f32 %v178, %v390
      %v541 = vadd.f32 %v178, %v395
      %v542 = vadd.f32 %v178, %v400
      %v543 = vadd.f32 %v178, %v405
      %v544 = vadd.f32 %v178, %v410
      %v545 = vadd.f32 %v178, %v415
      %v546 = vadd.f32 %v178, %v420
      %v547 = vadd.f32 %v178, %v425
      %v548 = vadd.f32 %v178, %v430
      %v549 = vadd.f32 %v178, %v435
      %v550 = vadd.f32 %v178, %v440
      %v551 = vadd.f32 %v178, %v445
      %v552 = vadd.f32 %v178, %v450
      %v553 = vadd.f32 %v178, %v455
      %v554 = vadd.f32 %v178, %v460
      %v555 = vadd.f32 %v178, %v465
      %v556 = vadd.f32 %v178, %v470
      %v557 = vadd.f32 %v178, %v475
      %v558 = vadd.f32 %v178, %v480
      %v559 = vadd.f32 %v178, %v485
      %v560 = vadd.f32 %v178, %v490
      %v561 = vadd.f32 %v178, %v495
      %v562 = vadd.f32 %v178, %v500
      %v563 = vadd.f32 %v178, %v505
      %v564 = vadd.f32 %v178, %v510
      %v565 = vadd.f32 %v178, %v515
      %v566 = vadd.f32 %v178, %v520
      %v567 = vadd.f32 %v178, %v525
      %v568 = vadd.f32 %v178, %v530
      %v569 = vadd.f32 %v178, %v535
      %v570 = vld [vmem:[%s165 + $0x1] sm:$0xff]
      %v571 = vld [vmem:[%s165 + $0x9] sm:$0xff]
      %v572 = vld [vmem:[%s165 + $0x19] sm:$0xff]
      %v573 = vld [vmem:[%s165 + $0x21] sm:$0xff]
      %v574 = vld [vmem:[%s165 + $0x31] sm:$0xff]
      %v575 = vld [vmem:[%s165 + $0x39] sm:$0xff]
      %v576 = vld [vmem:[%s165 + $0x49] sm:$0xff]
      %v577 = vld [vmem:[%s165 + $0x51] sm:$0xff]
      %v578 = vld [vmem:[%s165 + $0x61] sm:$0xff]
      %v579 = vld [vmem:[%s165 + $0x69] sm:$0xff]
      %v580 = vld [vmem:[%s165 + $0x79] sm:$0xff]
      %v581 = vld [vmem:[%s165 + $0x81] sm:$0xff]
      %v582 = vld [vmem:[%s165 + $0x91] sm:$0xff]
      %v583 = vld [vmem:[%s165 + $0x99] sm:$0xff]
      %v584 = vld [vmem:[%s165 + $0xa9] sm:$0xff]
      %v585 = vld [vmem:[%s165 + $0xb1] sm:$0xff]
      %v586 = vld [vmem:[%s165 + $0xc1] sm:$0xff]
      %v587 = vld [vmem:[%s165 + $0xc9] sm:$0xff]
      %v588 = vld [vmem:[%s165 + $0xd9] sm:$0xff]
      %v589 = vld [vmem:[%s165 + $0xe1] sm:$0xff]
      %v590 = vld [vmem:[%s165 + $0xf1] sm:$0xff]
      %v591 = vld [vmem:[%s165 + $0xf9] sm:$0xff]
      %v592 = vld [vmem:[%s165 + $0x109] sm:$0xff]
      %v593 = vld [vmem:[%s165 + $0x111] sm:$0xff]
      %v594 = vld [vmem:[%s165 + $0x121] sm:$0xff]
      %v595 = vld [vmem:[%s165 + $0x129] sm:$0xff]
      %v596 = vld [vmem:[%s165 + $0x139] sm:$0xff]
      %v597 = vld [vmem:[%s165 + $0x141] sm:$0xff]
      %v598 = vld [vmem:[%s165 + $0x151] sm:$0xff]
      %v599 = vld [vmem:[%s165 + $0x159] sm:$0xff]
      %v600 = vld [vmem:[%s165 + $0x169] sm:$0xff]
      %v601 = vld [vmem:[%s165 + $0x171] sm:$0xff]
      %s602 = scalar_lea.vmem %s1, 4
      %v603 = vld [vmem:[%s602] sm:$0xf]
      %v605 = vsel %vm212, %v570, 0
      %v608 = vsel %vm212, %v571, 0
      %v611 = vsel %vm212, %v572, 0
      %v614 = vsel %vm212, %v573, 0
      %v617 = vsel %vm212, %v574, 0
      %v620 = vsel %vm212, %v575, 0
      %v623 = vsel %vm212, %v576, 0
      %v626 = vsel %vm212, %v577, 0
      %v629 = vsel %vm212, %v578, 0
      %v632 = vsel %vm212, %v579, 0
      %v635 = vsel %vm212, %v580, 0
      %v638 = vsel %vm212, %v581, 0
      %v641 = vsel %vm212, %v582, 0
      %v644 = vsel %vm212, %v583, 0
      %v647 = vsel %vm212, %v584, 0
      %v650 = vsel %vm212, %v585, 0
      %v653 = vsel %vm212, %v586, 0
      %v656 = vsel %vm212, %v587, 0
      %v659 = vsel %vm212, %v588, 0
      %v662 = vsel %vm212, %v589, 0
      %v665 = vsel %vm212, %v590, 0
      %v668 = vsel %vm212, %v591, 0
      %v671 = vsel %vm212, %v592, 0
      %v674 = vsel %vm212, %v593, 0
      %v677 = vsel %vm212, %v594, 0
      %v680 = vsel %vm212, %v595, 0
      %v683 = vsel %vm212, %v596, 0
      %v686 = vsel %vm212, %v597, 0
      %v689 = vsel %vm212, %v598, 0
      %v692 = vsel %vm212, %v599, 0
      %v695 = vsel %vm212, %v600, 0
      %v698 = vsel %vm212, %v601, 0
      %v701 = vsel %vm309, %v603, 0
      %703 = vmatprep.subr.mxu0 0.0
      %704 = vmatpush1.msra.mxu0 %v701
      %705 = vmatprep.subr.mxu0 0.0
      %706 = vmatpush1.msra.mxu0 0.0
      %707 = vmatprep.subr.mxu0 0.0
      %708 = vmatpush1.msra.mxu0 0.0
      %709 = vmatprep.subr.mxu0 0.0
      %710 = vmatpush1.msra.mxu0 0.0
      %711 = vmatprep.subr.mxu0 0.0
      %712 = vmatpush1.msra.mxu0 0.0
      %713 = vmatprep.subr.mxu0 0.0
      %714 = vmatpush1.msra.mxu0 0.0
      %715 = vmatprep.subr.mxu0 0.0
      %716 = vmatpush1.msra.mxu0 0.0
      %717 = vmatprep.subr.mxu0 0.0
      %718 = vmatpush1.msra.mxu0 0.0
      %719 = vmatprep.subr.mxu0 0.0
      %720 = vmatpush1.msra.mxu0 0.0
      %721 = vmatprep.subr.mxu0 0.0
      %722 = vmatpush1.msra.mxu0 0.0
      %723 = vmatprep.subr.mxu0 0.0
      %724 = vmatpush1.msra.mxu0 0.0
      %725 = vmatprep.subr.mxu0 0.0
      %726 = vmatpush1.msra.mxu0 0.0
      %727 = vmatprep.subr.mxu0 0.0
      %728 = vmatpush1.msra.mxu0 0.0
      %729 = vmatprep.subr.mxu0 0.0
      %730 = vmatpush1.msra.mxu0 0.0
      %731 = vmatprep.subr.mxu0 0.0
      %732 = vmatpush1.msra.mxu0 0.0
      %733 = vmatprep.subr.mxu0 0.0
      %734 = vmatpush1.msra.mxu0 0.0
      %735 = vmatprep.subr.mxu0 0.0
      %736 = vmatpush1.msra.mxu0 0.0
      %737 = vmatprep.subr.mxu0 0.0
      %738 = vmatpush1.msra.mxu0 0.0
      %739 = vmatprep.subr.mxu0 0.0
      %740 = vmatpush1.msra.mxu0 0.0
      %741 = vmatprep.subr.mxu0 0.0
      %742 = vmatpush1.msra.mxu0 0.0
      %743 = vmatprep.subr.mxu0 0.0
      %744 = vmatpush1.msra.mxu0 0.0
      %745 = vmatprep.subr.mxu0 0.0
      %746 = vmatpush1.msra.mxu0 0.0
      %747 = vmatprep.subr.mxu0 0.0
      %748 = vmatpush1.msra.mxu0 0.0
      %749 = vmatprep.subr.mxu0 0.0
      %750 = vmatpush1.msra.mxu0 0.0
      %751 = vmatprep.subr.mxu0 0.0
      %752 = vmatpush1.msra.mxu0 0.0
      %753 = vmatprep.subr.mxu0 0.0
      %754 = vmatpush1.msra.mxu0 0.0
      %755 = vmatprep.subr.mxu0 0.0
      %756 = vmatpush1.msra.mxu0 0.0
      %757 = vmatprep.subr.mxu0 0.0
      %758 = vmatpush1.msra.mxu0 0.0
      %759 = vmatprep.subr.mxu0 0.0
      %760 = vmatpush1.msra.mxu0 0.0
      %761 = vmatprep.subr.mxu0 0.0
      %762 = vmatpush1.msra.mxu0 0.0
      %763 = vmatprep.subr.mxu0 0.0
      %764 = vmatpush1.msra.mxu0 0.0
      %765 = vmatprep.subr.mxu0 0.0
      %766 = vmatpush1.msra.mxu0 0.0
      %767 = vmatprep.mubr.f32.mxu0 0.0
      %768 = vmatmul.mubr.f32.gmra.mrb[0].mxu0 %v605
      %v769 = vpop.f32.mrb[0].mxu0
      %v770 = vadd.f32 0.0, %v769
      %v771 = vpop.f32.mrb[0].mxu0
      %772 = vmatprep.mubr.f32.mxu0 0.0
      %773 = vmatmul.mubr.f32.gmra.mrb[0].mxu0 %v608
      %v774 = vpop.f32.mrb[0].mxu0
      %v775 = vadd.f32 0.0, %v774
      %v776 = vpop.f32.mrb[0].mxu0
      %777 = vmatprep.mubr.f32.mxu0 0.0
      %778 = vmatmul.mubr.f32.gmra.mrb[0].mxu0 %v611
      %v779 = vpop.f32.mrb[0].mxu0
      %v780 = vadd.f32 0.0, %v779
      %v781 = vpop.f32.mrb[0].mxu0
      %782 = vmatprep.mubr.f32.mxu0 0.0
      %783 = vmatmul.mubr.f32.gmra.mrb[0].mxu0 %v614
      %v784 = vpop.f32.mrb[0].mxu0
      %v785 = vadd.f32 0.0, %v784
      %v786 = vpop.f32.mrb[0].mxu0
      %787 = vmatprep.mubr.f32.mxu0 0.0
      %788 = vmatmul.mubr.f32.gmra.mrb[0].mxu0 %v617
      %v789 = vpop.f32.mrb[0].mxu0
      %v790 = vadd.f32 0.0, %v789
      %v791 = vpop.f32.mrb[0].mxu0
      %792 = vmatprep.mubr.f32.mxu0 0.0
      %793 = vmatmul.mubr.f32.gmra.mrb[0].mxu0 %v620
      %v794 = vpop.f32.mrb[0].mxu0
      %v795 = vadd.f32 0.0, %v794
      %v796 = vpop.f32.mrb[0].mxu0
      %797 = vmatprep.mubr.f32.mxu0 0.0
      %798 = vmatmul.mubr.f32.gmra.mrb[0].mxu0 %v623
      %v799 = vpop.f32.mrb[0].mxu0
      %v800 = vadd.f32 0.0, %v799
      %v801 = vpop.f32.mrb[0].mxu0
      %802 = vmatprep.mubr.f32.mxu0 0.0
      %803 = vmatmul.mubr.f32.gmra.mrb[0].mxu0 %v626
      %v804 = vpop.f32.mrb[0].mxu0
      %v805 = vadd.f32 0.0, %v804
      %v806 = vpop.f32.mrb[0].mxu0
      %807 = vmatprep.mubr.f32.mxu0 0.0
      %808 = vmatmul.mubr.f32.gmra.mrb[0].mxu0 %v629
      %v809 = vpop.f32.mrb[0].mxu0
      %v810 = vadd.f32 0.0, %v809
      %v811 = vpop.f32.mrb[0].mxu0
      %812 = vmatprep.mubr.f32.mxu0 0.0
      %813 = vmatmul.mubr.f32.gmra.mrb[0].mxu0 %v632
      %v814 = vpop.f32.mrb[0].mxu0
      %v815 = vadd.f32 0.0, %v814
      %v816 = vpop.f32.mrb[0].mxu0
      %817 = vmatprep.mubr.f32.mxu0 0.0
      %818 = vmatmul.mubr.f32.gmra.mrb[0].mxu0 %v635
      %v819 = vpop.f32.mrb[0].mxu0
      %v820 = vadd.f32 0.0, %v819
      %v821 = vpop.f32.mrb[0].mxu0
      %822 = vmatprep.mubr.f32.mxu0 0.0
      %823 = vmatmul.mubr.f32.gmra.mrb[0].mxu0 %v638
      %v824 = vpop.f32.mrb[0].mxu0
      %v825 = vadd.f32 0.0, %v824
      %v826 = vpop.f32.mrb[0].mxu0
      %827 = vmatprep.mubr.f32.mxu0 0.0
      %828 = vmatmul.mubr.f32.gmra.mrb[0].mxu0 %v641
      %v829 = vpop.f32.mrb[0].mxu0
      %v830 = vadd.f32 0.0, %v829
      %v831 = vpop.f32.mrb[0].mxu0
      %832 = vmatprep.mubr.f32.mxu0 0.0
      %833 = vmatmul.mubr.f32.gmra.mrb[0].mxu0 %v644
      %v834 = vpop.f32.mrb[0].mxu0
      %v835 = vadd.f32 0.0, %v834
      %v836 = vpop.f32.mrb[0].mxu0
      %837 = vmatprep.mubr.f32.mxu0 0.0
      %838 = vmatmul.mubr.f32.gmra.mrb[0].mxu0 %v647
      %v839 = vpop.f32.mrb[0].mxu0
      %v840 = vadd.f32 0.0, %v839
      %v841 = vpop.f32.mrb[0].mxu0
      %842 = vmatprep.mubr.f32.mxu0 0.0
      %843 = vmatmul.mubr.f32.gmra.mrb[0].mxu0 %v650
      %v844 = vpop.f32.mrb[0].mxu0
      %v845 = vadd.f32 0.0, %v844
      %v846 = vpop.f32.mrb[0].mxu0
      %847 = vmatprep.mubr.f32.mxu0 0.0
      %848 = vmatmul.mubr.f32.gmra.mrb[0].mxu0 %v653
      %v849 = vpop.f32.mrb[0].mxu0
      %v850 = vadd.f32 0.0, %v849
      %v851 = vpop.f32.mrb[0].mxu0
      %852 = vmatprep.mubr.f32.mxu0 0.0
      %853 = vmatmul.mubr.f32.gmra.mrb[0].mxu0 %v656
      %v854 = vpop.f32.mrb[0].mxu0
      %v855 = vadd.f32 0.0, %v854
      %v856 = vpop.f32.mrb[0].mxu0
      %857 = vmatprep.mubr.f32.mxu0 0.0
      %858 = vmatmul.mubr.f32.gmra.mrb[0].mxu0 %v659
      %v859 = vpop.f32.mrb[0].mxu0
      %v860 = vadd.f32 0.0, %v859
      %v861 = vpop.f32.mrb[0].mxu0
      %862 = vmatprep.mubr.f32.mxu0 0.0
      %863 = vmatmul.mubr.f32.gmra.mrb[0].mxu0 %v662
      %v864 = vpop.f32.mrb[0].mxu0
      %v865 = vadd.f32 0.0, %v864
      %v866 = vpop.f32.mrb[0].mxu0
      %867 = vmatprep.mubr.f32.mxu0 0.0
      %868 = vmatmul.mubr.f32.gmra.mrb[0].mxu0 %v665
      %v869 = vpop.f32.mrb[0].mxu0
      %v870 = vadd.f32 0.0, %v869
      %v871 = vpop.f32.mrb[0].mxu0
      %872 = vmatprep.mubr.f32.mxu0 0.0
      %873 = vmatmul.mubr.f32.gmra.mrb[0].mxu0 %v668
      %v874 = vpop.f32.mrb[0].mxu0
      %v875 = vadd.f32 0.0, %v874
      %v876 = vpop.f32.mrb[0].mxu0
      %877 = vmatprep.mubr.f32.mxu0 0.0
      %878 = vmatmul.mubr.f32.gmra.mrb[0].mxu0 %v671
      %v879 = vpop.f32.mrb[0].mxu0
      %v880 = vadd.f32 0.0, %v879
      %v881 = vpop.f32.mrb[0].mxu0
      %882 = vmatprep.mubr.f32.mxu0 0.0
      %883 = vmatmul.mubr.f32.gmra.mrb[0].mxu0 %v674
      %v884 = vpop.f32.mrb[0].mxu0
      %v885 = vadd.f32 0.0, %v884
      %v886 = vpop.f32.mrb[0].mxu0
      %887 = vmatprep.mubr.f32.mxu0 0.0
      %888 = vmatmul.mubr.f32.gmra.mrb[0].mxu0 %v677
      %v889 = vpop.f32.mrb[0].mxu0
      %v890 = vadd.f32 0.0, %v889
      %v891 = vpop.f32.mrb[0].mxu0
      %892 = vmatprep.mubr.f32.mxu0 0.0
      %893 = vmatmul.mubr.f32.gmra.mrb[0].mxu0 %v680
      %v894 = vpop.f32.mrb[0].mxu0
      %v895 = vadd.f32 0.0, %v894
      %v896 = vpop.f32.mrb[0].mxu0
      %897 = vmatprep.mubr.f32.mxu0 0.0
      %898 = vmatmul.mubr.f32.gmra.mrb[0].mxu0 %v683
      %v899 = vpop.f32.mrb[0].mxu0
      %v900 = vadd.f32 0.0, %v899
      %v901 = vpop.f32.mrb[0].mxu0
      %902 = vmatprep.mubr.f32.mxu0 0.0
      %903 = vmatmul.mubr.f32.gmra.mrb[0].mxu0 %v686
      %v904 = vpop.f32.mrb[0].mxu0
      %v905 = vadd.f32 0.0, %v904
      %v906 = vpop.f32.mrb[0].mxu0
      %907 = vmatprep.mubr.f32.mxu0 0.0
      %908 = vmatmul.mubr.f32.gmra.mrb[0].mxu0 %v689
      %v909 = vpop.f32.mrb[0].mxu0
      %v910 = vadd.f32 0.0, %v909
      %v911 = vpop.f32.mrb[0].mxu0
      %912 = vmatprep.mubr.f32.mxu0 0.0
      %913 = vmatmul.mubr.f32.gmra.mrb[0].mxu0 %v692
      %v914 = vpop.f32.mrb[0].mxu0
      %v915 = vadd.f32 0.0, %v914
      %v916 = vpop.f32.mrb[0].mxu0
      %917 = vmatprep.mubr.f32.mxu0 0.0
      %918 = vmatmul.mubr.f32.gmra.mrb[0].mxu0 %v695
      %v919 = vpop.f32.mrb[0].mxu0
      %v920 = vadd.f32 0.0, %v919
      %v921 = vpop.f32.mrb[0].mxu0
      %922 = vmatprep.mubr.f32.mxu0 0.0
      %923 = vmatmul.mubr.f32.gmra.mrb[0].mxu0 %v698
      %v924 = vpop.f32.mrb[0].mxu0
      %v925 = vadd.f32 0.0, %v924
      %v926 = vpop.f32.mrb[0].mxu0
      %927 = vdwg.mxu0
      %v928 = vadd.f32 %v538, %v770
      %v929 = vadd.f32 %v539, %v775
      %v930 = vadd.f32 %v540, %v780
      %v931 = vadd.f32 %v541, %v785
      %v932 = vadd.f32 %v542, %v790
      %v933 = vadd.f32 %v543, %v795
      %v934 = vadd.f32 %v544, %v800
      %v935 = vadd.f32 %v545, %v805
      %v936 = vadd.f32 %v546, %v810
      %v937 = vadd.f32 %v547, %v815
      %v938 = vadd.f32 %v548, %v820
      %v939 = vadd.f32 %v549, %v825
      %v940 = vadd.f32 %v550, %v830
      %v941 = vadd.f32 %v551, %v835
      %v942 = vadd.f32 %v552, %v840
      %v943 = vadd.f32 %v553, %v845
      %v944 = vadd.f32 %v554, %v850
      %v945 = vadd.f32 %v555, %v855
      %v946 = vadd.f32 %v556, %v860
      %v947 = vadd.f32 %v557, %v865
      %v948 = vadd.f32 %v558, %v870
      %v949 = vadd.f32 %v559, %v875
      %v950 = vadd.f32 %v560, %v880
      %v951 = vadd.f32 %v561, %v885
      %v952 = vadd.f32 %v562, %v890
      %v953 = vadd.f32 %v563, %v895
      %v954 = vadd.f32 %v564, %v900
      %v955 = vadd.f32 %v565, %v905
      %v956 = vadd.f32 %v566, %v910
      %v957 = vadd.f32 %v567, %v915
      %v958 = vadd.f32 %v568, %v920
      %v959 = vadd.f32 %v569, %v925
      %v960 = vld [vmem:[%s165 + $0x2] sm:$0xff]
      %v961 = vld [vmem:[%s165 + $0xa] sm:$0xff]
      %v962 = vld [vmem:[%s165 + $0x1a] sm:$0xff]
      %v963 = vld [vmem:[%s165 + $0x22] sm:$0xff]
      %v964 = vld [vmem:[%s165 + $0x32] sm:$0xff]
      %v965 = vld [vmem:[%s165 + $0x3a] sm:$0xff]
      %v966 = vld [vmem:[%s165 + $0x4a] sm:$0xff]
      %v967 = vld [vmem:[%s165 + $0x52] sm:$0xff]
      %v968 = vld [vmem:[%s165 + $0x62] sm:$0xff]
      %v969 = vld [vmem:[%s165 + $0x6a] sm:$0xff]
      %v970 = vld [vmem:[%s165 + $0x7a] sm:$0xff]
      %v971 = vld [vmem:[%s165 + $0x82] sm:$0xff]
      %v972 = vld [vmem:[%s165 + $0x92] sm:$0xff]
      %v973 = vld [vmem:[%s165 + $0x9a] sm:$0xff]
      %v974 = vld [vmem:[%s165 + $0xaa] sm:$0xff]
      %v975 = vld [vmem:[%s165 + $0xb2] sm:$0xff]
      %v976 = vld [vmem:[%s165 + $0xc2] sm:$0xff]
      %v977 = vld [vmem:[%s165 + $0xca] sm:$0xff]
      %v978 = vld [vmem:[%s165 + $0xda] sm:$0xff]
      %v979 = vld [vmem:[%s165 + $0xe2] sm:$0xff]
      %v980 = vld [vmem:[%s165 + $0xf2] sm:$0xff]
      %v981 = vld [vmem:[%s165 + $0xfa] sm:$0xff]
      %v982 = vld [vmem:[%s165 + $0x10a] sm:$0xff]
      %v983 = vld [vmem:[%s165 + $0x112] sm:$0xff]
      %v984 = vld [vmem:[%s165 + $0x122] sm:$0xff]
      %v985 = vld [vmem:[%s165 + $0x12a] sm:$0xff]
      %v986 = vld [vmem:[%s165 + $0x13a] sm:$0xff]
      %v987 = vld [vmem:[%s165 + $0x142] sm:$0xff]
      %v988 = vld [vmem:[%s165 + $0x152] sm:$0xff]
      %v989 = vld [vmem:[%s165 + $0x15a] sm:$0xff]
      %v990 = vld [vmem:[%s165 + $0x16a] sm:$0xff]
      %v991 = vld [vmem:[%s165 + $0x172] sm:$0xff]
      %s992 = scalar_lea.vmem %s1, 8
      %v993 = vld [vmem:[%s992] sm:$0xf]
      %v995 = vsel %vm212, %v960, 0
      %v998 = vsel %vm212, %v961, 0
      %v1001 = vsel %vm212, %v962, 0
      %v1004 = vsel %vm212, %v963, 0
      %v1007 = vsel %vm212, %v964, 0
      %v1010 = vsel %vm212, %v965, 0
      %v1013 = vsel %vm212, %v966, 0
      %v1016 = vsel %vm212, %v967, 0
      %v1019 = vsel %vm212, %v968, 0
      %v1022 = vsel %vm212, %v969, 0
      %v1025 = vsel %vm212, %v970, 0
      %v1028 = vsel %vm212, %v971, 0
      %v1031 = vsel %vm212, %v972, 0
      %v1034 = vsel %vm212, %v973, 0
      %v1037 = vsel %vm212, %v974, 0
      %v1040 = vsel %vm212, %v975, 0
      %v1043 = vsel %vm212, %v976, 0
      %v1046 = vsel %vm212, %v977, 0
      %v1049 = vsel %vm212, %v978, 0
      %v1052 = vsel %vm212, %v979, 0
      %v1055 = vsel %vm212, %v980, 0
      %v1058 = vsel %vm212, %v981, 0
      %v1061 = vsel %vm212, %v982, 0
      %v1064 = vsel %vm212, %v983, 0
      %v1067 = vsel %vm212, %v984, 0
      %v1070 = vsel %vm212, %v985, 0
      %v1073 = vsel %vm212, %v986, 0
      %v1076 = vsel %vm212, %v987, 0
      %v1079 = vsel %vm212, %v988, 0
      %v1082 = vsel %vm212, %v989, 0
      %v1085 = vsel %vm212, %v990, 0
      %v1088 = vsel %vm212, %v991, 0
      %v1091 = vsel %vm309, %v993, 0
      %1093 = vmatprep.subr.mxu0 0.0
      %1094 = vmatpush1.msra.mxu0 %v1091
      %1095 = vmatprep.subr.mxu0 0.0
      %1096 = vmatpush1.msra.mxu0 0.0
      %1097 = vmatprep.subr.mxu0 0.0
      %1098 = vmatpush1.msra.mxu0 0.0
      %1099 = vmatprep.subr.mxu0 0.0
      %1100 = vmatpush1.msra.mxu0 0.0
      %1101 = vmatprep.subr.mxu0 0.0
      %1102 = vmatpush1.msra.mxu0 0.0
      %1103 = vmatprep.subr.mxu0 0.0
      %1104 = vmatpush1.msra.mxu0 0.0
      %1105 = vmatprep.subr.mxu0 0.0
      %1106 = vmatpush1.msra.mxu0 0.0
      %1107 = vmatprep.subr.mxu0 0.0
      %1108 = vmatpush1.msra.mxu0 0.0
      %1109 = vmatprep.subr.mxu0 0.0
      %1110 = vmatpush1.msra.mxu0 0.0
      %1111 = vmatprep.subr.mxu0 0.0
      %1112 = vmatpush1.msra.mxu0 0.0
      %1113 = vmatprep.subr.mxu0 0.0
      %1114 = vmatpush1.msra.mxu0 0.0
      %1115 = vmatprep.subr.mxu0 0.0
      %1116 = vmatpush1.msra.mxu0 0.0
      %1117 = vmatprep.subr.mxu0 0.0
      %1118 = vmatpush1.msra.mxu0 0.0
      %1119 = vmatprep.subr.mxu0 0.0
      %1120 = vmatpush1.msra.mxu0 0.0
      %1121 = vmatprep.subr.mxu0 0.0
      %1122 = vmatpush1.msra.mxu0 0.0
      %1123 = vmatprep.subr.mxu0 0.0
      %1124 = vmatpush1.msra.mxu0 0.0
      %1125 = vmatprep.subr.mxu0 0.0
      %1126 = vmatpush1.msra.mxu0 0.0
      %1127 = vmatprep.subr.mxu0 0.0
      %1128 = vmatpush1.msra.mxu0 0.0
      %1129 = vmatprep.subr.mxu0 0.0
      %1130 = vmatpush1.msra.mxu0 0.0
      %1131 = vmatprep.subr.mxu0 0.0
      %1132 = vmatpush1.msra.mxu0 0.0
      %1133 = vmatprep.subr.mxu0 0.0
      %1134 = vmatpush1.msra.mxu0 0.0
      %1135 = vmatprep.subr.mxu0 0.0
      %1136 = vmatpush1.msra.mxu0 0.0
      %1137 = vmatprep.subr.mxu0 0.0
      %1138 = vmatpush1.msra.mxu0 0.0
      %1139 = vmatprep.subr.mxu0 0.0
      %1140 = vmatpush1.msra.mxu0 0.0
      %1141 = vmatprep.subr.mxu0 0.0
      %1142 = vmatpush1.msra.mxu0 0.0
      %1143 = vmatprep.subr.mxu0 0.0
      %1144 = vmatpush1.msra.mxu0 0.0
      %1145 = vmatprep.subr.mxu0 0.0
      %1146 = vmatpush1.msra.mxu0 0.0
      %1147 = vmatprep.subr.mxu0 0.0
      %1148 = vmatpush1.msra.mxu0 0.0
      %1149 = vmatprep.subr.mxu0 0.0
      %1150 = vmatpush1.msra.mxu0 0.0
      %1151 = vmatprep.subr.mxu0 0.0
      %1152 = vmatpush1.msra.mxu0 0.0
      %1153 = vmatprep.subr.mxu0 0.0
      %1154 = vmatpush1.msra.mxu0 0.0
      %1155 = vmatprep.subr.mxu0 0.0
      %1156 = vmatpush1.msra.mxu0 0.0
      %1157 = vmatprep.mubr.f32.mxu0 0.0
      %1158 = vmatmul.mubr.f32.gmra.mrb[0].mxu0 %v995
      %v1159 = vpop.f32.mrb[0].mxu0
      %v1160 = vadd.f32 0.0, %v1159
      %v1161 = vpop.f32.mrb[0].mxu0
      %1162 = vmatprep.mubr.f32.mxu0 0.0
      %1163 = vmatmul.mubr.f32.gmra.mrb[0].mxu0 %v998
      %v1164 = vpop.f32.mrb[0].mxu0
      %v1165 = vadd.f32 0.0, %v1164
      %v1166 = vpop.f32.mrb[0].mxu0
      %1167 = vmatprep.mubr.f32.mxu0 0.0
      %1168 = vmatmul.mubr.f32.gmra.mrb[0].mxu0 %v1001
      %v1169 = vpop.f32.mrb[0].mxu0
      %v1170 = vadd.f32 0.0, %v1169
      %v1171 = vpop.f32.mrb[0].mxu0
      %1172 = vmatprep.mubr.f32.mxu0 0.0
      %1173 = vmatmul.mubr.f32.gmra.mrb[0].mxu0 %v1004
      %v1174 = vpop.f32.mrb[0].mxu0
      %v1175 = vadd.f32 0.0, %v1174
      %v1176 = vpop.f32.mrb[0].mxu0
      %1177 = vmatprep.mubr.f32.mxu0 0.0
      %1178 = vmatmul.mubr.f32.gmra.mrb[0].mxu0 %v1007
      %v1179 = vpop.f32.mrb[0].mxu0
      %v1180 = vadd.f32 0.0, %v1179
      %v1181 = vpop.f32.mrb[0].mxu0
      %1182 = vmatprep.mubr.f32.mxu0 0.0
      %1183 = vmatmul.mubr.f32.gmra.mrb[0].mxu0 %v1010
      %v1184 = vpop.f32.mrb[0].mxu0
      %v1185 = vadd.f32 0.0, %v1184
      %v1186 = vpop.f32.mrb[0].mxu0
      %1187 = vmatprep.mubr.f32.mxu0 0.0
      %1188 = vmatmul.mubr.f32.gmra.mrb[0].mxu0 %v1013
      %v1189 = vpop.f32.mrb[0].mxu0
      %v1190 = vadd.f32 0.0, %v1189
      %v1191 = vpop.f32.mrb[0].mxu0
      %1192 = vmatprep.mubr.f32.mxu0 0.0
      %1193 = vmatmul.mubr.f32.gmra.mrb[0].mxu0 %v1016
      %v1194 = vpop.f32.mrb[0].mxu0
      %v1195 = vadd.f32 0.0, %v1194
      %v1196 = vpop.f32.mrb[0].mxu0
      %1197 = vmatprep.mubr.f32.mxu0 0.0
      %1198 = vmatmul.mubr.f32.gmra.mrb[0].mxu0 %v1019
      %v1199 = vpop.f32.mrb[0].mxu0
      %v1200 = vadd.f32 0.0, %v1199
      %v1201 = vpop.f32.mrb[0].mxu0
      %1202 = vmatprep.mubr.f32.mxu0 0.0
      %1203 = vmatmul.mubr.f32.gmra.mrb[0].mxu0 %v1022
      %v1204 = vpop.f32.mrb[0].mxu0
      %v1205 = vadd.f32 0.0, %v1204
      %v1206 = vpop.f32.mrb[0].mxu0
      %1207 = vmatprep.mubr.f32.mxu0 0.0
      %1208 = vmatmul.mubr.f32.gmra.mrb[0].mxu0 %v1025
      %v1209 = vpop.f32.mrb[0].mxu0
      %v1210 = vadd.f32 0.0, %v1209
      %v1211 = vpop.f32.mrb[0].mxu0
      %1212 = vmatprep.mubr.f32.mxu0 0.0
      %1213 = vmatmul.mubr.f32.gmra.mrb[0].mxu0 %v1028
      %v1214 = vpop.f32.mrb[0].mxu0
      %v1215 = vadd.f32 0.0, %v1214
      %v1216 = vpop.f32.mrb[0].mxu0
      %1217 = vmatprep.mubr.f32.mxu0 0.0
      %1218 = vmatmul.mubr.f32.gmra.mrb[0].mxu0 %v1031
      %v1219 = vpop.f32.mrb[0].mxu0
      %v1220 = vadd.f32 0.0, %v1219
      %v1221 = vpop.f32.mrb[0].mxu0
      %1222 = vmatprep.mubr.f32.mxu0 0.0
      %1223 = vmatmul.mubr.f32.gmra.mrb[0].mxu0 %v1034
      %v1224 = vpop.f32.mrb[0].mxu0
      %v1225 = vadd.f32 0.0, %v1224
      %v1226 = vpop.f32.mrb[0].mxu0
      %1227 = vmatprep.mubr.f32.mxu0 0.0
      %1228 = vmatmul.mubr.f32.gmra.mrb[0].mxu0 %v1037
      %v1229 = vpop.f32.mrb[0].mxu0
      %v1230 = vadd.f32 0.0, %v1229
      %v1231 = vpop.f32.mrb[0].mxu0
      %1232 = vmatprep.mubr.f32.mxu0 0.0
      %1233 = vmatmul.mubr.f32.gmra.mrb[0].mxu0 %v1040
      %v1234 = vpop.f32.mrb[0].mxu0
      %v1235 = vadd.f32 0.0, %v1234
      %v1236 = vpop.f32.mrb[0].mxu0
      %1237 = vmatprep.mubr.f32.mxu0 0.0
      %1238 = vmatmul.mubr.f32.gmra.mrb[0].mxu0 %v1043
      %v1239 = vpop.f32.mrb[0].mxu0
      %v1240 = vadd.f32 0.0, %v1239
      %v1241 = vpop.f32.mrb[0].mxu0
      %1242 = vmatprep.mubr.f32.mxu0 0.0
      %1243 = vmatmul.mubr.f32.gmra.mrb[0].mxu0 %v1046
      %v1244 = vpop.f32.mrb[0].mxu0
      %v1245 = vadd.f32 0.0, %v1244
      %v1246 = vpop.f32.mrb[0].mxu0
      %1247 = vmatprep.mubr.f32.mxu0 0.0
      %1248 = vmatmul.mubr.f32.gmra.mrb[0].mxu0 %v1049
      %v1249 = vpop.f32.mrb[0].mxu0
      %v1250 = vadd.f32 0.0, %v1249
      %v1251 = vpop.f32.mrb[0].mxu0
      %1252 = vmatprep.mubr.f32.mxu0 0.0
      %1253 = vmatmul.mubr.f32.gmra.mrb[0].mxu0 %v1052
      %v1254 = vpop.f32.mrb[0].mxu0
      %v1255 = vadd.f32 0.0, %v1254
      %v1256 = vpop.f32.mrb[0].mxu0
      %1257 = vmatprep.mubr.f32.mxu0 0.0
      %1258 = vmatmul.mubr.f32.gmra.mrb[0].mxu0 %v1055
      %v1259 = vpop.f32.mrb[0].mxu0
      %v1260 = vadd.f32 0.0, %v1259
      %v1261 = vpop.f32.mrb[0].mxu0
      %1262 = vmatprep.mubr.f32.mxu0 0.0
      %1263 = vmatmul.mubr.f32.gmra.mrb[0].mxu0 %v1058
      %v1264 = vpop.f32.mrb[0].mxu0
      %v1265 = vadd.f32 0.0, %v1264
      %v1266 = vpop.f32.mrb[0].mxu0
      %1267 = vmatprep.mubr.f32.mxu0 0.0
      %1268 = vmatmul.mubr.f32.gmra.mrb[0].mxu0 %v1061
      %v1269 = vpop.f32.mrb[0].mxu0
      %v1270 = vadd.f32 0.0, %v1269
      %v1271 = vpop.f32.mrb[0].mxu0
      %1272 = vmatprep.mubr.f32.mxu0 0.0
      %1273 = vmatmul.mubr.f32.gmra.mrb[0].mxu0 %v1064
      %v1274 = vpop.f32.mrb[0].mxu0
      %v1275 = vadd.f32 0.0, %v1274
      %v1276 = vpop.f32.mrb[0].mxu0
      %1277 = vmatprep.mubr.f32.mxu0 0.0
      %1278 = vmatmul.mubr.f32.gmra.mrb[0].mxu0 %v1067
      %v1279 = vpop.f32.mrb[0].mxu0
      %v1280 = vadd.f32 0.0, %v1279
      %v1281 = vpop.f32.mrb[0].mxu0
      %1282 = vmatprep.mubr.f32.mxu0 0.0
      %1283 = vmatmul.mubr.f32.gmra.mrb[0].mxu0 %v1070
      %v1284 = vpop.f32.mrb[0].mxu0
      %v1285 = vadd.f32 0.0, %v1284
      %v1286 = vpop.f32.mrb[0].mxu0
      %1287 = vmatprep.mubr.f32.mxu0 0.0
      %1288 = vmatmul.mubr.f32.gmra.mrb[0].mxu0 %v1073
      %v1289 = vpop.f32.mrb[0].mxu0
      %v1290 = vadd.f32 0.0, %v1289
      %v1291 = vpop.f32.mrb[0].mxu0
      %1292 = vmatprep.mubr.f32.mxu0 0.0
      %1293 = vmatmul.mubr.f32.gmra.mrb[0].mxu0 %v1076
      %v1294 = vpop.f32.mrb[0].mxu0
      %v1295 = vadd.f32 0.0, %v1294
      %v1296 = vpop.f32.mrb[0].mxu0
      %1297 = vmatprep.mubr.f32.mxu0 0.0
      %1298 = vmatmul.mubr.f32.gmra.mrb[0].mxu0 %v1079
      %v1299 = vpop.f32.mrb[0].mxu0
      %v1300 = vadd.f32 0.0, %v1299
      %v1301 = vpop.f32.mrb[0].mxu0
      %1302 = vmatprep.mubr.f32.mxu0 0.0
      %1303 = vmatmul.mubr.f32.gmra.mrb[0].mxu0 %v1082
      %v1304 = vpop.f32.mrb[0].mxu0
      %v1305 = vadd.f32 0.0, %v1304
      %v1306 = vpop.f32.mrb[0].mxu0
      %1307 = vmatprep.mubr.f32.mxu0 0.0
      %1308 = vmatmul.mubr.f32.gmra.mrb[0].mxu0 %v1085
      %v1309 = vpop.f32.mrb[0].mxu0
      %v1310 = vadd.f32 0.0, %v1309
      %v1311 = vpop.f32.mrb[0].mxu0
      %1312 = vmatprep.mubr.f32.mxu0 0.0
      %1313 = vmatmul.mubr.f32.gmra.mrb[0].mxu0 %v1088
      %v1314 = vpop.f32.mrb[0].mxu0
      %v1315 = vadd.f32 0.0, %v1314
      %v1316 = vpop.f32.mrb[0].mxu0
      %1317 = vdwg.mxu0
      %v1318 = vadd.f32 %v928, %v1160
      %v1319 = vadd.f32 %v929, %v1165
      %v1320 = vadd.f32 %v930, %v1170
      %v1321 = vadd.f32 %v931, %v1175
      %v1322 = vadd.f32 %v932, %v1180
      %v1323 = vadd.f32 %v933, %v1185
      %v1324 = vadd.f32 %v934, %v1190
      %v1325 = vadd.f32 %v935, %v1195
      %v1326 = vadd.f32 %v936, %v1200
      %v1327 = vadd.f32 %v937, %v1205
      %v1328 = vadd.f32 %v938, %v1210
      %v1329 = vadd.f32 %v939, %v1215
      %v1330 = vadd.f32 %v940, %v1220
      %v1331 = vadd.f32 %v941, %v1225
      %v1332 = vadd.f32 %v942, %v1230
      %v1333 = vadd.f32 %v943, %v1235
      %v1334 = vadd.f32 %v944, %v1240
      %v1335 = vadd.f32 %v945, %v1245
      %v1336 = vadd.f32 %v946, %v1250
      %v1337 = vadd.f32 %v947, %v1255
      %v1338 = vadd.f32 %v948, %v1260
      %v1339 = vadd.f32 %v949, %v1265
      %v1340 = vadd.f32 %v950, %v1270
      %v1341 = vadd.f32 %v951, %v1275
      %v1342 = vadd.f32 %v952, %v1280
      %v1343 = vadd.f32 %v953, %v1285
      %v1344 = vadd.f32 %v954, %v1290
      %v1345 = vadd.f32 %v955, %v1295
      %v1346 = vadd.f32 %v956, %v1300
      %v1347 = vadd.f32 %v957, %v1305
      %v1348 = vadd.f32 %v958, %v1310
      %v1349 = vadd.f32 %v959, %v1315
      %s1350 = scalar_lea.vmem %s165, 24
      %v1351 = vld [vmem:[%s1350] sm:$0xff]
      %v1352 = vld [vmem:[%s1350 + $0x8] sm:$0xff]
      %v1353 = vld [vmem:[%s1350 + $0x18] sm:$0xff]
      %v1354 = vld [vmem:[%s1350 + $0x20] sm:$0xff]
      %v1355 = vld [vmem:[%s1350 + $0x30] sm:$0xff]
      %v1356 = vld [vmem:[%s1350 + $0x38] sm:$0xff]
      %v1357 = vld [vmem:[%s1350 + $0x48] sm:$0xff]
      %v1358 = vld [vmem:[%s1350 + $0x50] sm:$0xff]
      %v1359 = vld [vmem:[%s1350 + $0x60] sm:$0xff]
      %v1360 = vld [vmem:[%s1350 + $0x68] sm:$0xff]
      %v1361 = vld [vmem:[%s1350 + $0x78] sm:$0xff]
      %v1362 = vld [vmem:[%s1350 + $0x80] sm:$0xff]
      %v1363 = vld [vmem:[%s1350 + $0x90] sm:$0xff]
      %v1364 = vld [vmem:[%s1350 + $0x98] sm:$0xff]
      %v1365 = vld [vmem:[%s1350 + $0xa8] sm:$0xff]
      %v1366 = vld [vmem:[%s1350 + $0xb0] sm:$0xff]
      %v1367 = vld [vmem:[%s1350 + $0xc0] sm:$0xff]
      %v1368 = vld [vmem:[%s1350 + $0xc8] sm:$0xff]
      %v1369 = vld [vmem:[%s1350 + $0xd8] sm:$0xff]
      %v1370 = vld [vmem:[%s1350 + $0xe0] sm:$0xff]
      %v1371 = vld [vmem:[%s1350 + $0xf0] sm:$0xff]
      %v1372 = vld [vmem:[%s1350 + $0xf8] sm:$0xff]
      %v1373 = vld [vmem:[%s1350 + $0x108] sm:$0xff]
      %v1374 = vld [vmem:[%s1350 + $0x110] sm:$0xff]
      %v1375 = vld [vmem:[%s1350 + $0x120] sm:$0xff]
      %v1376 = vld [vmem:[%s1350 + $0x128] sm:$0xff]
      %v1377 = vld [vmem:[%s1350 + $0x138] sm:$0xff]
      %v1378 = vld [vmem:[%s1350 + $0x140] sm:$0xff]
      %v1379 = vld [vmem:[%s1350 + $0x150] sm:$0xff]
      %v1380 = vld [vmem:[%s1350 + $0x158] sm:$0xff]
      %v1381 = vld [vmem:[%s1350 + $0x168] sm:$0xff]
      %v1382 = vld [vmem:[%s1350 + $0x170] sm:$0xff]
      %s1383 = scalar_lea.vmem %s1, 12
      %v1384 = vld [vmem:[%s1383] sm:$0xf]
      %v1386 = vsel %vm212, %v1351, 0
      %v1389 = vsel %vm212, %v1352, 0
      %v1392 = vsel %vm212, %v1353, 0
      %v1395 = vsel %vm212, %v1354, 0
      %v1398 = vsel %vm212, %v1355, 0
      %v1401 = vsel %vm212, %v1356, 0
      %v1404 = vsel %vm212, %v1357, 0
      %v1407 = vsel %vm212, %v1358, 0
      %v1410 = vsel %vm212, %v1359, 0
      %v1413 = vsel %vm212, %v1360, 0
      %v1416 = vsel %vm212, %v1361, 0
      %v1419 = vsel %vm212, %v1362, 0
      %v1422 = vsel %vm212, %v1363, 0
      %v1425 = vsel %vm212, %v1364, 0
      %v1428 = vsel %vm212, %v1365, 0
      %v1431 = vsel %vm212, %v1366, 0
      %v1434 = vsel %vm212, %v1367, 0
      %v1437 = vsel %vm212, %v1368, 0
      %v1440 = vsel %vm212, %v1369, 0
      %v1443 = vsel %vm212, %v1370, 0
      %v1446 = vsel %vm212, %v1371, 0
      %v1449 = vsel %vm212, %v1372, 0
      %v1452 = vsel %vm212, %v1373, 0
      %v1455 = vsel %vm212, %v1374, 0
      %v1458 = vsel %vm212, %v1375, 0
      %v1461 = vsel %vm212, %v1376, 0
      %v1464 = vsel %vm212, %v1377, 0
      %v1467 = vsel %vm212, %v1378, 0
      %v1470 = vsel %vm212, %v1379, 0
      %v1473 = vsel %vm212, %v1380, 0
      %v1476 = vsel %vm212, %v1381, 0
      %v1479 = vsel %vm212, %v1382, 0
      %v1482 = vsel %vm309, %v1384, 0
      %1484 = vmatprep.subr.mxu0 0.0
      %1485 = vmatpush1.msra.mxu0 %v1482
      %1486 = vmatprep.subr.mxu0 0.0
      %1487 = vmatpush1.msra.mxu0 0.0
      %1488 = vmatprep.subr.mxu0 0.0
      %1489 = vmatpush1.msra.mxu0 0.0
      %1490 = vmatprep.subr.mxu0 0.0
      %1491 = vmatpush1.msra.mxu0 0.0
      %1492 = vmatprep.subr.mxu0 0.0
      %1493 = vmatpush1.msra.mxu0 0.0
      %1494 = vmatprep.subr.mxu0 0.0
      %1495 = vmatpush1.msra.mxu0 0.0
      %1496 = vmatprep.subr.mxu0 0.0
      %1497 = vmatpush1.msra.mxu0 0.0
      %1498 = vmatprep.subr.mxu0 0.0
      %1499 = vmatpush1.msra.mxu0 0.0
      %1500 = vmatprep.subr.mxu0 0.0
      %1501 = vmatpush1.msra.mxu0 0.0
      %1502 = vmatprep.subr.mxu0 0.0
      %1503 = vmatpush1.msra.mxu0 0.0
      %1504 = vmatprep.subr.mxu0 0.0
      %1505 = vmatpush1.msra.mxu0 0.0
      %1506 = vmatprep.subr.mxu0 0.0
      %1507 = vmatpush1.msra.mxu0 0.0
      %1508 = vmatprep.subr.mxu0 0.0
      %1509 = vmatpush1.msra.mxu0 0.0
      %1510 = vmatprep.subr.mxu0 0.0
      %1511 = vmatpush1.msra.mxu0 0.0
      %1512 = vmatprep.subr.mxu0 0.0
      %1513 = vmatpush1.msra.mxu0 0.0
      %1514 = vmatprep.subr.mxu0 0.0
      %1515 = vmatpush1.msra.mxu0 0.0
      %1516 = vmatprep.subr.mxu0 0.0
      %1517 = vmatpush1.msra.mxu0 0.0
      %1518 = vmatprep.subr.mxu0 0.0
      %1519 = vmatpush1.msra.mxu0 0.0
      %1520 = vmatprep.subr.mxu0 0.0
      %1521 = vmatpush1.msra.mxu0 0.0
      %1522 = vmatprep.subr.mxu0 0.0
      %1523 = vmatpush1.msra.mxu0 0.0
      %1524 = vmatprep.subr.mxu0 0.0
      %1525 = vmatpush1.msra.mxu0 0.0
      %1526 = vmatprep.subr.mxu0 0.0
      %1527 = vmatpush1.msra.mxu0 0.0
      %1528 = vmatprep.subr.mxu0 0.0
      %1529 = vmatpush1.msra.mxu0 0.0
      %1530 = vmatprep.subr.mxu0 0.0
      %1531 = vmatpush1.msra.mxu0 0.0
      %1532 = vmatprep.subr.mxu0 0.0
      %1533 = vmatpush1.msra.mxu0 0.0
      %1534 = vmatprep.subr.mxu0 0.0
      %1535 = vmatpush1.msra.mxu0 0.0
      %1536 = vmatprep.subr.mxu0 0.0
      %1537 = vmatpush1.msra.mxu0 0.0
      %1538 = vmatprep.subr.mxu0 0.0
      %1539 = vmatpush1.msra.mxu0 0.0
      %1540 = vmatprep.subr.mxu0 0.0
      %1541 = vmatpush1.msra.mxu0 0.0
      %1542 = vmatprep.subr.mxu0 0.0
      %1543 = vmatpush1.msra.mxu0 0.0
      %1544 = vmatprep.subr.mxu0 0.0
      %1545 = vmatpush1.msra.mxu0 0.0
      %1546 = vmatprep.subr.mxu0 0.0
      %1547 = vmatpush1.msra.mxu0 0.0
      %1548 = vmatprep.mubr.f32.mxu0 0.0
      %1549 = vmatmul.mubr.f32.gmra.mrb[0].mxu0 %v1386
      %v1550 = vpop.f32.mrb[0].mxu0
      %v1551 = vadd.f32 0.0, %v1550
      %v1552 = vpop.f32.mrb[0].mxu0
      %1553 = vmatprep.mubr.f32.mxu0 0.0
      %1554 = vmatmul.mubr.f32.gmra.mrb[0].mxu0 %v1389
      %v1555 = vpop.f32.mrb[0].mxu0
      %v1556 = vadd.f32 0.0, %v1555
      %v1557 = vpop.f32.mrb[0].mxu0
      %1558 = vmatprep.mubr.f32.mxu0 0.0
      %1559 = vmatmul.mubr.f32.gmra.mrb[0].mxu0 %v1392
      %v1560 = vpop.f32.mrb[0].mxu0
      %v1561 = vadd.f32 0.0, %v1560
      %v1562 = vpop.f32.mrb[0].mxu0
      %1563 = vmatprep.mubr.f32.mxu0 0.0
      %1564 = vmatmul.mubr.f32.gmra.mrb[0].mxu0 %v1395
      %v1565 = vpop.f32.mrb[0].mxu0
      %v1566 = vadd.f32 0.0, %v1565
      %v1567 = vpop.f32.mrb[0].mxu0
      %1568 = vmatprep.mubr.f32.mxu0 0.0
      %1569 = vmatmul.mubr.f32.gmra.mrb[0].mxu0 %v1398
      %v1570 = vpop.f32.mrb[0].mxu0
      %v1571 = vadd.f32 0.0, %v1570
      %v1572 = vpop.f32.mrb[0].mxu0
      %1573 = vmatprep.mubr.f32.mxu0 0.0
      %1574 = vmatmul.mubr.f32.gmra.mrb[0].mxu0 %v1401
      %v1575 = vpop.f32.mrb[0].mxu0
      %v1576 = vadd.f32 0.0, %v1575
      %v1577 = vpop.f32.mrb[0].mxu0
      %1578 = vmatprep.mubr.f32.mxu0 0.0
      %1579 = vmatmul.mubr.f32.gmra.mrb[0].mxu0 %v1404
      %v1580 = vpop.f32.mrb[0].mxu0
      %v1581 = vadd.f32 0.0, %v1580
      %v1582 = vpop.f32.mrb[0].mxu0
      %1583 = vmatprep.mubr.f32.mxu0 0.0
      %1584 = vmatmul.mubr.f32.gmra.mrb[0].mxu0 %v1407
      %v1585 = vpop.f32.mrb[0].mxu0
      %v1586 = vadd.f32 0.0, %v1585
      %v1587 = vpop.f32.mrb[0].mxu0
      %1588 = vmatprep.mubr.f32.mxu0 0.0
      %1589 = vmatmul.mubr.f32.gmra.mrb[0].mxu0 %v1410
      %v1590 = vpop.f32.mrb[0].mxu0
      %v1591 = vadd.f32 0.0, %v1590
      %v1592 = vpop.f32.mrb[0].mxu0
      %1593 = vmatprep.mubr.f32.mxu0 0.0
      %1594 = vmatmul.mubr.f32.gmra.mrb[0].mxu0 %v1413
      %v1595 = vpop.f32.mrb[0].mxu0
      %v1596 = vadd.f32 0.0, %v1595
      %v1597 = vpop.f32.mrb[0].mxu0
      %1598 = vmatprep.mubr.f32.mxu0 0.0
      %1599 = vmatmul.mubr.f32.gmra.mrb[0].mxu0 %v1416
      %v1600 = vpop.f32.mrb[0].mxu0
      %v1601 = vadd.f32 0.0, %v1600
      %v1602 = vpop.f32.mrb[0].mxu0
      %1603 = vmatprep.mubr.f32.mxu0 0.0
      %1604 = vmatmul.mubr.f32.gmra.mrb[0].mxu0 %v1419
      %v1605 = vpop.f32.mrb[0].mxu0
      %v1606 = vadd.f32 0.0, %v1605
      %v1607 = vpop.f32.mrb[0].mxu0
      %1608 = vmatprep.mubr.f32.mxu0 0.0
      %1609 = vmatmul.mubr.f32.gmra.mrb[0].mxu0 %v1422
      %v1610 = vpop.f32.mrb[0].mxu0
      %v1611 = vadd.f32 0.0, %v1610
      %v1612 = vpop.f32.mrb[0].mxu0
      %1613 = vmatprep.mubr.f32.mxu0 0.0
      %1614 = vmatmul.mubr.f32.gmra.mrb[0].mxu0 %v1425
      %v1615 = vpop.f32.mrb[0].mxu0
      %v1616 = vadd.f32 0.0, %v1615
      %v1617 = vpop.f32.mrb[0].mxu0
      %1618 = vmatprep.mubr.f32.mxu0 0.0
      %1619 = vmatmul.mubr.f32.gmra.mrb[0].mxu0 %v1428
      %v1620 = vpop.f32.mrb[0].mxu0
      %v1621 = vadd.f32 0.0, %v1620
      %v1622 = vpop.f32.mrb[0].mxu0
      %1623 = vmatprep.mubr.f32.mxu0 0.0
      %1624 = vmatmul.mubr.f32.gmra.mrb[0].mxu0 %v1431
      %v1625 = vpop.f32.mrb[0].mxu0
      %v1626 = vadd.f32 0.0, %v1625
      %v1627 = vpop.f32.mrb[0].mxu0
      %1628 = vmatprep.mubr.f32.mxu0 0.0
      %1629 = vmatmul.mubr.f32.gmra.mrb[0].mxu0 %v1434
      %v1630 = vpop.f32.mrb[0].mxu0
      %v1631 = vadd.f32 0.0, %v1630
      %v1632 = vpop.f32.mrb[0].mxu0
      %1633 = vmatprep.mubr.f32.mxu0 0.0
      %1634 = vmatmul.mubr.f32.gmra.mrb[0].mxu0 %v1437
      %v1635 = vpop.f32.mrb[0].mxu0
      %v1636 = vadd.f32 0.0, %v1635
      %v1637 = vpop.f32.mrb[0].mxu0
      %1638 = vmatprep.mubr.f32.mxu0 0.0
      %1639 = vmatmul.mubr.f32.gmra.mrb[0].mxu0 %v1440
      %v1640 = vpop.f32.mrb[0].mxu0
      %v1641 = vadd.f32 0.0, %v1640
      %v1642 = vpop.f32.mrb[0].mxu0
      %1643 = vmatprep.mubr.f32.mxu0 0.0
      %1644 = vmatmul.mubr.f32.gmra.mrb[0].mxu0 %v1443
      %v1645 = vpop.f32.mrb[0].mxu0
      %v1646 = vadd.f32 0.0, %v1645
      %v1647 = vpop.f32.mrb[0].mxu0
      %1648 = vmatprep.mubr.f32.mxu0 0.0
      %1649 = vmatmul.mubr.f32.gmra.mrb[0].mxu0 %v1446
      %v1650 = vpop.f32.mrb[0].mxu0
      %v1651 = vadd.f32 0.0, %v1650
      %v1652 = vpop.f32.mrb[0].mxu0
      %1653 = vmatprep.mubr.f32.mxu0 0.0
      %1654 = vmatmul.mubr.f32.gmra.mrb[0].mxu0 %v1449
      %v1655 = vpop.f32.mrb[0].mxu0
      %v1656 = vadd.f32 0.0, %v1655
      %v1657 = vpop.f32.mrb[0].mxu0
      %1658 = vmatprep.mubr.f32.mxu0 0.0
      %1659 = vmatmul.mubr.f32.gmra.mrb[0].mxu0 %v1452
      %v1660 = vpop.f32.mrb[0].mxu0
      %v1661 = vadd.f32 0.0, %v1660
      %v1662 = vpop.f32.mrb[0].mxu0
      %1663 = vmatprep.mubr.f32.mxu0 0.0
      %1664 = vmatmul.mubr.f32.gmra.mrb[0].mxu0 %v1455
      %v1665 = vpop.f32.mrb[0].mxu0
      %v1666 = vadd.f32 0.0, %v1665
      %v1667 = vpop.f32.mrb[0].mxu0
      %1668 = vmatprep.mubr.f32.mxu0 0.0
      %1669 = vmatmul.mubr.f32.gmra.mrb[0].mxu0 %v1458
      %v1670 = vpop.f32.mrb[0].mxu0
      %v1671 = vadd.f32 0.0, %v1670
      %v1672 = vpop.f32.mrb[0].mxu0
      %1673 = vmatprep.mubr.f32.mxu0 0.0
      %1674 = vmatmul.mubr.f32.gmra.mrb[0].mxu0 %v1461
      %v1675 = vpop.f32.mrb[0].mxu0
      %v1676 = vadd.f32 0.0, %v1675
      %v1677 = vpop.f32.mrb[0].mxu0
      %1678 = vmatprep.mubr.f32.mxu0 0.0
      %1679 = vmatmul.mubr.f32.gmra.mrb[0].mxu0 %v1464
      %v1680 = vpop.f32.mrb[0].mxu0
      %v1681 = vadd.f32 0.0, %v1680
      %v1682 = vpop.f32.mrb[0].mxu0
      %1683 = vmatprep.mubr.f32.mxu0 0.0
      %1684 = vmatmul.mubr.f32.gmra.mrb[0].mxu0 %v1467
      %v1685 = vpop.f32.mrb[0].mxu0
      %v1686 = vadd.f32 0.0, %v1685
      %v1687 = vpop.f32.mrb[0].mxu0
      %1688 = vmatprep.mubr.f32.mxu0 0.0
      %1689 = vmatmul.mubr.f32.gmra.mrb[0].mxu0 %v1470
      %v1690 = vpop.f32.mrb[0].mxu0
      %v1691 = vadd.f32 0.0, %v1690
      %v1692 = vpop.f32.mrb[0].mxu0
      %1693 = vmatprep.mubr.f32.mxu0 0.0
      %1694 = vmatmul.mubr.f32.gmra.mrb[0].mxu0 %v1473
      %v1695 = vpop.f32.mrb[0].mxu0
      %v1696 = vadd.f32 0.0, %v1695
      %v1697 = vpop.f32.mrb[0].mxu0
      %1698 = vmatprep.mubr.f32.mxu0 0.0
      %1699 = vmatmul.mubr.f32.gmra.mrb[0].mxu0 %v1476
      %v1700 = vpop.f32.mrb[0].mxu0
      %v1701 = vadd.f32 0.0, %v1700
      %v1702 = vpop.f32.mrb[0].mxu0
      %1703 = vmatprep.mubr.f32.mxu0 0.0
      %1704 = vmatmul.mubr.f32.gmra.mrb[0].mxu0 %v1479
      %v1705 = vpop.f32.mrb[0].mxu0
      %v1706 = vadd.f32 0.0, %v1705
      %v1707 = vpop.f32.mrb[0].mxu0
      %1708 = vdwg.mxu0
      %v1709 = vadd.f32 %v1318, %v1551
      %v1710 = vadd.f32 %v1319, %v1556
      %v1711 = vadd.f32 %v1320, %v1561
      %v1712 = vadd.f32 %v1321, %v1566
      %v1713 = vadd.f32 %v1322, %v1571
      %v1714 = vadd.f32 %v1323, %v1576
      %v1715 = vadd.f32 %v1324, %v1581
      %v1716 = vadd.f32 %v1325, %v1586
      %v1717 = vadd.f32 %v1326, %v1591
      %v1718 = vadd.f32 %v1327, %v1596
      %v1719 = vadd.f32 %v1328, %v1601
      %v1720 = vadd.f32 %v1329, %v1606
      %v1721 = vadd.f32 %v1330, %v1611
      %v1722 = vadd.f32 %v1331, %v1616
      %v1723 = vadd.f32 %v1332, %v1621
      %v1724 = vadd.f32 %v1333, %v1626
      %v1725 = vadd.f32 %v1334, %v1631
      %v1726 = vadd.f32 %v1335, %v1636
      %v1727 = vadd.f32 %v1336, %v1641
      %v1728 = vadd.f32 %v1337, %v1646
      %v1729 = vadd.f32 %v1338, %v1651
      %v1730 = vadd.f32 %v1339, %v1656
      %v1731 = vadd.f32 %v1340, %v1661
      %v1732 = vadd.f32 %v1341, %v1666
      %v1733 = vadd.f32 %v1342, %v1671
      %v1734 = vadd.f32 %v1343, %v1676
      %v1735 = vadd.f32 %v1344, %v1681
      %v1736 = vadd.f32 %v1345, %v1686
      %v1737 = vadd.f32 %v1346, %v1691
      %v1738 = vadd.f32 %v1347, %v1696
      %v1739 = vadd.f32 %v1348, %v1701
      %v1740 = vadd.f32 %v1349, %v1706
      %v1741 = vld [vmem:[%s1350 + $0x1] sm:$0xff]
      %v1742 = vld [vmem:[%s1350 + $0x9] sm:$0xff]
      %v1743 = vld [vmem:[%s1350 + $0x19] sm:$0xff]
      %v1744 = vld [vmem:[%s1350 + $0x21] sm:$0xff]
      %v1745 = vld [vmem:[%s1350 + $0x31] sm:$0xff]
      %v1746 = vld [vmem:[%s1350 + $0x39] sm:$0xff]
      %v1747 = vld [vmem:[%s1350 + $0x49] sm:$0xff]
      %v1748 = vld [vmem:[%s1350 + $0x51] sm:$0xff]
      %v1749 = vld [vmem:[%s1350 + $0x61] sm:$0xff]
      %v1750 = vld [vmem:[%s1350 + $0x69] sm:$0xff]
      %v1751 = vld [vmem:[%s1350 + $0x79] sm:$0xff]
      %v1752 = vld [vmem:[%s1350 + $0x81] sm:$0xff]
      %v1753 = vld [vmem:[%s1350 + $0x91] sm:$0xff]
      %v1754 = vld [vmem:[%s1350 + $0x99] sm:$0xff]
      %v1755 = vld [vmem:[%s1350 + $0xa9] sm:$0xff]
      %v1756 = vld [vmem:[%s1350 + $0xb1] sm:$0xff]
      %v1757 = vld [vmem:[%s1350 + $0xc1] sm:$0xff]
      %v1758 = vld [vmem:[%s1350 + $0xc9] sm:$0xff]
      %v1759 = vld [vmem:[%s1350 + $0xd9] sm:$0xff]
      %v1760 = vld [vmem:[%s1350 + $0xe1] sm:$0xff]
      %v1761 = vld [vmem:[%s1350 + $0xf1] sm:$0xff]
      %v1762 = vld [vmem:[%s1350 + $0xf9] sm:$0xff]
      %v1763 = vld [vmem:[%s1350 + $0x109] sm:$0xff]
      %v1764 = vld [vmem:[%s1350 + $0x111] sm:$0xff]
      %v1765 = vld [vmem:[%s1350 + $0x121] sm:$0xff]
      %v1766 = vld [vmem:[%s1350 + $0x129] sm:$0xff]
      %v1767 = vld [vmem:[%s1350 + $0x139] sm:$0xff]
      %v1768 = vld [vmem:[%s1350 + $0x141] sm:$0xff]
      %v1769 = vld [vmem:[%s1350 + $0x151] sm:$0xff]
      %v1770 = vld [vmem:[%s1350 + $0x159] sm:$0xff]
      %v1771 = vld [vmem:[%s1350 + $0x169] sm:$0xff]
      %v1772 = vld [vmem:[%s1350 + $0x171] sm:$0xff]
      %s1773 = scalar_lea.vmem %s1, 16
      %v1774 = vld [vmem:[%s1773] sm:$0xf]
      %v1776 = vsel %vm212, %v1741, 0
      %v1779 = vsel %vm212, %v1742, 0
      %v1782 = vsel %vm212, %v1743, 0
      %v1785 = vsel %vm212, %v1744, 0
      %v1788 = vsel %vm212, %v1745, 0
      %v1791 = vsel %vm212, %v1746, 0
      %v1794 = vsel %vm212, %v1747, 0
      %v1797 = vsel %vm212, %v1748, 0
      %v1800 = vsel %vm212, %v1749, 0
      %v1803 = vsel %vm212, %v1750, 0
      %v1806 = vsel %vm212, %v1751, 0
      %v1809 = vsel %vm212, %v1752, 0
      %v1812 = vsel %vm212, %v1753, 0
      %v1815 = vsel %vm212, %v1754, 0
      %v1818 = vsel %vm212, %v1755, 0
      %v1821 = vsel %vm212, %v1756, 0
      %v1824 = vsel %vm212, %v1757, 0
      %v1827 = vsel %vm212, %v1758, 0
      %v1830 = vsel %vm212, %v1759, 0
      %v1833 = vsel %vm212, %v1760, 0
      %v1836 = vsel %vm212, %v1761, 0
      %v1839 = vsel %vm212, %v1762, 0
      %v1842 = vsel %vm212, %v1763, 0
      %v1845 = vsel %vm212, %v1764, 0
      %v1848 = vsel %vm212, %v1765, 0
      %v1851 = vsel %vm212, %v1766, 0
      %v1854 = vsel %vm212, %v1767, 0
      %v1857 = vsel %vm212, %v1768, 0
      %v1860 = vsel %vm212, %v1769, 0
      %v1863 = vsel %vm212, %v1770, 0
      %v1866 = vsel %vm212, %v1771, 0
      %v1869 = vsel %vm212, %v1772, 0
      %v1872 = vsel %vm309, %v1774, 0
      %1874 = vmatprep.subr.mxu0 0.0
      %1875 = vmatpush1.msra.mxu0 %v1872
      %1876 = vmatprep.subr.mxu0 0.0
      %1877 = vmatpush1.msra.mxu0 0.0
      %1878 = vmatprep.subr.mxu0 0.0
      %1879 = vmatpush1.msra.mxu0 0.0
      %1880 = vmatprep.subr.mxu0 0.0
      %1881 = vmatpush1.msra.mxu0 0.0
      %1882 = vmatprep.subr.mxu0 0.0
      %1883 = vmatpush1.msra.mxu0 0.0
      %1884 = vmatprep.subr.mxu0 0.0
      %1885 = vmatpush1.msra.mxu0 0.0
      %1886 = vmatprep.subr.mxu0 0.0
      %1887 = vmatpush1.msra.mxu0 0.0
      %1888 = vmatprep.subr.mxu0 0.0
      %1889 = vmatpush1.msra.mxu0 0.0
      %1890 = vmatprep.subr.mxu0 0.0
      %1891 = vmatpush1.msra.mxu0 0.0
      %1892 = vmatprep.subr.mxu0 0.0
      %1893 = vmatpush1.msra.mxu0 0.0
      %1894 = vmatprep.subr.mxu0 0.0
      %1895 = vmatpush1.msra.mxu0 0.0
      %1896 = vmatprep.subr.mxu0 0.0
      %1897 = vmatpush1.msra.mxu0 0.0
      %1898 = vmatprep.subr.mxu0 0.0
      %1899 = vmatpush1.msra.mxu0 0.0
      %1900 = vmatprep.subr.mxu0 0.0
      %1901 = vmatpush1.msra.mxu0 0.0
      %1902 = vmatprep.subr.mxu0 0.0
      %1903 = vmatpush1.msra.mxu0 0.0
      %1904 = vmatprep.subr.mxu0 0.0
      %1905 = vmatpush1.msra.mxu0 0.0
      %1906 = vmatprep.subr.mxu0 0.0
      %1907 = vmatpush1.msra.mxu0 0.0
      %1908 = vmatprep.subr.mxu0 0.0
      %1909 = vmatpush1.msra.mxu0 0.0
      %1910 = vmatprep.subr.mxu0 0.0
      %1911 = vmatpush1.msra.mxu0 0.0
      %1912 = vmatprep.subr.mxu0 0.0
      %1913 = vmatpush1.msra.mxu0 0.0
      %1914 = vmatprep.subr.mxu0 0.0
      %1915 = vmatpush1.msra.mxu0 0.0
      %1916 = vmatprep.subr.mxu0 0.0
      %1917 = vmatpush1.msra.mxu0 0.0
      %1918 = vmatprep.subr.mxu0 0.0
      %1919 = vmatpush1.msra.mxu0 0.0
      %1920 = vmatprep.subr.mxu0 0.0
      %1921 = vmatpush1.msra.mxu0 0.0
      %1922 = vmatprep.subr.mxu0 0.0
      %1923 = vmatpush1.msra.mxu0 0.0
      %1924 = vmatprep.subr.mxu0 0.0
      %1925 = vmatpush1.msra.mxu0 0.0
      %1926 = vmatprep.subr.mxu0 0.0
      %1927 = vmatpush1.msra.mxu0 0.0
      %1928 = vmatprep.subr.mxu0 0.0
      %1929 = vmatpush1.msra.mxu0 0.0
      %1930 = vmatprep.subr.mxu0 0.0
      %1931 = vmatpush1.msra.mxu0 0.0
      %1932 = vmatprep.subr.mxu0 0.0
      %1933 = vmatpush1.msra.mxu0 0.0
      %1934 = vmatprep.subr.mxu0 0.0
      %1935 = vmatpush1.msra.mxu0 0.0
      %1936 = vmatprep.subr.mxu0 0.0
      %1937 = vmatpush1.msra.mxu0 0.0
      %1938 = vmatprep.mubr.f32.mxu0 0.0
      %1939 = vmatmul.mubr.f32.gmra.mrb[0].mxu0 %v1776
      %v1940 = vpop.f32.mrb[0].mxu0
      %v1941 = vadd.f32 0.0, %v1940
      %v1942 = vpop.f32.mrb[0].mxu0
      %1943 = vmatprep.mubr.f32.mxu0 0.0
      %1944 = vmatmul.mubr.f32.gmra.mrb[0].mxu0 %v1779
      %v1945 = vpop.f32.mrb[0].mxu0
      %v1946 = vadd.f32 0.0, %v1945
      %v1947 = vpop.f32.mrb[0].mxu0
      %1948 = vmatprep.mubr.f32.mxu0 0.0
      %1949 = vmatmul.mubr.f32.gmra.mrb[0].mxu0 %v1782
      %v1950 = vpop.f32.mrb[0].mxu0
      %v1951 = vadd.f32 0.0, %v1950
      %v1952 = vpop.f32.mrb[0].mxu0
      %1953 = vmatprep.mubr.f32.mxu0 0.0
      %1954 = vmatmul.mubr.f32.gmra.mrb[0].mxu0 %v1785
      %v1955 = vpop.f32.mrb[0].mxu0
      %v1956 = vadd.f32 0.0, %v1955
      %v1957 = vpop.f32.mrb[0].mxu0
      %1958 = vmatprep.mubr.f32.mxu0 0.0
      %1959 = vmatmul.mubr.f32.gmra.mrb[0].mxu0 %v1788
      %v1960 = vpop.f32.mrb[0].mxu0
      %v1961 = vadd.f32 0.0, %v1960
      %v1962 = vpop.f32.mrb[0].mxu0
      %1963 = vmatprep.mubr.f32.mxu0 0.0
      %1964 = vmatmul.mubr.f32.gmra.mrb[0].mxu0 %v1791
      %v1965 = vpop.f32.mrb[0].mxu0
      %v1966 = vadd.f32 0.0, %v1965
      %v1967 = vpop.f32.mrb[0].mxu0
      %1968 = vmatprep.mubr.f32.mxu0 0.0
      %1969 = vmatmul.mubr.f32.gmra.mrb[0].mxu0 %v1794
      %v1970 = vpop.f32.mrb[0].mxu0
      %v1971 = vadd.f32 0.0, %v1970
      %v1972 = vpop.f32.mrb[0].mxu0
      %1973 = vmatprep.mubr.f32.mxu0 0.0
      %1974 = vmatmul.mubr.f32.gmra.mrb[0].mxu0 %v1797
      %v1975 = vpop.f32.mrb[0].mxu0
      %v1976 = vadd.f32 0.0, %v1975
      %v1977 = vpop.f32.mrb[0].mxu0
      %1978 = vmatprep.mubr.f32.mxu0 0.0
      %1979 = vmatmul.mubr.f32.gmra.mrb[0].mxu0 %v1800
      %v1980 = vpop.f32.mrb[0].mxu0
      %v1981 = vadd.f32 0.0, %v1980
      %v1982 = vpop.f32.mrb[0].mxu0
      %1983 = vmatprep.mubr.f32.mxu0 0.0
      %1984 = vmatmul.mubr.f32.gmra.mrb[0].mxu0 %v1803
      %v1985 = vpop.f32.mrb[0].mxu0
      %v1986 = vadd.f32 0.0, %v1985
      %v1987 = vpop.f32.mrb[0].mxu0
      %1988 = vmatprep.mubr.f32.mxu0 0.0
      %1989 = vmatmul.mubr.f32.gmra.mrb[0].mxu0 %v1806
      %v1990 = vpop.f32.mrb[0].mxu0
      %v1991 = vadd.f32 0.0, %v1990
      %v1992 = vpop.f32.mrb[0].mxu0
      %1993 = vmatprep.mubr.f32.mxu0 0.0
      %1994 = vmatmul.mubr.f32.gmra.mrb[0].mxu0 %v1809
      %v1995 = vpop.f32.mrb[0].mxu0
      %v1996 = vadd.f32 0.0, %v1995
      %v1997 = vpop.f32.mrb[0].mxu0
      %1998 = vmatprep.mubr.f32.mxu0 0.0
      %1999 = vmatmul.mubr.f32.gmra.mrb[0].mxu0 %v1812
      %v2000 = vpop.f32.mrb[0].mxu0
      %v2001 = vadd.f32 0.0, %v2000
      %v2002 = vpop.f32.mrb[0].mxu0
      %2003 = vmatprep.mubr.f32.mxu0 0.0
      %2004 = vmatmul.mubr.f32.gmra.mrb[0].mxu0 %v1815
      %v2005 = vpop.f32.mrb[0].mxu0
      %v2006 = vadd.f32 0.0, %v2005
      %v2007 = vpop.f32.mrb[0].mxu0
      %2008 = vmatprep.mubr.f32.mxu0 0.0
      %2009 = vmatmul.mubr.f32.gmra.mrb[0].mxu0 %v1818
      %v2010 = vpop.f32.mrb[0].mxu0
      %v2011 = vadd.f32 0.0, %v2010
      %v2012 = vpop.f32.mrb[0].mxu0
      %2013 = vmatprep.mubr.f32.mxu0 0.0
      %2014 = vmatmul.mubr.f32.gmra.mrb[0].mxu0 %v1821
      %v2015 = vpop.f32.mrb[0].mxu0
      %v2016 = vadd.f32 0.0, %v2015
      %v2017 = vpop.f32.mrb[0].mxu0
      %2018 = vmatprep.mubr.f32.mxu0 0.0
      %2019 = vmatmul.mubr.f32.gmra.mrb[0].mxu0 %v1824
      %v2020 = vpop.f32.mrb[0].mxu0
      %v2021 = vadd.f32 0.0, %v2020
      %v2022 = vpop.f32.mrb[0].mxu0
      %2023 = vmatprep.mubr.f32.mxu0 0.0
      %2024 = vmatmul.mubr.f32.gmra.mrb[0].mxu0 %v1827
      %v2025 = vpop.f32.mrb[0].mxu0
      %v2026 = vadd.f32 0.0, %v2025
      %v2027 = vpop.f32.mrb[0].mxu0
      %2028 = vmatprep.mubr.f32.mxu0 0.0
      %2029 = vmatmul.mubr.f32.gmra.mrb[0].mxu0 %v1830
      %v2030 = vpop.f32.mrb[0].mxu0
      %v2031 = vadd.f32 0.0, %v2030
      %v2032 = vpop.f32.mrb[0].mxu0
      %2033 = vmatprep.mubr.f32.mxu0 0.0
      %2034 = vmatmul.mubr.f32.gmra.mrb[0].mxu0 %v1833
      %v2035 = vpop.f32.mrb[0].mxu0
      %v2036 = vadd.f32 0.0, %v2035
      %v2037 = vpop.f32.mrb[0].mxu0
      %2038 = vmatprep.mubr.f32.mxu0 0.0
      %2039 = vmatmul.mubr.f32.gmra.mrb[0].mxu0 %v1836
      %v2040 = vpop.f32.mrb[0].mxu0
      %v2041 = vadd.f32 0.0, %v2040
      %v2042 = vpop.f32.mrb[0].mxu0
      %2043 = vmatprep.mubr.f32.mxu0 0.0
      %2044 = vmatmul.mubr.f32.gmra.mrb[0].mxu0 %v1839
      %v2045 = vpop.f32.mrb[0].mxu0
      %v2046 = vadd.f32 0.0, %v2045
      %v2047 = vpop.f32.mrb[0].mxu0
      %2048 = vmatprep.mubr.f32.mxu0 0.0
      %2049 = vmatmul.mubr.f32.gmra.mrb[0].mxu0 %v1842
      %v2050 = vpop.f32.mrb[0].mxu0
      %v2051 = vadd.f32 0.0, %v2050
      %v2052 = vpop.f32.mrb[0].mxu0
      %2053 = vmatprep.mubr.f32.mxu0 0.0
      %2054 = vmatmul.mubr.f32.gmra.mrb[0].mxu0 %v1845
      %v2055 = vpop.f32.mrb[0].mxu0
      %v2056 = vadd.f32 0.0, %v2055
      %v2057 = vpop.f32.mrb[0].mxu0
      %2058 = vmatprep.mubr.f32.mxu0 0.0
      %2059 = vmatmul.mubr.f32.gmra.mrb[0].mxu0 %v1848
      %v2060 = vpop.f32.mrb[0].mxu0
      %v2061 = vadd.f32 0.0, %v2060
      %v2062 = vpop.f32.mrb[0].mxu0
      %2063 = vmatprep.mubr.f32.mxu0 0.0
      %2064 = vmatmul.mubr.f32.gmra.mrb[0].mxu0 %v1851
      %v2065 = vpop.f32.mrb[0].mxu0
      %v2066 = vadd.f32 0.0, %v2065
      %v2067 = vpop.f32.mrb[0].mxu0
      %2068 = vmatprep.mubr.f32.mxu0 0.0
      %2069 = vmatmul.mubr.f32.gmra.mrb[0].mxu0 %v1854
      %v2070 = vpop.f32.mrb[0].mxu0
      %v2071 = vadd.f32 0.0, %v2070
      %v2072 = vpop.f32.mrb[0].mxu0
      %2073 = vmatprep.mubr.f32.mxu0 0.0
      %2074 = vmatmul.mubr.f32.gmra.mrb[0].mxu0 %v1857
      %v2075 = vpop.f32.mrb[0].mxu0
      %v2076 = vadd.f32 0.0, %v2075
      %v2077 = vpop.f32.mrb[0].mxu0
      %2078 = vmatprep.mubr.f32.mxu0 0.0
      %2079 = vmatmul.mubr.f32.gmra.mrb[0].mxu0 %v1860
      %v2080 = vpop.f32.mrb[0].mxu0
      %v2081 = vadd.f32 0.0, %v2080
      %v2082 = vpop.f32.mrb[0].mxu0
      %2083 = vmatprep.mubr.f32.mxu0 0.0
      %2084 = vmatmul.mubr.f32.gmra.mrb[0].mxu0 %v1863
      %v2085 = vpop.f32.mrb[0].mxu0
      %v2086 = vadd.f32 0.0, %v2085
      %v2087 = vpop.f32.mrb[0].mxu0
      %2088 = vmatprep.mubr.f32.mxu0 0.0
      %2089 = vmatmul.mubr.f32.gmra.mrb[0].mxu0 %v1866
      %v2090 = vpop.f32.mrb[0].mxu0
      %v2091 = vadd.f32 0.0, %v2090
      %v2092 = vpop.f32.mrb[0].mxu0
      %2093 = vmatprep.mubr.f32.mxu0 0.0
      %2094 = vmatmul.mubr.f32.gmra.mrb[0].mxu0 %v1869
      %v2095 = vpop.f32.mrb[0].mxu0
      %v2096 = vadd.f32 0.0, %v2095
      %v2097 = vpop.f32.mrb[0].mxu0
      %2098 = vdwg.mxu0
      %v2099 = vadd.f32 %v1709, %v1941
      %v2100 = vadd.f32 %v1710, %v1946
      %v2101 = vadd.f32 %v1711, %v1951
      %v2102 = vadd.f32 %v1712, %v1956
      %v2103 = vadd.f32 %v1713, %v1961
      %v2104 = vadd.f32 %v1714, %v1966
      %v2105 = vadd.f32 %v1715, %v1971
      %v2106 = vadd.f32 %v1716, %v1976
      %v2107 = vadd.f32 %v1717, %v1981
      %v2108 = vadd.f32 %v1718, %v1986
      %v2109 = vadd.f32 %v1719, %v1991
      %v2110 = vadd.f32 %v1720, %v1996
      %v2111 = vadd.f32 %v1721, %v2001
      %v2112 = vadd.f32 %v1722, %v2006
      %v2113 = vadd.f32 %v1723, %v2011
      %v2114 = vadd.f32 %v1724, %v2016
      %v2115 = vadd.f32 %v1725, %v2021
      %v2116 = vadd.f32 %v1726, %v2026
      %v2117 = vadd.f32 %v1727, %v2031
      %v2118 = vadd.f32 %v1728, %v2036
      %v2119 = vadd.f32 %v1729, %v2041
      %v2120 = vadd.f32 %v1730, %v2046
      %v2121 = vadd.f32 %v1731, %v2051
      %v2122 = vadd.f32 %v1732, %v2056
      %v2123 = vadd.f32 %v1733, %v2061
      %v2124 = vadd.f32 %v1734, %v2066
      %v2125 = vadd.f32 %v1735, %v2071
      %v2126 = vadd.f32 %v1736, %v2076
      %v2127 = vadd.f32 %v1737, %v2081
      %v2128 = vadd.f32 %v1738, %v2086
      %v2129 = vadd.f32 %v1739, %v2091
      %v2130 = vadd.f32 %v1740, %v2096
      %v2131 = vld [vmem:[%s1350 + $0x2] sm:$0xff]
      %v2132 = vld [vmem:[%s1350 + $0xa] sm:$0xff]
      %v2133 = vld [vmem:[%s1350 + $0x1a] sm:$0xff]
      %v2134 = vld [vmem:[%s1350 + $0x22] sm:$0xff]
      %v2135 = vld [vmem:[%s1350 + $0x32] sm:$0xff]
      %v2136 = vld [vmem:[%s1350 + $0x3a] sm:$0xff]
      %v2137 = vld [vmem:[%s1350 + $0x4a] sm:$0xff]
      %v2138 = vld [vmem:[%s1350 + $0x52] sm:$0xff]
      %v2139 = vld [vmem:[%s1350 + $0x62] sm:$0xff]
      %v2140 = vld [vmem:[%s1350 + $0x6a] sm:$0xff]
      %v2141 = vld [vmem:[%s1350 + $0x7a] sm:$0xff]
      %v2142 = vld [vmem:[%s1350 + $0x82] sm:$0xff]
      %v2143 = vld [vmem:[%s1350 + $0x92] sm:$0xff]
      %v2144 = vld [vmem:[%s1350 + $0x9a] sm:$0xff]
      %v2145 = vld [vmem:[%s1350 + $0xaa] sm:$0xff]
      %v2146 = vld [vmem:[%s1350 + $0xb2] sm:$0xff]
      %v2147 = vld [vmem:[%s1350 + $0xc2] sm:$0xff]
      %v2148 = vld [vmem:[%s1350 + $0xca] sm:$0xff]
      %v2149 = vld [vmem:[%s1350 + $0xda] sm:$0xff]
      %v2150 = vld [vmem:[%s1350 + $0xe2] sm:$0xff]
      %v2151 = vld [vmem:[%s1350 + $0xf2] sm:$0xff]
      %v2152 = vld [vmem:[%s1350 + $0xfa] sm:$0xff]
      %v2153 = vld [vmem:[%s1350 + $0x10a] sm:$0xff]
      %v2154 = vld [vmem:[%s1350 + $0x112] sm:$0xff]
      %v2155 = vld [vmem:[%s1350 + $0x122] sm:$0xff]
      %v2156 = vld [vmem:[%s1350 + $0x12a] sm:$0xff]
      %v2157 = vld [vmem:[%s1350 + $0x13a] sm:$0xff]
      %v2158 = vld [vmem:[%s1350 + $0x142] sm:$0xff]
      %v2159 = vld [vmem:[%s1350 + $0x152] sm:$0xff]
      %v2160 = vld [vmem:[%s1350 + $0x15a] sm:$0xff]
      %v2161 = vld [vmem:[%s1350 + $0x16a] sm:$0xff]
      %v2162 = vld [vmem:[%s1350 + $0x172] sm:$0xff]
      %s2163 = scalar_lea.vmem %s1, 20
      %v2164 = vld [vmem:[%s2163] sm:$0xf]
      %v2166 = vsel %vm212, %v2131, 0
      %v2169 = vsel %vm212, %v2132, 0
      %v2172 = vsel %vm212, %v2133, 0
      %v2175 = vsel %vm212, %v2134, 0
      %v2178 = vsel %vm212, %v2135, 0
      %v2181 = vsel %vm212, %v2136, 0
      %v2184 = vsel %vm212, %v2137, 0
      %v2187 = vsel %vm212, %v2138, 0
      %v2190 = vsel %vm212, %v2139, 0
      %v2193 = vsel %vm212, %v2140, 0
      %v2196 = vsel %vm212, %v2141, 0
      %v2199 = vsel %vm212, %v2142, 0
      %v2202 = vsel %vm212, %v2143, 0
      %v2205 = vsel %vm212, %v2144, 0
      %v2208 = vsel %vm212, %v2145, 0
      %v2211 = vsel %vm212, %v2146, 0
      %v2214 = vsel %vm212, %v2147, 0
      %v2217 = vsel %vm212, %v2148, 0
      %v2220 = vsel %vm212, %v2149, 0
      %v2223 = vsel %vm212, %v2150, 0
      %v2226 = vsel %vm212, %v2151, 0
      %v2229 = vsel %vm212, %v2152, 0
      %v2232 = vsel %vm212, %v2153, 0
      %v2235 = vsel %vm212, %v2154, 0
      %v2238 = vsel %vm212, %v2155, 0
      %v2241 = vsel %vm212, %v2156, 0
      %v2244 = vsel %vm212, %v2157, 0
      %v2247 = vsel %vm212, %v2158, 0
      %v2250 = vsel %vm212, %v2159, 0
      %v2253 = vsel %vm212, %v2160, 0
      %v2256 = vsel %vm212, %v2161, 0
      %v2259 = vsel %vm212, %v2162, 0
      %v2262 = vsel %vm309, %v2164, 0
      %2264 = vmatprep.subr.mxu0 0.0
      %2265 = vmatpush1.msra.mxu0 %v2262
      %2266 = vmatprep.subr.mxu0 0.0
      %2267 = vmatpush1.msra.mxu0 0.0
      %2268 = vmatprep.subr.mxu0 0.0
      %2269 = vmatpush1.msra.mxu0 0.0
      %2270 = vmatprep.subr.mxu0 0.0
      %2271 = vmatpush1.msra.mxu0 0.0
      %2272 = vmatprep.subr.mxu0 0.0
      %2273 = vmatpush1.msra.mxu0 0.0
      %2274 = vmatprep.subr.mxu0 0.0
      %2275 = vmatpush1.msra.mxu0 0.0
      %2276 = vmatprep.subr.mxu0 0.0
      %2277 = vmatpush1.msra.mxu0 0.0
      %2278 = vmatprep.subr.mxu0 0.0
      %2279 = vmatpush1.msra.mxu0 0.0
      %2280 = vmatprep.subr.mxu0 0.0
      %2281 = vmatpush1.msra.mxu0 0.0
      %2282 = vmatprep.subr.mxu0 0.0
      %2283 = vmatpush1.msra.mxu0 0.0
      %2284 = vmatprep.subr.mxu0 0.0
      %2285 = vmatpush1.msra.mxu0 0.0
      %2286 = vmatprep.subr.mxu0 0.0
      %2287 = vmatpush1.msra.mxu0 0.0
      %2288 = vmatprep.subr.mxu0 0.0
      %2289 = vmatpush1.msra.mxu0 0.0
      %2290 = vmatprep.subr.mxu0 0.0
      %2291 = vmatpush1.msra.mxu0 0.0
      %2292 = vmatprep.subr.mxu0 0.0
      %2293 = vmatpush1.msra.mxu0 0.0
      %2294 = vmatprep.subr.mxu0 0.0
      %2295 = vmatpush1.msra.mxu0 0.0
      %2296 = vmatprep.subr.mxu0 0.0
      %2297 = vmatpush1.msra.mxu0 0.0
      %2298 = vmatprep.subr.mxu0 0.0
      %2299 = vmatpush1.msra.mxu0 0.0
      %2300 = vmatprep.subr.mxu0 0.0
      %2301 = vmatpush1.msra.mxu0 0.0
      %2302 = vmatprep.subr.mxu0 0.0
      %2303 = vmatpush1.msra.mxu0 0.0
      %2304 = vmatprep.subr.mxu0 0.0
      %2305 = vmatpush1.msra.mxu0 0.0
      %2306 = vmatprep.subr.mxu0 0.0
      %2307 = vmatpush1.msra.mxu0 0.0
      %2308 = vmatprep.subr.mxu0 0.0
      %2309 = vmatpush1.msra.mxu0 0.0
      %2310 = vmatprep.subr.mxu0 0.0
      %2311 = vmatpush1.msra.mxu0 0.0
      %2312 = vmatprep.subr.mxu0 0.0
      %2313 = vmatpush1.msra.mxu0 0.0
      %2314 = vmatprep.subr.mxu0 0.0
      %2315 = vmatpush1.msra.mxu0 0.0
      %2316 = vmatprep.subr.mxu0 0.0
      %2317 = vmatpush1.msra.mxu0 0.0
      %2318 = vmatprep.subr.mxu0 0.0
      %2319 = vmatpush1.msra.mxu0 0.0
      %2320 = vmatprep.subr.mxu0 0.0
      %2321 = vmatpush1.msra.mxu0 0.0
      %2322 = vmatprep.subr.mxu0 0.0
      %2323 = vmatpush1.msra.mxu0 0.0
      %2324 = vmatprep.subr.mxu0 0.0
      %2325 = vmatpush1.msra.mxu0 0.0
      %2326 = vmatprep.subr.mxu0 0.0
      %2327 = vmatpush1.msra.mxu0 0.0
      %2328 = vmatprep.mubr.f32.mxu0 0.0
      %2329 = vmatmul.mubr.f32.gmra.mrb[0].mxu0 %v2166
      %v2330 = vpop.f32.mrb[0].mxu0
      %v2331 = vadd.f32 0.0, %v2330
      %v2332 = vpop.f32.mrb[0].mxu0
      %2333 = vmatprep.mubr.f32.mxu0 0.0
      %2334 = vmatmul.mubr.f32.gmra.mrb[0].mxu0 %v2169
      %v2335 = vpop.f32.mrb[0].mxu0
      %v2336 = vadd.f32 0.0, %v2335
      %v2337 = vpop.f32.mrb[0].mxu0
      %2338 = vmatprep.mubr.f32.mxu0 0.0
      %2339 = vmatmul.mubr.f32.gmra.mrb[0].mxu0 %v2172
      %v2340 = vpop.f32.mrb[0].mxu0
      %v2341 = vadd.f32 0.0, %v2340
      %v2342 = vpop.f32.mrb[0].mxu0
      %2343 = vmatprep.mubr.f32.mxu0 0.0
      %2344 = vmatmul.mubr.f32.gmra.mrb[0].mxu0 %v2175
      %v2345 = vpop.f32.mrb[0].mxu0
      %v2346 = vadd.f32 0.0, %v2345
      %v2347 = vpop.f32.mrb[0].mxu0
      %2348 = vmatprep.mubr.f32.mxu0 0.0
      %2349 = vmatmul.mubr.f32.gmra.mrb[0].mxu0 %v2178
      %v2350 = vpop.f32.mrb[0].mxu0
      %v2351 = vadd.f32 0.0, %v2350
      %v2352 = vpop.f32.mrb[0].mxu0
      %2353 = vmatprep.mubr.f32.mxu0 0.0
      %2354 = vmatmul.mubr.f32.gmra.mrb[0].mxu0 %v2181
      %v2355 = vpop.f32.mrb[0].mxu0
      %v2356 = vadd.f32 0.0, %v2355
      %v2357 = vpop.f32.mrb[0].mxu0
      %2358 = vmatprep.mubr.f32.mxu0 0.0
      %2359 = vmatmul.mubr.f32.gmra.mrb[0].mxu0 %v2184
      %v2360 = vpop.f32.mrb[0].mxu0
      %v2361 = vadd.f32 0.0, %v2360
      %v2362 = vpop.f32.mrb[0].mxu0
      %2363 = vmatprep.mubr.f32.mxu0 0.0
      %2364 = vmatmul.mubr.f32.gmra.mrb[0].mxu0 %v2187
      %v2365 = vpop.f32.mrb[0].mxu0
      %v2366 = vadd.f32 0.0, %v2365
      %v2367 = vpop.f32.mrb[0].mxu0
      %2368 = vmatprep.mubr.f32.mxu0 0.0
      %2369 = vmatmul.mubr.f32.gmra.mrb[0].mxu0 %v2190
      %v2370 = vpop.f32.mrb[0].mxu0
      %v2371 = vadd.f32 0.0, %v2370
      %v2372 = vpop.f32.mrb[0].mxu0
      %2373 = vmatprep.mubr.f32.mxu0 0.0
      %2374 = vmatmul.mubr.f32.gmra.mrb[0].mxu0 %v2193
      %v2375 = vpop.f32.mrb[0].mxu0
      %v2376 = vadd.f32 0.0, %v2375
      %v2377 = vpop.f32.mrb[0].mxu0
      %2378 = vmatprep.mubr.f32.mxu0 0.0
      %2379 = vmatmul.mubr.f32.gmra.mrb[0].mxu0 %v2196
      %v2380 = vpop.f32.mrb[0].mxu0
      %v2381 = vadd.f32 0.0, %v2380
      %v2382 = vpop.f32.mrb[0].mxu0
      %2383 = vmatprep.mubr.f32.mxu0 0.0
      %2384 = vmatmul.mubr.f32.gmra.mrb[0].mxu0 %v2199
      %v2385 = vpop.f32.mrb[0].mxu0
      %v2386 = vadd.f32 0.0, %v2385
      %v2387 = vpop.f32.mrb[0].mxu0
      %2388 = vmatprep.mubr.f32.mxu0 0.0
      %2389 = vmatmul.mubr.f32.gmra.mrb[0].mxu0 %v2202
      %v2390 = vpop.f32.mrb[0].mxu0
      %v2391 = vadd.f32 0.0, %v2390
      %v2392 = vpop.f32.mrb[0].mxu0
      %2393 = vmatprep.mubr.f32.mxu0 0.0
      %2394 = vmatmul.mubr.f32.gmra.mrb[0].mxu0 %v2205
      %v2395 = vpop.f32.mrb[0].mxu0
      %v2396 = vadd.f32 0.0, %v2395
      %v2397 = vpop.f32.mrb[0].mxu0
      %2398 = vmatprep.mubr.f32.mxu0 0.0
      %2399 = vmatmul.mubr.f32.gmra.mrb[0].mxu0 %v2208
      %v2400 = vpop.f32.mrb[0].mxu0
      %v2401 = vadd.f32 0.0, %v2400
      %v2402 = vpop.f32.mrb[0].mxu0
      %2403 = vmatprep.mubr.f32.mxu0 0.0
      %2404 = vmatmul.mubr.f32.gmra.mrb[0].mxu0 %v2211
      %v2405 = vpop.f32.mrb[0].mxu0
      %v2406 = vadd.f32 0.0, %v2405
      %v2407 = vpop.f32.mrb[0].mxu0
      %2408 = vmatprep.mubr.f32.mxu0 0.0
      %2409 = vmatmul.mubr.f32.gmra.mrb[0].mxu0 %v2214
      %v2410 = vpop.f32.mrb[0].mxu0
      %v2411 = vadd.f32 0.0, %v2410
      %v2412 = vpop.f32.mrb[0].mxu0
      %2413 = vmatprep.mubr.f32.mxu0 0.0
      %2414 = vmatmul.mubr.f32.gmra.mrb[0].mxu0 %v2217
      %v2415 = vpop.f32.mrb[0].mxu0
      %v2416 = vadd.f32 0.0, %v2415
      %v2417 = vpop.f32.mrb[0].mxu0
      %2418 = vmatprep.mubr.f32.mxu0 0.0
      %2419 = vmatmul.mubr.f32.gmra.mrb[0].mxu0 %v2220
      %v2420 = vpop.f32.mrb[0].mxu0
      %v2421 = vadd.f32 0.0, %v2420
      %v2422 = vpop.f32.mrb[0].mxu0
      %2423 = vmatprep.mubr.f32.mxu0 0.0
      %2424 = vmatmul.mubr.f32.gmra.mrb[0].mxu0 %v2223
      %v2425 = vpop.f32.mrb[0].mxu0
      %v2426 = vadd.f32 0.0, %v2425
      %v2427 = vpop.f32.mrb[0].mxu0
      %2428 = vmatprep.mubr.f32.mxu0 0.0
      %2429 = vmatmul.mubr.f32.gmra.mrb[0].mxu0 %v2226
      %v2430 = vpop.f32.mrb[0].mxu0
      %v2431 = vadd.f32 0.0, %v2430
      %v2432 = vpop.f32.mrb[0].mxu0
      %2433 = vmatprep.mubr.f32.mxu0 0.0
      %2434 = vmatmul.mubr.f32.gmra.mrb[0].mxu0 %v2229
      %v2435 = vpop.f32.mrb[0].mxu0
      %v2436 = vadd.f32 0.0, %v2435
      %v2437 = vpop.f32.mrb[0].mxu0
      %2438 = vmatprep.mubr.f32.mxu0 0.0
      %2439 = vmatmul.mubr.f32.gmra.mrb[0].mxu0 %v2232
      %v2440 = vpop.f32.mrb[0].mxu0
      %v2441 = vadd.f32 0.0, %v2440
      %v2442 = vpop.f32.mrb[0].mxu0
      %2443 = vmatprep.mubr.f32.mxu0 0.0
      %2444 = vmatmul.mubr.f32.gmra.mrb[0].mxu0 %v2235
      %v2445 = vpop.f32.mrb[0].mxu0
      %v2446 = vadd.f32 0.0, %v2445
      %v2447 = vpop.f32.mrb[0].mxu0
      %2448 = vmatprep.mubr.f32.mxu0 0.0
      %2449 = vmatmul.mubr.f32.gmra.mrb[0].mxu0 %v2238
      %v2450 = vpop.f32.mrb[0].mxu0
      %v2451 = vadd.f32 0.0, %v2450
      %v2452 = vpop.f32.mrb[0].mxu0
      %2453 = vmatprep.mubr.f32.mxu0 0.0
      %2454 = vmatmul.mubr.f32.gmra.mrb[0].mxu0 %v2241
      %v2455 = vpop.f32.mrb[0].mxu0
      %v2456 = vadd.f32 0.0, %v2455
      %v2457 = vpop.f32.mrb[0].mxu0
      %2458 = vmatprep.mubr.f32.mxu0 0.0
      %2459 = vmatmul.mubr.f32.gmra.mrb[0].mxu0 %v2244
      %v2460 = vpop.f32.mrb[0].mxu0
      %v2461 = vadd.f32 0.0, %v2460
      %v2462 = vpop.f32.mrb[0].mxu0
      %2463 = vmatprep.mubr.f32.mxu0 0.0
      %2464 = vmatmul.mubr.f32.gmra.mrb[0].mxu0 %v2247
      %v2465 = vpop.f32.mrb[0].mxu0
      %v2466 = vadd.f32 0.0, %v2465
      %v2467 = vpop.f32.mrb[0].mxu0
      %2468 = vmatprep.mubr.f32.mxu0 0.0
      %2469 = vmatmul.mubr.f32.gmra.mrb[0].mxu0 %v2250
      %v2470 = vpop.f32.mrb[0].mxu0
      %v2471 = vadd.f32 0.0, %v2470
      %v2472 = vpop.f32.mrb[0].mxu0
      %2473 = vmatprep.mubr.f32.mxu0 0.0
      %2474 = vmatmul.mubr.f32.gmra.mrb[0].mxu0 %v2253
      %v2475 = vpop.f32.mrb[0].mxu0
      %v2476 = vadd.f32 0.0, %v2475
      %v2477 = vpop.f32.mrb[0].mxu0
      %2478 = vmatprep.mubr.f32.mxu0 0.0
      %2479 = vmatmul.mubr.f32.gmra.mrb[0].mxu0 %v2256
      %v2480 = vpop.f32.mrb[0].mxu0
      %v2481 = vadd.f32 0.0, %v2480
      %v2482 = vpop.f32.mrb[0].mxu0
      %2483 = vmatprep.mubr.f32.mxu0 0.0
      %2484 = vmatmul.mubr.f32.gmra.mrb[0].mxu0 %v2259
      %v2485 = vpop.f32.mrb[0].mxu0
      %v2486 = vadd.f32 0.0, %v2485
      %v2487 = vpop.f32.mrb[0].mxu0
      %2488 = vdwg.mxu0
      %v2489 = vadd.f32 %v2099, %v2331
      %v2490 = vadd.f32 %v2100, %v2336
      %v2491 = vadd.f32 %v2101, %v2341
      %v2492 = vadd.f32 %v2102, %v2346
      %v2493 = vadd.f32 %v2103, %v2351
      %v2494 = vadd.f32 %v2104, %v2356
      %v2495 = vadd.f32 %v2105, %v2361
      %v2496 = vadd.f32 %v2106, %v2366
      %v2497 = vadd.f32 %v2107, %v2371
      %v2498 = vadd.f32 %v2108, %v2376
      %v2499 = vadd.f32 %v2109, %v2381
      %v2500 = vadd.f32 %v2110, %v2386
      %v2501 = vadd.f32 %v2111, %v2391
      %v2502 = vadd.f32 %v2112, %v2396
      %v2503 = vadd.f32 %v2113, %v2401
      %v2504 = vadd.f32 %v2114, %v2406
      %v2505 = vadd.f32 %v2115, %v2411
      %v2506 = vadd.f32 %v2116, %v2416
      %v2507 = vadd.f32 %v2117, %v2421
      %v2508 = vadd.f32 %v2118, %v2426
      %v2509 = vadd.f32 %v2119, %v2431
      %v2510 = vadd.f32 %v2120, %v2436
      %v2511 = vadd.f32 %v2121, %v2441
      %v2512 = vadd.f32 %v2122, %v2446
      %v2513 = vadd.f32 %v2123, %v2451
      %v2514 = vadd.f32 %v2124, %v2456
      %v2515 = vadd.f32 %v2125, %v2461
      %v2516 = vadd.f32 %v2126, %v2466
      %v2517 = vadd.f32 %v2127, %v2471
      %v2518 = vadd.f32 %v2128, %v2476
      %v2519 = vadd.f32 %v2129, %v2481
      %v2520 = vadd.f32 %v2130, %v2486
      %s2521 = scalar_lea.vmem %s165, 48
      %v2522 = vld [vmem:[%s2521] sm:$0xff]
      %v2523 = vld [vmem:[%s2521 + $0x8] sm:$0xff]
      %v2524 = vld [vmem:[%s2521 + $0x18] sm:$0xff]
      %v2525 = vld [vmem:[%s2521 + $0x20] sm:$0xff]
      %v2526 = vld [vmem:[%s2521 + $0x30] sm:$0xff]
      %v2527 = vld [vmem:[%s2521 + $0x38] sm:$0xff]
      %v2528 = vld [vmem:[%s2521 + $0x48] sm:$0xff]
      %v2529 = vld [vmem:[%s2521 + $0x50] sm:$0xff]
      %v2530 = vld [vmem:[%s2521 + $0x60] sm:$0xff]
      %v2531 = vld [vmem:[%s2521 + $0x68] sm:$0xff]
      %v2532 = vld [vmem:[%s2521 + $0x78] sm:$0xff]
      %v2533 = vld [vmem:[%s2521 + $0x80] sm:$0xff]
      %v2534 = vld [vmem:[%s2521 + $0x90] sm:$0xff]
      %v2535 = vld [vmem:[%s2521 + $0x98] sm:$0xff]
      %v2536 = vld [vmem:[%s2521 + $0xa8] sm:$0xff]
      %v2537 = vld [vmem:[%s2521 + $0xb0] sm:$0xff]
      %v2538 = vld [vmem:[%s2521 + $0xc0] sm:$0xff]
      %v2539 = vld [vmem:[%s2521 + $0xc8] sm:$0xff]
      %v2540 = vld [vmem:[%s2521 + $0xd8] sm:$0xff]
      %v2541 = vld [vmem:[%s2521 + $0xe0] sm:$0xff]
      %v2542 = vld [vmem:[%s2521 + $0xf0] sm:$0xff]
      %v2543 = vld [vmem:[%s2521 + $0xf8] sm:$0xff]
      %v2544 = vld [vmem:[%s2521 + $0x108] sm:$0xff]
      %v2545 = vld [vmem:[%s2521 + $0x110] sm:$0xff]
      %v2546 = vld [vmem:[%s2521 + $0x120] sm:$0xff]
      %v2547 = vld [vmem:[%s2521 + $0x128] sm:$0xff]
      %v2548 = vld [vmem:[%s2521 + $0x138] sm:$0xff]
      %v2549 = vld [vmem:[%s2521 + $0x140] sm:$0xff]
      %v2550 = vld [vmem:[%s2521 + $0x150] sm:$0xff]
      %v2551 = vld [vmem:[%s2521 + $0x158] sm:$0xff]
      %v2552 = vld [vmem:[%s2521 + $0x168] sm:$0xff]
      %v2553 = vld [vmem:[%s2521 + $0x170] sm:$0xff]
      %s2554 = scalar_lea.vmem %s1, 24
      %v2555 = vld [vmem:[%s2554] sm:$0xf]
      %v2557 = vsel %vm212, %v2522, 0
      %v2560 = vsel %vm212, %v2523, 0
      %v2563 = vsel %vm212, %v2524, 0
      %v2566 = vsel %vm212, %v2525, 0
      %v2569 = vsel %vm212, %v2526, 0
      %v2572 = vsel %vm212, %v2527, 0
      %v2575 = vsel %vm212, %v2528, 0
      %v2578 = vsel %vm212, %v2529, 0
      %v2581 = vsel %vm212, %v2530, 0
      %v2584 = vsel %vm212, %v2531, 0
      %v2587 = vsel %vm212, %v2532, 0
      %v2590 = vsel %vm212, %v2533, 0
      %v2593 = vsel %vm212, %v2534, 0
      %v2596 = vsel %vm212, %v2535, 0
      %v2599 = vsel %vm212, %v2536, 0
      %v2602 = vsel %vm212, %v2537, 0
      %v2605 = vsel %vm212, %v2538, 0
      %v2608 = vsel %vm212, %v2539, 0
      %v2611 = vsel %vm212, %v2540, 0
      %v2614 = vsel %vm212, %v2541, 0
      %v2617 = vsel %vm212, %v2542, 0
      %v2620 = vsel %vm212, %v2543, 0
      %v2623 = vsel %vm212, %v2544, 0
      %v2626 = vsel %vm212, %v2545, 0
      %v2629 = vsel %vm212, %v2546, 0
      %v2632 = vsel %vm212, %v2547, 0
      %v2635 = vsel %vm212, %v2548, 0
      %v2638 = vsel %vm212, %v2549, 0
      %v2641 = vsel %vm212, %v2550, 0
      %v2644 = vsel %vm212, %v2551, 0
      %v2647 = vsel %vm212, %v2552, 0
      %v2650 = vsel %vm212, %v2553, 0
      %v2653 = vsel %vm309, %v2555, 0
      %2655 = vmatprep.subr.mxu0 0.0
      %2656 = vmatpush1.msra.mxu0 %v2653
      %2657 = vmatprep.subr.mxu0 0.0
      %2658 = vmatpush1.msra.mxu0 0.0
      %2659 = vmatprep.subr.mxu0 0.0
      %2660 = vmatpush1.msra.mxu0 0.0
      %2661 = vmatprep.subr.mxu0 0.0
      %2662 = vmatpush1.msra.mxu0 0.0
      %2663 = vmatprep.subr.mxu0 0.0
      %2664 = vmatpush1.msra.mxu0 0.0
      %2665 = vmatprep.subr.mxu0 0.0
      %2666 = vmatpush1.msra.mxu0 0.0
      %2667 = vmatprep.subr.mxu0 0.0
      %2668 = vmatpush1.msra.mxu0 0.0
      %2669 = vmatprep.subr.mxu0 0.0
      %2670 = vmatpush1.msra.mxu0 0.0
      %2671 = vmatprep.subr.mxu0 0.0
      %2672 = vmatpush1.msra.mxu0 0.0
      %2673 = vmatprep.subr.mxu0 0.0
      %2674 = vmatpush1.msra.mxu0 0.0
      %2675 = vmatprep.subr.mxu0 0.0
      %2676 = vmatpush1.msra.mxu0 0.0
      %2677 = vmatprep.subr.mxu0 0.0
      %2678 = vmatpush1.msra.mxu0 0.0
      %2679 = vmatprep.subr.mxu0 0.0
      %2680 = vmatpush1.msra.mxu0 0.0
      %2681 = vmatprep.subr.mxu0 0.0
      %2682 = vmatpush1.msra.mxu0 0.0
      %2683 = vmatprep.subr.mxu0 0.0
      %2684 = vmatpush1.msra.mxu0 0.0
      %2685 = vmatprep.subr.mxu0 0.0
      %2686 = vmatpush1.msra.mxu0 0.0
      %2687 = vmatprep.subr.mxu0 0.0
      %2688 = vmatpush1.msra.mxu0 0.0
      %2689 = vmatprep.subr.mxu0 0.0
      %2690 = vmatpush1.msra.mxu0 0.0
      %2691 = vmatprep.subr.mxu0 0.0
      %2692 = vmatpush1.msra.mxu0 0.0
      %2693 = vmatprep.subr.mxu0 0.0
      %2694 = vmatpush1.msra.mxu0 0.0
      %2695 = vmatprep.subr.mxu0 0.0
      %2696 = vmatpush1.msra.mxu0 0.0
      %2697 = vmatprep.subr.mxu0 0.0
      %2698 = vmatpush1.msra.mxu0 0.0
      %2699 = vmatprep.subr.mxu0 0.0
      %2700 = vmatpush1.msra.mxu0 0.0
      %2701 = vmatprep.subr.mxu0 0.0
      %2702 = vmatpush1.msra.mxu0 0.0
      %2703 = vmatprep.subr.mxu0 0.0
      %2704 = vmatpush1.msra.mxu0 0.0
      %2705 = vmatprep.subr.mxu0 0.0
      %2706 = vmatpush1.msra.mxu0 0.0
      %2707 = vmatprep.subr.mxu0 0.0
      %2708 = vmatpush1.msra.mxu0 0.0
      %2709 = vmatprep.subr.mxu0 0.0
      %2710 = vmatpush1.msra.mxu0 0.0
      %2711 = vmatprep.subr.mxu0 0.0
      %2712 = vmatpush1.msra.mxu0 0.0
      %2713 = vmatprep.subr.mxu0 0.0
      %2714 = vmatpush1.msra.mxu0 0.0
      %2715 = vmatprep.subr.mxu0 0.0
      %2716 = vmatpush1.msra.mxu0 0.0
      %2717 = vmatprep.subr.mxu0 0.0
      %2718 = vmatpush1.msra.mxu0 0.0
      %2719 = vmatprep.mubr.f32.mxu0 0.0
      %2720 = vmatmul.mubr.f32.gmra.mrb[0].mxu0 %v2557
      %v2721 = vpop.f32.mrb[0].mxu0
      %v2722 = vadd.f32 0.0, %v2721
      %v2723 = vpop.f32.mrb[0].mxu0
      %2724 = vmatprep.mubr.f32.mxu0 0.0
      %2725 = vmatmul.mubr.f32.gmra.mrb[0].mxu0 %v2560
      %v2726 = vpop.f32.mrb[0].mxu0
      %v2727 = vadd.f32 0.0, %v2726
      %v2728 = vpop.f32.mrb[0].mxu0
      %2729 = vmatprep.mubr.f32.mxu0 0.0
      %2730 = vmatmul.mubr.f32.gmra.mrb[0].mxu0 %v2563
      %v2731 = vpop.f32.mrb[0].mxu0
      %v2732 = vadd.f32 0.0, %v2731
      %v2733 = vpop.f32.mrb[0].mxu0
      %2734 = vmatprep.mubr.f32.mxu0 0.0
      %2735 = vmatmul.mubr.f32.gmra.mrb[0].mxu0 %v2566
      %v2736 = vpop.f32.mrb[0].mxu0
      %v2737 = vadd.f32 0.0, %v2736
      %v2738 = vpop.f32.mrb[0].mxu0
      %2739 = vmatprep.mubr.f32.mxu0 0.0
      %2740 = vmatmul.mubr.f32.gmra.mrb[0].mxu0 %v2569
      %v2741 = vpop.f32.mrb[0].mxu0
      %v2742 = vadd.f32 0.0, %v2741
      %v2743 = vpop.f32.mrb[0].mxu0
      %2744 = vmatprep.mubr.f32.mxu0 0.0
      %2745 = vmatmul.mubr.f32.gmra.mrb[0].mxu0 %v2572
      %v2746 = vpop.f32.mrb[0].mxu0
      %v2747 = vadd.f32 0.0, %v2746
      %v2748 = vpop.f32.mrb[0].mxu0
      %2749 = vmatprep.mubr.f32.mxu0 0.0
      %2750 = vmatmul.mubr.f32.gmra.mrb[0].mxu0 %v2575
      %v2751 = vpop.f32.mrb[0].mxu0
      %v2752 = vadd.f32 0.0, %v2751
      %v2753 = vpop.f32.mrb[0].mxu0
      %2754 = vmatprep.mubr.f32.mxu0 0.0
      %2755 = vmatmul.mubr.f32.gmra.mrb[0].mxu0 %v2578
      %v2756 = vpop.f32.mrb[0].mxu0
      %v2757 = vadd.f32 0.0, %v2756
      %v2758 = vpop.f32.mrb[0].mxu0
      %2759 = vmatprep.mubr.f32.mxu0 0.0
      %2760 = vmatmul.mubr.f32.gmra.mrb[0].mxu0 %v2581
      %v2761 = vpop.f32.mrb[0].mxu0
      %v2762 = vadd.f32 0.0, %v2761
      %v2763 = vpop.f32.mrb[0].mxu0
      %2764 = vmatprep.mubr.f32.mxu0 0.0
      %2765 = vmatmul.mubr.f32.gmra.mrb[0].mxu0 %v2584
      %v2766 = vpop.f32.mrb[0].mxu0
      %v2767 = vadd.f32 0.0, %v2766
      %v2768 = vpop.f32.mrb[0].mxu0
      %2769 = vmatprep.mubr.f32.mxu0 0.0
      %2770 = vmatmul.mubr.f32.gmra.mrb[0].mxu0 %v2587
      %v2771 = vpop.f32.mrb[0].mxu0
      %v2772 = vadd.f32 0.0, %v2771
      %v2773 = vpop.f32.mrb[0].mxu0
      %2774 = vmatprep.mubr.f32.mxu0 0.0
      %2775 = vmatmul.mubr.f32.gmra.mrb[0].mxu0 %v2590
      %v2776 = vpop.f32.mrb[0].mxu0
      %v2777 = vadd.f32 0.0, %v2776
      %v2778 = vpop.f32.mrb[0].mxu0
      %2779 = vmatprep.mubr.f32.mxu0 0.0
      %2780 = vmatmul.mubr.f32.gmra.mrb[0].mxu0 %v2593
      %v2781 = vpop.f32.mrb[0].mxu0
      %v2782 = vadd.f32 0.0, %v2781
      %v2783 = vpop.f32.mrb[0].mxu0
      %2784 = vmatprep.mubr.f32.mxu0 0.0
      %2785 = vmatmul.mubr.f32.gmra.mrb[0].mxu0 %v2596
      %v2786 = vpop.f32.mrb[0].mxu0
      %v2787 = vadd.f32 0.0, %v2786
      %v2788 = vpop.f32.mrb[0].mxu0
      %2789 = vmatprep.mubr.f32.mxu0 0.0
      %2790 = vmatmul.mubr.f32.gmra.mrb[0].mxu0 %v2599
      %v2791 = vpop.f32.mrb[0].mxu0
      %v2792 = vadd.f32 0.0, %v2791
      %v2793 = vpop.f32.mrb[0].mxu0
      %2794 = vmatprep.mubr.f32.mxu0 0.0
      %2795 = vmatmul.mubr.f32.gmra.mrb[0].mxu0 %v2602
      %v2796 = vpop.f32.mrb[0].mxu0
      %v2797 = vadd.f32 0.0, %v2796
      %v2798 = vpop.f32.mrb[0].mxu0
      %2799 = vmatprep.mubr.f32.mxu0 0.0
      %2800 = vmatmul.mubr.f32.gmra.mrb[0].mxu0 %v2605
      %v2801 = vpop.f32.mrb[0].mxu0
      %v2802 = vadd.f32 0.0, %v2801
      %v2803 = vpop.f32.mrb[0].mxu0
      %2804 = vmatprep.mubr.f32.mxu0 0.0
      %2805 = vmatmul.mubr.f32.gmra.mrb[0].mxu0 %v2608
      %v2806 = vpop.f32.mrb[0].mxu0
      %v2807 = vadd.f32 0.0, %v2806
      %v2808 = vpop.f32.mrb[0].mxu0
      %2809 = vmatprep.mubr.f32.mxu0 0.0
      %2810 = vmatmul.mubr.f32.gmra.mrb[0].mxu0 %v2611
      %v2811 = vpop.f32.mrb[0].mxu0
      %v2812 = vadd.f32 0.0, %v2811
      %v2813 = vpop.f32.mrb[0].mxu0
      %2814 = vmatprep.mubr.f32.mxu0 0.0
      %2815 = vmatmul.mubr.f32.gmra.mrb[0].mxu0 %v2614
      %v2816 = vpop.f32.mrb[0].mxu0
      %v2817 = vadd.f32 0.0, %v2816
      %v2818 = vpop.f32.mrb[0].mxu0
      %2819 = vmatprep.mubr.f32.mxu0 0.0
      %2820 = vmatmul.mubr.f32.gmra.mrb[0].mxu0 %v2617
      %v2821 = vpop.f32.mrb[0].mxu0
      %v2822 = vadd.f32 0.0, %v2821
      %v2823 = vpop.f32.mrb[0].mxu0
      %2824 = vmatprep.mubr.f32.mxu0 0.0
      %2825 = vmatmul.mubr.f32.gmra.mrb[0].mxu0 %v2620
      %v2826 = vpop.f32.mrb[0].mxu0
      %v2827 = vadd.f32 0.0, %v2826
      %v2828 = vpop.f32.mrb[0].mxu0
      %2829 = vmatprep.mubr.f32.mxu0 0.0
      %2830 = vmatmul.mubr.f32.gmra.mrb[0].mxu0 %v2623
      %v2831 = vpop.f32.mrb[0].mxu0
      %v2832 = vadd.f32 0.0, %v2831
      %v2833 = vpop.f32.mrb[0].mxu0
      %2834 = vmatprep.mubr.f32.mxu0 0.0
      %2835 = vmatmul.mubr.f32.gmra.mrb[0].mxu0 %v2626
      %v2836 = vpop.f32.mrb[0].mxu0
      %v2837 = vadd.f32 0.0, %v2836
      %v2838 = vpop.f32.mrb[0].mxu0
      %2839 = vmatprep.mubr.f32.mxu0 0.0
      %2840 = vmatmul.mubr.f32.gmra.mrb[0].mxu0 %v2629
      %v2841 = vpop.f32.mrb[0].mxu0
      %v2842 = vadd.f32 0.0, %v2841
      %v2843 = vpop.f32.mrb[0].mxu0
      %2844 = vmatprep.mubr.f32.mxu0 0.0
      %2845 = vmatmul.mubr.f32.gmra.mrb[0].mxu0 %v2632
      %v2846 = vpop.f32.mrb[0].mxu0
      %v2847 = vadd.f32 0.0, %v2846
      %v2848 = vpop.f32.mrb[0].mxu0
      %2849 = vmatprep.mubr.f32.mxu0 0.0
      %2850 = vmatmul.mubr.f32.gmra.mrb[0].mxu0 %v2635
      %v2851 = vpop.f32.mrb[0].mxu0
      %v2852 = vadd.f32 0.0, %v2851
      %v2853 = vpop.f32.mrb[0].mxu0
      %2854 = vmatprep.mubr.f32.mxu0 0.0
      %2855 = vmatmul.mubr.f32.gmra.mrb[0].mxu0 %v2638
      %v2856 = vpop.f32.mrb[0].mxu0
      %v2857 = vadd.f32 0.0, %v2856
      %v2858 = vpop.f32.mrb[0].mxu0
      %2859 = vmatprep.mubr.f32.mxu0 0.0
      %2860 = vmatmul.mubr.f32.gmra.mrb[0].mxu0 %v2641
      %v2861 = vpop.f32.mrb[0].mxu0
      %v2862 = vadd.f32 0.0, %v2861
      %v2863 = vpop.f32.mrb[0].mxu0
      %2864 = vmatprep.mubr.f32.mxu0 0.0
      %2865 = vmatmul.mubr.f32.gmra.mrb[0].mxu0 %v2644
      %v2866 = vpop.f32.mrb[0].mxu0
      %v2867 = vadd.f32 0.0, %v2866
      %v2868 = vpop.f32.mrb[0].mxu0
      %2869 = vmatprep.mubr.f32.mxu0 0.0
      %2870 = vmatmul.mubr.f32.gmra.mrb[0].mxu0 %v2647
      %v2871 = vpop.f32.mrb[0].mxu0
      %v2872 = vadd.f32 0.0, %v2871
      %v2873 = vpop.f32.mrb[0].mxu0
      %2874 = vmatprep.mubr.f32.mxu0 0.0
      %2875 = vmatmul.mubr.f32.gmra.mrb[0].mxu0 %v2650
      %v2876 = vpop.f32.mrb[0].mxu0
      %v2877 = vadd.f32 0.0, %v2876
      %v2878 = vpop.f32.mrb[0].mxu0
      %2879 = vdwg.mxu0
      %v2880 = vadd.f32 %v2489, %v2722
      %v2881 = vadd.f32 %v2490, %v2727
      %v2882 = vadd.f32 %v2491, %v2732
      %v2883 = vadd.f32 %v2492, %v2737
      %v2884 = vadd.f32 %v2493, %v2742
      %v2885 = vadd.f32 %v2494, %v2747
      %v2886 = vadd.f32 %v2495, %v2752
      %v2887 = vadd.f32 %v2496, %v2757
      %v2888 = vadd.f32 %v2497, %v2762
      %v2889 = vadd.f32 %v2498, %v2767
      %v2890 = vadd.f32 %v2499, %v2772
      %v2891 = vadd.f32 %v2500, %v2777
      %v2892 = vadd.f32 %v2501, %v2782
      %v2893 = vadd.f32 %v2502, %v2787
      %v2894 = vadd.f32 %v2503, %v2792
      %v2895 = vadd.f32 %v2504, %v2797
      %v2896 = vadd.f32 %v2505, %v2802
      %v2897 = vadd.f32 %v2506, %v2807
      %v2898 = vadd.f32 %v2507, %v2812
      %v2899 = vadd.f32 %v2508, %v2817
      %v2900 = vadd.f32 %v2509, %v2822
      %v2901 = vadd.f32 %v2510, %v2827
      %v2902 = vadd.f32 %v2511, %v2832
      %v2903 = vadd.f32 %v2512, %v2837
      %v2904 = vadd.f32 %v2513, %v2842
      %v2905 = vadd.f32 %v2514, %v2847
      %v2906 = vadd.f32 %v2515, %v2852
      %v2907 = vadd.f32 %v2516, %v2857
      %v2908 = vadd.f32 %v2517, %v2862
      %v2909 = vadd.f32 %v2518, %v2867
      %v2910 = vadd.f32 %v2519, %v2872
      %v2911 = vadd.f32 %v2520, %v2877
      %v2912 = vld [vmem:[%s2521 + $0x1] sm:$0xff]
      %v2913 = vld [vmem:[%s2521 + $0x9] sm:$0xff]
      %v2914 = vld [vmem:[%s2521 + $0x19] sm:$0xff]
      %v2915 = vld [vmem:[%s2521 + $0x21] sm:$0xff]
      %v2916 = vld [vmem:[%s2521 + $0x31] sm:$0xff]
      %v2917 = vld [vmem:[%s2521 + $0x39] sm:$0xff]
      %v2918 = vld [vmem:[%s2521 + $0x49] sm:$0xff]
      %v2919 = vld [vmem:[%s2521 + $0x51] sm:$0xff]
      %v2920 = vld [vmem:[%s2521 + $0x61] sm:$0xff]
      %v2921 = vld [vmem:[%s2521 + $0x69] sm:$0xff]
      %v2922 = vld [vmem:[%s2521 + $0x79] sm:$0xff]
      %v2923 = vld [vmem:[%s2521 + $0x81] sm:$0xff]
      %v2924 = vld [vmem:[%s2521 + $0x91] sm:$0xff]
      %v2925 = vld [vmem:[%s2521 + $0x99] sm:$0xff]
      %v2926 = vld [vmem:[%s2521 + $0xa9] sm:$0xff]
      %v2927 = vld [vmem:[%s2521 + $0xb1] sm:$0xff]
      %v2928 = vld [vmem:[%s2521 + $0xc1] sm:$0xff]
      %v2929 = vld [vmem:[%s2521 + $0xc9] sm:$0xff]
      %v2930 = vld [vmem:[%s2521 + $0xd9] sm:$0xff]
      %v2931 = vld [vmem:[%s2521 + $0xe1] sm:$0xff]
      %v2932 = vld [vmem:[%s2521 + $0xf1] sm:$0xff]
      %v2933 = vld [vmem:[%s2521 + $0xf9] sm:$0xff]
      %v2934 = vld [vmem:[%s2521 + $0x109] sm:$0xff]
      %v2935 = vld [vmem:[%s2521 + $0x111] sm:$0xff]
      %v2936 = vld [vmem:[%s2521 + $0x121] sm:$0xff]
      %v2937 = vld [vmem:[%s2521 + $0x129] sm:$0xff]
      %v2938 = vld [vmem:[%s2521 + $0x139] sm:$0xff]
      %v2939 = vld [vmem:[%s2521 + $0x141] sm:$0xff]
      %v2940 = vld [vmem:[%s2521 + $0x151] sm:$0xff]
      %v2941 = vld [vmem:[%s2521 + $0x159] sm:$0xff]
      %v2942 = vld [vmem:[%s2521 + $0x169] sm:$0xff]
      %v2943 = vld [vmem:[%s2521 + $0x171] sm:$0xff]
      %s2944 = scalar_lea.vmem %s1, 28
      %v2945 = vld [vmem:[%s2944] sm:$0xf]
      %v2947 = vsel %vm212, %v2912, 0
      %v2950 = vsel %vm212, %v2913, 0
      %v2953 = vsel %vm212, %v2914, 0
      %v2956 = vsel %vm212, %v2915, 0
      %v2959 = vsel %vm212, %v2916, 0
      %v2962 = vsel %vm212, %v2917, 0
      %v2965 = vsel %vm212, %v2918, 0
      %v2968 = vsel %vm212, %v2919, 0
      %v2971 = vsel %vm212, %v2920, 0
      %v2974 = vsel %vm212, %v2921, 0
      %v2977 = vsel %vm212, %v2922, 0
      %v2980 = vsel %vm212, %v2923, 0
      %v2983 = vsel %vm212, %v2924, 0
      %v2986 = vsel %vm212, %v2925, 0
      %v2989 = vsel %vm212, %v2926, 0
      %v2992 = vsel %vm212, %v2927, 0
      %v2995 = vsel %vm212, %v2928, 0
      %v2998 = vsel %vm212, %v2929, 0
      %v3001 = vsel %vm212, %v2930, 0
      %v3004 = vsel %vm212, %v2931, 0
      %v3007 = vsel %vm212, %v2932, 0
      %v3010 = vsel %vm212, %v2933, 0
      %v3013 = vsel %vm212, %v2934, 0
      %v3016 = vsel %vm212, %v2935, 0
      %v3019 = vsel %vm212, %v2936, 0
      %v3022 = vsel %vm212, %v2937, 0
      %v3025 = vsel %vm212, %v2938, 0
      %v3028 = vsel %vm212, %v2939, 0
      %v3031 = vsel %vm212, %v2940, 0
      %v3034 = vsel %vm212, %v2941, 0
      %v3037 = vsel %vm212, %v2942, 0
      %v3040 = vsel %vm212, %v2943, 0
      %v3043 = vsel %vm309, %v2945, 0
      %3045 = vmatprep.subr.mxu0 0.0
      %3046 = vmatpush1.msra.mxu0 %v3043
      %3047 = vmatprep.subr.mxu0 0.0
      %3048 = vmatpush1.msra.mxu0 0.0
      %3049 = vmatprep.subr.mxu0 0.0
      %3050 = vmatpush1.msra.mxu0 0.0
      %3051 = vmatprep.subr.mxu0 0.0
      %3052 = vmatpush1.msra.mxu0 0.0
      %3053 = vmatprep.subr.mxu0 0.0
      %3054 = vmatpush1.msra.mxu0 0.0
      %3055 = vmatprep.subr.mxu0 0.0
      %3056 = vmatpush1.msra.mxu0 0.0
      %3057 = vmatprep.subr.mxu0 0.0
      %3058 = vmatpush1.msra.mxu0 0.0
      %3059 = vmatprep.subr.mxu0 0.0
      %3060 = vmatpush1.msra.mxu0 0.0
      %3061 = vmatprep.subr.mxu0 0.0
      %3062 = vmatpush1.msra.mxu0 0.0
      %3063 = vmatprep.subr.mxu0 0.0
      %3064 = vmatpush1.msra.mxu0 0.0
      %3065 = vmatprep.subr.mxu0 0.0
      %3066 = vmatpush1.msra.mxu0 0.0
      %3067 = vmatprep.subr.mxu0 0.0
      %3068 = vmatpush1.msra.mxu0 0.0
      %3069 = vmatprep.subr.mxu0 0.0
      %3070 = vmatpush1.msra.mxu0 0.0
      %3071 = vmatprep.subr.mxu0 0.0
      %3072 = vmatpush1.msra.mxu0 0.0
      %3073 = vmatprep.subr.mxu0 0.0
      %3074 = vmatpush1.msra.mxu0 0.0
      %3075 = vmatprep.subr.mxu0 0.0
      %3076 = vmatpush1.msra.mxu0 0.0
      %3077 = vmatprep.subr.mxu0 0.0
      %3078 = vmatpush1.msra.mxu0 0.0
      %3079 = vmatprep.subr.mxu0 0.0
      %3080 = vmatpush1.msra.mxu0 0.0
      %3081 = vmatprep.subr.mxu0 0.0
      %3082 = vmatpush1.msra.mxu0 0.0
      %3083 = vmatprep.subr.mxu0 0.0
      %3084 = vmatpush1.msra.mxu0 0.0
      %3085 = vmatprep.subr.mxu0 0.0
      %3086 = vmatpush1.msra.mxu0 0.0
      %3087 = vmatprep.subr.mxu0 0.0
      %3088 = vmatpush1.msra.mxu0 0.0
      %3089 = vmatprep.subr.mxu0 0.0
      %3090 = vmatpush1.msra.mxu0 0.0
      %3091 = vmatprep.subr.mxu0 0.0
      %3092 = vmatpush1.msra.mxu0 0.0
      %3093 = vmatprep.subr.mxu0 0.0
      %3094 = vmatpush1.msra.mxu0 0.0
      %3095 = vmatprep.subr.mxu0 0.0
      %3096 = vmatpush1.msra.mxu0 0.0
      %3097 = vmatprep.subr.mxu0 0.0
      %3098 = vmatpush1.msra.mxu0 0.0
      %3099 = vmatprep.subr.mxu0 0.0
      %3100 = vmatpush1.msra.mxu0 0.0
      %3101 = vmatprep.subr.mxu0 0.0
      %3102 = vmatpush1.msra.mxu0 0.0
      %3103 = vmatprep.subr.mxu0 0.0
      %3104 = vmatpush1.msra.mxu0 0.0
      %3105 = vmatprep.subr.mxu0 0.0
      %3106 = vmatpush1.msra.mxu0 0.0
      %3107 = vmatprep.subr.mxu0 0.0
      %3108 = vmatpush1.msra.mxu0 0.0
      %3109 = vmatprep.mubr.f32.mxu0 0.0
      %3110 = vmatmul.mubr.f32.gmra.mrb[0].mxu0 %v2947
      %v3111 = vpop.f32.mrb[0].mxu0
      %v3112 = vadd.f32 0.0, %v3111
      %v3113 = vpop.f32.mrb[0].mxu0
      %3114 = vmatprep.mubr.f32.mxu0 0.0
      %3115 = vmatmul.mubr.f32.gmra.mrb[0].mxu0 %v2950
      %v3116 = vpop.f32.mrb[0].mxu0
      %v3117 = vadd.f32 0.0, %v3116
      %v3118 = vpop.f32.mrb[0].mxu0
      %3119 = vmatprep.mubr.f32.mxu0 0.0
      %3120 = vmatmul.mubr.f32.gmra.mrb[0].mxu0 %v2953
      %v3121 = vpop.f32.mrb[0].mxu0
      %v3122 = vadd.f32 0.0, %v3121
      %v3123 = vpop.f32.mrb[0].mxu0
      %3124 = vmatprep.mubr.f32.mxu0 0.0
      %3125 = vmatmul.mubr.f32.gmra.mrb[0].mxu0 %v2956
      %v3126 = vpop.f32.mrb[0].mxu0
      %v3127 = vadd.f32 0.0, %v3126
      %v3128 = vpop.f32.mrb[0].mxu0
      %3129 = vmatprep.mubr.f32.mxu0 0.0
      %3130 = vmatmul.mubr.f32.gmra.mrb[0].mxu0 %v2959
      %v3131 = vpop.f32.mrb[0].mxu0
      %v3132 = vadd.f32 0.0, %v3131
      %v3133 = vpop.f32.mrb[0].mxu0
      %3134 = vmatprep.mubr.f32.mxu0 0.0
      %3135 = vmatmul.mubr.f32.gmra.mrb[0].mxu0 %v2962
      %v3136 = vpop.f32.mrb[0].mxu0
      %v3137 = vadd.f32 0.0, %v3136
      %v3138 = vpop.f32.mrb[0].mxu0
      %3139 = vmatprep.mubr.f32.mxu0 0.0
      %3140 = vmatmul.mubr.f32.gmra.mrb[0].mxu0 %v2965
      %v3141 = vpop.f32.mrb[0].mxu0
      %v3142 = vadd.f32 0.0, %v3141
      %v3143 = vpop.f32.mrb[0].mxu0
      %3144 = vmatprep.mubr.f32.mxu0 0.0
      %3145 = vmatmul.mubr.f32.gmra.mrb[0].mxu0 %v2968
      %v3146 = vpop.f32.mrb[0].mxu0
      %v3147 = vadd.f32 0.0, %v3146
      %v3148 = vpop.f32.mrb[0].mxu0
      %3149 = vmatprep.mubr.f32.mxu0 0.0
      %3150 = vmatmul.mubr.f32.gmra.mrb[0].mxu0 %v2971
      %v3151 = vpop.f32.mrb[0].mxu0
      %v3152 = vadd.f32 0.0, %v3151
      %v3153 = vpop.f32.mrb[0].mxu0
      %3154 = vmatprep.mubr.f32.mxu0 0.0
      %3155 = vmatmul.mubr.f32.gmra.mrb[0].mxu0 %v2974
      %v3156 = vpop.f32.mrb[0].mxu0
      %v3157 = vadd.f32 0.0, %v3156
      %v3158 = vpop.f32.mrb[0].mxu0
      %3159 = vmatprep.mubr.f32.mxu0 0.0
      %3160 = vmatmul.mubr.f32.gmra.mrb[0].mxu0 %v2977
      %v3161 = vpop.f32.mrb[0].mxu0
      %v3162 = vadd.f32 0.0, %v3161
      %v3163 = vpop.f32.mrb[0].mxu0
      %3164 = vmatprep.mubr.f32.mxu0 0.0
      %3165 = vmatmul.mubr.f32.gmra.mrb[0].mxu0 %v2980
      %v3166 = vpop.f32.mrb[0].mxu0
      %v3167 = vadd.f32 0.0, %v3166
      %v3168 = vpop.f32.mrb[0].mxu0
      %3169 = vmatprep.mubr.f32.mxu0 0.0
      %3170 = vmatmul.mubr.f32.gmra.mrb[0].mxu0 %v2983
      %v3171 = vpop.f32.mrb[0].mxu0
      %v3172 = vadd.f32 0.0, %v3171
      %v3173 = vpop.f32.mrb[0].mxu0
      %3174 = vmatprep.mubr.f32.mxu0 0.0
      %3175 = vmatmul.mubr.f32.gmra.mrb[0].mxu0 %v2986
      %v3176 = vpop.f32.mrb[0].mxu0
      %v3177 = vadd.f32 0.0, %v3176
      %v3178 = vpop.f32.mrb[0].mxu0
      %3179 = vmatprep.mubr.f32.mxu0 0.0
      %3180 = vmatmul.mubr.f32.gmra.mrb[0].mxu0 %v2989
      %v3181 = vpop.f32.mrb[0].mxu0
      %v3182 = vadd.f32 0.0, %v3181
      %v3183 = vpop.f32.mrb[0].mxu0
      %3184 = vmatprep.mubr.f32.mxu0 0.0
      %3185 = vmatmul.mubr.f32.gmra.mrb[0].mxu0 %v2992
      %v3186 = vpop.f32.mrb[0].mxu0
      %v3187 = vadd.f32 0.0, %v3186
      %v3188 = vpop.f32.mrb[0].mxu0
      %3189 = vmatprep.mubr.f32.mxu0 0.0
      %3190 = vmatmul.mubr.f32.gmra.mrb[0].mxu0 %v2995
      %v3191 = vpop.f32.mrb[0].mxu0
      %v3192 = vadd.f32 0.0, %v3191
      %v3193 = vpop.f32.mrb[0].mxu0
      %3194 = vmatprep.mubr.f32.mxu0 0.0
      %3195 = vmatmul.mubr.f32.gmra.mrb[0].mxu0 %v2998
      %v3196 = vpop.f32.mrb[0].mxu0
      %v3197 = vadd.f32 0.0, %v3196
      %v3198 = vpop.f32.mrb[0].mxu0
      %3199 = vmatprep.mubr.f32.mxu0 0.0
      %3200 = vmatmul.mubr.f32.gmra.mrb[0].mxu0 %v3001
      %v3201 = vpop.f32.mrb[0].mxu0
      %v3202 = vadd.f32 0.0, %v3201
      %v3203 = vpop.f32.mrb[0].mxu0
      %3204 = vmatprep.mubr.f32.mxu0 0.0
      %3205 = vmatmul.mubr.f32.gmra.mrb[0].mxu0 %v3004
      %v3206 = vpop.f32.mrb[0].mxu0
      %v3207 = vadd.f32 0.0, %v3206
      %v3208 = vpop.f32.mrb[0].mxu0
      %3209 = vmatprep.mubr.f32.mxu0 0.0
      %3210 = vmatmul.mubr.f32.gmra.mrb[0].mxu0 %v3007
      %v3211 = vpop.f32.mrb[0].mxu0
      %v3212 = vadd.f32 0.0, %v3211
      %v3213 = vpop.f32.mrb[0].mxu0
      %3214 = vmatprep.mubr.f32.mxu0 0.0
      %3215 = vmatmul.mubr.f32.gmra.mrb[0].mxu0 %v3010
      %v3216 = vpop.f32.mrb[0].mxu0
      %v3217 = vadd.f32 0.0, %v3216
      %v3218 = vpop.f32.mrb[0].mxu0
      %3219 = vmatprep.mubr.f32.mxu0 0.0
      %3220 = vmatmul.mubr.f32.gmra.mrb[0].mxu0 %v3013
      %v3221 = vpop.f32.mrb[0].mxu0
      %v3222 = vadd.f32 0.0, %v3221
      %v3223 = vpop.f32.mrb[0].mxu0
      %3224 = vmatprep.mubr.f32.mxu0 0.0
      %3225 = vmatmul.mubr.f32.gmra.mrb[0].mxu0 %v3016
      %v3226 = vpop.f32.mrb[0].mxu0
      %v3227 = vadd.f32 0.0, %v3226
      %v3228 = vpop.f32.mrb[0].mxu0
      %3229 = vmatprep.mubr.f32.mxu0 0.0
      %3230 = vmatmul.mubr.f32.gmra.mrb[0].mxu0 %v3019
      %v3231 = vpop.f32.mrb[0].mxu0
      %v3232 = vadd.f32 0.0, %v3231
      %v3233 = vpop.f32.mrb[0].mxu0
      %3234 = vmatprep.mubr.f32.mxu0 0.0
      %3235 = vmatmul.mubr.f32.gmra.mrb[0].mxu0 %v3022
      %v3236 = vpop.f32.mrb[0].mxu0
      %v3237 = vadd.f32 0.0, %v3236
      %v3238 = vpop.f32.mrb[0].mxu0
      %3239 = vmatprep.mubr.f32.mxu0 0.0
      %3240 = vmatmul.mubr.f32.gmra.mrb[0].mxu0 %v3025
      %v3241 = vpop.f32.mrb[0].mxu0
      %v3242 = vadd.f32 0.0, %v3241
      %v3243 = vpop.f32.mrb[0].mxu0
      %3244 = vmatprep.mubr.f32.mxu0 0.0
      %3245 = vmatmul.mubr.f32.gmra.mrb[0].mxu0 %v3028
      %v3246 = vpop.f32.mrb[0].mxu0
      %v3247 = vadd.f32 0.0, %v3246
      %v3248 = vpop.f32.mrb[0].mxu0
      %3249 = vmatprep.mubr.f32.mxu0 0.0
      %3250 = vmatmul.mubr.f32.gmra.mrb[0].mxu0 %v3031
      %v3251 = vpop.f32.mrb[0].mxu0
      %v3252 = vadd.f32 0.0, %v3251
      %v3253 = vpop.f32.mrb[0].mxu0
      %3254 = vmatprep.mubr.f32.mxu0 0.0
      %3255 = vmatmul.mubr.f32.gmra.mrb[0].mxu0 %v3034
      %v3256 = vpop.f32.mrb[0].mxu0
      %v3257 = vadd.f32 0.0, %v3256
      %v3258 = vpop.f32.mrb[0].mxu0
      %3259 = vmatprep.mubr.f32.mxu0 0.0
      %3260 = vmatmul.mubr.f32.gmra.mrb[0].mxu0 %v3037
      %v3261 = vpop.f32.mrb[0].mxu0
      %v3262 = vadd.f32 0.0, %v3261
      %v3263 = vpop.f32.mrb[0].mxu0
      %3264 = vmatprep.mubr.f32.mxu0 0.0
      %3265 = vmatmul.mubr.f32.gmra.mrb[0].mxu0 %v3040
      %v3266 = vpop.f32.mrb[0].mxu0
      %v3267 = vadd.f32 0.0, %v3266
      %v3268 = vpop.f32.mrb[0].mxu0
      %3269 = vdwg.mxu0
      %v3270 = vadd.f32 %v2880, %v3112
      %v3271 = vadd.f32 %v2881, %v3117
      %v3272 = vadd.f32 %v2882, %v3122
      %v3273 = vadd.f32 %v2883, %v3127
      %v3274 = vadd.f32 %v2884, %v3132
      %v3275 = vadd.f32 %v2885, %v3137
      %v3276 = vadd.f32 %v2886, %v3142
      %v3277 = vadd.f32 %v2887, %v3147
      %v3278 = vadd.f32 %v2888, %v3152
      %v3279 = vadd.f32 %v2889, %v3157
      %v3280 = vadd.f32 %v2890, %v3162
      %v3281 = vadd.f32 %v2891, %v3167
      %v3282 = vadd.f32 %v2892, %v3172
      %v3283 = vadd.f32 %v2893, %v3177
      %v3284 = vadd.f32 %v2894, %v3182
      %v3285 = vadd.f32 %v2895, %v3187
      %v3286 = vadd.f32 %v2896, %v3192
      %v3287 = vadd.f32 %v2897, %v3197
      %v3288 = vadd.f32 %v2898, %v3202
      %v3289 = vadd.f32 %v2899, %v3207
      %v3290 = vadd.f32 %v2900, %v3212
      %v3291 = vadd.f32 %v2901, %v3217
      %v3292 = vadd.f32 %v2902, %v3222
      %v3293 = vadd.f32 %v2903, %v3227
      %v3294 = vadd.f32 %v2904, %v3232
      %v3295 = vadd.f32 %v2905, %v3237
      %v3296 = vadd.f32 %v2906, %v3242
      %v3297 = vadd.f32 %v2907, %v3247
      %v3298 = vadd.f32 %v2908, %v3252
      %v3299 = vadd.f32 %v2909, %v3257
      %v3300 = vadd.f32 %v2910, %v3262
      %v3301 = vadd.f32 %v2911, %v3267
      %v3302 = vld [vmem:[%s2521 + $0x2] sm:$0xff]
      %v3303 = vld [vmem:[%s2521 + $0xa] sm:$0xff]
      %v3304 = vld [vmem:[%s2521 + $0x1a] sm:$0xff]
      %v3305 = vld [vmem:[%s2521 + $0x22] sm:$0xff]
      %v3306 = vld [vmem:[%s2521 + $0x32] sm:$0xff]
      %v3307 = vld [vmem:[%s2521 + $0x3a] sm:$0xff]
      %v3308 = vld [vmem:[%s2521 + $0x4a] sm:$0xff]
      %v3309 = vld [vmem:[%s2521 + $0x52] sm:$0xff]
      %v3310 = vld [vmem:[%s2521 + $0x62] sm:$0xff]
      %v3311 = vld [vmem:[%s2521 + $0x6a] sm:$0xff]
      %v3312 = vld [vmem:[%s2521 + $0x7a] sm:$0xff]
      %v3313 = vld [vmem:[%s2521 + $0x82] sm:$0xff]
      %v3314 = vld [vmem:[%s2521 + $0x92] sm:$0xff]
      %v3315 = vld [vmem:[%s2521 + $0x9a] sm:$0xff]
      %v3316 = vld [vmem:[%s2521 + $0xaa] sm:$0xff]
      %v3317 = vld [vmem:[%s2521 + $0xb2] sm:$0xff]
      %v3318 = vld [vmem:[%s2521 + $0xc2] sm:$0xff]
      %v3319 = vld [vmem:[%s2521 + $0xca] sm:$0xff]
      %v3320 = vld [vmem:[%s2521 + $0xda] sm:$0xff]
      %v3321 = vld [vmem:[%s2521 + $0xe2] sm:$0xff]
      %v3322 = vld [vmem:[%s2521 + $0xf2] sm:$0xff]
      %v3323 = vld [vmem:[%s2521 + $0xfa] sm:$0xff]
      %v3324 = vld [vmem:[%s2521 + $0x10a] sm:$0xff]
      %v3325 = vld [vmem:[%s2521 + $0x112] sm:$0xff]
      %v3326 = vld [vmem:[%s2521 + $0x122] sm:$0xff]
      %v3327 = vld [vmem:[%s2521 + $0x12a] sm:$0xff]
      %v3328 = vld [vmem:[%s2521 + $0x13a] sm:$0xff]
      %v3329 = vld [vmem:[%s2521 + $0x142] sm:$0xff]
      %v3330 = vld [vmem:[%s2521 + $0x152] sm:$0xff]
      %v3331 = vld [vmem:[%s2521 + $0x15a] sm:$0xff]
      %v3332 = vld [vmem:[%s2521 + $0x16a] sm:$0xff]
      %v3333 = vld [vmem:[%s2521 + $0x172] sm:$0xff]
      %s3334 = scalar_lea.vmem %s1, 32
      %v3335 = vld [vmem:[%s3334] sm:$0xf]
      %v3337 = vsel %vm212, %v3302, 0
      %v3340 = vsel %vm212, %v3303, 0
      %v3343 = vsel %vm212, %v3304, 0
      %v3346 = vsel %vm212, %v3305, 0
      %v3349 = vsel %vm212, %v3306, 0
      %v3352 = vsel %vm212, %v3307, 0
      %v3355 = vsel %vm212, %v3308, 0
      %v3358 = vsel %vm212, %v3309, 0
      %v3361 = vsel %vm212, %v3310, 0
      %v3364 = vsel %vm212, %v3311, 0
      %v3367 = vsel %vm212, %v3312, 0
      %v3370 = vsel %vm212, %v3313, 0
      %v3373 = vsel %vm212, %v3314, 0
      %v3376 = vsel %vm212, %v3315, 0
      %v3379 = vsel %vm212, %v3316, 0
      %v3382 = vsel %vm212, %v3317, 0
      %v3385 = vsel %vm212, %v3318, 0
      %v3388 = vsel %vm212, %v3319, 0
      %v3391 = vsel %vm212, %v3320, 0
      %v3394 = vsel %vm212, %v3321, 0
      %v3397 = vsel %vm212, %v3322, 0
      %v3400 = vsel %vm212, %v3323, 0
      %v3403 = vsel %vm212, %v3324, 0
      %v3406 = vsel %vm212, %v3325, 0
      %v3409 = vsel %vm212, %v3326, 0
      %v3412 = vsel %vm212, %v3327, 0
      %v3415 = vsel %vm212, %v3328, 0
      %v3418 = vsel %vm212, %v3329, 0
      %v3421 = vsel %vm212, %v3330, 0
      %v3424 = vsel %vm212, %v3331, 0
      %v3427 = vsel %vm212, %v3332, 0
      %v3430 = vsel %vm212, %v3333, 0
      %v3433 = vsel %vm309, %v3335, 0
      %3435 = vmatprep.subr.mxu0 0.0
      %3436 = vmatpush1.msra.mxu0 %v3433
      %3437 = vmatprep.subr.mxu0 0.0
      %3438 = vmatpush1.msra.mxu0 0.0
      %3439 = vmatprep.subr.mxu0 0.0
      %3440 = vmatpush1.msra.mxu0 0.0
      %3441 = vmatprep.subr.mxu0 0.0
      %3442 = vmatpush1.msra.mxu0 0.0
      %3443 = vmatprep.subr.mxu0 0.0
      %3444 = vmatpush1.msra.mxu0 0.0
      %3445 = vmatprep.subr.mxu0 0.0
      %3446 = vmatpush1.msra.mxu0 0.0
      %3447 = vmatprep.subr.mxu0 0.0
      %3448 = vmatpush1.msra.mxu0 0.0
      %3449 = vmatprep.subr.mxu0 0.0
      %3450 = vmatpush1.msra.mxu0 0.0
      %3451 = vmatprep.subr.mxu0 0.0
      %3452 = vmatpush1.msra.mxu0 0.0
      %3453 = vmatprep.subr.mxu0 0.0
      %3454 = vmatpush1.msra.mxu0 0.0
      %3455 = vmatprep.subr.mxu0 0.0
      %3456 = vmatpush1.msra.mxu0 0.0
      %3457 = vmatprep.subr.mxu0 0.0
      %3458 = vmatpush1.msra.mxu0 0.0
      %3459 = vmatprep.subr.mxu0 0.0
      %3460 = vmatpush1.msra.mxu0 0.0
      %3461 = vmatprep.subr.mxu0 0.0
      %3462 = vmatpush1.msra.mxu0 0.0
      %3463 = vmatprep.subr.mxu0 0.0
      %3464 = vmatpush1.msra.mxu0 0.0
      %3465 = vmatprep.subr.mxu0 0.0
      %3466 = vmatpush1.msra.mxu0 0.0
      %3467 = vmatprep.subr.mxu0 0.0
      %3468 = vmatpush1.msra.mxu0 0.0
      %3469 = vmatprep.subr.mxu0 0.0
      %3470 = vmatpush1.msra.mxu0 0.0
      %3471 = vmatprep.subr.mxu0 0.0
      %3472 = vmatpush1.msra.mxu0 0.0
      %3473 = vmatprep.subr.mxu0 0.0
      %3474 = vmatpush1.msra.mxu0 0.0
      %3475 = vmatprep.subr.mxu0 0.0
      %3476 = vmatpush1.msra.mxu0 0.0
      %3477 = vmatprep.subr.mxu0 0.0
      %3478 = vmatpush1.msra.mxu0 0.0
      %3479 = vmatprep.subr.mxu0 0.0
      %3480 = vmatpush1.msra.mxu0 0.0
      %3481 = vmatprep.subr.mxu0 0.0
      %3482 = vmatpush1.msra.mxu0 0.0
      %3483 = vmatprep.subr.mxu0 0.0
      %3484 = vmatpush1.msra.mxu0 0.0
      %3485 = vmatprep.subr.mxu0 0.0
      %3486 = vmatpush1.msra.mxu0 0.0
      %3487 = vmatprep.subr.mxu0 0.0
      %3488 = vmatpush1.msra.mxu0 0.0
      %3489 = vmatprep.subr.mxu0 0.0
      %3490 = vmatpush1.msra.mxu0 0.0
      %3491 = vmatprep.subr.mxu0 0.0
      %3492 = vmatpush1.msra.mxu0 0.0
      %3493 = vmatprep.subr.mxu0 0.0
      %3494 = vmatpush1.msra.mxu0 0.0
      %3495 = vmatprep.subr.mxu0 0.0
      %3496 = vmatpush1.msra.mxu0 0.0
      %3497 = vmatprep.subr.mxu0 0.0
      %3498 = vmatpush1.msra.mxu0 0.0
      %3499 = vmatprep.mubr.f32.mxu0 0.0
      %3500 = vmatmul.mubr.f32.gmra.mrb[0].mxu0 %v3337
      %v3501 = vpop.f32.mrb[0].mxu0
      %v3502 = vadd.f32 0.0, %v3501
      %v3503 = vpop.f32.mrb[0].mxu0
      %3504 = vmatprep.mubr.f32.mxu0 0.0
      %3505 = vmatmul.mubr.f32.gmra.mrb[0].mxu0 %v3340
      %v3506 = vpop.f32.mrb[0].mxu0
      %v3507 = vadd.f32 0.0, %v3506
      %v3508 = vpop.f32.mrb[0].mxu0
      %3509 = vmatprep.mubr.f32.mxu0 0.0
      %3510 = vmatmul.mubr.f32.gmra.mrb[0].mxu0 %v3343
      %v3511 = vpop.f32.mrb[0].mxu0
      %v3512 = vadd.f32 0.0, %v3511
      %v3513 = vpop.f32.mrb[0].mxu0
      %3514 = vmatprep.mubr.f32.mxu0 0.0
      %3515 = vmatmul.mubr.f32.gmra.mrb[0].mxu0 %v3346
      %v3516 = vpop.f32.mrb[0].mxu0
      %v3517 = vadd.f32 0.0, %v3516
      %v3518 = vpop.f32.mrb[0].mxu0
      %3519 = vmatprep.mubr.f32.mxu0 0.0
      %3520 = vmatmul.mubr.f32.gmra.mrb[0].mxu0 %v3349
      %v3521 = vpop.f32.mrb[0].mxu0
      %v3522 = vadd.f32 0.0, %v3521
      %v3523 = vpop.f32.mrb[0].mxu0
      %3524 = vmatprep.mubr.f32.mxu0 0.0
      %3525 = vmatmul.mubr.f32.gmra.mrb[0].mxu0 %v3352
      %v3526 = vpop.f32.mrb[0].mxu0
      %v3527 = vadd.f32 0.0, %v3526
      %v3528 = vpop.f32.mrb[0].mxu0
      %3529 = vmatprep.mubr.f32.mxu0 0.0
      %3530 = vmatmul.mubr.f32.gmra.mrb[0].mxu0 %v3355
      %v3531 = vpop.f32.mrb[0].mxu0
      %v3532 = vadd.f32 0.0, %v3531
      %v3533 = vpop.f32.mrb[0].mxu0
      %3534 = vmatprep.mubr.f32.mxu0 0.0
      %3535 = vmatmul.mubr.f32.gmra.mrb[0].mxu0 %v3358
      %v3536 = vpop.f32.mrb[0].mxu0
      %v3537 = vadd.f32 0.0, %v3536
      %v3538 = vpop.f32.mrb[0].mxu0
      %3539 = vmatprep.mubr.f32.mxu0 0.0
      %3540 = vmatmul.mubr.f32.gmra.mrb[0].mxu0 %v3361
      %v3541 = vpop.f32.mrb[0].mxu0
      %v3542 = vadd.f32 0.0, %v3541
      %v3543 = vpop.f32.mrb[0].mxu0
      %3544 = vmatprep.mubr.f32.mxu0 0.0
      %3545 = vmatmul.mubr.f32.gmra.mrb[0].mxu0 %v3364
      %v3546 = vpop.f32.mrb[0].mxu0
      %v3547 = vadd.f32 0.0, %v3546
      %v3548 = vpop.f32.mrb[0].mxu0
      %3549 = vmatprep.mubr.f32.mxu0 0.0
      %3550 = vmatmul.mubr.f32.gmra.mrb[0].mxu0 %v3367
      %v3551 = vpop.f32.mrb[0].mxu0
      %v3552 = vadd.f32 0.0, %v3551
      %v3553 = vpop.f32.mrb[0].mxu0
      %3554 = vmatprep.mubr.f32.mxu0 0.0
      %3555 = vmatmul.mubr.f32.gmra.mrb[0].mxu0 %v3370
      %v3556 = vpop.f32.mrb[0].mxu0
      %v3557 = vadd.f32 0.0, %v3556
      %v3558 = vpop.f32.mrb[0].mxu0
      %3559 = vmatprep.mubr.f32.mxu0 0.0
      %3560 = vmatmul.mubr.f32.gmra.mrb[0].mxu0 %v3373
      %v3561 = vpop.f32.mrb[0].mxu0
      %v3562 = vadd.f32 0.0, %v3561
      %v3563 = vpop.f32.mrb[0].mxu0
      %3564 = vmatprep.mubr.f32.mxu0 0.0
      %3565 = vmatmul.mubr.f32.gmra.mrb[0].mxu0 %v3376
      %v3566 = vpop.f32.mrb[0].mxu0
      %v3567 = vadd.f32 0.0, %v3566
      %v3568 = vpop.f32.mrb[0].mxu0
      %3569 = vmatprep.mubr.f32.mxu0 0.0
      %3570 = vmatmul.mubr.f32.gmra.mrb[0].mxu0 %v3379
      %v3571 = vpop.f32.mrb[0].mxu0
      %v3572 = vadd.f32 0.0, %v3571
      %v3573 = vpop.f32.mrb[0].mxu0
      %3574 = vmatprep.mubr.f32.mxu0 0.0
      %3575 = vmatmul.mubr.f32.gmra.mrb[0].mxu0 %v3382
      %v3576 = vpop.f32.mrb[0].mxu0
      %v3577 = vadd.f32 0.0, %v3576
      %v3578 = vpop.f32.mrb[0].mxu0
      %3579 = vmatprep.mubr.f32.mxu0 0.0
      %3580 = vmatmul.mubr.f32.gmra.mrb[0].mxu0 %v3385
      %v3581 = vpop.f32.mrb[0].mxu0
      %v3582 = vadd.f32 0.0, %v3581
      %v3583 = vpop.f32.mrb[0].mxu0
      %3584 = vmatprep.mubr.f32.mxu0 0.0
      %3585 = vmatmul.mubr.f32.gmra.mrb[0].mxu0 %v3388
      %v3586 = vpop.f32.mrb[0].mxu0
      %v3587 = vadd.f32 0.0, %v3586
      %v3588 = vpop.f32.mrb[0].mxu0
      %3589 = vmatprep.mubr.f32.mxu0 0.0
      %3590 = vmatmul.mubr.f32.gmra.mrb[0].mxu0 %v3391
      %v3591 = vpop.f32.mrb[0].mxu0
      %v3592 = vadd.f32 0.0, %v3591
      %v3593 = vpop.f32.mrb[0].mxu0
      %3594 = vmatprep.mubr.f32.mxu0 0.0
      %3595 = vmatmul.mubr.f32.gmra.mrb[0].mxu0 %v3394
      %v3596 = vpop.f32.mrb[0].mxu0
      %v3597 = vadd.f32 0.0, %v3596
      %v3598 = vpop.f32.mrb[0].mxu0
      %3599 = vmatprep.mubr.f32.mxu0 0.0
      %3600 = vmatmul.mubr.f32.gmra.mrb[0].mxu0 %v3397
      %v3601 = vpop.f32.mrb[0].mxu0
      %v3602 = vadd.f32 0.0, %v3601
      %v3603 = vpop.f32.mrb[0].mxu0
      %3604 = vmatprep.mubr.f32.mxu0 0.0
      %3605 = vmatmul.mubr.f32.gmra.mrb[0].mxu0 %v3400
      %v3606 = vpop.f32.mrb[0].mxu0
      %v3607 = vadd.f32 0.0, %v3606
      %v3608 = vpop.f32.mrb[0].mxu0
      %3609 = vmatprep.mubr.f32.mxu0 0.0
      %3610 = vmatmul.mubr.f32.gmra.mrb[0].mxu0 %v3403
      %v3611 = vpop.f32.mrb[0].mxu0
      %v3612 = vadd.f32 0.0, %v3611
      %v3613 = vpop.f32.mrb[0].mxu0
      %3614 = vmatprep.mubr.f32.mxu0 0.0
      %3615 = vmatmul.mubr.f32.gmra.mrb[0].mxu0 %v3406
      %v3616 = vpop.f32.mrb[0].mxu0
      %v3617 = vadd.f32 0.0, %v3616
      %v3618 = vpop.f32.mrb[0].mxu0
      %3619 = vmatprep.mubr.f32.mxu0 0.0
      %3620 = vmatmul.mubr.f32.gmra.mrb[0].mxu0 %v3409
      %v3621 = vpop.f32.mrb[0].mxu0
      %v3622 = vadd.f32 0.0, %v3621
      %v3623 = vpop.f32.mrb[0].mxu0
      %3624 = vmatprep.mubr.f32.mxu0 0.0
      %3625 = vmatmul.mubr.f32.gmra.mrb[0].mxu0 %v3412
      %v3626 = vpop.f32.mrb[0].mxu0
      %v3627 = vadd.f32 0.0, %v3626
      %v3628 = vpop.f32.mrb[0].mxu0
      %3629 = vmatprep.mubr.f32.mxu0 0.0
      %3630 = vmatmul.mubr.f32.gmra.mrb[0].mxu0 %v3415
      %v3631 = vpop.f32.mrb[0].mxu0
      %v3632 = vadd.f32 0.0, %v3631
      %v3633 = vpop.f32.mrb[0].mxu0
      %3634 = vmatprep.mubr.f32.mxu0 0.0
      %3635 = vmatmul.mubr.f32.gmra.mrb[0].mxu0 %v3418
      %v3636 = vpop.f32.mrb[0].mxu0
      %v3637 = vadd.f32 0.0, %v3636
      %v3638 = vpop.f32.mrb[0].mxu0
      %3639 = vmatprep.mubr.f32.mxu0 0.0
      %3640 = vmatmul.mubr.f32.gmra.mrb[0].mxu0 %v3421
      %v3641 = vpop.f32.mrb[0].mxu0
      %v3642 = vadd.f32 0.0, %v3641
      %v3643 = vpop.f32.mrb[0].mxu0
      %3644 = vmatprep.mubr.f32.mxu0 0.0
      %3645 = vmatmul.mubr.f32.gmra.mrb[0].mxu0 %v3424
      %v3646 = vpop.f32.mrb[0].mxu0
      %v3647 = vadd.f32 0.0, %v3646
      %v3648 = vpop.f32.mrb[0].mxu0
      %3649 = vmatprep.mubr.f32.mxu0 0.0
      %3650 = vmatmul.mubr.f32.gmra.mrb[0].mxu0 %v3427
      %v3651 = vpop.f32.mrb[0].mxu0
      %v3652 = vadd.f32 0.0, %v3651
      %v3653 = vpop.f32.mrb[0].mxu0
      %3654 = vmatprep.mubr.f32.mxu0 0.0
      %3655 = vmatmul.mubr.f32.gmra.mrb[0].mxu0 %v3430
      %v3656 = vpop.f32.mrb[0].mxu0
      %v3657 = vadd.f32 0.0, %v3656
      %v3658 = vpop.f32.mrb[0].mxu0
      %3659 = vdwg.mxu0
      %v3660 = vadd.f32 %v3270, %v3502
      %v3661 = vadd.f32 %v3271, %v3507
      %v3662 = vadd.f32 %v3272, %v3512
      %v3663 = vadd.f32 %v3273, %v3517
      %v3664 = vadd.f32 %v3274, %v3522
      %v3665 = vadd.f32 %v3275, %v3527
      %v3666 = vadd.f32 %v3276, %v3532
      %v3667 = vadd.f32 %v3277, %v3537
      %v3668 = vadd.f32 %v3278, %v3542
      %v3669 = vadd.f32 %v3279, %v3547
      %v3670 = vadd.f32 %v3280, %v3552
      %v3671 = vadd.f32 %v3281, %v3557
      %v3672 = vadd.f32 %v3282, %v3562
      %v3673 = vadd.f32 %v3283, %v3567
      %v3674 = vadd.f32 %v3284, %v3572
      %v3675 = vadd.f32 %v3285, %v3577
      %v3676 = vadd.f32 %v3286, %v3582
      %v3677 = vadd.f32 %v3287, %v3587
      %v3678 = vadd.f32 %v3288, %v3592
      %v3679 = vadd.f32 %v3289, %v3597
      %v3680 = vadd.f32 %v3290, %v3602
      %v3681 = vadd.f32 %v3291, %v3607
      %v3682 = vadd.f32 %v3292, %v3612
      %v3683 = vadd.f32 %v3293, %v3617
      %v3684 = vadd.f32 %v3294, %v3622
      %v3685 = vadd.f32 %v3295, %v3627
      %v3686 = vadd.f32 %v3296, %v3632
      %v3687 = vadd.f32 %v3297, %v3637
      %v3688 = vadd.f32 %v3298, %v3642
      %v3689 = vadd.f32 %v3299, %v3647
      %v3690 = vadd.f32 %v3300, %v3652
      %v3691 = vadd.f32 %v3301, %v3657
      %v3692 = vmax.f32 %v3660, 0.0
      %v3693 = vmax.f32 %v3661, 0.0
      %v3694 = vmax.f32 %v3662, 0.0
      %v3695 = vmax.f32 %v3663, 0.0
      %v3696 = vmax.f32 %v3664, 0.0
      %v3697 = vmax.f32 %v3665, 0.0
      %v3698 = vmax.f32 %v3666, 0.0
      %v3699 = vmax.f32 %v3667, 0.0
      %v3700 = vmax.f32 %v3668, 0.0
      %v3701 = vmax.f32 %v3669, 0.0
      %v3702 = vmax.f32 %v3670, 0.0
      %v3703 = vmax.f32 %v3671, 0.0
      %v3704 = vmax.f32 %v3672, 0.0
      %v3705 = vmax.f32 %v3673, 0.0
      %v3706 = vmax.f32 %v3674, 0.0
      %v3707 = vmax.f32 %v3675, 0.0
      %v3708 = vmax.f32 %v3676, 0.0
      %v3709 = vmax.f32 %v3677, 0.0
      %v3710 = vmax.f32 %v3678, 0.0
      %v3711 = vmax.f32 %v3679, 0.0
      %v3712 = vmax.f32 %v3680, 0.0
      %v3713 = vmax.f32 %v3681, 0.0
      %v3714 = vmax.f32 %v3682, 0.0
      %v3715 = vmax.f32 %v3683, 0.0
      %v3716 = vmax.f32 %v3684, 0.0
      %v3717 = vmax.f32 %v3685, 0.0
      %v3718 = vmax.f32 %v3686, 0.0
      %v3719 = vmax.f32 %v3687, 0.0
      %v3720 = vmax.f32 %v3688, 0.0
      %v3721 = vmax.f32 %v3689, 0.0
      %v3722 = vmax.f32 %v3690, 0.0
      %v3723 = vmax.f32 %v3691, 0.0
      %vm3724 = vcmask 64512
      %3725 = vst.msk [vmem:[%s170] sm:$0xff] %vm3724, %v3692
      %3726 = vst.msk [vmem:[%s170 + $0x8] sm:$0xff] %vm3724, %v3693
      %3727 = vst.msk [vmem:[%s170 + $0x10] sm:$0xff] %vm3724, %v3694
      %3728 = vst.msk [vmem:[%s170 + $0x18] sm:$0xff] %vm3724, %v3695
      %3729 = vst.msk [vmem:[%s170 + $0x20] sm:$0xff] %vm3724, %v3696
      %3730 = vst.msk [vmem:[%s170 + $0x28] sm:$0xff] %vm3724, %v3697
      %3731 = vst.msk [vmem:[%s170 + $0x30] sm:$0xff] %vm3724, %v3698
      %3732 = vst.msk [vmem:[%s170 + $0x38] sm:$0xff] %vm3724, %v3699
      %3733 = vst.msk [vmem:[%s170 + $0x40] sm:$0xff] %vm3724, %v3700
      %3734 = vst.msk [vmem:[%s170 + $0x48] sm:$0xff] %vm3724, %v3701
      %3735 = vst.msk [vmem:[%s170 + $0x50] sm:$0xff] %vm3724, %v3702
      %3736 = vst.msk [vmem:[%s170 + $0x58] sm:$0xff] %vm3724, %v3703
      %3737 = vst.msk [vmem:[%s170 + $0x60] sm:$0xff] %vm3724, %v3704
      %3738 = vst.msk [vmem:[%s170 + $0x68] sm:$0xff] %vm3724, %v3705
      %3739 = vst.msk [vmem:[%s170 + $0x70] sm:$0xff] %vm3724, %v3706
      %3740 = vst.msk [vmem:[%s170 + $0x78] sm:$0xff] %vm3724, %v3707
      %3741 = vst.msk [vmem:[%s170 + $0x80] sm:$0xff] %vm3724, %v3708
      %3742 = vst.msk [vmem:[%s170 + $0x88] sm:$0xff] %vm3724, %v3709
      %3743 = vst.msk [vmem:[%s170 + $0x90] sm:$0xff] %vm3724, %v3710
      %3744 = vst.msk [vmem:[%s170 + $0x98] sm:$0xff] %vm3724, %v3711
      %3745 = vst.msk [vmem:[%s170 + $0xa0] sm:$0xff] %vm3724, %v3712
      %3746 = vst.msk [vmem:[%s170 + $0xa8] sm:$0xff] %vm3724, %v3713
      %3747 = vst.msk [vmem:[%s170 + $0xb0] sm:$0xff] %vm3724, %v3714
      %3748 = vst.msk [vmem:[%s170 + $0xb8] sm:$0xff] %vm3724, %v3715
      %3749 = vst.msk [vmem:[%s170 + $0xc0] sm:$0xff] %vm3724, %v3716
      %3750 = vst.msk [vmem:[%s170 + $0xc8] sm:$0xff] %vm3724, %v3717
      %3751 = vst.msk [vmem:[%s170 + $0xd0] sm:$0xff] %vm3724, %v3718
      %3752 = vst.msk [vmem:[%s170 + $0xd8] sm:$0xff] %vm3724, %v3719
      %3753 = vst.msk [vmem:[%s170 + $0xe0] sm:$0xff] %vm3724, %v3720
      %3754 = vst.msk [vmem:[%s170 + $0xe8] sm:$0xff] %vm3724, %v3721
      %3755 = vst.msk [vmem:[%s170 + $0xf0] sm:$0xff] %vm3724, %v3722
      %3756 = vst.msk [vmem:[%s170 + $0xf8] sm:$0xff] %vm3724, %v3723
      %p3757 = scmp.lt.s32.totalorder %s14, 1
      %s3758 = scalar_select %p3757, %s14, 1
      %s3759 = smul.addr %s3758, 32
      %s3760 = smul.addr %s3759, 8
      %s3761 = scalar_lea.vmem %s3, %s3760
      // Predicated region
      $region33: #{conv_classifier_forward.5} parent=31 // pred_check
        %p3762 = pneg %p100
      $region34: #{conv_classifier_forward.5} parent=31 // pred_check_branch
        %3764 = sbr.rel (%p3762) target = $region36
      $region35: #{conv_classifier_forward.5} parent=31 // pred_region
        _
      $region36: #{conv_classifier_forward.5} parent=31 // pred_fallthru
        _
    $region32: #{conv_classifier_forward.5} parent=5 // pred_fallthru
      _
    %p3765 = scmp.le.s32.totalorder 2, %s9
    // Predicated region
    $region37: #{conv_classifier_forward.5} parent=5 // pred_check
      %p3766 = pneg %p3765
    $region38: #{conv_classifier_forward.5} parent=5 // pred_check_branch
      %3768 = sbr.rel (%p3766) target = $region40
    $region39: #{conv_classifier_forward.5} parent=5 // pred_region
      %s3769 = ssub.s32 %s9, 2
      // Predicated region
      $region41: #{conv_classifier_forward.5} parent=39 // pred_check
        %p3770 = pneg %p106
      $region42: #{conv_classifier_forward.5} parent=39 // pred_check_branch
        %3772 = sbr.rel (%p3770) target = $region44
      $region43: #{conv_classifier_forward.5} parent=39 // pred_region
        %p3773 = scmp.lt.s32.totalorder %s15, 1
        %s3774 = scalar_select %p3773, %s15, 1
        %s3775 = smul.addr %s3774, 32
        %s3776 = smul.addr %s3775, 8
        %s3777 = scalar_lea.vmem %s3, %s3776
      $region44: #{conv_classifier_forward.5} parent=39 // pred_fallthru
        _
    $region40: #{conv_classifier_forward.5} parent=5 // pred_fallthru
      _
  $region6: #{conv_classifier_forward.5} parent=0 // loop_footer
    %s13 = sadd.s32 1, %s9
  $region7: #{conv_classifier_forward.5} parent=0 // loop_footer_branch
    %8 = sbr.rel target = $region3
  $region8: #{conv_classifier_forward.5} parent=0 // loop_exit
    _

// kernel: conv_classifier_forward.8
$region0: #{conv_classifier_forward.8}
  #allocation0 [shape = 'u32[]', space=smem, size = 0x4, offset = 0x4, fixed_abs, tag = 'smem constant byte address 0x4 - core index']
  #allocation1 [shape = 'u32[144,128]{1,0:T(1,128)}', space=vmem, size = 0x12000, scoped, tag = 'internal scratch']
  #allocation2 [shape = 'f32[8,128]{1,0:T(8,128)}', space=vmem, size = 0x1000, scoped, tag = 'scratch operand']
  %s0 = inlined_call_operand.vmem [shape: f32[8,512], index: 0, kind: input, shape index: {}]
  %s1 = inlined_call_operand.vmem [shape: f32[512,128], index: 1, kind: input, shape index: {}]
  %s2 = inlined_call_operand.vmem [shape: f32[1,128], index: 2, kind: input, shape index: {}]
  %s3 = inlined_call_operand.vmem [shape: f32[8,128], index: 3, kind: output, shape index: {}]
  %s4 = sld [smem:[#allocation0]]
  $region30: #{conv_classifier_forward.8} parent=0
    _
  %s6 = ssub.s32 1, %s4
  %s7 = scalar_select 0, %s6, %s4
  // Predicated region
  $region2: #{conv_classifier_forward.8} parent=0 // pred_check
    _
  $region3: #{conv_classifier_forward.8} parent=0 // pred_check_branch
    %9 = sbr.rel (0) target = $region5
  $region4: #{conv_classifier_forward.8} parent=0 // pred_region
    _
  $region5: #{conv_classifier_forward.8} parent=0 // pred_fallthru
    _
  // Predicated region
  $region6: #{conv_classifier_forward.8} parent=0 // pred_check
    _
  $region7: #{conv_classifier_forward.8} parent=0 // pred_check_branch
    %11 = sbr.rel (0) target = $region9
  $region8: #{conv_classifier_forward.8} parent=0 // pred_region
    _
  $region9: #{conv_classifier_forward.8} parent=0 // pred_fallthru
    _
  // Predicated region
  $region10: #{conv_classifier_forward.8} parent=0 // pred_check
    _
  $region11: #{conv_classifier_forward.8} parent=0 // pred_check_branch
    %13 = sbr.rel (0) target = $region13
  $region12: #{conv_classifier_forward.8} parent=0 // pred_region
    _
  $region13: #{conv_classifier_forward.8} parent=0 // pred_fallthru
    _
  %p14 = scmp.eq.s32.totalorder 0, 0
  // Predicated region
  $region14: #{conv_classifier_forward.8} parent=0 // pred_check
    %p15 = pneg %p14
  $region15: #{conv_classifier_forward.8} parent=0 // pred_check_branch
    %17 = sbr.rel (%p15) target = $region17
  $region16: #{conv_classifier_forward.8} parent=0 // pred_region
    %v18 = vld [vmem:[%s2] sm:$0x1]
    %v20 = vlaneseq
    %v21 = vshrl.u32 %v20, 7
    %v22 = vsub.s32 0, %v21
    %v23 = vrot.slane %v18, %v22
    %v25 = vadd.f32 %v23, 0.0
    %26 = vst [vmem:[#allocation2] sm:$0xff] %v25
  $region17: #{conv_classifier_forward.8} parent=0 // pred_fallthru
    _
  %v27 = vld [vmem:[#allocation2] sm:$0xff]
  %v28 = vld [vmem:[%s0] sm:$0xff]
  %v29 = vld [vmem:[%s0 + $0x8] sm:$0xff]
  %v30 = vld [vmem:[%s0 + $0x10] sm:$0xff]
  %v31 = vld [vmem:[%s0 + $0x18] sm:$0xff]
  %v32 = vld [vmem:[%s1] sm:$0xff]
  %v33 = vld [vmem:[%s1 + $0x8] sm:$0xff]
  %v34 = vld [vmem:[%s1 + $0x10] sm:$0xff]
  %v35 = vld [vmem:[%s1 + $0x18] sm:$0xff]
  %v36 = vld [vmem:[%s1 + $0x20] sm:$0xff]
  %v37 = vld [vmem:[%s1 + $0x28] sm:$0xff]
  %v38 = vld [vmem:[%s1 + $0x30] sm:$0xff]
  %v39 = vld [vmem:[%s1 + $0x38] sm:$0xff]
  %v40 = vld [vmem:[%s1 + $0x40] sm:$0xff]
  %v41 = vld [vmem:[%s1 + $0x48] sm:$0xff]
  %v42 = vld [vmem:[%s1 + $0x50] sm:$0xff]
  %v43 = vld [vmem:[%s1 + $0x58] sm:$0xff]
  %v44 = vld [vmem:[%s1 + $0x60] sm:$0xff]
  %v45 = vld [vmem:[%s1 + $0x68] sm:$0xff]
  %v46 = vld [vmem:[%s1 + $0x70] sm:$0xff]
  %v47 = vld [vmem:[%s1 + $0x78] sm:$0xff]
  %v48 = vld [vmem:[%s1 + $0x80] sm:$0xff]
  %v49 = vld [vmem:[%s1 + $0x88] sm:$0xff]
  %v50 = vld [vmem:[%s1 + $0x90] sm:$0xff]
  %v51 = vld [vmem:[%s1 + $0x98] sm:$0xff]
  %v52 = vld [vmem:[%s1 + $0xa0] sm:$0xff]
  %v53 = vld [vmem:[%s1 + $0xa8] sm:$0xff]
  %v54 = vld [vmem:[%s1 + $0xb0] sm:$0xff]
  %v55 = vld [vmem:[%s1 + $0xb8] sm:$0xff]
  %v56 = vld [vmem:[%s1 + $0xc0] sm:$0xff]
  %v57 = vld [vmem:[%s1 + $0xc8] sm:$0xff]
  %v58 = vld [vmem:[%s1 + $0xd0] sm:$0xff]
  %v59 = vld [vmem:[%s1 + $0xd8] sm:$0xff]
  %v60 = vld [vmem:[%s1 + $0xe0] sm:$0xff]
  %v61 = vld [vmem:[%s1 + $0xe8] sm:$0xff]
  %v62 = vld [vmem:[%s1 + $0xf0] sm:$0xff]
  %v63 = vld [vmem:[%s1 + $0xf8] sm:$0xff]
  %v64 = vld [vmem:[%s1 + $0x100] sm:$0xff]
  %v65 = vld [vmem:[%s1 + $0x108] sm:$0xff]
  %v66 = vld [vmem:[%s1 + $0x110] sm:$0xff]
  %v67 = vld [vmem:[%s1 + $0x118] sm:$0xff]
  %v68 = vld [vmem:[%s1 + $0x120] sm:$0xff]
  %v69 = vld [vmem:[%s1 + $0x128] sm:$0xff]
  %v70 = vld [vmem:[%s1 + $0x130] sm:$0xff]
  %v71 = vld [vmem:[%s1 + $0x138] sm:$0xff]
  %v72 = vld [vmem:[%s1 + $0x140] sm:$0xff]
  %v73 = vld [vmem:[%s1 + $0x148] sm:$0xff]
  %v74 = vld [vmem:[%s1 + $0x150] sm:$0xff]
  %v75 = vld [vmem:[%s1 + $0x158] sm:$0xff]
  %v76 = vld [vmem:[%s1 + $0x160] sm:$0xff]
  %v77 = vld [vmem:[%s1 + $0x168] sm:$0xff]
  %v78 = vld [vmem:[%s1 + $0x170] sm:$0xff]
  %v79 = vld [vmem:[%s1 + $0x178] sm:$0xff]
  %v80 = vld [vmem:[%s1 + $0x180] sm:$0xff]
  %v81 = vld [vmem:[%s1 + $0x188] sm:$0xff]
  %v82 = vld [vmem:[%s1 + $0x190] sm:$0xff]
  %v83 = vld [vmem:[%s1 + $0x198] sm:$0xff]
  %v84 = vld [vmem:[%s1 + $0x1a0] sm:$0xff]
  %v85 = vld [vmem:[%s1 + $0x1a8] sm:$0xff]
  %v86 = vld [vmem:[%s1 + $0x1b0] sm:$0xff]
  %v87 = vld [vmem:[%s1 + $0x1b8] sm:$0xff]
  %v88 = vld [vmem:[%s1 + $0x1c0] sm:$0xff]
  %v89 = vld [vmem:[%s1 + $0x1c8] sm:$0xff]
  %v90 = vld [vmem:[%s1 + $0x1d0] sm:$0xff]
  %v91 = vld [vmem:[%s1 + $0x1d8] sm:$0xff]
  %v92 = vld [vmem:[%s1 + $0x1e0] sm:$0xff]
  %v93 = vld [vmem:[%s1 + $0x1e8] sm:$0xff]
  %v94 = vld [vmem:[%s1 + $0x1f0] sm:$0xff]
  %v95 = vld [vmem:[%s1 + $0x1f8] sm:$0xff]
  %96 = vmatprep.subr.mxu0 0.0
  %97 = vmatpush1.msra.mxu0 %v32
  %98 = vmatprep.subr.mxu0 0.0
  %99 = vmatpush1.msra.mxu0 %v33
  %100 = vmatprep.subr.mxu0 0.0
  %101 = vmatpush1.msra.mxu0 %v34
  %102 = vmatprep.subr.mxu0 0.0
  %103 = vmatpush1.msra.mxu0 %v35
  %104 = vmatprep.subr.mxu0 0.0
  %105 = vmatpush1.msra.mxu0 %v36
  %106 = vmatprep.subr.mxu0 0.0
  %107 = vmatpush1.msra.mxu0 %v37
  %108 = vmatprep.subr.mxu0 0.0
  %109 = vmatpush1.msra.mxu0 %v38
  %110 = vmatprep.subr.mxu0 0.0
  %111 = vmatpush1.msra.mxu0 %v39
  %112 = vmatprep.subr.mxu0 0.0
  %113 = vmatpush1.msra.mxu0 %v40
  %114 = vmatprep.subr.mxu0 0.0
  %115 = vmatpush1.msra.mxu0 %v41
  %116 = vmatprep.subr.mxu0 0.0
  %117 = vmatpush1.msra.mxu0 %v42
  %118 = vmatprep.subr.mxu0 0.0
  %119 = vmatpush1.msra.mxu0 %v43
  %120 = vmatprep.subr.mxu0 0.0
  %121 = vmatpush1.msra.mxu0 %v44
  %122 = vmatprep.subr.mxu0 0.0
  %123 = vmatpush1.msra.mxu0 %v45
  %124 = vmatprep.subr.mxu0 0.0
  %125 = vmatpush1.msra.mxu0 %v46
  %126 = vmatprep.subr.mxu0 0.0
  %127 = vmatpush1.msra.mxu0 %v47
  %128 = vmatprep.subr.mxu0 0.0
  %129 = vmatpush1.msra.mxu0 %v48
  %130 = vmatprep.subr.mxu0 0.0
  %131 = vmatpush1.msra.mxu0 %v49
  %132 = vmatprep.subr.mxu0 0.0
  %133 = vmatpush1.msra.mxu0 %v50
  %134 = vmatprep.subr.mxu0 0.0
  %135 = vmatpush1.msra.mxu0 %v51
  %136 = vmatprep.subr.mxu0 0.0
  %137 = vmatpush1.msra.mxu0 %v52
  %138 = vmatprep.subr.mxu0 0.0
  %139 = vmatpush1.msra.mxu0 %v53
  %140 = vmatprep.subr.mxu0 0.0
  %141 = vmatpush1.msra.mxu0 %v54
  %142 = vmatprep.subr.mxu0 0.0
  %143 = vmatpush1.msra.mxu0 %v55
  %144 = vmatprep.subr.mxu0 0.0
  %145 = vmatpush1.msra.mxu0 %v56
  %146 = vmatprep.subr.mxu0 0.0
  %147 = vmatpush1.msra.mxu0 %v57
  %148 = vmatprep.subr.mxu0 0.0
  %149 = vmatpush1.msra.mxu0 %v58
  %150 = vmatprep.subr.mxu0 0.0
  %151 = vmatpush1.msra.mxu0 %v59
  %152 = vmatprep.subr.mxu0 0.0
  %153 = vmatpush1.msra.mxu0 %v60
  %154 = vmatprep.subr.mxu0 0.0
  %155 = vmatpush1.msra.mxu0 %v61
  %156 = vmatprep.subr.mxu0 0.0
  %157 = vmatpush1.msra.mxu0 %v62
  %158 = vmatprep.subr.mxu0 0.0
  %159 = vmatpush1.msra.mxu0 %v63
  %160 = vmatprep.mubr.f32.mxu0 %v29
  %161 = vmatmul.mubr.f32.gmra.mrb[0].mxu0 %v28
  %v162 = vpop.f32.mrb[0].mxu0
  %v163 = vadd.f32 0.0, %v162
  %v164 = vpop.f32.mrb[0].mxu0
  %165 = vdwg.mxu0
  %166 = vmatprep.subr.mxu0 0.0
  %167 = vmatpush1.msra.mxu0 %v64
  %168 = vmatprep.subr.mxu0 0.0
  %169 = vmatpush1.msra.mxu0 %v65
  %170 = vmatprep.subr.mxu0 0.0
  %171 = vmatpush1.msra.mxu0 %v66
  %172 = vmatprep.subr.mxu0 0.0
  %173 = vmatpush1.msra.mxu0 %v67
  %174 = vmatprep.subr.mxu0 0.0
  %175 = vmatpush1.msra.mxu0 %v68
  %176 = vmatprep.subr.mxu0 0.0
  %177 = vmatpush1.msra.mxu0 %v69
  %178 = vmatprep.subr.mxu0 0.0
  %179 = vmatpush1.msra.mxu0 %v70
  %180 = vmatprep.subr.mxu0 0.0
  %181 = vmatpush1.msra.mxu0 %v71
  %182 = vmatprep.subr.mxu0 0.0
  %183 = vmatpush1.msra.mxu0 %v72
  %184 = vmatprep.subr.mxu0 0.0
  %185 = vmatpush1.msra.mxu0 %v73
  %186 = vmatprep.subr.mxu0 0.0
  %187 = vmatpush1.msra.mxu0 %v74
  %188 = vmatprep.subr.mxu0 0.0
  %189 = vmatpush1.msra.mxu0 %v75
  %190 = vmatprep.subr.mxu0 0.0
  %191 = vmatpush1.msra.mxu0 %v76
  %192 = vmatprep.subr.mxu0 0.0
  %193 = vmatpush1.msra.mxu0 %v77
  %194 = vmatprep.subr.mxu0 0.0
  %195 = vmatpush1.msra.mxu0 %v78
  %196 = vmatprep.subr.mxu0 0.0
  %197 = vmatpush1.msra.mxu0 %v79
  %198 = vmatprep.subr.mxu0 0.0
  %199 = vmatpush1.msra.mxu0 %v80
  %200 = vmatprep.subr.mxu0 0.0
  %201 = vmatpush1.msra.mxu0 %v81
  %202 = vmatprep.subr.mxu0 0.0
  %203 = vmatpush1.msra.mxu0 %v82
  %204 = vmatprep.subr.mxu0 0.0
  %205 = vmatpush1.msra.mxu0 %v83
  %206 = vmatprep.subr.mxu0 0.0
  %207 = vmatpush1.msra.mxu0 %v84
  %208 = vmatprep.subr.mxu0 0.0
  %209 = vmatpush1.msra.mxu0 %v85
  %210 = vmatprep.subr.mxu0 0.0
  %211 = vmatpush1.msra.mxu0 %v86
  %212 = vmatprep.subr.mxu0 0.0
  %213 = vmatpush1.msra.mxu0 %v87
  %214 = vmatprep.subr.mxu0 0.0
  %215 = vmatpush1.msra.mxu0 %v88
  %216 = vmatprep.subr.mxu0 0.0
  %217 = vmatpush1.msra.mxu0 %v89
  %218 = vmatprep.subr.mxu0 0.0
  %219 = vmatpush1.msra.mxu0 %v90
  %220 = vmatprep.subr.mxu0 0.0
  %221 = vmatpush1.msra.mxu0 %v91
  %222 = vmatprep.subr.mxu0 0.0
  %223 = vmatpush1.msra.mxu0 %v92
  %224 = vmatprep.subr.mxu0 0.0
  %225 = vmatpush1.msra.mxu0 %v93
  %226 = vmatprep.subr.mxu0 0.0
  %227 = vmatpush1.msra.mxu0 %v94
  %228 = vmatprep.subr.mxu0 0.0
  %229 = vmatpush1.msra.mxu0 %v95
  %230 = vmatprep.mubr.f32.mxu0 %v31
  %231 = vmatmul.mubr.f32.gmra.mrb[0].mxu0 %v30
  %v232 = vpop.f32.mrb[0].mxu0
  %v233 = vadd.f32 %v163, %v232
  %v234 = vpop.f32.mrb[0].mxu0
  %235 = vdwg.mxu0
  %v236 = vadd.f32 %v27, %v233
  %237 = vst [vmem:[#allocation2] sm:$0xff] %v236
  // Predicated region
  $region18: #{conv_classifier_forward.8} parent=0 // pred_check
    %p238 = pneg %p14
  $region19: #{conv_classifier_forward.8} parent=0 // pred_check_branch
    %240 = sbr.rel (%p238) target = $region21
  $region20: #{conv_classifier_forward.8} parent=0 // pred_region
    %v241 = vld [vmem:[#allocation2] sm:$0xff]
    %v242 = vmax.f32 %v241, 0.0
    %243 = vst [vmem:[%s3] sm:$0xff] %v242
  $region21: #{conv_classifier_forward.8} parent=0 // pred_fallthru
    _
  // Predicated region
  $region22: #{conv_classifier_forward.8} parent=0 // pred_check
    _
  $region23: #{conv_classifier_forward.8} parent=0 // pred_check_branch
    %245 = sbr.rel (0) target = $region25
  $region24: #{conv_classifier_forward.8} parent=0 // pred_region
    _
  $region25: #{conv_classifier_forward.8} parent=0 // pred_fallthru
    _
  // Predicated region
  $region26: #{conv_classifier_forward.8} parent=0 // pred_check
    _
  $region27: #{conv_classifier_forward.8} parent=0 // pred_check_branch
    %247 = sbr.rel (0) target = $region29
  $region28: #{conv_classifier_forward.8} parent=0 // pred_region
    _
  $region29: #{conv_classifier_forward.8} parent=0 // pred_fallthru
    _

// kernel: conv_classifier_forward.9
$region0: #{conv_classifier_forward.9}
  #allocation0 [shape = 'u32[]', space=smem, size = 0x4, offset = 0x4, fixed_abs, tag = 'smem constant byte address 0x4 - core index']
  #allocation1 [shape = 'u32[144,128]{1,0:T(1,128)}', space=vmem, size = 0x12000, scoped, tag = 'internal scratch']
  #allocation2 [shape = 'f32[8,128]{1,0:T(8,128)}', space=vmem, size = 0x1000, scoped, tag = 'scratch operand']
  %s0 = inlined_call_operand.vmem [shape: f32[8,128], index: 0, kind: input, shape index: {}]
  %s1 = inlined_call_operand.vmem [shape: f32[128,128], index: 1, kind: input, shape index: {}]
  %s2 = inlined_call_operand.vmem [shape: f32[1,128], index: 2, kind: input, shape index: {}]
  %s3 = inlined_call_operand.vmem [shape: f32[8,128], index: 3, kind: output, shape index: {}]
  %s4 = sld [smem:[#allocation0]]
  $region30: #{conv_classifier_forward.9} parent=0
    _
  %s6 = ssub.s32 1, %s4
  %s7 = scalar_select 0, %s6, %s4
  // Predicated region
  $region2: #{conv_classifier_forward.9} parent=0 // pred_check
    _
  $region3: #{conv_classifier_forward.9} parent=0 // pred_check_branch
    %9 = sbr.rel (0) target = $region5
  $region4: #{conv_classifier_forward.9} parent=0 // pred_region
    _
  $region5: #{conv_classifier_forward.9} parent=0 // pred_fallthru
    _
  // Predicated region
  $region6: #{conv_classifier_forward.9} parent=0 // pred_check
    _
  $region7: #{conv_classifier_forward.9} parent=0 // pred_check_branch
    %11 = sbr.rel (0) target = $region9
  $region8: #{conv_classifier_forward.9} parent=0 // pred_region
    _
  $region9: #{conv_classifier_forward.9} parent=0 // pred_fallthru
    _
  // Predicated region
  $region10: #{conv_classifier_forward.9} parent=0 // pred_check
    _
  $region11: #{conv_classifier_forward.9} parent=0 // pred_check_branch
    %13 = sbr.rel (0) target = $region13
  $region12: #{conv_classifier_forward.9} parent=0 // pred_region
    _
  $region13: #{conv_classifier_forward.9} parent=0 // pred_fallthru
    _
  %p14 = scmp.eq.s32.totalorder 0, 0
  // Predicated region
  $region14: #{conv_classifier_forward.9} parent=0 // pred_check
    %p15 = pneg %p14
  $region15: #{conv_classifier_forward.9} parent=0 // pred_check_branch
    %17 = sbr.rel (%p15) target = $region17
  $region16: #{conv_classifier_forward.9} parent=0 // pred_region
    %v18 = vld [vmem:[%s2] sm:$0x1]
    %v20 = vlaneseq
    %v21 = vshrl.u32 %v20, 7
    %v22 = vsub.s32 0, %v21
    %v23 = vrot.slane %v18, %v22
    %v25 = vadd.f32 %v23, 0.0
    %26 = vst [vmem:[#allocation2] sm:$0xff] %v25
  $region17: #{conv_classifier_forward.9} parent=0 // pred_fallthru
    _
  %v27 = vld [vmem:[#allocation2] sm:$0xff]
  %v28 = vld [vmem:[%s0] sm:$0xff]
  %v29 = vld [vmem:[%s1] sm:$0xff]
  %v30 = vld [vmem:[%s1 + $0x8] sm:$0xff]
  %v31 = vld [vmem:[%s1 + $0x10] sm:$0xff]
  %v32 = vld [vmem:[%s1 + $0x18] sm:$0xff]
  %v33 = vld [vmem:[%s1 + $0x20] sm:$0xff]
  %v34 = vld [vmem:[%s1 + $0x28] sm:$0xff]
  %v35 = vld [vmem:[%s1 + $0x30] sm:$0xff]
  %v36 = vld [vmem:[%s1 + $0x38] sm:$0xff]
  %v37 = vld [vmem:[%s1 + $0x40] sm:$0xff]
  %v38 = vld [vmem:[%s1 + $0x48] sm:$0xff]
  %v39 = vld [vmem:[%s1 + $0x50] sm:$0xff]
  %v40 = vld [vmem:[%s1 + $0x58] sm:$0xff]
  %v41 = vld [vmem:[%s1 + $0x60] sm:$0xff]
  %v42 = vld [vmem:[%s1 + $0x68] sm:$0xff]
  %v43 = vld [vmem:[%s1 + $0x70] sm:$0xff]
  %v44 = vld [vmem:[%s1 + $0x78] sm:$0xff]
  %45 = vmatprep.subr.mxu0 0.0
  %46 = vmatpush1.msra.mxu0 %v29
  %47 = vmatprep.subr.mxu0 0.0
  %48 = vmatpush1.msra.mxu0 %v30
  %49 = vmatprep.subr.mxu0 0.0
  %50 = vmatpush1.msra.mxu0 %v31
  %51 = vmatprep.subr.mxu0 0.0
  %52 = vmatpush1.msra.mxu0 %v32
  %53 = vmatprep.subr.mxu0 0.0
  %54 = vmatpush1.msra.mxu0 %v33
  %55 = vmatprep.subr.mxu0 0.0
  %56 = vmatpush1.msra.mxu0 %v34
  %57 = vmatprep.subr.mxu0 0.0
  %58 = vmatpush1.msra.mxu0 %v35
  %59 = vmatprep.subr.mxu0 0.0
  %60 = vmatpush1.msra.mxu0 %v36
  %61 = vmatprep.subr.mxu0 0.0
  %62 = vmatpush1.msra.mxu0 %v37
  %63 = vmatprep.subr.mxu0 0.0
  %64 = vmatpush1.msra.mxu0 %v38
  %65 = vmatprep.subr.mxu0 0.0
  %66 = vmatpush1.msra.mxu0 %v39
  %67 = vmatprep.subr.mxu0 0.0
  %68 = vmatpush1.msra.mxu0 %v40
  %69 = vmatprep.subr.mxu0 0.0
  %70 = vmatpush1.msra.mxu0 %v41
  %71 = vmatprep.subr.mxu0 0.0
  %72 = vmatpush1.msra.mxu0 %v42
  %73 = vmatprep.subr.mxu0 0.0
  %74 = vmatpush1.msra.mxu0 %v43
  %75 = vmatprep.subr.mxu0 0.0
  %76 = vmatpush1.msra.mxu0 %v44
  %77 = vmatprep.subr.mxu0 0.0
  %78 = vmatpush1.msra.mxu0 0.0
  %79 = vmatprep.subr.mxu0 0.0
  %80 = vmatpush1.msra.mxu0 0.0
  %81 = vmatprep.subr.mxu0 0.0
  %82 = vmatpush1.msra.mxu0 0.0
  %83 = vmatprep.subr.mxu0 0.0
  %84 = vmatpush1.msra.mxu0 0.0
  %85 = vmatprep.subr.mxu0 0.0
  %86 = vmatpush1.msra.mxu0 0.0
  %87 = vmatprep.subr.mxu0 0.0
  %88 = vmatpush1.msra.mxu0 0.0
  %89 = vmatprep.subr.mxu0 0.0
  %90 = vmatpush1.msra.mxu0 0.0
  %91 = vmatprep.subr.mxu0 0.0
  %92 = vmatpush1.msra.mxu0 0.0
  %93 = vmatprep.subr.mxu0 0.0
  %94 = vmatpush1.msra.mxu0 0.0
  %95 = vmatprep.subr.mxu0 0.0
  %96 = vmatpush1.msra.mxu0 0.0
  %97 = vmatprep.subr.mxu0 0.0
  %98 = vmatpush1.msra.mxu0 0.0
  %99 = vmatprep.subr.mxu0 0.0
  %100 = vmatpush1.msra.mxu0 0.0
  %101 = vmatprep.subr.mxu0 0.0
  %102 = vmatpush1.msra.mxu0 0.0
  %103 = vmatprep.subr.mxu0 0.0
  %104 = vmatpush1.msra.mxu0 0.0
  %105 = vmatprep.subr.mxu0 0.0
  %106 = vmatpush1.msra.mxu0 0.0
  %107 = vmatprep.subr.mxu0 0.0
  %108 = vmatpush1.msra.mxu0 0.0
  %109 = vmatprep.mubr.f32.mxu0 0.0
  %110 = vmatmul.mubr.f32.gmra.mrb[0].mxu0 %v28
  %v111 = vpop.f32.mrb[0].mxu0
  %v112 = vadd.f32 0.0, %v111
  %v113 = vpop.f32.mrb[0].mxu0
  %114 = vdwg.mxu0
  %v115 = vadd.f32 %v27, %v112
  %116 = vst [vmem:[#allocation2] sm:$0xff] %v115
  // Predicated region
  $region18: #{conv_classifier_forward.9} parent=0 // pred_check
    %p117 = pneg %p14
  $region19: #{conv_classifier_forward.9} parent=0 // pred_check_branch
    %119 = sbr.rel (%p117) target = $region21
  $region20: #{conv_classifier_forward.9} parent=0 // pred_region
    %v120 = vld [vmem:[#allocation2] sm:$0xff]
    %121 = vst [vmem:[%s3] sm:$0xff] %v120
  $region21: #{conv_classifier_forward.9} parent=0 // pred_fallthru
    _
  // Predicated region
  $region22: #{conv_classifier_forward.9} parent=0 // pred_check
    _
  $region23: #{conv_classifier_forward.9} parent=0 // pred_check_branch
    %123 = sbr.rel (0) target = $region25
  $region24: #{conv_classifier_forward.9} parent=0 // pred_region
    _
  $region25: #{conv_classifier_forward.9} parent=0 // pred_fallthru
    _
  // Predicated region
  $region26: #{conv_classifier_forward.9} parent=0 // pred_check
    _
  $region27: #{conv_classifier_forward.9} parent=0 // pred_check_branch
    %125 = sbr.rel (0) target = $region29
  $region28: #{conv_classifier_forward.9} parent=0 // pred_region
    _
  $region29: #{conv_classifier_forward.9} parent=0 // pred_fallthru
    _

// kernel: conv_classifier_forward.6
$region0: #{conv_classifier_forward.6}
  #allocation0 [shape = 'u32[]', space=smem, size = 0x4, offset = 0x4, fixed_abs, tag = 'smem constant byte address 0x4 - core index']
  #allocation1 [shape = 'u32[144,128]{1,0:T(1,128)}', space=vmem, size = 0x12000, scoped, tag = 'internal scratch']
  %s0 = inlined_call_operand.vmem [shape: f32[2,18,18,8], index: 0, kind: input, shape index: {}]
  %s1 = inlined_call_operand.vmem [shape: f32[9,8,8], index: 1, kind: input, shape index: {}]
  %s2 = inlined_call_operand.vmem [shape: f32[1,8], index: 2, kind: input, shape index: {}]
  %s3 = inlined_call_operand.vmem [shape: f32[2,256,8], index: 3, kind: output, shape index: {}]
  %s4 = sld [smem:[#allocation0]]
  $region45: #{conv_classifier_forward.6} parent=0
    _
  %s6 = ssub.s32 1, %s4
  %s7 = scalar_select 0, %s6, %s4
  loop: start=0, step=1, limit=4
  $region2: #{conv_classifier_forward.6} parent=0 // loop_pre_header
    _
  $region3: #{conv_classifier_forward.6} parent=0 // loop_header
    %s9 = sphi 0, %s13
    %p10 = scmp.ge.s32.totalorder %s9, 4
    %s19 = sphi 0, %s21
    %s22 = sphi 0, %s19
    %s23 = sphi 0, %s22
    %s39 = sphi 0, %s23
    %s43 = sphi 0, %s43
    %s45 = sphi 0, %s43
    %s46 = sphi 0, %s45
    %s60 = sphi 0, %s46
    %s64 = sphi 0, %s64
    %s66 = sphi 0, %s64
    %s67 = sphi 0, %s66
    %s81 = sphi 0, %s67
    %s87 = sphi 0, %s89
    %s90 = sphi 0, %s87
    %s91 = sphi 0, %s90
    %s107 = sphi 0, %s91
  $region4: #{conv_classifier_forward.6} parent=0 // loop_header_branch
    %12 = sbr.rel (%p10) target = $region8
  $region5: #{conv_classifier_forward.6} parent=0 // loop_body
    %s14 = ssub.s32 %s9, 1
    %s15 = ssub.s32 %s9, 2
    %s16 = sadd.s32 %s9, 1
    %s17 = ssub.s32 %s9, %s16
    %p18 = scmp.eq.s32.totalorder %s17, 0
    %s20 = sadd.s32 %s19, 1
    %s21 = scalar_select %p18, %s19, %s20
    %p24 = pneg %p18
    %p25 = scmp.eq.s32.totalorder %s9, 1
    %p26 = por %p24, %p25
    %p27 = scmp.ne.s32.totalorder %s19, %s22
    %p28 = scmp.eq.s32.totalorder %s9, 0
    %p29 = por %p27, %p28
    %p30 = scmp.ne.s32.totalorder %s19, %s22
    %p31 = scmp.eq.s32.totalorder %s14, 1
    %p32 = por %p30, %p31
    %p33 = scmp.ne.s32.totalorder %s22, %s23
    %p34 = scmp.eq.s32.totalorder %s14, 0
    %p35 = por %p33, %p34
    %p36 = scmp.ne.s32.totalorder %s22, %s23
    %p37 = scmp.eq.s32.totalorder %s15, 1
    %p38 = por %p36, %p37
    %p40 = scmp.ne.s32.totalorder %s23, %s39
    %p41 = scmp.eq.s32.totalorder %s15, 0
    %p42 = por %p40, %p41
    %s44 = sadd.s32 %s43, 1
    %p47 = scmp.eq.s32.totalorder %s9, 1
    %p48 = scmp.ne.s32.totalorder %s43, %s45
    %p49 = scmp.eq.s32.totalorder %s9, 0
    %p50 = por %p48, %p49
    %p51 = scmp.ne.s32.totalorder %s43, %s45
    %p52 = scmp.eq.s32.totalorder %s14, 1
    %p53 = por %p51, %p52
    %p54 = scmp.ne.s32.totalorder %s45, %s46
    %p55 = scmp.eq.s32.totalorder %s14, 0
    %p56 = por %p54, %p55
    %p57 = scmp.ne.s32.totalorder %s45, %s46
    %p58 = scmp.eq.s32.totalorder %s15, 1
    %p59 = por %p57, %p58
    %p61 = scmp.ne.s32.totalorder %s46, %s60
    %p62 = scmp.eq.s32.totalorder %s15, 0
    %p63 = por %p61, %p62
    %s65 = sadd.s32 %s64, 1
    %p68 = scmp.eq.s32.totalorder %s9, 1
    %p69 = scmp.ne.s32.totalorder %s64, %s66
    %p70 = scmp.eq.s32.totalorder %s9, 0
    %p71 = por %p69, %p70
    %p72 = scmp.ne.s32.totalorder %s64, %s66
    %p73 = scmp.eq.s32.totalorder %s14, 1
    %p74 = por %p72, %p73
    %p75 = scmp.ne.s32.totalorder %s66, %s67
    %p76 = scmp.eq.s32.totalorder %s14, 0
    %p77 = por %p75, %p76
    %p78 = scmp.ne.s32.totalorder %s66, %s67
    %p79 = scmp.eq.s32.totalorder %s15, 1
    %p80 = por %p78, %p79
    %p82 = scmp.ne.s32.totalorder %s67, %s81
    %p83 = scmp.eq.s32.totalorder %s15, 0
    %p84 = por %p82, %p83
    %s85 = ssub.s32 %s9, %s16
    %p86 = scmp.eq.s32.totalorder %s85, 0
    %s88 = sadd.s32 %s87, 1
    %s89 = scalar_select %p86, %s87, %s88
    %p92 = pneg %p86
    %p93 = scmp.eq.s32.totalorder %s9, 1
    %p94 = por %p92, %p93
    %p95 = scmp.ne.s32.totalorder %s87, %s90
    %p96 = scmp.eq.s32.totalorder %s9, 0
    %p97 = por %p95, %p96
    %p98 = scmp.ne.s32.totalorder %s87, %s90
    %p99 = scmp.eq.s32.totalorder %s14, 1
    %p100 = por %p98, %p99
    %p101 = scmp.ne.s32.totalorder %s90, %s91
    %p102 = scmp.eq.s32.totalorder %s14, 0
    %p103 = por %p101, %p102
    %p104 = scmp.ne.s32.totalorder %s90, %s91
    %p105 = scmp.eq.s32.totalorder %s15, 1
    %p106 = por %p104, %p105
    %p108 = scmp.ne.s32.totalorder %s91, %s107
    %p109 = scmp.eq.s32.totalorder %s15, 0
    %p110 = por %p108, %p109
    %p111 = scmp.le.s32.totalorder 1, %s9
    %p112 = scmp.lt.s32.totalorder %s9, 3
    %p113 = pnand %p111, %p112
    %p114 = pneg %p113
    // Predicated region
    $region9: #{conv_classifier_forward.6} parent=5 // pred_check
      _
    $region10: #{conv_classifier_forward.6} parent=5 // pred_check_branch
      %116 = sbr.rel (%p113) target = $region12
    $region11: #{conv_classifier_forward.6} parent=5 // pred_region
      %s117 = ssub.s32 %s9, 1
      // Predicated region
      $region13: #{conv_classifier_forward.6} parent=11 // pred_check
        %p118 = pneg %p56
      $region14: #{conv_classifier_forward.6} parent=11 // pred_check_branch
        %120 = sbr.rel (%p118) target = $region16
      $region15: #{conv_classifier_forward.6} parent=11 // pred_region
        _
      $region16: #{conv_classifier_forward.6} parent=11 // pred_fallthru
        _
      // Predicated region
      $region17: #{conv_classifier_forward.6} parent=11 // pred_check
        %p121 = pneg %p77
      $region18: #{conv_classifier_forward.6} parent=11 // pred_check_branch
        %123 = sbr.rel (%p121) target = $region20
      $region19: #{conv_classifier_forward.6} parent=11 // pred_region
        _
      $region20: #{conv_classifier_forward.6} parent=11 // pred_fallthru
        _
    $region12: #{conv_classifier_forward.6} parent=5 // pred_fallthru
      _
    %p124 = scmp.lt.s32.totalorder %s9, 2
    // Predicated region
    $region21: #{conv_classifier_forward.6} parent=5 // pred_check
      %p125 = pneg %p124
    $region22: #{conv_classifier_forward.6} parent=5 // pred_check_branch
      %127 = sbr.rel (%p125) target = $region24
    $region23: #{conv_classifier_forward.6} parent=5 // pred_region
      // Predicated region
      $region25: #{conv_classifier_forward.6} parent=23 // pred_check
        %p128 = pneg %p29
      $region26: #{conv_classifier_forward.6} parent=23 // pred_check_branch
        %130 = sbr.rel (%p128) target = $region28
      $region27: #{conv_classifier_forward.6} parent=23 // pred_region
        %p131 = scmp.lt.s32.totalorder %s9, 1
        %s132 = scalar_select %p131, %s9, 1
        %s133 = smul.addr %s132, 54
        %s134 = smul.addr %s133, 8
        %s135 = scalar_lea.vmem %s0, %s134
      $region28: #{conv_classifier_forward.6} parent=23 // pred_fallthru
        _
    $region24: #{conv_classifier_forward.6} parent=5 // pred_fallthru
      _
    %p136 = scmp.le.s32.totalorder 1, %s9
    %p137 = scmp.lt.s32.totalorder %s9, 3
    %p138 = pnand %p136, %p137
    %p139 = pneg %p138
    // Predicated region
    $region29: #{conv_classifier_forward.6} parent=5 // pred_check
      _
    $region30: #{conv_classifier_forward.6} parent=5 // pred_check_branch
      %141 = sbr.rel (%p138) target = $region32
    $region31: #{conv_classifier_forward.6} parent=5 // pred_region
      %s142 = ssub.s32 %s9, 1
      %p143 = scmp.lt.s32.totalorder %s14, 1
      %s144 = scalar_select %p143, %s14, 1
      %s145 = smul.addr %s144, 54
      %s146 = smul.addr %s145, 8
      %s147 = scalar_lea.vmem %s0, %s146
      %p148 = pneg %p35
      %p149 = pneg %p32
      %p150 = pneg %p56
      %p151 = pneg %p53
      %p152 = pneg %p77
      %p153 = pneg %p74
      %p154 = pneg %p103
      %p155 = pneg %p100
      %p156 = scmp.lt.s32.totalorder %s14, 1
      %s157 = scalar_select %p156, %s14, 1
      %s158 = smul.addr %s157, 32
      %s159 = smul.addr %s158, 8
      %s160 = scalar_lea.vmem %s3, %s159
      %p161 = scmp.lt.s32.totalorder %s14, 1
      %s162 = scalar_select %p161, %s14, 1
      %s163 = smul.addr %s162, 54
      %s164 = smul.addr %s163, 8
      %s165 = scalar_lea.vmem %s0, %s164
      %p166 = scmp.lt.s32.totalorder %s14, 1
      %s167 = scalar_select %p166, %s14, 1
      %s168 = smul.addr %s167, 32
      %s169 = smul.addr %s168, 8
      %s170 = scalar_lea.vmem %s3, %s169
      %v171 = vld [vmem:[%s2] sm:$0x1]
      %v173 = vlaneseq
      %v174 = vshrl.u32 %v173, 7
      %v175 = vsub.s32 0, %v174
      %v176 = vrot.slane %v171, %v175
      %v178 = vadd.f32 %v176, 0.0
      %v179 = vld [vmem:[%s165] sm:$0xff]
      %v180 = vld [vmem:[%s165 + $0x8] sm:$0xff]
      %v181 = vld [vmem:[%s165 + $0x18] sm:$0xff]
      %v182 = vld [vmem:[%s165 + $0x20] sm:$0xff]
      %v183 = vld [vmem:[%s165 + $0x30] sm:$0xff]
      %v184 = vld [vmem:[%s165 + $0x38] sm:$0xff]
      %v185 = vld [vmem:[%s165 + $0x48] sm:$0xff]
      %v186 = vld [vmem:[%s165 + $0x50] sm:$0xff]
      %v187 = vld [vmem:[%s165 + $0x60] sm:$0xff]
      %v188 = vld [vmem:[%s165 + $0x68] sm:$0xff]
      %v189 = vld [vmem:[%s165 + $0x78] sm:$0xff]
      %v190 = vld [vmem:[%s165 + $0x80] sm:$0xff]
      %v191 = vld [vmem:[%s165 + $0x90] sm:$0xff]
      %v192 = vld [vmem:[%s165 + $0x98] sm:$0xff]
      %v193 = vld [vmem:[%s165 + $0xa8] sm:$0xff]
      %v194 = vld [vmem:[%s165 + $0xb0] sm:$0xff]
      %v195 = vld [vmem:[%s165 + $0xc0] sm:$0xff]
      %v196 = vld [vmem:[%s165 + $0xc8] sm:$0xff]
      %v197 = vld [vmem:[%s165 + $0xd8] sm:$0xff]
      %v198 = vld [vmem:[%s165 + $0xe0] sm:$0xff]
      %v199 = vld [vmem:[%s165 + $0xf0] sm:$0xff]
      %v200 = vld [vmem:[%s165 + $0xf8] sm:$0xff]
      %v201 = vld [vmem:[%s165 + $0x108] sm:$0xff]
      %v202 = vld [vmem:[%s165 + $0x110] sm:$0xff]
      %v203 = vld [vmem:[%s165 + $0x120] sm:$0xff]
      %v204 = vld [vmem:[%s165 + $0x128] sm:$0xff]
      %v205 = vld [vmem:[%s165 + $0x138] sm:$0xff]
      %v206 = vld [vmem:[%s165 + $0x140] sm:$0xff]
      %v207 = vld [vmem:[%s165 + $0x150] sm:$0xff]
      %v208 = vld [vmem:[%s165 + $0x158] sm:$0xff]
      %v209 = vld [vmem:[%s165 + $0x168] sm:$0xff]
      %v210 = vld [vmem:[%s165 + $0x170] sm:$0xff]
      %v211 = vld [vmem:[%s1] sm:$0xff]
      %vm212 = vcmask 64512
      %v214 = vsel %vm212, %v179, 0
      %v217 = vsel %vm212, %v180, 0
      %v220 = vsel %vm212, %v181, 0
      %v223 = vsel %vm212, %v182, 0
      %v226 = vsel %vm212, %v183, 0
      %v229 = vsel %vm212, %v184, 0
      %v232 = vsel %vm212, %v185, 0
      %v235 = vsel %vm212, %v186, 0
      %v238 = vsel %vm212, %v187, 0
      %v241 = vsel %vm212, %v188, 0
      %v244 = vsel %vm212, %v189, 0
      %v247 = vsel %vm212, %v190, 0
      %v250 = vsel %vm212, %v191, 0
      %v253 = vsel %vm212, %v192, 0
      %v256 = vsel %vm212, %v193, 0
      %v259 = vsel %vm212, %v194, 0
      %v262 = vsel %vm212, %v195, 0
      %v265 = vsel %vm212, %v196, 0
      %v268 = vsel %vm212, %v197, 0
      %v271 = vsel %vm212, %v198, 0
      %v274 = vsel %vm212, %v199, 0
      %v277 = vsel %vm212, %v200, 0
      %v280 = vsel %vm212, %v201, 0
      %v283 = vsel %vm212, %v202, 0
      %v286 = vsel %vm212, %v203, 0
      %v289 = vsel %vm212, %v204, 0
      %v292 = vsel %vm212, %v205, 0
      %v295 = vsel %vm212, %v206, 0
      %v298 = vsel %vm212, %v207, 0
      %v301 = vsel %vm212, %v208, 0
      %v304 = vsel %vm212, %v209, 0
      %v307 = vsel %vm212, %v210, 0
      %309 = vmatprep.subr.mxu0 0.0
      %310 = vmatpush1.msra.mxu0 %v211
      %311 = vmatprep.subr.mxu0 0.0
      %312 = vmatpush1.msra.mxu0 0.0
      %313 = vmatprep.subr.mxu0 0.0
      %314 = vmatpush1.msra.mxu0 0.0
      %315 = vmatprep.subr.mxu0 0.0
      %316 = vmatpush1.msra.mxu0 0.0
      %317 = vmatprep.subr.mxu0 0.0
      %318 = vmatpush1.msra.mxu0 0.0
      %319 = vmatprep.subr.mxu0 0.0
      %320 = vmatpush1.msra.mxu0 0.0
      %321 = vmatprep.subr.mxu0 0.0
      %322 = vmatpush1.msra.mxu0 0.0
      %323 = vmatprep.subr.mxu0 0.0
      %324 = vmatpush1.msra.mxu0 0.0
      %325 = vmatprep.subr.mxu0 0.0
      %326 = vmatpush1.msra.mxu0 0.0
      %327 = vmatprep.subr.mxu0 0.0
      %328 = vmatpush1.msra.mxu0 0.0
      %329 = vmatprep.subr.mxu0 0.0
      %330 = vmatpush1.msra.mxu0 0.0
      %331 = vmatprep.subr.mxu0 0.0
      %332 = vmatpush1.msra.mxu0 0.0
      %333 = vmatprep.subr.mxu0 0.0
      %334 = vmatpush1.msra.mxu0 0.0
      %335 = vmatprep.subr.mxu0 0.0
      %336 = vmatpush1.msra.mxu0 0.0
      %337 = vmatprep.subr.mxu0 0.0
      %338 = vmatpush1.msra.mxu0 0.0
      %339 = vmatprep.subr.mxu0 0.0
      %340 = vmatpush1.msra.mxu0 0.0
      %341 = vmatprep.subr.mxu0 0.0
      %342 = vmatpush1.msra.mxu0 0.0
      %343 = vmatprep.subr.mxu0 0.0
      %344 = vmatpush1.msra.mxu0 0.0
      %345 = vmatprep.subr.mxu0 0.0
      %346 = vmatpush1.msra.mxu0 0.0
      %347 = vmatprep.subr.mxu0 0.0
      %348 = vmatpush1.msra.mxu0 0.0
      %349 = vmatprep.subr.mxu0 0.0
      %350 = vmatpush1.msra.mxu0 0.0
      %351 = vmatprep.subr.mxu0 0.0
      %352 = vmatpush1.msra.mxu0 0.0
      %353 = vmatprep.subr.mxu0 0.0
      %354 = vmatpush1.msra.mxu0 0.0
      %355 = vmatprep.subr.mxu0 0.0
      %356 = vmatpush1.msra.mxu0 0.0
      %357 = vmatprep.subr.mxu0 0.0
      %358 = vmatpush1.msra.mxu0 0.0
      %359 = vmatprep.subr.mxu0 0.0
      %360 = vmatpush1.msra.mxu0 0.0
      %361 = vmatprep.subr.mxu0 0.0
      %362 = vmatpush1.msra.mxu0 0.0
      %363 = vmatprep.subr.mxu0 0.0
      %364 = vmatpush1.msra.mxu0 0.0
      %365 = vmatprep.subr.mxu0 0.0
      %366 = vmatpush1.msra.mxu0 0.0
      %367 = vmatprep.subr.mxu0 0.0
      %368 = vmatpush1.msra.mxu0 0.0
      %369 = vmatprep.subr.mxu0 0.0
      %370 = vmatpush1.msra.mxu0 0.0
      %371 = vmatprep.subr.mxu0 0.0
      %372 = vmatpush1.msra.mxu0 0.0
      %373 = vmatprep.mubr.f32.mxu0 0.0
      %374 = vmatmul.mubr.f32.gmra.mrb[0].mxu0 %v214
      %v375 = vpop.f32.mrb[0].mxu0
      %v376 = vadd.f32 0.0, %v375
      %v377 = vpop.f32.mrb[0].mxu0
      %378 = vmatprep.mubr.f32.mxu0 0.0
      %379 = vmatmul.mubr.f32.gmra.mrb[0].mxu0 %v217
      %v380 = vpop.f32.mrb[0].mxu0
      %v381 = vadd.f32 0.0, %v380
      %v382 = vpop.f32.mrb[0].mxu0
      %383 = vmatprep.mubr.f32.mxu0 0.0
      %384 = vmatmul.mubr.f32.gmra.mrb[0].mxu0 %v220
      %v385 = vpop.f32.mrb[0].mxu0
      %v386 = vadd.f32 0.0, %v385
      %v387 = vpop.f32.mrb[0].mxu0
      %388 = vmatprep.mubr.f32.mxu0 0.0
      %389 = vmatmul.mubr.f32.gmra.mrb[0].mxu0 %v223
      %v390 = vpop.f32.mrb[0].mxu0
      %v391 = vadd.f32 0.0, %v390
      %v392 = vpop.f32.mrb[0].mxu0
      %393 = vmatprep.mubr.f32.mxu0 0.0
      %394 = vmatmul.mubr.f32.gmra.mrb[0].mxu0 %v226
      %v395 = vpop.f32.mrb[0].mxu0
      %v396 = vadd.f32 0.0, %v395
      %v397 = vpop.f32.mrb[0].mxu0
      %398 = vmatprep.mubr.f32.mxu0 0.0
      %399 = vmatmul.mubr.f32.gmra.mrb[0].mxu0 %v229
      %v400 = vpop.f32.mrb[0].mxu0
      %v401 = vadd.f32 0.0, %v400
      %v402 = vpop.f32.mrb[0].mxu0
      %403 = vmatprep.mubr.f32.mxu0 0.0
      %404 = vmatmul.mubr.f32.gmra.mrb[0].mxu0 %v232
      %v405 = vpop.f32.mrb[0].mxu0
      %v406 = vadd.f32 0.0, %v405
      %v407 = vpop.f32.mrb[0].mxu0
      %408 = vmatprep.mubr.f32.mxu0 0.0
      %409 = vmatmul.mubr.f32.gmra.mrb[0].mxu0 %v235
      %v410 = vpop.f32.mrb[0].mxu0
      %v411 = vadd.f32 0.0, %v410
      %v412 = vpop.f32.mrb[0].mxu0
      %413 = vmatprep.mubr.f32.mxu0 0.0
      %414 = vmatmul.mubr.f32.gmra.mrb[0].mxu0 %v238
      %v415 = vpop.f32.mrb[0].mxu0
      %v416 = vadd.f32 0.0, %v415
      %v417 = vpop.f32.mrb[0].mxu0
      %418 = vmatprep.mubr.f32.mxu0 0.0
      %419 = vmatmul.mubr.f32.gmra.mrb[0].mxu0 %v241
      %v420 = vpop.f32.mrb[0].mxu0
      %v421 = vadd.f32 0.0, %v420
      %v422 = vpop.f32.mrb[0].mxu0
      %423 = vmatprep.mubr.f32.mxu0 0.0
      %424 = vmatmul.mubr.f32.gmra.mrb[0].mxu0 %v244
      %v425 = vpop.f32.mrb[0].mxu0
      %v426 = vadd.f32 0.0, %v425
      %v427 = vpop.f32.mrb[0].mxu0
      %428 = vmatprep.mubr.f32.mxu0 0.0
      %429 = vmatmul.mubr.f32.gmra.mrb[0].mxu0 %v247
      %v430 = vpop.f32.mrb[0].mxu0
      %v431 = vadd.f32 0.0, %v430
      %v432 = vpop.f32.mrb[0].mxu0
      %433 = vmatprep.mubr.f32.mxu0 0.0
      %434 = vmatmul.mubr.f32.gmra.mrb[0].mxu0 %v250
      %v435 = vpop.f32.mrb[0].mxu0
      %v436 = vadd.f32 0.0, %v435
      %v437 = vpop.f32.mrb[0].mxu0
      %438 = vmatprep.mubr.f32.mxu0 0.0
      %439 = vmatmul.mubr.f32.gmra.mrb[0].mxu0 %v253
      %v440 = vpop.f32.mrb[0].mxu0
      %v441 = vadd.f32 0.0, %v440
      %v442 = vpop.f32.mrb[0].mxu0
      %443 = vmatprep.mubr.f32.mxu0 0.0
      %444 = vmatmul.mubr.f32.gmra.mrb[0].mxu0 %v256
      %v445 = vpop.f32.mrb[0].mxu0
      %v446 = vadd.f32 0.0, %v445
      %v447 = vpop.f32.mrb[0].mxu0
      %448 = vmatprep.mubr.f32.mxu0 0.0
      %449 = vmatmul.mubr.f32.gmra.mrb[0].mxu0 %v259
      %v450 = vpop.f32.mrb[0].mxu0
      %v451 = vadd.f32 0.0, %v450
      %v452 = vpop.f32.mrb[0].mxu0
      %453 = vmatprep.mubr.f32.mxu0 0.0
      %454 = vmatmul.mubr.f32.gmra.mrb[0].mxu0 %v262
      %v455 = vpop.f32.mrb[0].mxu0
      %v456 = vadd.f32 0.0, %v455
      %v457 = vpop.f32.mrb[0].mxu0
      %458 = vmatprep.mubr.f32.mxu0 0.0
      %459 = vmatmul.mubr.f32.gmra.mrb[0].mxu0 %v265
      %v460 = vpop.f32.mrb[0].mxu0
      %v461 = vadd.f32 0.0, %v460
      %v462 = vpop.f32.mrb[0].mxu0
      %463 = vmatprep.mubr.f32.mxu0 0.0
      %464 = vmatmul.mubr.f32.gmra.mrb[0].mxu0 %v268
      %v465 = vpop.f32.mrb[0].mxu0
      %v466 = vadd.f32 0.0, %v465
      %v467 = vpop.f32.mrb[0].mxu0
      %468 = vmatprep.mubr.f32.mxu0 0.0
      %469 = vmatmul.mubr.f32.gmra.mrb[0].mxu0 %v271
      %v470 = vpop.f32.mrb[0].mxu0
      %v471 = vadd.f32 0.0, %v470
      %v472 = vpop.f32.mrb[0].mxu0
      %473 = vmatprep.mubr.f32.mxu0 0.0
      %474 = vmatmul.mubr.f32.gmra.mrb[0].mxu0 %v274
      %v475 = vpop.f32.mrb[0].mxu0
      %v476 = vadd.f32 0.0, %v475
      %v477 = vpop.f32.mrb[0].mxu0
      %478 = vmatprep.mubr.f32.mxu0 0.0
      %479 = vmatmul.mubr.f32.gmra.mrb[0].mxu0 %v277
      %v480 = vpop.f32.mrb[0].mxu0
      %v481 = vadd.f32 0.0, %v480
      %v482 = vpop.f32.mrb[0].mxu0
      %483 = vmatprep.mubr.f32.mxu0 0.0
      %484 = vmatmul.mubr.f32.gmra.mrb[0].mxu0 %v280
      %v485 = vpop.f32.mrb[0].mxu0
      %v486 = vadd.f32 0.0, %v485
      %v487 = vpop.f32.mrb[0].mxu0
      %488 = vmatprep.mubr.f32.mxu0 0.0
      %489 = vmatmul.mubr.f32.gmra.mrb[0].mxu0 %v283
      %v490 = vpop.f32.mrb[0].mxu0
      %v491 = vadd.f32 0.0, %v490
      %v492 = vpop.f32.mrb[0].mxu0
      %493 = vmatprep.mubr.f32.mxu0 0.0
      %494 = vmatmul.mubr.f32.gmra.mrb[0].mxu0 %v286
      %v495 = vpop.f32.mrb[0].mxu0
      %v496 = vadd.f32 0.0, %v495
      %v497 = vpop.f32.mrb[0].mxu0
      %498 = vmatprep.mubr.f32.mxu0 0.0
      %499 = vmatmul.mubr.f32.gmra.mrb[0].mxu0 %v289
      %v500 = vpop.f32.mrb[0].mxu0
      %v501 = vadd.f32 0.0, %v500
      %v502 = vpop.f32.mrb[0].mxu0
      %503 = vmatprep.mubr.f32.mxu0 0.0
      %504 = vmatmul.mubr.f32.gmra.mrb[0].mxu0 %v292
      %v505 = vpop.f32.mrb[0].mxu0
      %v506 = vadd.f32 0.0, %v505
      %v507 = vpop.f32.mrb[0].mxu0
      %508 = vmatprep.mubr.f32.mxu0 0.0
      %509 = vmatmul.mubr.f32.gmra.mrb[0].mxu0 %v295
      %v510 = vpop.f32.mrb[0].mxu0
      %v511 = vadd.f32 0.0, %v510
      %v512 = vpop.f32.mrb[0].mxu0
      %513 = vmatprep.mubr.f32.mxu0 0.0
      %514 = vmatmul.mubr.f32.gmra.mrb[0].mxu0 %v298
      %v515 = vpop.f32.mrb[0].mxu0
      %v516 = vadd.f32 0.0, %v515
      %v517 = vpop.f32.mrb[0].mxu0
      %518 = vmatprep.mubr.f32.mxu0 0.0
      %519 = vmatmul.mubr.f32.gmra.mrb[0].mxu0 %v301
      %v520 = vpop.f32.mrb[0].mxu0
      %v521 = vadd.f32 0.0, %v520
      %v522 = vpop.f32.mrb[0].mxu0
      %523 = vmatprep.mubr.f32.mxu0 0.0
      %524 = vmatmul.mubr.f32.gmra.mrb[0].mxu0 %v304
      %v525 = vpop.f32.mrb[0].mxu0
      %v526 = vadd.f32 0.0, %v525
      %v527 = vpop.f32.mrb[0].mxu0
      %528 = vmatprep.mubr.f32.mxu0 0.0
      %529 = vmatmul.mubr.f32.gmra.mrb[0].mxu0 %v307
      %v530 = vpop.f32.mrb[0].mxu0
      %v531 = vadd.f32 0.0, %v530
      %v532 = vpop.f32.mrb[0].mxu0
      %533 = vdwg.mxu0
      %v534 = vadd.f32 %v178, %v376
      %v535 = vadd.f32 %v178, %v381
      %v536 = vadd.f32 %v178, %v386
      %v537 = vadd.f32 %v178, %v391
      %v538 = vadd.f32 %v178, %v396
      %v539 = vadd.f32 %v178, %v401
      %v540 = vadd.f32 %v178, %v406
      %v541 = vadd.f32 %v178, %v411
      %v542 = vadd.f32 %v178, %v416
      %v543 = vadd.f32 %v178, %v421
      %v544 = vadd.f32 %v178, %v426
      %v545 = vadd.f32 %v178, %v431
      %v546 = vadd.f32 %v178, %v436
      %v547 = vadd.f32 %v178, %v441
      %v548 = vadd.f32 %v178, %v446
      %v549 = vadd.f32 %v178, %v451
      %v550 = vadd.f32 %v178, %v456
      %v551 = vadd.f32 %v178, %v461
      %v552 = vadd.f32 %v178, %v466
      %v553 = vadd.f32 %v178, %v471
      %v554 = vadd.f32 %v178, %v476
      %v555 = vadd.f32 %v178, %v481
      %v556 = vadd.f32 %v178, %v486
      %v557 = vadd.f32 %v178, %v491
      %v558 = vadd.f32 %v178, %v496
      %v559 = vadd.f32 %v178, %v501
      %v560 = vadd.f32 %v178, %v506
      %v561 = vadd.f32 %v178, %v511
      %v562 = vadd.f32 %v178, %v516
      %v563 = vadd.f32 %v178, %v521
      %v564 = vadd.f32 %v178, %v526
      %v565 = vadd.f32 %v178, %v531
      %v566 = vld [vmem:[%s165 + $0x1] sm:$0xff]
      %v567 = vld [vmem:[%s165 + $0x9] sm:$0xff]
      %v568 = vld [vmem:[%s165 + $0x19] sm:$0xff]
      %v569 = vld [vmem:[%s165 + $0x21] sm:$0xff]
      %v570 = vld [vmem:[%s165 + $0x31] sm:$0xff]
      %v571 = vld [vmem:[%s165 + $0x39] sm:$0xff]
      %v572 = vld [vmem:[%s165 + $0x49] sm:$0xff]
      %v573 = vld [vmem:[%s165 + $0x51] sm:$0xff]
      %v574 = vld [vmem:[%s165 + $0x61] sm:$0xff]
      %v575 = vld [vmem:[%s165 + $0x69] sm:$0xff]
      %v576 = vld [vmem:[%s165 + $0x79] sm:$0xff]
      %v577 = vld [vmem:[%s165 + $0x81] sm:$0xff]
      %v578 = vld [vmem:[%s165 + $0x91] sm:$0xff]
      %v579 = vld [vmem:[%s165 + $0x99] sm:$0xff]
      %v580 = vld [vmem:[%s165 + $0xa9] sm:$0xff]
      %v581 = vld [vmem:[%s165 + $0xb1] sm:$0xff]
      %v582 = vld [vmem:[%s165 + $0xc1] sm:$0xff]
      %v583 = vld [vmem:[%s165 + $0xc9] sm:$0xff]
      %v584 = vld [vmem:[%s165 + $0xd9] sm:$0xff]
      %v585 = vld [vmem:[%s165 + $0xe1] sm:$0xff]
      %v586 = vld [vmem:[%s165 + $0xf1] sm:$0xff]
      %v587 = vld [vmem:[%s165 + $0xf9] sm:$0xff]
      %v588 = vld [vmem:[%s165 + $0x109] sm:$0xff]
      %v589 = vld [vmem:[%s165 + $0x111] sm:$0xff]
      %v590 = vld [vmem:[%s165 + $0x121] sm:$0xff]
      %v591 = vld [vmem:[%s165 + $0x129] sm:$0xff]
      %v592 = vld [vmem:[%s165 + $0x139] sm:$0xff]
      %v593 = vld [vmem:[%s165 + $0x141] sm:$0xff]
      %v594 = vld [vmem:[%s165 + $0x151] sm:$0xff]
      %v595 = vld [vmem:[%s165 + $0x159] sm:$0xff]
      %v596 = vld [vmem:[%s165 + $0x169] sm:$0xff]
      %v597 = vld [vmem:[%s165 + $0x171] sm:$0xff]
      %s598 = scalar_lea.vmem %s1, 8
      %v599 = vld [vmem:[%s598] sm:$0xff]
      %v601 = vsel %vm212, %v566, 0
      %v604 = vsel %vm212, %v567, 0
      %v607 = vsel %vm212, %v568, 0
      %v610 = vsel %vm212, %v569, 0
      %v613 = vsel %vm212, %v570, 0
      %v616 = vsel %vm212, %v571, 0
      %v619 = vsel %vm212, %v572, 0
      %v622 = vsel %vm212, %v573, 0
      %v625 = vsel %vm212, %v574, 0
      %v628 = vsel %vm212, %v575, 0
      %v631 = vsel %vm212, %v576, 0
      %v634 = vsel %vm212, %v577, 0
      %v637 = vsel %vm212, %v578, 0
      %v640 = vsel %vm212, %v579, 0
      %v643 = vsel %vm212, %v580, 0
      %v646 = vsel %vm212, %v581, 0
      %v649 = vsel %vm212, %v582, 0
      %v652 = vsel %vm212, %v583, 0
      %v655 = vsel %vm212, %v584, 0
      %v658 = vsel %vm212, %v585, 0
      %v661 = vsel %vm212, %v586, 0
      %v664 = vsel %vm212, %v587, 0
      %v667 = vsel %vm212, %v588, 0
      %v670 = vsel %vm212, %v589, 0
      %v673 = vsel %vm212, %v590, 0
      %v676 = vsel %vm212, %v591, 0
      %v679 = vsel %vm212, %v592, 0
      %v682 = vsel %vm212, %v593, 0
      %v685 = vsel %vm212, %v594, 0
      %v688 = vsel %vm212, %v595, 0
      %v691 = vsel %vm212, %v596, 0
      %v694 = vsel %vm212, %v597, 0
      %696 = vmatprep.subr.mxu0 0.0
      %697 = vmatpush1.msra.mxu0 %v599
      %698 = vmatprep.subr.mxu0 0.0
      %699 = vmatpush1.msra.mxu0 0.0
      %700 = vmatprep.subr.mxu0 0.0
      %701 = vmatpush1.msra.mxu0 0.0
      %702 = vmatprep.subr.mxu0 0.0
      %703 = vmatpush1.msra.mxu0 0.0
      %704 = vmatprep.subr.mxu0 0.0
      %705 = vmatpush1.msra.mxu0 0.0
      %706 = vmatprep.subr.mxu0 0.0
      %707 = vmatpush1.msra.mxu0 0.0
      %708 = vmatprep.subr.mxu0 0.0
      %709 = vmatpush1.msra.mxu0 0.0
      %710 = vmatprep.subr.mxu0 0.0
      %711 = vmatpush1.msra.mxu0 0.0
      %712 = vmatprep.subr.mxu0 0.0
      %713 = vmatpush1.msra.mxu0 0.0
      %714 = vmatprep.subr.mxu0 0.0
      %715 = vmatpush1.msra.mxu0 0.0
      %716 = vmatprep.subr.mxu0 0.0
      %717 = vmatpush1.msra.mxu0 0.0
      %718 = vmatprep.subr.mxu0 0.0
      %719 = vmatpush1.msra.mxu0 0.0
      %720 = vmatprep.subr.mxu0 0.0
      %721 = vmatpush1.msra.mxu0 0.0
      %722 = vmatprep.subr.mxu0 0.0
      %723 = vmatpush1.msra.mxu0 0.0
      %724 = vmatprep.subr.mxu0 0.0
      %725 = vmatpush1.msra.mxu0 0.0
      %726 = vmatprep.subr.mxu0 0.0
      %727 = vmatpush1.msra.mxu0 0.0
      %728 = vmatprep.subr.mxu0 0.0
      %729 = vmatpush1.msra.mxu0 0.0
      %730 = vmatprep.subr.mxu0 0.0
      %731 = vmatpush1.msra.mxu0 0.0
      %732 = vmatprep.subr.mxu0 0.0
      %733 = vmatpush1.msra.mxu0 0.0
      %734 = vmatprep.subr.mxu0 0.0
      %735 = vmatpush1.msra.mxu0 0.0
      %736 = vmatprep.subr.mxu0 0.0
      %737 = vmatpush1.msra.mxu0 0.0
      %738 = vmatprep.subr.mxu0 0.0
      %739 = vmatpush1.msra.mxu0 0.0
      %740 = vmatprep.subr.mxu0 0.0
      %741 = vmatpush1.msra.mxu0 0.0
      %742 = vmatprep.subr.mxu0 0.0
      %743 = vmatpush1.msra.mxu0 0.0
      %744 = vmatprep.subr.mxu0 0.0
      %745 = vmatpush1.msra.mxu0 0.0
      %746 = vmatprep.subr.mxu0 0.0
      %747 = vmatpush1.msra.mxu0 0.0
      %748 = vmatprep.subr.mxu0 0.0
      %749 = vmatpush1.msra.mxu0 0.0
      %750 = vmatprep.subr.mxu0 0.0
      %751 = vmatpush1.msra.mxu0 0.0
      %752 = vmatprep.subr.mxu0 0.0
      %753 = vmatpush1.msra.mxu0 0.0
      %754 = vmatprep.subr.mxu0 0.0
      %755 = vmatpush1.msra.mxu0 0.0
      %756 = vmatprep.subr.mxu0 0.0
      %757 = vmatpush1.msra.mxu0 0.0
      %758 = vmatprep.subr.mxu0 0.0
      %759 = vmatpush1.msra.mxu0 0.0
      %760 = vmatprep.mubr.f32.mxu0 0.0
      %761 = vmatmul.mubr.f32.gmra.mrb[0].mxu0 %v601
      %v762 = vpop.f32.mrb[0].mxu0
      %v763 = vadd.f32 0.0, %v762
      %v764 = vpop.f32.mrb[0].mxu0
      %765 = vmatprep.mubr.f32.mxu0 0.0
      %766 = vmatmul.mubr.f32.gmra.mrb[0].mxu0 %v604
      %v767 = vpop.f32.mrb[0].mxu0
      %v768 = vadd.f32 0.0, %v767
      %v769 = vpop.f32.mrb[0].mxu0
      %770 = vmatprep.mubr.f32.mxu0 0.0
      %771 = vmatmul.mubr.f32.gmra.mrb[0].mxu0 %v607
      %v772 = vpop.f32.mrb[0].mxu0
      %v773 = vadd.f32 0.0, %v772
      %v774 = vpop.f32.mrb[0].mxu0
      %775 = vmatprep.mubr.f32.mxu0 0.0
      %776 = vmatmul.mubr.f32.gmra.mrb[0].mxu0 %v610
      %v777 = vpop.f32.mrb[0].mxu0
      %v778 = vadd.f32 0.0, %v777
      %v779 = vpop.f32.mrb[0].mxu0
      %780 = vmatprep.mubr.f32.mxu0 0.0
      %781 = vmatmul.mubr.f32.gmra.mrb[0].mxu0 %v613
      %v782 = vpop.f32.mrb[0].mxu0
      %v783 = vadd.f32 0.0, %v782
      %v784 = vpop.f32.mrb[0].mxu0
      %785 = vmatprep.mubr.f32.mxu0 0.0
      %786 = vmatmul.mubr.f32.gmra.mrb[0].mxu0 %v616
      %v787 = vpop.f32.mrb[0].mxu0
      %v788 = vadd.f32 0.0, %v787
      %v789 = vpop.f32.mrb[0].mxu0
      %790 = vmatprep.mubr.f32.mxu0 0.0
      %791 = vmatmul.mubr.f32.gmra.mrb[0].mxu0 %v619
      %v792 = vpop.f32.mrb[0].mxu0
      %v793 = vadd.f32 0.0, %v792
      %v794 = vpop.f32.mrb[0].mxu0
      %795 = vmatprep.mubr.f32.mxu0 0.0
      %796 = vmatmul.mubr.f32.gmra.mrb[0].mxu0 %v622
      %v797 = vpop.f32.mrb[0].mxu0
      %v798 = vadd.f32 0.0, %v797
      %v799 = vpop.f32.mrb[0].mxu0
      %800 = vmatprep.mubr.f32.mxu0 0.0
      %801 = vmatmul.mubr.f32.gmra.mrb[0].mxu0 %v625
      %v802 = vpop.f32.mrb[0].mxu0
      %v803 = vadd.f32 0.0, %v802
      %v804 = vpop.f32.mrb[0].mxu0
      %805 = vmatprep.mubr.f32.mxu0 0.0
      %806 = vmatmul.mubr.f32.gmra.mrb[0].mxu0 %v628
      %v807 = vpop.f32.mrb[0].mxu0
      %v808 = vadd.f32 0.0, %v807
      %v809 = vpop.f32.mrb[0].mxu0
      %810 = vmatprep.mubr.f32.mxu0 0.0
      %811 = vmatmul.mubr.f32.gmra.mrb[0].mxu0 %v631
      %v812 = vpop.f32.mrb[0].mxu0
      %v813 = vadd.f32 0.0, %v812
      %v814 = vpop.f32.mrb[0].mxu0
      %815 = vmatprep.mubr.f32.mxu0 0.0
      %816 = vmatmul.mubr.f32.gmra.mrb[0].mxu0 %v634
      %v817 = vpop.f32.mrb[0].mxu0
      %v818 = vadd.f32 0.0, %v817
      %v819 = vpop.f32.mrb[0].mxu0
      %820 = vmatprep.mubr.f32.mxu0 0.0
      %821 = vmatmul.mubr.f32.gmra.mrb[0].mxu0 %v637
      %v822 = vpop.f32.mrb[0].mxu0
      %v823 = vadd.f32 0.0, %v822
      %v824 = vpop.f32.mrb[0].mxu0
      %825 = vmatprep.mubr.f32.mxu0 0.0
      %826 = vmatmul.mubr.f32.gmra.mrb[0].mxu0 %v640
      %v827 = vpop.f32.mrb[0].mxu0
      %v828 = vadd.f32 0.0, %v827
      %v829 = vpop.f32.mrb[0].mxu0
      %830 = vmatprep.mubr.f32.mxu0 0.0
      %831 = vmatmul.mubr.f32.gmra.mrb[0].mxu0 %v643
      %v832 = vpop.f32.mrb[0].mxu0
      %v833 = vadd.f32 0.0, %v832
      %v834 = vpop.f32.mrb[0].mxu0
      %835 = vmatprep.mubr.f32.mxu0 0.0
      %836 = vmatmul.mubr.f32.gmra.mrb[0].mxu0 %v646
      %v837 = vpop.f32.mrb[0].mxu0
      %v838 = vadd.f32 0.0, %v837
      %v839 = vpop.f32.mrb[0].mxu0
      %840 = vmatprep.mubr.f32.mxu0 0.0
      %841 = vmatmul.mubr.f32.gmra.mrb[0].mxu0 %v649
      %v842 = vpop.f32.mrb[0].mxu0
      %v843 = vadd.f32 0.0, %v842
      %v844 = vpop.f32.mrb[0].mxu0
      %845 = vmatprep.mubr.f32.mxu0 0.0
      %846 = vmatmul.mubr.f32.gmra.mrb[0].mxu0 %v652
      %v847 = vpop.f32.mrb[0].mxu0
      %v848 = vadd.f32 0.0, %v847
      %v849 = vpop.f32.mrb[0].mxu0
      %850 = vmatprep.mubr.f32.mxu0 0.0
      %851 = vmatmul.mubr.f32.gmra.mrb[0].mxu0 %v655
      %v852 = vpop.f32.mrb[0].mxu0
      %v853 = vadd.f32 0.0, %v852
      %v854 = vpop.f32.mrb[0].mxu0
      %855 = vmatprep.mubr.f32.mxu0 0.0
      %856 = vmatmul.mubr.f32.gmra.mrb[0].mxu0 %v658
      %v857 = vpop.f32.mrb[0].mxu0
      %v858 = vadd.f32 0.0, %v857
      %v859 = vpop.f32.mrb[0].mxu0
      %860 = vmatprep.mubr.f32.mxu0 0.0
      %861 = vmatmul.mubr.f32.gmra.mrb[0].mxu0 %v661
      %v862 = vpop.f32.mrb[0].mxu0
      %v863 = vadd.f32 0.0, %v862
      %v864 = vpop.f32.mrb[0].mxu0
      %865 = vmatprep.mubr.f32.mxu0 0.0
      %866 = vmatmul.mubr.f32.gmra.mrb[0].mxu0 %v664
      %v867 = vpop.f32.mrb[0].mxu0
      %v868 = vadd.f32 0.0, %v867
      %v869 = vpop.f32.mrb[0].mxu0
      %870 = vmatprep.mubr.f32.mxu0 0.0
      %871 = vmatmul.mubr.f32.gmra.mrb[0].mxu0 %v667
      %v872 = vpop.f32.mrb[0].mxu0
      %v873 = vadd.f32 0.0, %v872
      %v874 = vpop.f32.mrb[0].mxu0
      %875 = vmatprep.mubr.f32.mxu0 0.0
      %876 = vmatmul.mubr.f32.gmra.mrb[0].mxu0 %v670
      %v877 = vpop.f32.mrb[0].mxu0
      %v878 = vadd.f32 0.0, %v877
      %v879 = vpop.f32.mrb[0].mxu0
      %880 = vmatprep.mubr.f32.mxu0 0.0
      %881 = vmatmul.mubr.f32.gmra.mrb[0].mxu0 %v673
      %v882 = vpop.f32.mrb[0].mxu0
      %v883 = vadd.f32 0.0, %v882
      %v884 = vpop.f32.mrb[0].mxu0
      %885 = vmatprep.mubr.f32.mxu0 0.0
      %886 = vmatmul.mubr.f32.gmra.mrb[0].mxu0 %v676
      %v887 = vpop.f32.mrb[0].mxu0
      %v888 = vadd.f32 0.0, %v887
      %v889 = vpop.f32.mrb[0].mxu0
      %890 = vmatprep.mubr.f32.mxu0 0.0
      %891 = vmatmul.mubr.f32.gmra.mrb[0].mxu0 %v679
      %v892 = vpop.f32.mrb[0].mxu0
      %v893 = vadd.f32 0.0, %v892
      %v894 = vpop.f32.mrb[0].mxu0
      %895 = vmatprep.mubr.f32.mxu0 0.0
      %896 = vmatmul.mubr.f32.gmra.mrb[0].mxu0 %v682
      %v897 = vpop.f32.mrb[0].mxu0
      %v898 = vadd.f32 0.0, %v897
      %v899 = vpop.f32.mrb[0].mxu0
      %900 = vmatprep.mubr.f32.mxu0 0.0
      %901 = vmatmul.mubr.f32.gmra.mrb[0].mxu0 %v685
      %v902 = vpop.f32.mrb[0].mxu0
      %v903 = vadd.f32 0.0, %v902
      %v904 = vpop.f32.mrb[0].mxu0
      %905 = vmatprep.mubr.f32.mxu0 0.0
      %906 = vmatmul.mubr.f32.gmra.mrb[0].mxu0 %v688
      %v907 = vpop.f32.mrb[0].mxu0
      %v908 = vadd.f32 0.0, %v907
      %v909 = vpop.f32.mrb[0].mxu0
      %910 = vmatprep.mubr.f32.mxu0 0.0
      %911 = vmatmul.mubr.f32.gmra.mrb[0].mxu0 %v691
      %v912 = vpop.f32.mrb[0].mxu0
      %v913 = vadd.f32 0.0, %v912
      %v914 = vpop.f32.mrb[0].mxu0
      %915 = vmatprep.mubr.f32.mxu0 0.0
      %916 = vmatmul.mubr.f32.gmra.mrb[0].mxu0 %v694
      %v917 = vpop.f32.mrb[0].mxu0
      %v918 = vadd.f32 0.0, %v917
      %v919 = vpop.f32.mrb[0].mxu0
      %920 = vdwg.mxu0
      %v921 = vadd.f32 %v534, %v763
      %v922 = vadd.f32 %v535, %v768
      %v923 = vadd.f32 %v536, %v773
      %v924 = vadd.f32 %v537, %v778
      %v925 = vadd.f32 %v538, %v783
      %v926 = vadd.f32 %v539, %v788
      %v927 = vadd.f32 %v540, %v793
      %v928 = vadd.f32 %v541, %v798
      %v929 = vadd.f32 %v542, %v803
      %v930 = vadd.f32 %v543, %v808
      %v931 = vadd.f32 %v544, %v813
      %v932 = vadd.f32 %v545, %v818
      %v933 = vadd.f32 %v546, %v823
      %v934 = vadd.f32 %v547, %v828
      %v935 = vadd.f32 %v548, %v833
      %v936 = vadd.f32 %v549, %v838
      %v937 = vadd.f32 %v550, %v843
      %v938 = vadd.f32 %v551, %v848
      %v939 = vadd.f32 %v552, %v853
      %v940 = vadd.f32 %v553, %v858
      %v941 = vadd.f32 %v554, %v863
      %v942 = vadd.f32 %v555, %v868
      %v943 = vadd.f32 %v556, %v873
      %v944 = vadd.f32 %v557, %v878
      %v945 = vadd.f32 %v558, %v883
      %v946 = vadd.f32 %v559, %v888
      %v947 = vadd.f32 %v560, %v893
      %v948 = vadd.f32 %v561, %v898
      %v949 = vadd.f32 %v562, %v903
      %v950 = vadd.f32 %v563, %v908
      %v951 = vadd.f32 %v564, %v913
      %v952 = vadd.f32 %v565, %v918
      %v953 = vld [vmem:[%s165 + $0x2] sm:$0xff]
      %v954 = vld [vmem:[%s165 + $0xa] sm:$0xff]
      %v955 = vld [vmem:[%s165 + $0x1a] sm:$0xff]
      %v956 = vld [vmem:[%s165 + $0x22] sm:$0xff]
      %v957 = vld [vmem:[%s165 + $0x32] sm:$0xff]
      %v958 = vld [vmem:[%s165 + $0x3a] sm:$0xff]
      %v959 = vld [vmem:[%s165 + $0x4a] sm:$0xff]
      %v960 = vld [vmem:[%s165 + $0x52] sm:$0xff]
      %v961 = vld [vmem:[%s165 + $0x62] sm:$0xff]
      %v962 = vld [vmem:[%s165 + $0x6a] sm:$0xff]
      %v963 = vld [vmem:[%s165 + $0x7a] sm:$0xff]
      %v964 = vld [vmem:[%s165 + $0x82] sm:$0xff]
      %v965 = vld [vmem:[%s165 + $0x92] sm:$0xff]
      %v966 = vld [vmem:[%s165 + $0x9a] sm:$0xff]
      %v967 = vld [vmem:[%s165 + $0xaa] sm:$0xff]
      %v968 = vld [vmem:[%s165 + $0xb2] sm:$0xff]
      %v969 = vld [vmem:[%s165 + $0xc2] sm:$0xff]
      %v970 = vld [vmem:[%s165 + $0xca] sm:$0xff]
      %v971 = vld [vmem:[%s165 + $0xda] sm:$0xff]
      %v972 = vld [vmem:[%s165 + $0xe2] sm:$0xff]
      %v973 = vld [vmem:[%s165 + $0xf2] sm:$0xff]
      %v974 = vld [vmem:[%s165 + $0xfa] sm:$0xff]
      %v975 = vld [vmem:[%s165 + $0x10a] sm:$0xff]
      %v976 = vld [vmem:[%s165 + $0x112] sm:$0xff]
      %v977 = vld [vmem:[%s165 + $0x122] sm:$0xff]
      %v978 = vld [vmem:[%s165 + $0x12a] sm:$0xff]
      %v979 = vld [vmem:[%s165 + $0x13a] sm:$0xff]
      %v980 = vld [vmem:[%s165 + $0x142] sm:$0xff]
      %v981 = vld [vmem:[%s165 + $0x152] sm:$0xff]
      %v982 = vld [vmem:[%s165 + $0x15a] sm:$0xff]
      %v983 = vld [vmem:[%s165 + $0x16a] sm:$0xff]
      %v984 = vld [vmem:[%s165 + $0x172] sm:$0xff]
      %s985 = scalar_lea.vmem %s1, 16
      %v986 = vld [vmem:[%s985] sm:$0xff]
      %v988 = vsel %vm212, %v953, 0
      %v991 = vsel %vm212, %v954, 0
      %v994 = vsel %vm212, %v955, 0
      %v997 = vsel %vm212, %v956, 0
      %v1000 = vsel %vm212, %v957, 0
      %v1003 = vsel %vm212, %v958, 0
      %v1006 = vsel %vm212, %v959, 0
      %v1009 = vsel %vm212, %v960, 0
      %v1012 = vsel %vm212, %v961, 0
      %v1015 = vsel %vm212, %v962, 0
      %v1018 = vsel %vm212, %v963, 0
      %v1021 = vsel %vm212, %v964, 0
      %v1024 = vsel %vm212, %v965, 0
      %v1027 = vsel %vm212, %v966, 0
      %v1030 = vsel %vm212, %v967, 0
      %v1033 = vsel %vm212, %v968, 0
      %v1036 = vsel %vm212, %v969, 0
      %v1039 = vsel %vm212, %v970, 0
      %v1042 = vsel %vm212, %v971, 0
      %v1045 = vsel %vm212, %v972, 0
      %v1048 = vsel %vm212, %v973, 0
      %v1051 = vsel %vm212, %v974, 0
      %v1054 = vsel %vm212, %v975, 0
      %v1057 = vsel %vm212, %v976, 0
      %v1060 = vsel %vm212, %v977, 0
      %v1063 = vsel %vm212, %v978, 0
      %v1066 = vsel %vm212, %v979, 0
      %v1069 = vsel %vm212, %v980, 0
      %v1072 = vsel %vm212, %v981, 0
      %v1075 = vsel %vm212, %v982, 0
      %v1078 = vsel %vm212, %v983, 0
      %v1081 = vsel %vm212, %v984, 0
      %1083 = vmatprep.subr.mxu0 0.0
      %1084 = vmatpush1.msra.mxu0 %v986
      %1085 = vmatprep.subr.mxu0 0.0
      %1086 = vmatpush1.msra.mxu0 0.0
      %1087 = vmatprep.subr.mxu0 0.0
      %1088 = vmatpush1.msra.mxu0 0.0
      %1089 = vmatprep.subr.mxu0 0.0
      %1090 = vmatpush1.msra.mxu0 0.0
      %1091 = vmatprep.subr.mxu0 0.0
      %1092 = vmatpush1.msra.mxu0 0.0
      %1093 = vmatprep.subr.mxu0 0.0
      %1094 = vmatpush1.msra.mxu0 0.0
      %1095 = vmatprep.subr.mxu0 0.0
      %1096 = vmatpush1.msra.mxu0 0.0
      %1097 = vmatprep.subr.mxu0 0.0
      %1098 = vmatpush1.msra.mxu0 0.0
      %1099 = vmatprep.subr.mxu0 0.0
      %1100 = vmatpush1.msra.mxu0 0.0
      %1101 = vmatprep.subr.mxu0 0.0
      %1102 = vmatpush1.msra.mxu0 0.0
      %1103 = vmatprep.subr.mxu0 0.0
      %1104 = vmatpush1.msra.mxu0 0.0
      %1105 = vmatprep.subr.mxu0 0.0
      %1106 = vmatpush1.msra.mxu0 0.0
      %1107 = vmatprep.subr.mxu0 0.0
      %1108 = vmatpush1.msra.mxu0 0.0
      %1109 = vmatprep.subr.mxu0 0.0
      %1110 = vmatpush1.msra.mxu0 0.0
      %1111 = vmatprep.subr.mxu0 0.0
      %1112 = vmatpush1.msra.mxu0 0.0
      %1113 = vmatprep.subr.mxu0 0.0
      %1114 = vmatpush1.msra.mxu0 0.0
      %1115 = vmatprep.subr.mxu0 0.0
      %1116 = vmatpush1.msra.mxu0 0.0
      %1117 = vmatprep.subr.mxu0 0.0
      %1118 = vmatpush1.msra.mxu0 0.0
      %1119 = vmatprep.subr.mxu0 0.0
      %1120 = vmatpush1.msra.mxu0 0.0
      %1121 = vmatprep.subr.mxu0 0.0
      %1122 = vmatpush1.msra.mxu0 0.0
      %1123 = vmatprep.subr.mxu0 0.0
      %1124 = vmatpush1.msra.mxu0 0.0
      %1125 = vmatprep.subr.mxu0 0.0
      %1126 = vmatpush1.msra.mxu0 0.0
      %1127 = vmatprep.subr.mxu0 0.0
      %1128 = vmatpush1.msra.mxu0 0.0
      %1129 = vmatprep.subr.mxu0 0.0
      %1130 = vmatpush1.msra.mxu0 0.0
      %1131 = vmatprep.subr.mxu0 0.0
      %1132 = vmatpush1.msra.mxu0 0.0
      %1133 = vmatprep.subr.mxu0 0.0
      %1134 = vmatpush1.msra.mxu0 0.0
      %1135 = vmatprep.subr.mxu0 0.0
      %1136 = vmatpush1.msra.mxu0 0.0
      %1137 = vmatprep.subr.mxu0 0.0
      %1138 = vmatpush1.msra.mxu0 0.0
      %1139 = vmatprep.subr.mxu0 0.0
      %1140 = vmatpush1.msra.mxu0 0.0
      %1141 = vmatprep.subr.mxu0 0.0
      %1142 = vmatpush1.msra.mxu0 0.0
      %1143 = vmatprep.subr.mxu0 0.0
      %1144 = vmatpush1.msra.mxu0 0.0
      %1145 = vmatprep.subr.mxu0 0.0
      %1146 = vmatpush1.msra.mxu0 0.0
      %1147 = vmatprep.mubr.f32.mxu0 0.0
      %1148 = vmatmul.mubr.f32.gmra.mrb[0].mxu0 %v988
      %v1149 = vpop.f32.mrb[0].mxu0
      %v1150 = vadd.f32 0.0, %v1149
      %v1151 = vpop.f32.mrb[0].mxu0
      %1152 = vmatprep.mubr.f32.mxu0 0.0
      %1153 = vmatmul.mubr.f32.gmra.mrb[0].mxu0 %v991
      %v1154 = vpop.f32.mrb[0].mxu0
      %v1155 = vadd.f32 0.0, %v1154
      %v1156 = vpop.f32.mrb[0].mxu0
      %1157 = vmatprep.mubr.f32.mxu0 0.0
      %1158 = vmatmul.mubr.f32.gmra.mrb[0].mxu0 %v994
      %v1159 = vpop.f32.mrb[0].mxu0
      %v1160 = vadd.f32 0.0, %v1159
      %v1161 = vpop.f32.mrb[0].mxu0
      %1162 = vmatprep.mubr.f32.mxu0 0.0
      %1163 = vmatmul.mubr.f32.gmra.mrb[0].mxu0 %v997
      %v1164 = vpop.f32.mrb[0].mxu0
      %v1165 = vadd.f32 0.0, %v1164
      %v1166 = vpop.f32.mrb[0].mxu0
      %1167 = vmatprep.mubr.f32.mxu0 0.0
      %1168 = vmatmul.mubr.f32.gmra.mrb[0].mxu0 %v1000
      %v1169 = vpop.f32.mrb[0].mxu0
      %v1170 = vadd.f32 0.0, %v1169
      %v1171 = vpop.f32.mrb[0].mxu0
      %1172 = vmatprep.mubr.f32.mxu0 0.0
      %1173 = vmatmul.mubr.f32.gmra.mrb[0].mxu0 %v1003
      %v1174 = vpop.f32.mrb[0].mxu0
      %v1175 = vadd.f32 0.0, %v1174
      %v1176 = vpop.f32.mrb[0].mxu0
      %1177 = vmatprep.mubr.f32.mxu0 0.0
      %1178 = vmatmul.mubr.f32.gmra.mrb[0].mxu0 %v1006
      %v1179 = vpop.f32.mrb[0].mxu0
      %v1180 = vadd.f32 0.0, %v1179
      %v1181 = vpop.f32.mrb[0].mxu0
      %1182 = vmatprep.mubr.f32.mxu0 0.0
      %1183 = vmatmul.mubr.f32.gmra.mrb[0].mxu0 %v1009
      %v1184 = vpop.f32.mrb[0].mxu0
      %v1185 = vadd.f32 0.0, %v1184
      %v1186 = vpop.f32.mrb[0].mxu0
      %1187 = vmatprep.mubr.f32.mxu0 0.0
      %1188 = vmatmul.mubr.f32.gmra.mrb[0].mxu0 %v1012
      %v1189 = vpop.f32.mrb[0].mxu0
      %v1190 = vadd.f32 0.0, %v1189
      %v1191 = vpop.f32.mrb[0].mxu0
      %1192 = vmatprep.mubr.f32.mxu0 0.0
      %1193 = vmatmul.mubr.f32.gmra.mrb[0].mxu0 %v1015
      %v1194 = vpop.f32.mrb[0].mxu0
      %v1195 = vadd.f32 0.0, %v1194
      %v1196 = vpop.f32.mrb[0].mxu0
      %1197 = vmatprep.mubr.f32.mxu0 0.0
      %1198 = vmatmul.mubr.f32.gmra.mrb[0].mxu0 %v1018
      %v1199 = vpop.f32.mrb[0].mxu0
      %v1200 = vadd.f32 0.0, %v1199
      %v1201 = vpop.f32.mrb[0].mxu0
      %1202 = vmatprep.mubr.f32.mxu0 0.0
      %1203 = vmatmul.mubr.f32.gmra.mrb[0].mxu0 %v1021
      %v1204 = vpop.f32.mrb[0].mxu0
      %v1205 = vadd.f32 0.0, %v1204
      %v1206 = vpop.f32.mrb[0].mxu0
      %1207 = vmatprep.mubr.f32.mxu0 0.0
      %1208 = vmatmul.mubr.f32.gmra.mrb[0].mxu0 %v1024
      %v1209 = vpop.f32.mrb[0].mxu0
      %v1210 = vadd.f32 0.0, %v1209
      %v1211 = vpop.f32.mrb[0].mxu0
      %1212 = vmatprep.mubr.f32.mxu0 0.0
      %1213 = vmatmul.mubr.f32.gmra.mrb[0].mxu0 %v1027
      %v1214 = vpop.f32.mrb[0].mxu0
      %v1215 = vadd.f32 0.0, %v1214
      %v1216 = vpop.f32.mrb[0].mxu0
      %1217 = vmatprep.mubr.f32.mxu0 0.0
      %1218 = vmatmul.mubr.f32.gmra.mrb[0].mxu0 %v1030
      %v1219 = vpop.f32.mrb[0].mxu0
      %v1220 = vadd.f32 0.0, %v1219
      %v1221 = vpop.f32.mrb[0].mxu0
      %1222 = vmatprep.mubr.f32.mxu0 0.0
      %1223 = vmatmul.mubr.f32.gmra.mrb[0].mxu0 %v1033
      %v1224 = vpop.f32.mrb[0].mxu0
      %v1225 = vadd.f32 0.0, %v1224
      %v1226 = vpop.f32.mrb[0].mxu0
      %1227 = vmatprep.mubr.f32.mxu0 0.0
      %1228 = vmatmul.mubr.f32.gmra.mrb[0].mxu0 %v1036
      %v1229 = vpop.f32.mrb[0].mxu0
      %v1230 = vadd.f32 0.0, %v1229
      %v1231 = vpop.f32.mrb[0].mxu0
      %1232 = vmatprep.mubr.f32.mxu0 0.0
      %1233 = vmatmul.mubr.f32.gmra.mrb[0].mxu0 %v1039
      %v1234 = vpop.f32.mrb[0].mxu0
      %v1235 = vadd.f32 0.0, %v1234
      %v1236 = vpop.f32.mrb[0].mxu0
      %1237 = vmatprep.mubr.f32.mxu0 0.0
      %1238 = vmatmul.mubr.f32.gmra.mrb[0].mxu0 %v1042
      %v1239 = vpop.f32.mrb[0].mxu0
      %v1240 = vadd.f32 0.0, %v1239
      %v1241 = vpop.f32.mrb[0].mxu0
      %1242 = vmatprep.mubr.f32.mxu0 0.0
      %1243 = vmatmul.mubr.f32.gmra.mrb[0].mxu0 %v1045
      %v1244 = vpop.f32.mrb[0].mxu0
      %v1245 = vadd.f32 0.0, %v1244
      %v1246 = vpop.f32.mrb[0].mxu0
      %1247 = vmatprep.mubr.f32.mxu0 0.0
      %1248 = vmatmul.mubr.f32.gmra.mrb[0].mxu0 %v1048
      %v1249 = vpop.f32.mrb[0].mxu0
      %v1250 = vadd.f32 0.0, %v1249
      %v1251 = vpop.f32.mrb[0].mxu0
      %1252 = vmatprep.mubr.f32.mxu0 0.0
      %1253 = vmatmul.mubr.f32.gmra.mrb[0].mxu0 %v1051
      %v1254 = vpop.f32.mrb[0].mxu0
      %v1255 = vadd.f32 0.0, %v1254
      %v1256 = vpop.f32.mrb[0].mxu0
      %1257 = vmatprep.mubr.f32.mxu0 0.0
      %1258 = vmatmul.mubr.f32.gmra.mrb[0].mxu0 %v1054
      %v1259 = vpop.f32.mrb[0].mxu0
      %v1260 = vadd.f32 0.0, %v1259
      %v1261 = vpop.f32.mrb[0].mxu0
      %1262 = vmatprep.mubr.f32.mxu0 0.0
      %1263 = vmatmul.mubr.f32.gmra.mrb[0].mxu0 %v1057
      %v1264 = vpop.f32.mrb[0].mxu0
      %v1265 = vadd.f32 0.0, %v1264
      %v1266 = vpop.f32.mrb[0].mxu0
      %1267 = vmatprep.mubr.f32.mxu0 0.0
      %1268 = vmatmul.mubr.f32.gmra.mrb[0].mxu0 %v1060
      %v1269 = vpop.f32.mrb[0].mxu0
      %v1270 = vadd.f32 0.0, %v1269
      %v1271 = vpop.f32.mrb[0].mxu0
      %1272 = vmatprep.mubr.f32.mxu0 0.0
      %1273 = vmatmul.mubr.f32.gmra.mrb[0].mxu0 %v1063
      %v1274 = vpop.f32.mrb[0].mxu0
      %v1275 = vadd.f32 0.0, %v1274
      %v1276 = vpop.f32.mrb[0].mxu0
      %1277 = vmatprep.mubr.f32.mxu0 0.0
      %1278 = vmatmul.mubr.f32.gmra.mrb[0].mxu0 %v1066
      %v1279 = vpop.f32.mrb[0].mxu0
      %v1280 = vadd.f32 0.0, %v1279
      %v1281 = vpop.f32.mrb[0].mxu0
      %1282 = vmatprep.mubr.f32.mxu0 0.0
      %1283 = vmatmul.mubr.f32.gmra.mrb[0].mxu0 %v1069
      %v1284 = vpop.f32.mrb[0].mxu0
      %v1285 = vadd.f32 0.0, %v1284
      %v1286 = vpop.f32.mrb[0].mxu0
      %1287 = vmatprep.mubr.f32.mxu0 0.0
      %1288 = vmatmul.mubr.f32.gmra.mrb[0].mxu0 %v1072
      %v1289 = vpop.f32.mrb[0].mxu0
      %v1290 = vadd.f32 0.0, %v1289
      %v1291 = vpop.f32.mrb[0].mxu0
      %1292 = vmatprep.mubr.f32.mxu0 0.0
      %1293 = vmatmul.mubr.f32.gmra.mrb[0].mxu0 %v1075
      %v1294 = vpop.f32.mrb[0].mxu0
      %v1295 = vadd.f32 0.0, %v1294
      %v1296 = vpop.f32.mrb[0].mxu0
      %1297 = vmatprep.mubr.f32.mxu0 0.0
      %1298 = vmatmul.mubr.f32.gmra.mrb[0].mxu0 %v1078
      %v1299 = vpop.f32.mrb[0].mxu0
      %v1300 = vadd.f32 0.0, %v1299
      %v1301 = vpop.f32.mrb[0].mxu0
      %1302 = vmatprep.mubr.f32.mxu0 0.0
      %1303 = vmatmul.mubr.f32.gmra.mrb[0].mxu0 %v1081
      %v1304 = vpop.f32.mrb[0].mxu0
      %v1305 = vadd.f32 0.0, %v1304
      %v1306 = vpop.f32.mrb[0].mxu0
      %1307 = vdwg.mxu0
      %v1308 = vadd.f32 %v921, %v1150
      %v1309 = vadd.f32 %v922, %v1155
      %v1310 = vadd.f32 %v923, %v1160
      %v1311 = vadd.f32 %v924, %v1165
      %v1312 = vadd.f32 %v925, %v1170
      %v1313 = vadd.f32 %v926, %v1175
      %v1314 = vadd.f32 %v927, %v1180
      %v1315 = vadd.f32 %v928, %v1185
      %v1316 = vadd.f32 %v929, %v1190
      %v1317 = vadd.f32 %v930, %v1195
      %v1318 = vadd.f32 %v931, %v1200
      %v1319 = vadd.f32 %v932, %v1205
      %v1320 = vadd.f32 %v933, %v1210
      %v1321 = vadd.f32 %v934, %v1215
      %v1322 = vadd.f32 %v935, %v1220
      %v1323 = vadd.f32 %v936, %v1225
      %v1324 = vadd.f32 %v937, %v1230
      %v1325 = vadd.f32 %v938, %v1235
      %v1326 = vadd.f32 %v939, %v1240
      %v1327 = vadd.f32 %v940, %v1245
      %v1328 = vadd.f32 %v941, %v1250
      %v1329 = vadd.f32 %v942, %v1255
      %v1330 = vadd.f32 %v943, %v1260
      %v1331 = vadd.f32 %v944, %v1265
      %v1332 = vadd.f32 %v945, %v1270
      %v1333 = vadd.f32 %v946, %v1275
      %v1334 = vadd.f32 %v947, %v1280
      %v1335 = vadd.f32 %v948, %v1285
      %v1336 = vadd.f32 %v949, %v1290
      %v1337 = vadd.f32 %v950, %v1295
      %v1338 = vadd.f32 %v951, %v1300
      %v1339 = vadd.f32 %v952, %v1305
      %s1340 = scalar_lea.vmem %s165, 24
      %v1341 = vld [vmem:[%s1340] sm:$0xff]
      %v1342 = vld [vmem:[%s1340 + $0x8] sm:$0xff]
      %v1343 = vld [vmem:[%s1340 + $0x18] sm:$0xff]
      %v1344 = vld [vmem:[%s1340 + $0x20] sm:$0xff]
      %v1345 = vld [vmem:[%s1340 + $0x30] sm:$0xff]
      %v1346 = vld [vmem:[%s1340 + $0x38] sm:$0xff]
      %v1347 = vld [vmem:[%s1340 + $0x48] sm:$0xff]
      %v1348 = vld [vmem:[%s1340 + $0x50] sm:$0xff]
      %v1349 = vld [vmem:[%s1340 + $0x60] sm:$0xff]
      %v1350 = vld [vmem:[%s1340 + $0x68] sm:$0xff]
      %v1351 = vld [vmem:[%s1340 + $0x78] sm:$0xff]
      %v1352 = vld [vmem:[%s1340 + $0x80] sm:$0xff]
      %v1353 = vld [vmem:[%s1340 + $0x90] sm:$0xff]
      %v1354 = vld [vmem:[%s1340 + $0x98] sm:$0xff]
      %v1355 = vld [vmem:[%s1340 + $0xa8] sm:$0xff]
      %v1356 = vld [vmem:[%s1340 + $0xb0] sm:$0xff]
      %v1357 = vld [vmem:[%s1340 + $0xc0] sm:$0xff]
      %v1358 = vld [vmem:[%s1340 + $0xc8] sm:$0xff]
      %v1359 = vld [vmem:[%s1340 + $0xd8] sm:$0xff]
      %v1360 = vld [vmem:[%s1340 + $0xe0] sm:$0xff]
      %v1361 = vld [vmem:[%s1340 + $0xf0] sm:$0xff]
      %v1362 = vld [vmem:[%s1340 + $0xf8] sm:$0xff]
      %v1363 = vld [vmem:[%s1340 + $0x108] sm:$0xff]
      %v1364 = vld [vmem:[%s1340 + $0x110] sm:$0xff]
      %v1365 = vld [vmem:[%s1340 + $0x120] sm:$0xff]
      %v1366 = vld [vmem:[%s1340 + $0x128] sm:$0xff]
      %v1367 = vld [vmem:[%s1340 + $0x138] sm:$0xff]
      %v1368 = vld [vmem:[%s1340 + $0x140] sm:$0xff]
      %v1369 = vld [vmem:[%s1340 + $0x150] sm:$0xff]
      %v1370 = vld [vmem:[%s1340 + $0x158] sm:$0xff]
      %v1371 = vld [vmem:[%s1340 + $0x168] sm:$0xff]
      %v1372 = vld [vmem:[%s1340 + $0x170] sm:$0xff]
      %s1373 = scalar_lea.vmem %s1, 24
      %v1374 = vld [vmem:[%s1373] sm:$0xff]
      %v1376 = vsel %vm212, %v1341, 0
      %v1379 = vsel %vm212, %v1342, 0
      %v1382 = vsel %vm212, %v1343, 0
      %v1385 = vsel %vm212, %v1344, 0
      %v1388 = vsel %vm212, %v1345, 0
      %v1391 = vsel %vm212, %v1346, 0
      %v1394 = vsel %vm212, %v1347, 0
      %v1397 = vsel %vm212, %v1348, 0
      %v1400 = vsel %vm212, %v1349, 0
      %v1403 = vsel %vm212, %v1350, 0
      %v1406 = vsel %vm212, %v1351, 0
      %v1409 = vsel %vm212, %v1352, 0
      %v1412 = vsel %vm212, %v1353, 0
      %v1415 = vsel %vm212, %v1354, 0
      %v1418 = vsel %vm212, %v1355, 0
      %v1421 = vsel %vm212, %v1356, 0
      %v1424 = vsel %vm212, %v1357, 0
      %v1427 = vsel %vm212, %v1358, 0
      %v1430 = vsel %vm212, %v1359, 0
      %v1433 = vsel %vm212, %v1360, 0
      %v1436 = vsel %vm212, %v1361, 0
      %v1439 = vsel %vm212, %v1362, 0
      %v1442 = vsel %vm212, %v1363, 0
      %v1445 = vsel %vm212, %v1364, 0
      %v1448 = vsel %vm212, %v1365, 0
      %v1451 = vsel %vm212, %v1366, 0
      %v1454 = vsel %vm212, %v1367, 0
      %v1457 = vsel %vm212, %v1368, 0
      %v1460 = vsel %vm212, %v1369, 0
      %v1463 = vsel %vm212, %v1370, 0
      %v1466 = vsel %vm212, %v1371, 0
      %v1469 = vsel %vm212, %v1372, 0
      %1471 = vmatprep.subr.mxu0 0.0
      %1472 = vmatpush1.msra.mxu0 %v1374
      %1473 = vmatprep.subr.mxu0 0.0
      %1474 = vmatpush1.msra.mxu0 0.0
      %1475 = vmatprep.subr.mxu0 0.0
      %1476 = vmatpush1.msra.mxu0 0.0
      %1477 = vmatprep.subr.mxu0 0.0
      %1478 = vmatpush1.msra.mxu0 0.0
      %1479 = vmatprep.subr.mxu0 0.0
      %1480 = vmatpush1.msra.mxu0 0.0
      %1481 = vmatprep.subr.mxu0 0.0
      %1482 = vmatpush1.msra.mxu0 0.0
      %1483 = vmatprep.subr.mxu0 0.0
      %1484 = vmatpush1.msra.mxu0 0.0
      %1485 = vmatprep.subr.mxu0 0.0
      %1486 = vmatpush1.msra.mxu0 0.0
      %1487 = vmatprep.subr.mxu0 0.0
      %1488 = vmatpush1.msra.mxu0 0.0
      %1489 = vmatprep.subr.mxu0 0.0
      %1490 = vmatpush1.msra.mxu0 0.0
      %1491 = vmatprep.subr.mxu0 0.0
      %1492 = vmatpush1.msra.mxu0 0.0
      %1493 = vmatprep.subr.mxu0 0.0
      %1494 = vmatpush1.msra.mxu0 0.0
      %1495 = vmatprep.subr.mxu0 0.0
      %1496 = vmatpush1.msra.mxu0 0.0
      %1497 = vmatprep.subr.mxu0 0.0
      %1498 = vmatpush1.msra.mxu0 0.0
      %1499 = vmatprep.subr.mxu0 0.0
      %1500 = vmatpush1.msra.mxu0 0.0
      %1501 = vmatprep.subr.mxu0 0.0
      %1502 = vmatpush1.msra.mxu0 0.0
      %1503 = vmatprep.subr.mxu0 0.0
      %1504 = vmatpush1.msra.mxu0 0.0
      %1505 = vmatprep.subr.mxu0 0.0
      %1506 = vmatpush1.msra.mxu0 0.0
      %1507 = vmatprep.subr.mxu0 0.0
      %1508 = vmatpush1.msra.mxu0 0.0
      %1509 = vmatprep.subr.mxu0 0.0
      %1510 = vmatpush1.msra.mxu0 0.0
      %1511 = vmatprep.subr.mxu0 0.0
      %1512 = vmatpush1.msra.mxu0 0.0
      %1513 = vmatprep.subr.mxu0 0.0
      %1514 = vmatpush1.msra.mxu0 0.0
      %1515 = vmatprep.subr.mxu0 0.0
      %1516 = vmatpush1.msra.mxu0 0.0
      %1517 = vmatprep.subr.mxu0 0.0
      %1518 = vmatpush1.msra.mxu0 0.0
      %1519 = vmatprep.subr.mxu0 0.0
      %1520 = vmatpush1.msra.mxu0 0.0
      %1521 = vmatprep.subr.mxu0 0.0
      %1522 = vmatpush1.msra.mxu0 0.0
      %1523 = vmatprep.subr.mxu0 0.0
      %1524 = vmatpush1.msra.mxu0 0.0
      %1525 = vmatprep.subr.mxu0 0.0
      %1526 = vmatpush1.msra.mxu0 0.0
      %1527 = vmatprep.subr.mxu0 0.0
      %1528 = vmatpush1.msra.mxu0 0.0
      %1529 = vmatprep.subr.mxu0 0.0
      %1530 = vmatpush1.msra.mxu0 0.0
      %1531 = vmatprep.subr.mxu0 0.0
      %1532 = vmatpush1.msra.mxu0 0.0
      %1533 = vmatprep.subr.mxu0 0.0
      %1534 = vmatpush1.msra.mxu0 0.0
      %1535 = vmatprep.mubr.f32.mxu0 0.0
      %1536 = vmatmul.mubr.f32.gmra.mrb[0].mxu0 %v1376
      %v1537 = vpop.f32.mrb[0].mxu0
      %v1538 = vadd.f32 0.0, %v1537
      %v1539 = vpop.f32.mrb[0].mxu0
      %1540 = vmatprep.mubr.f32.mxu0 0.0
      %1541 = vmatmul.mubr.f32.gmra.mrb[0].mxu0 %v1379
      %v1542 = vpop.f32.mrb[0].mxu0
      %v1543 = vadd.f32 0.0, %v1542
      %v1544 = vpop.f32.mrb[0].mxu0
      %1545 = vmatprep.mubr.f32.mxu0 0.0
      %1546 = vmatmul.mubr.f32.gmra.mrb[0].mxu0 %v1382
      %v1547 = vpop.f32.mrb[0].mxu0
      %v1548 = vadd.f32 0.0, %v1547
      %v1549 = vpop.f32.mrb[0].mxu0
      %1550 = vmatprep.mubr.f32.mxu0 0.0
      %1551 = vmatmul.mubr.f32.gmra.mrb[0].mxu0 %v1385
      %v1552 = vpop.f32.mrb[0].mxu0
      %v1553 = vadd.f32 0.0, %v1552
      %v1554 = vpop.f32.mrb[0].mxu0
      %1555 = vmatprep.mubr.f32.mxu0 0.0
      %1556 = vmatmul.mubr.f32.gmra.mrb[0].mxu0 %v1388
      %v1557 = vpop.f32.mrb[0].mxu0
      %v1558 = vadd.f32 0.0, %v1557
      %v1559 = vpop.f32.mrb[0].mxu0
      %1560 = vmatprep.mubr.f32.mxu0 0.0
      %1561 = vmatmul.mubr.f32.gmra.mrb[0].mxu0 %v1391
      %v1562 = vpop.f32.mrb[0].mxu0
      %v1563 = vadd.f32 0.0, %v1562
      %v1564 = vpop.f32.mrb[0].mxu0
      %1565 = vmatprep.mubr.f32.mxu0 0.0
      %1566 = vmatmul.mubr.f32.gmra.mrb[0].mxu0 %v1394
      %v1567 = vpop.f32.mrb[0].mxu0
      %v1568 = vadd.f32 0.0, %v1567
      %v1569 = vpop.f32.mrb[0].mxu0
      %1570 = vmatprep.mubr.f32.mxu0 0.0
      %1571 = vmatmul.mubr.f32.gmra.mrb[0].mxu0 %v1397
      %v1572 = vpop.f32.mrb[0].mxu0
      %v1573 = vadd.f32 0.0, %v1572
      %v1574 = vpop.f32.mrb[0].mxu0
      %1575 = vmatprep.mubr.f32.mxu0 0.0
      %1576 = vmatmul.mubr.f32.gmra.mrb[0].mxu0 %v1400
      %v1577 = vpop.f32.mrb[0].mxu0
      %v1578 = vadd.f32 0.0, %v1577
      %v1579 = vpop.f32.mrb[0].mxu0
      %1580 = vmatprep.mubr.f32.mxu0 0.0
      %1581 = vmatmul.mubr.f32.gmra.mrb[0].mxu0 %v1403
      %v1582 = vpop.f32.mrb[0].mxu0
      %v1583 = vadd.f32 0.0, %v1582
      %v1584 = vpop.f32.mrb[0].mxu0
      %1585 = vmatprep.mubr.f32.mxu0 0.0
      %1586 = vmatmul.mubr.f32.gmra.mrb[0].mxu0 %v1406
      %v1587 = vpop.f32.mrb[0].mxu0
      %v1588 = vadd.f32 0.0, %v1587
      %v1589 = vpop.f32.mrb[0].mxu0
      %1590 = vmatprep.mubr.f32.mxu0 0.0
      %1591 = vmatmul.mubr.f32.gmra.mrb[0].mxu0 %v1409
      %v1592 = vpop.f32.mrb[0].mxu0
      %v1593 = vadd.f32 0.0, %v1592
      %v1594 = vpop.f32.mrb[0].mxu0
      %1595 = vmatprep.mubr.f32.mxu0 0.0
      %1596 = vmatmul.mubr.f32.gmra.mrb[0].mxu0 %v1412
      %v1597 = vpop.f32.mrb[0].mxu0
      %v1598 = vadd.f32 0.0, %v1597
      %v1599 = vpop.f32.mrb[0].mxu0
      %1600 = vmatprep.mubr.f32.mxu0 0.0
      %1601 = vmatmul.mubr.f32.gmra.mrb[0].mxu0 %v1415
      %v1602 = vpop.f32.mrb[0].mxu0
      %v1603 = vadd.f32 0.0, %v1602
      %v1604 = vpop.f32.mrb[0].mxu0
      %1605 = vmatprep.mubr.f32.mxu0 0.0
      %1606 = vmatmul.mubr.f32.gmra.mrb[0].mxu0 %v1418
      %v1607 = vpop.f32.mrb[0].mxu0
      %v1608 = vadd.f32 0.0, %v1607
      %v1609 = vpop.f32.mrb[0].mxu0
      %1610 = vmatprep.mubr.f32.mxu0 0.0
      %1611 = vmatmul.mubr.f32.gmra.mrb[0].mxu0 %v1421
      %v1612 = vpop.f32.mrb[0].mxu0
      %v1613 = vadd.f32 0.0, %v1612
      %v1614 = vpop.f32.mrb[0].mxu0
      %1615 = vmatprep.mubr.f32.mxu0 0.0
      %1616 = vmatmul.mubr.f32.gmra.mrb[0].mxu0 %v1424
      %v1617 = vpop.f32.mrb[0].mxu0
      %v1618 = vadd.f32 0.0, %v1617
      %v1619 = vpop.f32.mrb[0].mxu0
      %1620 = vmatprep.mubr.f32.mxu0 0.0
      %1621 = vmatmul.mubr.f32.gmra.mrb[0].mxu0 %v1427
      %v1622 = vpop.f32.mrb[0].mxu0
      %v1623 = vadd.f32 0.0, %v1622
      %v1624 = vpop.f32.mrb[0].mxu0
      %1625 = vmatprep.mubr.f32.mxu0 0.0
      %1626 = vmatmul.mubr.f32.gmra.mrb[0].mxu0 %v1430
      %v1627 = vpop.f32.mrb[0].mxu0
      %v1628 = vadd.f32 0.0, %v1627
      %v1629 = vpop.f32.mrb[0].mxu0
      %1630 = vmatprep.mubr.f32.mxu0 0.0
      %1631 = vmatmul.mubr.f32.gmra.mrb[0].mxu0 %v1433
      %v1632 = vpop.f32.mrb[0].mxu0
      %v1633 = vadd.f32 0.0, %v1632
      %v1634 = vpop.f32.mrb[0].mxu0
      %1635 = vmatprep.mubr.f32.mxu0 0.0
      %1636 = vmatmul.mubr.f32.gmra.mrb[0].mxu0 %v1436
      %v1637 = vpop.f32.mrb[0].mxu0
      %v1638 = vadd.f32 0.0, %v1637
      %v1639 = vpop.f32.mrb[0].mxu0
      %1640 = vmatprep.mubr.f32.mxu0 0.0
      %1641 = vmatmul.mubr.f32.gmra.mrb[0].mxu0 %v1439
      %v1642 = vpop.f32.mrb[0].mxu0
      %v1643 = vadd.f32 0.0, %v1642
      %v1644 = vpop.f32.mrb[0].mxu0
      %1645 = vmatprep.mubr.f32.mxu0 0.0
      %1646 = vmatmul.mubr.f32.gmra.mrb[0].mxu0 %v1442
      %v1647 = vpop.f32.mrb[0].mxu0
      %v1648 = vadd.f32 0.0, %v1647
      %v1649 = vpop.f32.mrb[0].mxu0
      %1650 = vmatprep.mubr.f32.mxu0 0.0
      %1651 = vmatmul.mubr.f32.gmra.mrb[0].mxu0 %v1445
      %v1652 = vpop.f32.mrb[0].mxu0
      %v1653 = vadd.f32 0.0, %v1652
      %v1654 = vpop.f32.mrb[0].mxu0
      %1655 = vmatprep.mubr.f32.mxu0 0.0
      %1656 = vmatmul.mubr.f32.gmra.mrb[0].mxu0 %v1448
      %v1657 = vpop.f32.mrb[0].mxu0
      %v1658 = vadd.f32 0.0, %v1657
      %v1659 = vpop.f32.mrb[0].mxu0
      %1660 = vmatprep.mubr.f32.mxu0 0.0
      %1661 = vmatmul.mubr.f32.gmra.mrb[0].mxu0 %v1451
      %v1662 = vpop.f32.mrb[0].mxu0
      %v1663 = vadd.f32 0.0, %v1662
      %v1664 = vpop.f32.mrb[0].mxu0
      %1665 = vmatprep.mubr.f32.mxu0 0.0
      %1666 = vmatmul.mubr.f32.gmra.mrb[0].mxu0 %v1454
      %v1667 = vpop.f32.mrb[0].mxu0
      %v1668 = vadd.f32 0.0, %v1667
      %v1669 = vpop.f32.mrb[0].mxu0
      %1670 = vmatprep.mubr.f32.mxu0 0.0
      %1671 = vmatmul.mubr.f32.gmra.mrb[0].mxu0 %v1457
      %v1672 = vpop.f32.mrb[0].mxu0
      %v1673 = vadd.f32 0.0, %v1672
      %v1674 = vpop.f32.mrb[0].mxu0
      %1675 = vmatprep.mubr.f32.mxu0 0.0
      %1676 = vmatmul.mubr.f32.gmra.mrb[0].mxu0 %v1460
      %v1677 = vpop.f32.mrb[0].mxu0
      %v1678 = vadd.f32 0.0, %v1677
      %v1679 = vpop.f32.mrb[0].mxu0
      %1680 = vmatprep.mubr.f32.mxu0 0.0
      %1681 = vmatmul.mubr.f32.gmra.mrb[0].mxu0 %v1463
      %v1682 = vpop.f32.mrb[0].mxu0
      %v1683 = vadd.f32 0.0, %v1682
      %v1684 = vpop.f32.mrb[0].mxu0
      %1685 = vmatprep.mubr.f32.mxu0 0.0
      %1686 = vmatmul.mubr.f32.gmra.mrb[0].mxu0 %v1466
      %v1687 = vpop.f32.mrb[0].mxu0
      %v1688 = vadd.f32 0.0, %v1687
      %v1689 = vpop.f32.mrb[0].mxu0
      %1690 = vmatprep.mubr.f32.mxu0 0.0
      %1691 = vmatmul.mubr.f32.gmra.mrb[0].mxu0 %v1469
      %v1692 = vpop.f32.mrb[0].mxu0
      %v1693 = vadd.f32 0.0, %v1692
      %v1694 = vpop.f32.mrb[0].mxu0
      %1695 = vdwg.mxu0
      %v1696 = vadd.f32 %v1308, %v1538
      %v1697 = vadd.f32 %v1309, %v1543
      %v1698 = vadd.f32 %v1310, %v1548
      %v1699 = vadd.f32 %v1311, %v1553
      %v1700 = vadd.f32 %v1312, %v1558
      %v1701 = vadd.f32 %v1313, %v1563
      %v1702 = vadd.f32 %v1314, %v1568
      %v1703 = vadd.f32 %v1315, %v1573
      %v1704 = vadd.f32 %v1316, %v1578
      %v1705 = vadd.f32 %v1317, %v1583
      %v1706 = vadd.f32 %v1318, %v1588
      %v1707 = vadd.f32 %v1319, %v1593
      %v1708 = vadd.f32 %v1320, %v1598
      %v1709 = vadd.f32 %v1321, %v1603
      %v1710 = vadd.f32 %v1322, %v1608
      %v1711 = vadd.f32 %v1323, %v1613
      %v1712 = vadd.f32 %v1324, %v1618
      %v1713 = vadd.f32 %v1325, %v1623
      %v1714 = vadd.f32 %v1326, %v1628
      %v1715 = vadd.f32 %v1327, %v1633
      %v1716 = vadd.f32 %v1328, %v1638
      %v1717 = vadd.f32 %v1329, %v1643
      %v1718 = vadd.f32 %v1330, %v1648
      %v1719 = vadd.f32 %v1331, %v1653
      %v1720 = vadd.f32 %v1332, %v1658
      %v1721 = vadd.f32 %v1333, %v1663
      %v1722 = vadd.f32 %v1334, %v1668
      %v1723 = vadd.f32 %v1335, %v1673
      %v1724 = vadd.f32 %v1336, %v1678
      %v1725 = vadd.f32 %v1337, %v1683
      %v1726 = vadd.f32 %v1338, %v1688
      %v1727 = vadd.f32 %v1339, %v1693
      %v1728 = vld [vmem:[%s1340 + $0x1] sm:$0xff]
      %v1729 = vld [vmem:[%s1340 + $0x9] sm:$0xff]
      %v1730 = vld [vmem:[%s1340 + $0x19] sm:$0xff]
      %v1731 = vld [vmem:[%s1340 + $0x21] sm:$0xff]
      %v1732 = vld [vmem:[%s1340 + $0x31] sm:$0xff]
      %v1733 = vld [vmem:[%s1340 + $0x39] sm:$0xff]
      %v1734 = vld [vmem:[%s1340 + $0x49] sm:$0xff]
      %v1735 = vld [vmem:[%s1340 + $0x51] sm:$0xff]
      %v1736 = vld [vmem:[%s1340 + $0x61] sm:$0xff]
      %v1737 = vld [vmem:[%s1340 + $0x69] sm:$0xff]
      %v1738 = vld [vmem:[%s1340 + $0x79] sm:$0xff]
      %v1739 = vld [vmem:[%s1340 + $0x81] sm:$0xff]
      %v1740 = vld [vmem:[%s1340 + $0x91] sm:$0xff]
      %v1741 = vld [vmem:[%s1340 + $0x99] sm:$0xff]
      %v1742 = vld [vmem:[%s1340 + $0xa9] sm:$0xff]
      %v1743 = vld [vmem:[%s1340 + $0xb1] sm:$0xff]
      %v1744 = vld [vmem:[%s1340 + $0xc1] sm:$0xff]
      %v1745 = vld [vmem:[%s1340 + $0xc9] sm:$0xff]
      %v1746 = vld [vmem:[%s1340 + $0xd9] sm:$0xff]
      %v1747 = vld [vmem:[%s1340 + $0xe1] sm:$0xff]
      %v1748 = vld [vmem:[%s1340 + $0xf1] sm:$0xff]
      %v1749 = vld [vmem:[%s1340 + $0xf9] sm:$0xff]
      %v1750 = vld [vmem:[%s1340 + $0x109] sm:$0xff]
      %v1751 = vld [vmem:[%s1340 + $0x111] sm:$0xff]
      %v1752 = vld [vmem:[%s1340 + $0x121] sm:$0xff]
      %v1753 = vld [vmem:[%s1340 + $0x129] sm:$0xff]
      %v1754 = vld [vmem:[%s1340 + $0x139] sm:$0xff]
      %v1755 = vld [vmem:[%s1340 + $0x141] sm:$0xff]
      %v1756 = vld [vmem:[%s1340 + $0x151] sm:$0xff]
      %v1757 = vld [vmem:[%s1340 + $0x159] sm:$0xff]
      %v1758 = vld [vmem:[%s1340 + $0x169] sm:$0xff]
      %v1759 = vld [vmem:[%s1340 + $0x171] sm:$0xff]
      %s1760 = scalar_lea.vmem %s1, 32
      %v1761 = vld [vmem:[%s1760] sm:$0xff]
      %v1763 = vsel %vm212, %v1728, 0
      %v1766 = vsel %vm212, %v1729, 0
      %v1769 = vsel %vm212, %v1730, 0
      %v1772 = vsel %vm212, %v1731, 0
      %v1775 = vsel %vm212, %v1732, 0
      %v1778 = vsel %vm212, %v1733, 0
      %v1781 = vsel %vm212, %v1734, 0
      %v1784 = vsel %vm212, %v1735, 0
      %v1787 = vsel %vm212, %v1736, 0
      %v1790 = vsel %vm212, %v1737, 0
      %v1793 = vsel %vm212, %v1738, 0
      %v1796 = vsel %vm212, %v1739, 0
      %v1799 = vsel %vm212, %v1740, 0
      %v1802 = vsel %vm212, %v1741, 0
      %v1805 = vsel %vm212, %v1742, 0
      %v1808 = vsel %vm212, %v1743, 0
      %v1811 = vsel %vm212, %v1744, 0
      %v1814 = vsel %vm212, %v1745, 0
      %v1817 = vsel %vm212, %v1746, 0
      %v1820 = vsel %vm212, %v1747, 0
      %v1823 = vsel %vm212, %v1748, 0
      %v1826 = vsel %vm212, %v1749, 0
      %v1829 = vsel %vm212, %v1750, 0
      %v1832 = vsel %vm212, %v1751, 0
      %v1835 = vsel %vm212, %v1752, 0
      %v1838 = vsel %vm212, %v1753, 0
      %v1841 = vsel %vm212, %v1754, 0
      %v1844 = vsel %vm212, %v1755, 0
      %v1847 = vsel %vm212, %v1756, 0
      %v1850 = vsel %vm212, %v1757, 0
      %v1853 = vsel %vm212, %v1758, 0
      %v1856 = vsel %vm212, %v1759, 0
      %1858 = vmatprep.subr.mxu0 0.0
      %1859 = vmatpush1.msra.mxu0 %v1761
      %1860 = vmatprep.subr.mxu0 0.0
      %1861 = vmatpush1.msra.mxu0 0.0
      %1862 = vmatprep.subr.mxu0 0.0
      %1863 = vmatpush1.msra.mxu0 0.0
      %1864 = vmatprep.subr.mxu0 0.0
      %1865 = vmatpush1.msra.mxu0 0.0
      %1866 = vmatprep.subr.mxu0 0.0
      %1867 = vmatpush1.msra.mxu0 0.0
      %1868 = vmatprep.subr.mxu0 0.0
      %1869 = vmatpush1.msra.mxu0 0.0
      %1870 = vmatprep.subr.mxu0 0.0
      %1871 = vmatpush1.msra.mxu0 0.0
      %1872 = vmatprep.subr.mxu0 0.0
      %1873 = vmatpush1.msra.mxu0 0.0
      %1874 = vmatprep.subr.mxu0 0.0
      %1875 = vmatpush1.msra.mxu0 0.0
      %1876 = vmatprep.subr.mxu0 0.0
      %1877 = vmatpush1.msra.mxu0 0.0
      %1878 = vmatprep.subr.mxu0 0.0
      %1879 = vmatpush1.msra.mxu0 0.0
      %1880 = vmatprep.subr.mxu0 0.0
      %1881 = vmatpush1.msra.mxu0 0.0
      %1882 = vmatprep.subr.mxu0 0.0
      %1883 = vmatpush1.msra.mxu0 0.0
      %1884 = vmatprep.subr.mxu0 0.0
      %1885 = vmatpush1.msra.mxu0 0.0
      %1886 = vmatprep.subr.mxu0 0.0
      %1887 = vmatpush1.msra.mxu0 0.0
      %1888 = vmatprep.subr.mxu0 0.0
      %1889 = vmatpush1.msra.mxu0 0.0
      %1890 = vmatprep.subr.mxu0 0.0
      %1891 = vmatpush1.msra.mxu0 0.0
      %1892 = vmatprep.subr.mxu0 0.0
      %1893 = vmatpush1.msra.mxu0 0.0
      %1894 = vmatprep.subr.mxu0 0.0
      %1895 = vmatpush1.msra.mxu0 0.0
      %1896 = vmatprep.subr.mxu0 0.0
      %1897 = vmatpush1.msra.mxu0 0.0
      %1898 = vmatprep.subr.mxu0 0.0
      %1899 = vmatpush1.msra.mxu0 0.0
      %1900 = vmatprep.subr.mxu0 0.0
      %1901 = vmatpush1.msra.mxu0 0.0
      %1902 = vmatprep.subr.mxu0 0.0
      %1903 = vmatpush1.msra.mxu0 0.0
      %1904 = vmatprep.subr.mxu0 0.0
      %1905 = vmatpush1.msra.mxu0 0.0
      %1906 = vmatprep.subr.mxu0 0.0
      %1907 = vmatpush1.msra.mxu0 0.0
      %1908 = vmatprep.subr.mxu0 0.0
      %1909 = vmatpush1.msra.mxu0 0.0
      %1910 = vmatprep.subr.mxu0 0.0
      %1911 = vmatpush1.msra.mxu0 0.0
      %1912 = vmatprep.subr.mxu0 0.0
      %1913 = vmatpush1.msra.mxu0 0.0
      %1914 = vmatprep.subr.mxu0 0.0
      %1915 = vmatpush1.msra.mxu0 0.0
      %1916 = vmatprep.subr.mxu0 0.0
      %1917 = vmatpush1.msra.mxu0 0.0
      %1918 = vmatprep.subr.mxu0 0.0
      %1919 = vmatpush1.msra.mxu0 0.0
      %1920 = vmatprep.subr.mxu0 0.0
      %1921 = vmatpush1.msra.mxu0 0.0
      %1922 = vmatprep.mubr.f32.mxu0 0.0
      %1923 = vmatmul.mubr.f32.gmra.mrb[0].mxu0 %v1763
      %v1924 = vpop.f32.mrb[0].mxu0
      %v1925 = vadd.f32 0.0, %v1924
      %v1926 = vpop.f32.mrb[0].mxu0
      %1927 = vmatprep.mubr.f32.mxu0 0.0
      %1928 = vmatmul.mubr.f32.gmra.mrb[0].mxu0 %v1766
      %v1929 = vpop.f32.mrb[0].mxu0
      %v1930 = vadd.f32 0.0, %v1929
      %v1931 = vpop.f32.mrb[0].mxu0
      %1932 = vmatprep.mubr.f32.mxu0 0.0
      %1933 = vmatmul.mubr.f32.gmra.mrb[0].mxu0 %v1769
      %v1934 = vpop.f32.mrb[0].mxu0
      %v1935 = vadd.f32 0.0, %v1934
      %v1936 = vpop.f32.mrb[0].mxu0
      %1937 = vmatprep.mubr.f32.mxu0 0.0
      %1938 = vmatmul.mubr.f32.gmra.mrb[0].mxu0 %v1772
      %v1939 = vpop.f32.mrb[0].mxu0
      %v1940 = vadd.f32 0.0, %v1939
      %v1941 = vpop.f32.mrb[0].mxu0
      %1942 = vmatprep.mubr.f32.mxu0 0.0
      %1943 = vmatmul.mubr.f32.gmra.mrb[0].mxu0 %v1775
      %v1944 = vpop.f32.mrb[0].mxu0
      %v1945 = vadd.f32 0.0, %v1944
      %v1946 = vpop.f32.mrb[0].mxu0
      %1947 = vmatprep.mubr.f32.mxu0 0.0
      %1948 = vmatmul.mubr.f32.gmra.mrb[0].mxu0 %v1778
      %v1949 = vpop.f32.mrb[0].mxu0
      %v1950 = vadd.f32 0.0, %v1949
      %v1951 = vpop.f32.mrb[0].mxu0
      %1952 = vmatprep.mubr.f32.mxu0 0.0
      %1953 = vmatmul.mubr.f32.gmra.mrb[0].mxu0 %v1781
      %v1954 = vpop.f32.mrb[0].mxu0
      %v1955 = vadd.f32 0.0, %v1954
      %v1956 = vpop.f32.mrb[0].mxu0
      %1957 = vmatprep.mubr.f32.mxu0 0.0
      %1958 = vmatmul.mubr.f32.gmra.mrb[0].mxu0 %v1784
      %v1959 = vpop.f32.mrb[0].mxu0
      %v1960 = vadd.f32 0.0, %v1959
      %v1961 = vpop.f32.mrb[0].mxu0
      %1962 = vmatprep.mubr.f32.mxu0 0.0
      %1963 = vmatmul.mubr.f32.gmra.mrb[0].mxu0 %v1787
      %v1964 = vpop.f32.mrb[0].mxu0
      %v1965 = vadd.f32 0.0, %v1964
      %v1966 = vpop.f32.mrb[0].mxu0
      %1967 = vmatprep.mubr.f32.mxu0 0.0
      %1968 = vmatmul.mubr.f32.gmra.mrb[0].mxu0 %v1790
      %v1969 = vpop.f32.mrb[0].mxu0
      %v1970 = vadd.f32 0.0, %v1969
      %v1971 = vpop.f32.mrb[0].mxu0
      %1972 = vmatprep.mubr.f32.mxu0 0.0
      %1973 = vmatmul.mubr.f32.gmra.mrb[0].mxu0 %v1793
      %v1974 = vpop.f32.mrb[0].mxu0
      %v1975 = vadd.f32 0.0, %v1974
      %v1976 = vpop.f32.mrb[0].mxu0
      %1977 = vmatprep.mubr.f32.mxu0 0.0
      %1978 = vmatmul.mubr.f32.gmra.mrb[0].mxu0 %v1796
      %v1979 = vpop.f32.mrb[0].mxu0
      %v1980 = vadd.f32 0.0, %v1979
      %v1981 = vpop.f32.mrb[0].mxu0
      %1982 = vmatprep.mubr.f32.mxu0 0.0
      %1983 = vmatmul.mubr.f32.gmra.mrb[0].mxu0 %v1799
      %v1984 = vpop.f32.mrb[0].mxu0
      %v1985 = vadd.f32 0.0, %v1984
      %v1986 = vpop.f32.mrb[0].mxu0
      %1987 = vmatprep.mubr.f32.mxu0 0.0
      %1988 = vmatmul.mubr.f32.gmra.mrb[0].mxu0 %v1802
      %v1989 = vpop.f32.mrb[0].mxu0
      %v1990 = vadd.f32 0.0, %v1989
      %v1991 = vpop.f32.mrb[0].mxu0
      %1992 = vmatprep.mubr.f32.mxu0 0.0
      %1993 = vmatmul.mubr.f32.gmra.mrb[0].mxu0 %v1805
      %v1994 = vpop.f32.mrb[0].mxu0
      %v1995 = vadd.f32 0.0, %v1994
      %v1996 = vpop.f32.mrb[0].mxu0
      %1997 = vmatprep.mubr.f32.mxu0 0.0
      %1998 = vmatmul.mubr.f32.gmra.mrb[0].mxu0 %v1808
      %v1999 = vpop.f32.mrb[0].mxu0
      %v2000 = vadd.f32 0.0, %v1999
      %v2001 = vpop.f32.mrb[0].mxu0
      %2002 = vmatprep.mubr.f32.mxu0 0.0
      %2003 = vmatmul.mubr.f32.gmra.mrb[0].mxu0 %v1811
      %v2004 = vpop.f32.mrb[0].mxu0
      %v2005 = vadd.f32 0.0, %v2004
      %v2006 = vpop.f32.mrb[0].mxu0
      %2007 = vmatprep.mubr.f32.mxu0 0.0
      %2008 = vmatmul.mubr.f32.gmra.mrb[0].mxu0 %v1814
      %v2009 = vpop.f32.mrb[0].mxu0
      %v2010 = vadd.f32 0.0, %v2009
      %v2011 = vpop.f32.mrb[0].mxu0
      %2012 = vmatprep.mubr.f32.mxu0 0.0
      %2013 = vmatmul.mubr.f32.gmra.mrb[0].mxu0 %v1817
      %v2014 = vpop.f32.mrb[0].mxu0
      %v2015 = vadd.f32 0.0, %v2014
      %v2016 = vpop.f32.mrb[0].mxu0
      %2017 = vmatprep.mubr.f32.mxu0 0.0
      %2018 = vmatmul.mubr.f32.gmra.mrb[0].mxu0 %v1820
      %v2019 = vpop.f32.mrb[0].mxu0
      %v2020 = vadd.f32 0.0, %v2019
      %v2021 = vpop.f32.mrb[0].mxu0
      %2022 = vmatprep.mubr.f32.mxu0 0.0
      %2023 = vmatmul.mubr.f32.gmra.mrb[0].mxu0 %v1823
      %v2024 = vpop.f32.mrb[0].mxu0
      %v2025 = vadd.f32 0.0, %v2024
      %v2026 = vpop.f32.mrb[0].mxu0
      %2027 = vmatprep.mubr.f32.mxu0 0.0
      %2028 = vmatmul.mubr.f32.gmra.mrb[0].mxu0 %v1826
      %v2029 = vpop.f32.mrb[0].mxu0
      %v2030 = vadd.f32 0.0, %v2029
      %v2031 = vpop.f32.mrb[0].mxu0
      %2032 = vmatprep.mubr.f32.mxu0 0.0
      %2033 = vmatmul.mubr.f32.gmra.mrb[0].mxu0 %v1829
      %v2034 = vpop.f32.mrb[0].mxu0
      %v2035 = vadd.f32 0.0, %v2034
      %v2036 = vpop.f32.mrb[0].mxu0
      %2037 = vmatprep.mubr.f32.mxu0 0.0
      %2038 = vmatmul.mubr.f32.gmra.mrb[0].mxu0 %v1832
      %v2039 = vpop.f32.mrb[0].mxu0
      %v2040 = vadd.f32 0.0, %v2039
      %v2041 = vpop.f32.mrb[0].mxu0
      %2042 = vmatprep.mubr.f32.mxu0 0.0
      %2043 = vmatmul.mubr.f32.gmra.mrb[0].mxu0 %v1835
      %v2044 = vpop.f32.mrb[0].mxu0
      %v2045 = vadd.f32 0.0, %v2044
      %v2046 = vpop.f32.mrb[0].mxu0
      %2047 = vmatprep.mubr.f32.mxu0 0.0
      %2048 = vmatmul.mubr.f32.gmra.mrb[0].mxu0 %v1838
      %v2049 = vpop.f32.mrb[0].mxu0
      %v2050 = vadd.f32 0.0, %v2049
      %v2051 = vpop.f32.mrb[0].mxu0
      %2052 = vmatprep.mubr.f32.mxu0 0.0
      %2053 = vmatmul.mubr.f32.gmra.mrb[0].mxu0 %v1841
      %v2054 = vpop.f32.mrb[0].mxu0
      %v2055 = vadd.f32 0.0, %v2054
      %v2056 = vpop.f32.mrb[0].mxu0
      %2057 = vmatprep.mubr.f32.mxu0 0.0
      %2058 = vmatmul.mubr.f32.gmra.mrb[0].mxu0 %v1844
      %v2059 = vpop.f32.mrb[0].mxu0
      %v2060 = vadd.f32 0.0, %v2059
      %v2061 = vpop.f32.mrb[0].mxu0
      %2062 = vmatprep.mubr.f32.mxu0 0.0
      %2063 = vmatmul.mubr.f32.gmra.mrb[0].mxu0 %v1847
      %v2064 = vpop.f32.mrb[0].mxu0
      %v2065 = vadd.f32 0.0, %v2064
      %v2066 = vpop.f32.mrb[0].mxu0
      %2067 = vmatprep.mubr.f32.mxu0 0.0
      %2068 = vmatmul.mubr.f32.gmra.mrb[0].mxu0 %v1850
      %v2069 = vpop.f32.mrb[0].mxu0
      %v2070 = vadd.f32 0.0, %v2069
      %v2071 = vpop.f32.mrb[0].mxu0
      %2072 = vmatprep.mubr.f32.mxu0 0.0
      %2073 = vmatmul.mubr.f32.gmra.mrb[0].mxu0 %v1853
      %v2074 = vpop.f32.mrb[0].mxu0
      %v2075 = vadd.f32 0.0, %v2074
      %v2076 = vpop.f32.mrb[0].mxu0
      %2077 = vmatprep.mubr.f32.mxu0 0.0
      %2078 = vmatmul.mubr.f32.gmra.mrb[0].mxu0 %v1856
      %v2079 = vpop.f32.mrb[0].mxu0
      %v2080 = vadd.f32 0.0, %v2079
      %v2081 = vpop.f32.mrb[0].mxu0
      %2082 = vdwg.mxu0
      %v2083 = vadd.f32 %v1696, %v1925
      %v2084 = vadd.f32 %v1697, %v1930
      %v2085 = vadd.f32 %v1698, %v1935
      %v2086 = vadd.f32 %v1699, %v1940
      %v2087 = vadd.f32 %v1700, %v1945
      %v2088 = vadd.f32 %v1701, %v1950
      %v2089 = vadd.f32 %v1702, %v1955
      %v2090 = vadd.f32 %v1703, %v1960
      %v2091 = vadd.f32 %v1704, %v1965
      %v2092 = vadd.f32 %v1705, %v1970
      %v2093 = vadd.f32 %v1706, %v1975
      %v2094 = vadd.f32 %v1707, %v1980
      %v2095 = vadd.f32 %v1708, %v1985
      %v2096 = vadd.f32 %v1709, %v1990
      %v2097 = vadd.f32 %v1710, %v1995
      %v2098 = vadd.f32 %v1711, %v2000
      %v2099 = vadd.f32 %v1712, %v2005
      %v2100 = vadd.f32 %v1713, %v2010
      %v2101 = vadd.f32 %v1714, %v2015
      %v2102 = vadd.f32 %v1715, %v2020
      %v2103 = vadd.f32 %v1716, %v2025
      %v2104 = vadd.f32 %v1717, %v2030
      %v2105 = vadd.f32 %v1718, %v2035
      %v2106 = vadd.f32 %v1719, %v2040
      %v2107 = vadd.f32 %v1720, %v2045
      %v2108 = vadd.f32 %v1721, %v2050
      %v2109 = vadd.f32 %v1722, %v2055
      %v2110 = vadd.f32 %v1723, %v2060
      %v2111 = vadd.f32 %v1724, %v2065
      %v2112 = vadd.f32 %v1725, %v2070
      %v2113 = vadd.f32 %v1726, %v2075
      %v2114 = vadd.f32 %v1727, %v2080
      %v2115 = vld [vmem:[%s1340 + $0x2] sm:$0xff]
      %v2116 = vld [vmem:[%s1340 + $0xa] sm:$0xff]
      %v2117 = vld [vmem:[%s1340 + $0x1a] sm:$0xff]
      %v2118 = vld [vmem:[%s1340 + $0x22] sm:$0xff]
      %v2119 = vld [vmem:[%s1340 + $0x32] sm:$0xff]
      %v2120 = vld [vmem:[%s1340 + $0x3a] sm:$0xff]
      %v2121 = vld [vmem:[%s1340 + $0x4a] sm:$0xff]
      %v2122 = vld [vmem:[%s1340 + $0x52] sm:$0xff]
      %v2123 = vld [vmem:[%s1340 + $0x62] sm:$0xff]
      %v2124 = vld [vmem:[%s1340 + $0x6a] sm:$0xff]
      %v2125 = vld [vmem:[%s1340 + $0x7a] sm:$0xff]
      %v2126 = vld [vmem:[%s1340 + $0x82] sm:$0xff]
      %v2127 = vld [vmem:[%s1340 + $0x92] sm:$0xff]
      %v2128 = vld [vmem:[%s1340 + $0x9a] sm:$0xff]
      %v2129 = vld [vmem:[%s1340 + $0xaa] sm:$0xff]
      %v2130 = vld [vmem:[%s1340 + $0xb2] sm:$0xff]
      %v2131 = vld [vmem:[%s1340 + $0xc2] sm:$0xff]
      %v2132 = vld [vmem:[%s1340 + $0xca] sm:$0xff]
      %v2133 = vld [vmem:[%s1340 + $0xda] sm:$0xff]
      %v2134 = vld [vmem:[%s1340 + $0xe2] sm:$0xff]
      %v2135 = vld [vmem:[%s1340 + $0xf2] sm:$0xff]
      %v2136 = vld [vmem:[%s1340 + $0xfa] sm:$0xff]
      %v2137 = vld [vmem:[%s1340 + $0x10a] sm:$0xff]
      %v2138 = vld [vmem:[%s1340 + $0x112] sm:$0xff]
      %v2139 = vld [vmem:[%s1340 + $0x122] sm:$0xff]
      %v2140 = vld [vmem:[%s1340 + $0x12a] sm:$0xff]
      %v2141 = vld [vmem:[%s1340 + $0x13a] sm:$0xff]
      %v2142 = vld [vmem:[%s1340 + $0x142] sm:$0xff]
      %v2143 = vld [vmem:[%s1340 + $0x152] sm:$0xff]
      %v2144 = vld [vmem:[%s1340 + $0x15a] sm:$0xff]
      %v2145 = vld [vmem:[%s1340 + $0x16a] sm:$0xff]
      %v2146 = vld [vmem:[%s1340 + $0x172] sm:$0xff]
      %s2147 = scalar_lea.vmem %s1, 40
      %v2148 = vld [vmem:[%s2147] sm:$0xff]
      %v2150 = vsel %vm212, %v2115, 0
      %v2153 = vsel %vm212, %v2116, 0
      %v2156 = vsel %vm212, %v2117, 0
      %v2159 = vsel %vm212, %v2118, 0
      %v2162 = vsel %vm212, %v2119, 0
      %v2165 = vsel %vm212, %v2120, 0
      %v2168 = vsel %vm212, %v2121, 0
      %v2171 = vsel %vm212, %v2122, 0
      %v2174 = vsel %vm212, %v2123, 0
      %v2177 = vsel %vm212, %v2124, 0
      %v2180 = vsel %vm212, %v2125, 0
      %v2183 = vsel %vm212, %v2126, 0
      %v2186 = vsel %vm212, %v2127, 0
      %v2189 = vsel %vm212, %v2128, 0
      %v2192 = vsel %vm212, %v2129, 0
      %v2195 = vsel %vm212, %v2130, 0
      %v2198 = vsel %vm212, %v2131, 0
      %v2201 = vsel %vm212, %v2132, 0
      %v2204 = vsel %vm212, %v2133, 0
      %v2207 = vsel %vm212, %v2134, 0
      %v2210 = vsel %vm212, %v2135, 0
      %v2213 = vsel %vm212, %v2136, 0
      %v2216 = vsel %vm212, %v2137, 0
      %v2219 = vsel %vm212, %v2138, 0
      %v2222 = vsel %vm212, %v2139, 0
      %v2225 = vsel %vm212, %v2140, 0
      %v2228 = vsel %vm212, %v2141, 0
      %v2231 = vsel %vm212, %v2142, 0
      %v2234 = vsel %vm212, %v2143, 0
      %v2237 = vsel %vm212, %v2144, 0
      %v2240 = vsel %vm212, %v2145, 0
      %v2243 = vsel %vm212, %v2146, 0
      %2245 = vmatprep.subr.mxu0 0.0
      %2246 = vmatpush1.msra.mxu0 %v2148
      %2247 = vmatprep.subr.mxu0 0.0
      %2248 = vmatpush1.msra.mxu0 0.0
      %2249 = vmatprep.subr.mxu0 0.0
      %2250 = vmatpush1.msra.mxu0 0.0
      %2251 = vmatprep.subr.mxu0 0.0
      %2252 = vmatpush1.msra.mxu0 0.0
      %2253 = vmatprep.subr.mxu0 0.0
      %2254 = vmatpush1.msra.mxu0 0.0
      %2255 = vmatprep.subr.mxu0 0.0
      %2256 = vmatpush1.msra.mxu0 0.0
      %2257 = vmatprep.subr.mxu0 0.0
      %2258 = vmatpush1.msra.mxu0 0.0
      %2259 = vmatprep.subr.mxu0 0.0
      %2260 = vmatpush1.msra.mxu0 0.0
      %2261 = vmatprep.subr.mxu0 0.0
      %2262 = vmatpush1.msra.mxu0 0.0
      %2263 = vmatprep.subr.mxu0 0.0
      %2264 = vmatpush1.msra.mxu0 0.0
      %2265 = vmatprep.subr.mxu0 0.0
      %2266 = vmatpush1.msra.mxu0 0.0
      %2267 = vmatprep.subr.mxu0 0.0
      %2268 = vmatpush1.msra.mxu0 0.0
      %2269 = vmatprep.subr.mxu0 0.0
      %2270 = vmatpush1.msra.mxu0 0.0
      %2271 = vmatprep.subr.mxu0 0.0
      %2272 = vmatpush1.msra.mxu0 0.0
      %2273 = vmatprep.subr.mxu0 0.0
      %2274 = vmatpush1.msra.mxu0 0.0
      %2275 = vmatprep.subr.mxu0 0.0
      %2276 = vmatpush1.msra.mxu0 0.0
      %2277 = vmatprep.subr.mxu0 0.0
      %2278 = vmatpush1.msra.mxu0 0.0
      %2279 = vmatprep.subr.mxu0 0.0
      %2280 = vmatpush1.msra.mxu0 0.0
      %2281 = vmatprep.subr.mxu0 0.0
      %2282 = vmatpush1.msra.mxu0 0.0
      %2283 = vmatprep.subr.mxu0 0.0
      %2284 = vmatpush1.msra.mxu0 0.0
      %2285 = vmatprep.subr.mxu0 0.0
      %2286 = vmatpush1.msra.mxu0 0.0
      %2287 = vmatprep.subr.mxu0 0.0
      %2288 = vmatpush1.msra.mxu0 0.0
      %2289 = vmatprep.subr.mxu0 0.0
      %2290 = vmatpush1.msra.mxu0 0.0
      %2291 = vmatprep.subr.mxu0 0.0
      %2292 = vmatpush1.msra.mxu0 0.0
      %2293 = vmatprep.subr.mxu0 0.0
      %2294 = vmatpush1.msra.mxu0 0.0
      %2295 = vmatprep.subr.mxu0 0.0
      %2296 = vmatpush1.msra.mxu0 0.0
      %2297 = vmatprep.subr.mxu0 0.0
      %2298 = vmatpush1.msra.mxu0 0.0
      %2299 = vmatprep.subr.mxu0 0.0
      %2300 = vmatpush1.msra.mxu0 0.0
      %2301 = vmatprep.subr.mxu0 0.0
      %2302 = vmatpush1.msra.mxu0 0.0
      %2303 = vmatprep.subr.mxu0 0.0
      %2304 = vmatpush1.msra.mxu0 0.0
      %2305 = vmatprep.subr.mxu0 0.0
      %2306 = vmatpush1.msra.mxu0 0.0
      %2307 = vmatprep.subr.mxu0 0.0
      %2308 = vmatpush1.msra.mxu0 0.0
      %2309 = vmatprep.mubr.f32.mxu0 0.0
      %2310 = vmatmul.mubr.f32.gmra.mrb[0].mxu0 %v2150
      %v2311 = vpop.f32.mrb[0].mxu0
      %v2312 = vadd.f32 0.0, %v2311
      %v2313 = vpop.f32.mrb[0].mxu0
      %2314 = vmatprep.mubr.f32.mxu0 0.0
      %2315 = vmatmul.mubr.f32.gmra.mrb[0].mxu0 %v2153
      %v2316 = vpop.f32.mrb[0].mxu0
      %v2317 = vadd.f32 0.0, %v2316
      %v2318 = vpop.f32.mrb[0].mxu0
      %2319 = vmatprep.mubr.f32.mxu0 0.0
      %2320 = vmatmul.mubr.f32.gmra.mrb[0].mxu0 %v2156
      %v2321 = vpop.f32.mrb[0].mxu0
      %v2322 = vadd.f32 0.0, %v2321
      %v2323 = vpop.f32.mrb[0].mxu0
      %2324 = vmatprep.mubr.f32.mxu0 0.0
      %2325 = vmatmul.mubr.f32.gmra.mrb[0].mxu0 %v2159
      %v2326 = vpop.f32.mrb[0].mxu0
      %v2327 = vadd.f32 0.0, %v2326
      %v2328 = vpop.f32.mrb[0].mxu0
      %2329 = vmatprep.mubr.f32.mxu0 0.0
      %2330 = vmatmul.mubr.f32.gmra.mrb[0].mxu0 %v2162
      %v2331 = vpop.f32.mrb[0].mxu0
      %v2332 = vadd.f32 0.0, %v2331
      %v2333 = vpop.f32.mrb[0].mxu0
      %2334 = vmatprep.mubr.f32.mxu0 0.0
      %2335 = vmatmul.mubr.f32.gmra.mrb[0].mxu0 %v2165
      %v2336 = vpop.f32.mrb[0].mxu0
      %v2337 = vadd.f32 0.0, %v2336
      %v2338 = vpop.f32.mrb[0].mxu0
      %2339 = vmatprep.mubr.f32.mxu0 0.0
      %2340 = vmatmul.mubr.f32.gmra.mrb[0].mxu0 %v2168
      %v2341 = vpop.f32.mrb[0].mxu0
      %v2342 = vadd.f32 0.0, %v2341
      %v2343 = vpop.f32.mrb[0].mxu0
      %2344 = vmatprep.mubr.f32.mxu0 0.0
      %2345 = vmatmul.mubr.f32.gmra.mrb[0].mxu0 %v2171
      %v2346 = vpop.f32.mrb[0].mxu0
      %v2347 = vadd.f32 0.0, %v2346
      %v2348 = vpop.f32.mrb[0].mxu0
      %2349 = vmatprep.mubr.f32.mxu0 0.0
      %2350 = vmatmul.mubr.f32.gmra.mrb[0].mxu0 %v2174
      %v2351 = vpop.f32.mrb[0].mxu0
      %v2352 = vadd.f32 0.0, %v2351
      %v2353 = vpop.f32.mrb[0].mxu0
      %2354 = vmatprep.mubr.f32.mxu0 0.0
      %2355 = vmatmul.mubr.f32.gmra.mrb[0].mxu0 %v2177
      %v2356 = vpop.f32.mrb[0].mxu0
      %v2357 = vadd.f32 0.0, %v2356
      %v2358 = vpop.f32.mrb[0].mxu0
      %2359 = vmatprep.mubr.f32.mxu0 0.0
      %2360 = vmatmul.mubr.f32.gmra.mrb[0].mxu0 %v2180
      %v2361 = vpop.f32.mrb[0].mxu0
      %v2362 = vadd.f32 0.0, %v2361
      %v2363 = vpop.f32.mrb[0].mxu0
      %2364 = vmatprep.mubr.f32.mxu0 0.0
      %2365 = vmatmul.mubr.f32.gmra.mrb[0].mxu0 %v2183
      %v2366 = vpop.f32.mrb[0].mxu0
      %v2367 = vadd.f32 0.0, %v2366
      %v2368 = vpop.f32.mrb[0].mxu0
      %2369 = vmatprep.mubr.f32.mxu0 0.0
      %2370 = vmatmul.mubr.f32.gmra.mrb[0].mxu0 %v2186
      %v2371 = vpop.f32.mrb[0].mxu0
      %v2372 = vadd.f32 0.0, %v2371
      %v2373 = vpop.f32.mrb[0].mxu0
      %2374 = vmatprep.mubr.f32.mxu0 0.0
      %2375 = vmatmul.mubr.f32.gmra.mrb[0].mxu0 %v2189
      %v2376 = vpop.f32.mrb[0].mxu0
      %v2377 = vadd.f32 0.0, %v2376
      %v2378 = vpop.f32.mrb[0].mxu0
      %2379 = vmatprep.mubr.f32.mxu0 0.0
      %2380 = vmatmul.mubr.f32.gmra.mrb[0].mxu0 %v2192
      %v2381 = vpop.f32.mrb[0].mxu0
      %v2382 = vadd.f32 0.0, %v2381
      %v2383 = vpop.f32.mrb[0].mxu0
      %2384 = vmatprep.mubr.f32.mxu0 0.0
      %2385 = vmatmul.mubr.f32.gmra.mrb[0].mxu0 %v2195
      %v2386 = vpop.f32.mrb[0].mxu0
      %v2387 = vadd.f32 0.0, %v2386
      %v2388 = vpop.f32.mrb[0].mxu0
      %2389 = vmatprep.mubr.f32.mxu0 0.0
      %2390 = vmatmul.mubr.f32.gmra.mrb[0].mxu0 %v2198
      %v2391 = vpop.f32.mrb[0].mxu0
      %v2392 = vadd.f32 0.0, %v2391
      %v2393 = vpop.f32.mrb[0].mxu0
      %2394 = vmatprep.mubr.f32.mxu0 0.0
      %2395 = vmatmul.mubr.f32.gmra.mrb[0].mxu0 %v2201
      %v2396 = vpop.f32.mrb[0].mxu0
      %v2397 = vadd.f32 0.0, %v2396
      %v2398 = vpop.f32.mrb[0].mxu0
      %2399 = vmatprep.mubr.f32.mxu0 0.0
      %2400 = vmatmul.mubr.f32.gmra.mrb[0].mxu0 %v2204
      %v2401 = vpop.f32.mrb[0].mxu0
      %v2402 = vadd.f32 0.0, %v2401
      %v2403 = vpop.f32.mrb[0].mxu0
      %2404 = vmatprep.mubr.f32.mxu0 0.0
      %2405 = vmatmul.mubr.f32.gmra.mrb[0].mxu0 %v2207
      %v2406 = vpop.f32.mrb[0].mxu0
      %v2407 = vadd.f32 0.0, %v2406
      %v2408 = vpop.f32.mrb[0].mxu0
      %2409 = vmatprep.mubr.f32.mxu0 0.0
      %2410 = vmatmul.mubr.f32.gmra.mrb[0].mxu0 %v2210
      %v2411 = vpop.f32.mrb[0].mxu0
      %v2412 = vadd.f32 0.0, %v2411
      %v2413 = vpop.f32.mrb[0].mxu0
      %2414 = vmatprep.mubr.f32.mxu0 0.0
      %2415 = vmatmul.mubr.f32.gmra.mrb[0].mxu0 %v2213
      %v2416 = vpop.f32.mrb[0].mxu0
      %v2417 = vadd.f32 0.0, %v2416
      %v2418 = vpop.f32.mrb[0].mxu0
      %2419 = vmatprep.mubr.f32.mxu0 0.0
      %2420 = vmatmul.mubr.f32.gmra.mrb[0].mxu0 %v2216
      %v2421 = vpop.f32.mrb[0].mxu0
      %v2422 = vadd.f32 0.0, %v2421
      %v2423 = vpop.f32.mrb[0].mxu0
      %2424 = vmatprep.mubr.f32.mxu0 0.0
      %2425 = vmatmul.mubr.f32.gmra.mrb[0].mxu0 %v2219
      %v2426 = vpop.f32.mrb[0].mxu0
      %v2427 = vadd.f32 0.0, %v2426
      %v2428 = vpop.f32.mrb[0].mxu0
      %2429 = vmatprep.mubr.f32.mxu0 0.0
      %2430 = vmatmul.mubr.f32.gmra.mrb[0].mxu0 %v2222
      %v2431 = vpop.f32.mrb[0].mxu0
      %v2432 = vadd.f32 0.0, %v2431
      %v2433 = vpop.f32.mrb[0].mxu0
      %2434 = vmatprep.mubr.f32.mxu0 0.0
      %2435 = vmatmul.mubr.f32.gmra.mrb[0].mxu0 %v2225
      %v2436 = vpop.f32.mrb[0].mxu0
      %v2437 = vadd.f32 0.0, %v2436
      %v2438 = vpop.f32.mrb[0].mxu0
      %2439 = vmatprep.mubr.f32.mxu0 0.0
      %2440 = vmatmul.mubr.f32.gmra.mrb[0].mxu0 %v2228
      %v2441 = vpop.f32.mrb[0].mxu0
      %v2442 = vadd.f32 0.0, %v2441
      %v2443 = vpop.f32.mrb[0].mxu0
      %2444 = vmatprep.mubr.f32.mxu0 0.0
      %2445 = vmatmul.mubr.f32.gmra.mrb[0].mxu0 %v2231
      %v2446 = vpop.f32.mrb[0].mxu0
      %v2447 = vadd.f32 0.0, %v2446
      %v2448 = vpop.f32.mrb[0].mxu0
      %2449 = vmatprep.mubr.f32.mxu0 0.0
      %2450 = vmatmul.mubr.f32.gmra.mrb[0].mxu0 %v2234
      %v2451 = vpop.f32.mrb[0].mxu0
      %v2452 = vadd.f32 0.0, %v2451
      %v2453 = vpop.f32.mrb[0].mxu0
      %2454 = vmatprep.mubr.f32.mxu0 0.0
      %2455 = vmatmul.mubr.f32.gmra.mrb[0].mxu0 %v2237
      %v2456 = vpop.f32.mrb[0].mxu0
      %v2457 = vadd.f32 0.0, %v2456
      %v2458 = vpop.f32.mrb[0].mxu0
      %2459 = vmatprep.mubr.f32.mxu0 0.0
      %2460 = vmatmul.mubr.f32.gmra.mrb[0].mxu0 %v2240
      %v2461 = vpop.f32.mrb[0].mxu0
      %v2462 = vadd.f32 0.0, %v2461
      %v2463 = vpop.f32.mrb[0].mxu0
      %2464 = vmatprep.mubr.f32.mxu0 0.0
      %2465 = vmatmul.mubr.f32.gmra.mrb[0].mxu0 %v2243
      %v2466 = vpop.f32.mrb[0].mxu0
      %v2467 = vadd.f32 0.0, %v2466
      %v2468 = vpop.f32.mrb[0].mxu0
      %2469 = vdwg.mxu0
      %v2470 = vadd.f32 %v2083, %v2312
      %v2471 = vadd.f32 %v2084, %v2317
      %v2472 = vadd.f32 %v2085, %v2322
      %v2473 = vadd.f32 %v2086, %v2327
      %v2474 = vadd.f32 %v2087, %v2332
      %v2475 = vadd.f32 %v2088, %v2337
      %v2476 = vadd.f32 %v2089, %v2342
      %v2477 = vadd.f32 %v2090, %v2347
      %v2478 = vadd.f32 %v2091, %v2352
      %v2479 = vadd.f32 %v2092, %v2357
      %v2480 = vadd.f32 %v2093, %v2362
      %v2481 = vadd.f32 %v2094, %v2367
      %v2482 = vadd.f32 %v2095, %v2372
      %v2483 = vadd.f32 %v2096, %v2377
      %v2484 = vadd.f32 %v2097, %v2382
      %v2485 = vadd.f32 %v2098, %v2387
      %v2486 = vadd.f32 %v2099, %v2392
      %v2487 = vadd.f32 %v2100, %v2397
      %v2488 = vadd.f32 %v2101, %v2402
      %v2489 = vadd.f32 %v2102, %v2407
      %v2490 = vadd.f32 %v2103, %v2412
      %v2491 = vadd.f32 %v2104, %v2417
      %v2492 = vadd.f32 %v2105, %v2422
      %v2493 = vadd.f32 %v2106, %v2427
      %v2494 = vadd.f32 %v2107, %v2432
      %v2495 = vadd.f32 %v2108, %v2437
      %v2496 = vadd.f32 %v2109, %v2442
      %v2497 = vadd.f32 %v2110, %v2447
      %v2498 = vadd.f32 %v2111, %v2452
      %v2499 = vadd.f32 %v2112, %v2457
      %v2500 = vadd.f32 %v2113, %v2462
      %v2501 = vadd.f32 %v2114, %v2467
      %s2502 = scalar_lea.vmem %s165, 48
      %v2503 = vld [vmem:[%s2502] sm:$0xff]
      %v2504 = vld [vmem:[%s2502 + $0x8] sm:$0xff]
      %v2505 = vld [vmem:[%s2502 + $0x18] sm:$0xff]
      %v2506 = vld [vmem:[%s2502 + $0x20] sm:$0xff]
      %v2507 = vld [vmem:[%s2502 + $0x30] sm:$0xff]
      %v2508 = vld [vmem:[%s2502 + $0x38] sm:$0xff]
      %v2509 = vld [vmem:[%s2502 + $0x48] sm:$0xff]
      %v2510 = vld [vmem:[%s2502 + $0x50] sm:$0xff]
      %v2511 = vld [vmem:[%s2502 + $0x60] sm:$0xff]
      %v2512 = vld [vmem:[%s2502 + $0x68] sm:$0xff]
      %v2513 = vld [vmem:[%s2502 + $0x78] sm:$0xff]
      %v2514 = vld [vmem:[%s2502 + $0x80] sm:$0xff]
      %v2515 = vld [vmem:[%s2502 + $0x90] sm:$0xff]
      %v2516 = vld [vmem:[%s2502 + $0x98] sm:$0xff]
      %v2517 = vld [vmem:[%s2502 + $0xa8] sm:$0xff]
      %v2518 = vld [vmem:[%s2502 + $0xb0] sm:$0xff]
      %v2519 = vld [vmem:[%s2502 + $0xc0] sm:$0xff]
      %v2520 = vld [vmem:[%s2502 + $0xc8] sm:$0xff]
      %v2521 = vld [vmem:[%s2502 + $0xd8] sm:$0xff]
      %v2522 = vld [vmem:[%s2502 + $0xe0] sm:$0xff]
      %v2523 = vld [vmem:[%s2502 + $0xf0] sm:$0xff]
      %v2524 = vld [vmem:[%s2502 + $0xf8] sm:$0xff]
      %v2525 = vld [vmem:[%s2502 + $0x108] sm:$0xff]
      %v2526 = vld [vmem:[%s2502 + $0x110] sm:$0xff]
      %v2527 = vld [vmem:[%s2502 + $0x120] sm:$0xff]
      %v2528 = vld [vmem:[%s2502 + $0x128] sm:$0xff]
      %v2529 = vld [vmem:[%s2502 + $0x138] sm:$0xff]
      %v2530 = vld [vmem:[%s2502 + $0x140] sm:$0xff]
      %v2531 = vld [vmem:[%s2502 + $0x150] sm:$0xff]
      %v2532 = vld [vmem:[%s2502 + $0x158] sm:$0xff]
      %v2533 = vld [vmem:[%s2502 + $0x168] sm:$0xff]
      %v2534 = vld [vmem:[%s2502 + $0x170] sm:$0xff]
      %s2535 = scalar_lea.vmem %s1, 48
      %v2536 = vld [vmem:[%s2535] sm:$0xff]
      %v2538 = vsel %vm212, %v2503, 0
      %v2541 = vsel %vm212, %v2504, 0
      %v2544 = vsel %vm212, %v2505, 0
      %v2547 = vsel %vm212, %v2506, 0
      %v2550 = vsel %vm212, %v2507, 0
      %v2553 = vsel %vm212, %v2508, 0
      %v2556 = vsel %vm212, %v2509, 0
      %v2559 = vsel %vm212, %v2510, 0
      %v2562 = vsel %vm212, %v2511, 0
      %v2565 = vsel %vm212, %v2512, 0
      %v2568 = vsel %vm212, %v2513, 0
      %v2571 = vsel %vm212, %v2514, 0
      %v2574 = vsel %vm212, %v2515, 0
      %v2577 = vsel %vm212, %v2516, 0
      %v2580 = vsel %vm212, %v2517, 0
      %v2583 = vsel %vm212, %v2518, 0
      %v2586 = vsel %vm212, %v2519, 0
      %v2589 = vsel %vm212, %v2520, 0
      %v2592 = vsel %vm212, %v2521, 0
      %v2595 = vsel %vm212, %v2522, 0
      %v2598 = vsel %vm212, %v2523, 0
      %v2601 = vsel %vm212, %v2524, 0
      %v2604 = vsel %vm212, %v2525, 0
      %v2607 = vsel %vm212, %v2526, 0
      %v2610 = vsel %vm212, %v2527, 0
      %v2613 = vsel %vm212, %v2528, 0
      %v2616 = vsel %vm212, %v2529, 0
      %v2619 = vsel %vm212, %v2530, 0
      %v2622 = vsel %vm212, %v2531, 0
      %v2625 = vsel %vm212, %v2532, 0
      %v2628 = vsel %vm212, %v2533, 0
      %v2631 = vsel %vm212, %v2534, 0
      %2633 = vmatprep.subr.mxu0 0.0
      %2634 = vmatpush1.msra.mxu0 %v2536
      %2635 = vmatprep.subr.mxu0 0.0
      %2636 = vmatpush1.msra.mxu0 0.0
      %2637 = vmatprep.subr.mxu0 0.0
      %2638 = vmatpush1.msra.mxu0 0.0
      %2639 = vmatprep.subr.mxu0 0.0
      %2640 = vmatpush1.msra.mxu0 0.0
      %2641 = vmatprep.subr.mxu0 0.0
      %2642 = vmatpush1.msra.mxu0 0.0
      %2643 = vmatprep.subr.mxu0 0.0
      %2644 = vmatpush1.msra.mxu0 0.0
      %2645 = vmatprep.subr.mxu0 0.0
      %2646 = vmatpush1.msra.mxu0 0.0
      %2647 = vmatprep.subr.mxu0 0.0
      %2648 = vmatpush1.msra.mxu0 0.0
      %2649 = vmatprep.subr.mxu0 0.0
      %2650 = vmatpush1.msra.mxu0 0.0
      %2651 = vmatprep.subr.mxu0 0.0
      %2652 = vmatpush1.msra.mxu0 0.0
      %2653 = vmatprep.subr.mxu0 0.0
      %2654 = vmatpush1.msra.mxu0 0.0
      %2655 = vmatprep.subr.mxu0 0.0
      %2656 = vmatpush1.msra.mxu0 0.0
      %2657 = vmatprep.subr.mxu0 0.0
      %2658 = vmatpush1.msra.mxu0 0.0
      %2659 = vmatprep.subr.mxu0 0.0
      %2660 = vmatpush1.msra.mxu0 0.0
      %2661 = vmatprep.subr.mxu0 0.0
      %2662 = vmatpush1.msra.mxu0 0.0
      %2663 = vmatprep.subr.mxu0 0.0
      %2664 = vmatpush1.msra.mxu0 0.0
      %2665 = vmatprep.subr.mxu0 0.0
      %2666 = vmatpush1.msra.mxu0 0.0
      %2667 = vmatprep.subr.mxu0 0.0
      %2668 = vmatpush1.msra.mxu0 0.0
      %2669 = vmatprep.subr.mxu0 0.0
      %2670 = vmatpush1.msra.mxu0 0.0
      %2671 = vmatprep.subr.mxu0 0.0
      %2672 = vmatpush1.msra.mxu0 0.0
      %2673 = vmatprep.subr.mxu0 0.0
      %2674 = vmatpush1.msra.mxu0 0.0
      %2675 = vmatprep.subr.mxu0 0.0
      %2676 = vmatpush1.msra.mxu0 0.0
      %2677 = vmatprep.subr.mxu0 0.0
      %2678 = vmatpush1.msra.mxu0 0.0
      %2679 = vmatprep.subr.mxu0 0.0
      %2680 = vmatpush1.msra.mxu0 0.0
      %2681 = vmatprep.subr.mxu0 0.0
      %2682 = vmatpush1.msra.mxu0 0.0
      %2683 = vmatprep.subr.mxu0 0.0
      %2684 = vmatpush1.msra.mxu0 0.0
      %2685 = vmatprep.subr.mxu0 0.0
      %2686 = vmatpush1.msra.mxu0 0.0
      %2687 = vmatprep.subr.mxu0 0.0
      %2688 = vmatpush1.msra.mxu0 0.0
      %2689 = vmatprep.subr.mxu0 0.0
      %2690 = vmatpush1.msra.mxu0 0.0
      %2691 = vmatprep.subr.mxu0 0.0
      %2692 = vmatpush1.msra.mxu0 0.0
      %2693 = vmatprep.subr.mxu0 0.0
      %2694 = vmatpush1.msra.mxu0 0.0
      %2695 = vmatprep.subr.mxu0 0.0
      %2696 = vmatpush1.msra.mxu0 0.0
      %2697 = vmatprep.mubr.f32.mxu0 0.0
      %2698 = vmatmul.mubr.f32.gmra.mrb[0].mxu0 %v2538
      %v2699 = vpop.f32.mrb[0].mxu0
      %v2700 = vadd.f32 0.0, %v2699
      %v2701 = vpop.f32.mrb[0].mxu0
      %2702 = vmatprep.mubr.f32.mxu0 0.0
      %2703 = vmatmul.mubr.f32.gmra.mrb[0].mxu0 %v2541
      %v2704 = vpop.f32.mrb[0].mxu0
      %v2705 = vadd.f32 0.0, %v2704
      %v2706 = vpop.f32.mrb[0].mxu0
      %2707 = vmatprep.mubr.f32.mxu0 0.0
      %2708 = vmatmul.mubr.f32.gmra.mrb[0].mxu0 %v2544
      %v2709 = vpop.f32.mrb[0].mxu0
      %v2710 = vadd.f32 0.0, %v2709
      %v2711 = vpop.f32.mrb[0].mxu0
      %2712 = vmatprep.mubr.f32.mxu0 0.0
      %2713 = vmatmul.mubr.f32.gmra.mrb[0].mxu0 %v2547
      %v2714 = vpop.f32.mrb[0].mxu0
      %v2715 = vadd.f32 0.0, %v2714
      %v2716 = vpop.f32.mrb[0].mxu0
      %2717 = vmatprep.mubr.f32.mxu0 0.0
      %2718 = vmatmul.mubr.f32.gmra.mrb[0].mxu0 %v2550
      %v2719 = vpop.f32.mrb[0].mxu0
      %v2720 = vadd.f32 0.0, %v2719
      %v2721 = vpop.f32.mrb[0].mxu0
      %2722 = vmatprep.mubr.f32.mxu0 0.0
      %2723 = vmatmul.mubr.f32.gmra.mrb[0].mxu0 %v2553
      %v2724 = vpop.f32.mrb[0].mxu0
      %v2725 = vadd.f32 0.0, %v2724
      %v2726 = vpop.f32.mrb[0].mxu0
      %2727 = vmatprep.mubr.f32.mxu0 0.0
      %2728 = vmatmul.mubr.f32.gmra.mrb[0].mxu0 %v2556
      %v2729 = vpop.f32.mrb[0].mxu0
      %v2730 = vadd.f32 0.0, %v2729
      %v2731 = vpop.f32.mrb[0].mxu0
      %2732 = vmatprep.mubr.f32.mxu0 0.0
      %2733 = vmatmul.mubr.f32.gmra.mrb[0].mxu0 %v2559
      %v2734 = vpop.f32.mrb[0].mxu0
      %v2735 = vadd.f32 0.0, %v2734
      %v2736 = vpop.f32.mrb[0].mxu0
      %2737 = vmatprep.mubr.f32.mxu0 0.0
      %2738 = vmatmul.mubr.f32.gmra.mrb[0].mxu0 %v2562
      %v2739 = vpop.f32.mrb[0].mxu0
      %v2740 = vadd.f32 0.0, %v2739
      %v2741 = vpop.f32.mrb[0].mxu0
      %2742 = vmatprep.mubr.f32.mxu0 0.0
      %2743 = vmatmul.mubr.f32.gmra.mrb[0].mxu0 %v2565
      %v2744 = vpop.f32.mrb[0].mxu0
      %v2745 = vadd.f32 0.0, %v2744
      %v2746 = vpop.f32.mrb[0].mxu0
      %2747 = vmatprep.mubr.f32.mxu0 0.0
      %2748 = vmatmul.mubr.f32.gmra.mrb[0].mxu0 %v2568
      %v2749 = vpop.f32.mrb[0].mxu0
      %v2750 = vadd.f32 0.0, %v2749
      %v2751 = vpop.f32.mrb[0].mxu0
      %2752 = vmatprep.mubr.f32.mxu0 0.0
      %2753 = vmatmul.mubr.f32.gmra.mrb[0].mxu0 %v2571
      %v2754 = vpop.f32.mrb[0].mxu0
      %v2755 = vadd.f32 0.0, %v2754
      %v2756 = vpop.f32.mrb[0].mxu0
      %2757 = vmatprep.mubr.f32.mxu0 0.0
      %2758 = vmatmul.mubr.f32.gmra.mrb[0].mxu0 %v2574
      %v2759 = vpop.f32.mrb[0].mxu0
      %v2760 = vadd.f32 0.0, %v2759
      %v2761 = vpop.f32.mrb[0].mxu0
      %2762 = vmatprep.mubr.f32.mxu0 0.0
      %2763 = vmatmul.mubr.f32.gmra.mrb[0].mxu0 %v2577
      %v2764 = vpop.f32.mrb[0].mxu0
      %v2765 = vadd.f32 0.0, %v2764
      %v2766 = vpop.f32.mrb[0].mxu0
      %2767 = vmatprep.mubr.f32.mxu0 0.0
      %2768 = vmatmul.mubr.f32.gmra.mrb[0].mxu0 %v2580
      %v2769 = vpop.f32.mrb[0].mxu0
      %v2770 = vadd.f32 0.0, %v2769
      %v2771 = vpop.f32.mrb[0].mxu0
      %2772 = vmatprep.mubr.f32.mxu0 0.0
      %2773 = vmatmul.mubr.f32.gmra.mrb[0].mxu0 %v2583
      %v2774 = vpop.f32.mrb[0].mxu0
      %v2775 = vadd.f32 0.0, %v2774
      %v2776 = vpop.f32.mrb[0].mxu0
      %2777 = vmatprep.mubr.f32.mxu0 0.0
      %2778 = vmatmul.mubr.f32.gmra.mrb[0].mxu0 %v2586
      %v2779 = vpop.f32.mrb[0].mxu0
      %v2780 = vadd.f32 0.0, %v2779
      %v2781 = vpop.f32.mrb[0].mxu0
      %2782 = vmatprep.mubr.f32.mxu0 0.0
      %2783 = vmatmul.mubr.f32.gmra.mrb[0].mxu0 %v2589
      %v2784 = vpop.f32.mrb[0].mxu0
      %v2785 = vadd.f32 0.0, %v2784
      %v2786 = vpop.f32.mrb[0].mxu0
      %2787 = vmatprep.mubr.f32.mxu0 0.0
      %2788 = vmatmul.mubr.f32.gmra.mrb[0].mxu0 %v2592
      %v2789 = vpop.f32.mrb[0].mxu0
      %v2790 = vadd.f32 0.0, %v2789
      %v2791 = vpop.f32.mrb[0].mxu0
      %2792 = vmatprep.mubr.f32.mxu0 0.0
      %2793 = vmatmul.mubr.f32.gmra.mrb[0].mxu0 %v2595
      %v2794 = vpop.f32.mrb[0].mxu0
      %v2795 = vadd.f32 0.0, %v2794
      %v2796 = vpop.f32.mrb[0].mxu0
      %2797 = vmatprep.mubr.f32.mxu0 0.0
      %2798 = vmatmul.mubr.f32.gmra.mrb[0].mxu0 %v2598
      %v2799 = vpop.f32.mrb[0].mxu0
      %v2800 = vadd.f32 0.0, %v2799
      %v2801 = vpop.f32.mrb[0].mxu0
      %2802 = vmatprep.mubr.f32.mxu0 0.0
      %2803 = vmatmul.mubr.f32.gmra.mrb[0].mxu0 %v2601
      %v2804 = vpop.f32.mrb[0].mxu0
      %v2805 = vadd.f32 0.0, %v2804
      %v2806 = vpop.f32.mrb[0].mxu0
      %2807 = vmatprep.mubr.f32.mxu0 0.0
      %2808 = vmatmul.mubr.f32.gmra.mrb[0].mxu0 %v2604
      %v2809 = vpop.f32.mrb[0].mxu0
      %v2810 = vadd.f32 0.0, %v2809
      %v2811 = vpop.f32.mrb[0].mxu0
      %2812 = vmatprep.mubr.f32.mxu0 0.0
      %2813 = vmatmul.mubr.f32.gmra.mrb[0].mxu0 %v2607
      %v2814 = vpop.f32.mrb[0].mxu0
      %v2815 = vadd.f32 0.0, %v2814
      %v2816 = vpop.f32.mrb[0].mxu0
      %2817 = vmatprep.mubr.f32.mxu0 0.0
      %2818 = vmatmul.mubr.f32.gmra.mrb[0].mxu0 %v2610
      %v2819 = vpop.f32.mrb[0].mxu0
      %v2820 = vadd.f32 0.0, %v2819
      %v2821 = vpop.f32.mrb[0].mxu0
      %2822 = vmatprep.mubr.f32.mxu0 0.0
      %2823 = vmatmul.mubr.f32.gmra.mrb[0].mxu0 %v2613
      %v2824 = vpop.f32.mrb[0].mxu0
      %v2825 = vadd.f32 0.0, %v2824
      %v2826 = vpop.f32.mrb[0].mxu0
      %2827 = vmatprep.mubr.f32.mxu0 0.0
      %2828 = vmatmul.mubr.f32.gmra.mrb[0].mxu0 %v2616
      %v2829 = vpop.f32.mrb[0].mxu0
      %v2830 = vadd.f32 0.0, %v2829
      %v2831 = vpop.f32.mrb[0].mxu0
      %2832 = vmatprep.mubr.f32.mxu0 0.0
      %2833 = vmatmul.mubr.f32.gmra.mrb[0].mxu0 %v2619
      %v2834 = vpop.f32.mrb[0].mxu0
      %v2835 = vadd.f32 0.0, %v2834
      %v2836 = vpop.f32.mrb[0].mxu0
      %2837 = vmatprep.mubr.f32.mxu0 0.0
      %2838 = vmatmul.mubr.f32.gmra.mrb[0].mxu0 %v2622
      %v2839 = vpop.f32.mrb[0].mxu0
      %v2840 = vadd.f32 0.0, %v2839
      %v2841 = vpop.f32.mrb[0].mxu0
      %2842 = vmatprep.mubr.f32.mxu0 0.0
      %2843 = vmatmul.mubr.f32.gmra.mrb[0].mxu0 %v2625
      %v2844 = vpop.f32.mrb[0].mxu0
      %v2845 = vadd.f32 0.0, %v2844
      %v2846 = vpop.f32.mrb[0].mxu0
      %2847 = vmatprep.mubr.f32.mxu0 0.0
      %2848 = vmatmul.mubr.f32.gmra.mrb[0].mxu0 %v2628
      %v2849 = vpop.f32.mrb[0].mxu0
      %v2850 = vadd.f32 0.0, %v2849
      %v2851 = vpop.f32.mrb[0].mxu0
      %2852 = vmatprep.mubr.f32.mxu0 0.0
      %2853 = vmatmul.mubr.f32.gmra.mrb[0].mxu0 %v2631
      %v2854 = vpop.f32.mrb[0].mxu0
      %v2855 = vadd.f32 0.0, %v2854
      %v2856 = vpop.f32.mrb[0].mxu0
      %2857 = vdwg.mxu0
      %v2858 = vadd.f32 %v2470, %v2700
      %v2859 = vadd.f32 %v2471, %v2705
      %v2860 = vadd.f32 %v2472, %v2710
      %v2861 = vadd.f32 %v2473, %v2715
      %v2862 = vadd.f32 %v2474, %v2720
      %v2863 = vadd.f32 %v2475, %v2725
      %v2864 = vadd.f32 %v2476, %v2730
      %v2865 = vadd.f32 %v2477, %v2735
      %v2866 = vadd.f32 %v2478, %v2740
      %v2867 = vadd.f32 %v2479, %v2745
      %v2868 = vadd.f32 %v2480, %v2750
      %v2869 = vadd.f32 %v2481, %v2755
      %v2870 = vadd.f32 %v2482, %v2760
      %v2871 = vadd.f32 %v2483, %v2765
      %v2872 = vadd.f32 %v2484, %v2770
      %v2873 = vadd.f32 %v2485, %v2775
      %v2874 = vadd.f32 %v2486, %v2780
      %v2875 = vadd.f32 %v2487, %v2785
      %v2876 = vadd.f32 %v2488, %v2790
      %v2877 = vadd.f32 %v2489, %v2795
      %v2878 = vadd.f32 %v2490, %v2800
      %v2879 = vadd.f32 %v2491, %v2805
      %v2880 = vadd.f32 %v2492, %v2810
      %v2881 = vadd.f32 %v2493, %v2815
      %v2882 = vadd.f32 %v2494, %v2820
      %v2883 = vadd.f32 %v2495, %v2825
      %v2884 = vadd.f32 %v2496, %v2830
      %v2885 = vadd.f32 %v2497, %v2835
      %v2886 = vadd.f32 %v2498, %v2840
      %v2887 = vadd.f32 %v2499, %v2845
      %v2888 = vadd.f32 %v2500, %v2850
      %v2889 = vadd.f32 %v2501, %v2855
      %v2890 = vld [vmem:[%s2502 + $0x1] sm:$0xff]
      %v2891 = vld [vmem:[%s2502 + $0x9] sm:$0xff]
      %v2892 = vld [vmem:[%s2502 + $0x19] sm:$0xff]
      %v2893 = vld [vmem:[%s2502 + $0x21] sm:$0xff]
      %v2894 = vld [vmem:[%s2502 + $0x31] sm:$0xff]
      %v2895 = vld [vmem:[%s2502 + $0x39] sm:$0xff]
      %v2896 = vld [vmem:[%s2502 + $0x49] sm:$0xff]
      %v2897 = vld [vmem:[%s2502 + $0x51] sm:$0xff]
      %v2898 = vld [vmem:[%s2502 + $0x61] sm:$0xff]
      %v2899 = vld [vmem:[%s2502 + $0x69] sm:$0xff]
      %v2900 = vld [vmem:[%s2502 + $0x79] sm:$0xff]
      %v2901 = vld [vmem:[%s2502 + $0x81] sm:$0xff]
      %v2902 = vld [vmem:[%s2502 + $0x91] sm:$0xff]
      %v2903 = vld [vmem:[%s2502 + $0x99] sm:$0xff]
      %v2904 = vld [vmem:[%s2502 + $0xa9] sm:$0xff]
      %v2905 = vld [vmem:[%s2502 + $0xb1] sm:$0xff]
      %v2906 = vld [vmem:[%s2502 + $0xc1] sm:$0xff]
      %v2907 = vld [vmem:[%s2502 + $0xc9] sm:$0xff]
      %v2908 = vld [vmem:[%s2502 + $0xd9] sm:$0xff]
      %v2909 = vld [vmem:[%s2502 + $0xe1] sm:$0xff]
      %v2910 = vld [vmem:[%s2502 + $0xf1] sm:$0xff]
      %v2911 = vld [vmem:[%s2502 + $0xf9] sm:$0xff]
      %v2912 = vld [vmem:[%s2502 + $0x109] sm:$0xff]
      %v2913 = vld [vmem:[%s2502 + $0x111] sm:$0xff]
      %v2914 = vld [vmem:[%s2502 + $0x121] sm:$0xff]
      %v2915 = vld [vmem:[%s2502 + $0x129] sm:$0xff]
      %v2916 = vld [vmem:[%s2502 + $0x139] sm:$0xff]
      %v2917 = vld [vmem:[%s2502 + $0x141] sm:$0xff]
      %v2918 = vld [vmem:[%s2502 + $0x151] sm:$0xff]
      %v2919 = vld [vmem:[%s2502 + $0x159] sm:$0xff]
      %v2920 = vld [vmem:[%s2502 + $0x169] sm:$0xff]
      %v2921 = vld [vmem:[%s2502 + $0x171] sm:$0xff]
      %s2922 = scalar_lea.vmem %s1, 56
      %v2923 = vld [vmem:[%s2922] sm:$0xff]
      %v2925 = vsel %vm212, %v2890, 0
      %v2928 = vsel %vm212, %v2891, 0
      %v2931 = vsel %vm212, %v2892, 0
      %v2934 = vsel %vm212, %v2893, 0
      %v2937 = vsel %vm212, %v2894, 0
      %v2940 = vsel %vm212, %v2895, 0
      %v2943 = vsel %vm212, %v2896, 0
      %v2946 = vsel %vm212, %v2897, 0
      %v2949 = vsel %vm212, %v2898, 0
      %v2952 = vsel %vm212, %v2899, 0
      %v2955 = vsel %vm212, %v2900, 0
      %v2958 = vsel %vm212, %v2901, 0
      %v2961 = vsel %vm212, %v2902, 0
      %v2964 = vsel %vm212, %v2903, 0
      %v2967 = vsel %vm212, %v2904, 0
      %v2970 = vsel %vm212, %v2905, 0
      %v2973 = vsel %vm212, %v2906, 0
      %v2976 = vsel %vm212, %v2907, 0
      %v2979 = vsel %vm212, %v2908, 0
      %v2982 = vsel %vm212, %v2909, 0
      %v2985 = vsel %vm212, %v2910, 0
      %v2988 = vsel %vm212, %v2911, 0
      %v2991 = vsel %vm212, %v2912, 0
      %v2994 = vsel %vm212, %v2913, 0
      %v2997 = vsel %vm212, %v2914, 0
      %v3000 = vsel %vm212, %v2915, 0
      %v3003 = vsel %vm212, %v2916, 0
      %v3006 = vsel %vm212, %v2917, 0
      %v3009 = vsel %vm212, %v2918, 0
      %v3012 = vsel %vm212, %v2919, 0
      %v3015 = vsel %vm212, %v2920, 0
      %v3018 = vsel %vm212, %v2921, 0
      %3020 = vmatprep.subr.mxu0 0.0
      %3021 = vmatpush1.msra.mxu0 %v2923
      %3022 = vmatprep.subr.mxu0 0.0
      %3023 = vmatpush1.msra.mxu0 0.0
      %3024 = vmatprep.subr.mxu0 0.0
      %3025 = vmatpush1.msra.mxu0 0.0
      %3026 = vmatprep.subr.mxu0 0.0
      %3027 = vmatpush1.msra.mxu0 0.0
      %3028 = vmatprep.subr.mxu0 0.0
      %3029 = vmatpush1.msra.mxu0 0.0
      %3030 = vmatprep.subr.mxu0 0.0
      %3031 = vmatpush1.msra.mxu0 0.0
      %3032 = vmatprep.subr.mxu0 0.0
      %3033 = vmatpush1.msra.mxu0 0.0
      %3034 = vmatprep.subr.mxu0 0.0
      %3035 = vmatpush1.msra.mxu0 0.0
      %3036 = vmatprep.subr.mxu0 0.0
      %3037 = vmatpush1.msra.mxu0 0.0
      %3038 = vmatprep.subr.mxu0 0.0
      %3039 = vmatpush1.msra.mxu0 0.0
      %3040 = vmatprep.subr.mxu0 0.0
      %3041 = vmatpush1.msra.mxu0 0.0
      %3042 = vmatprep.subr.mxu0 0.0
      %3043 = vmatpush1.msra.mxu0 0.0
      %3044 = vmatprep.subr.mxu0 0.0
      %3045 = vmatpush1.msra.mxu0 0.0
      %3046 = vmatprep.subr.mxu0 0.0
      %3047 = vmatpush1.msra.mxu0 0.0
      %3048 = vmatprep.subr.mxu0 0.0
      %3049 = vmatpush1.msra.mxu0 0.0
      %3050 = vmatprep.subr.mxu0 0.0
      %3051 = vmatpush1.msra.mxu0 0.0
      %3052 = vmatprep.subr.mxu0 0.0
      %3053 = vmatpush1.msra.mxu0 0.0
      %3054 = vmatprep.subr.mxu0 0.0
      %3055 = vmatpush1.msra.mxu0 0.0
      %3056 = vmatprep.subr.mxu0 0.0
      %3057 = vmatpush1.msra.mxu0 0.0
      %3058 = vmatprep.subr.mxu0 0.0
      %3059 = vmatpush1.msra.mxu0 0.0
      %3060 = vmatprep.subr.mxu0 0.0
      %3061 = vmatpush1.msra.mxu0 0.0
      %3062 = vmatprep.subr.mxu0 0.0
      %3063 = vmatpush1.msra.mxu0 0.0
      %3064 = vmatprep.subr.mxu0 0.0
      %3065 = vmatpush1.msra.mxu0 0.0
      %3066 = vmatprep.subr.mxu0 0.0
      %3067 = vmatpush1.msra.mxu0 0.0
      %3068 = vmatprep.subr.mxu0 0.0
      %3069 = vmatpush1.msra.mxu0 0.0
      %3070 = vmatprep.subr.mxu0 0.0
      %3071 = vmatpush1.msra.mxu0 0.0
      %3072 = vmatprep.subr.mxu0 0.0
      %3073 = vmatpush1.msra.mxu0 0.0
      %3074 = vmatprep.subr.mxu0 0.0
      %3075 = vmatpush1.msra.mxu0 0.0
      %3076 = vmatprep.subr.mxu0 0.0
      %3077 = vmatpush1.msra.mxu0 0.0
      %3078 = vmatprep.subr.mxu0 0.0
      %3079 = vmatpush1.msra.mxu0 0.0
      %3080 = vmatprep.subr.mxu0 0.0
      %3081 = vmatpush1.msra.mxu0 0.0
      %3082 = vmatprep.subr.mxu0 0.0
      %3083 = vmatpush1.msra.mxu0 0.0
      %3084 = vmatprep.mubr.f32.mxu0 0.0
      %3085 = vmatmul.mubr.f32.gmra.mrb[0].mxu0 %v2925
      %v3086 = vpop.f32.mrb[0].mxu0
      %v3087 = vadd.f32 0.0, %v3086
      %v3088 = vpop.f32.mrb[0].mxu0
      %3089 = vmatprep.mubr.f32.mxu0 0.0
      %3090 = vmatmul.mubr.f32.gmra.mrb[0].mxu0 %v2928
      %v3091 = vpop.f32.mrb[0].mxu0
      %v3092 = vadd.f32 0.0, %v3091
      %v3093 = vpop.f32.mrb[0].mxu0
      %3094 = vmatprep.mubr.f32.mxu0 0.0
      %3095 = vmatmul.mubr.f32.gmra.mrb[0].mxu0 %v2931
      %v3096 = vpop.f32.mrb[0].mxu0
      %v3097 = vadd.f32 0.0, %v3096
      %v3098 = vpop.f32.mrb[0].mxu0
      %3099 = vmatprep.mubr.f32.mxu0 0.0
      %3100 = vmatmul.mubr.f32.gmra.mrb[0].mxu0 %v2934
      %v3101 = vpop.f32.mrb[0].mxu0
      %v3102 = vadd.f32 0.0, %v3101
      %v3103 = vpop.f32.mrb[0].mxu0
      %3104 = vmatprep.mubr.f32.mxu0 0.0
      %3105 = vmatmul.mubr.f32.gmra.mrb[0].mxu0 %v2937
      %v3106 = vpop.f32.mrb[0].mxu0
      %v3107 = vadd.f32 0.0, %v3106
      %v3108 = vpop.f32.mrb[0].mxu0
      %3109 = vmatprep.mubr.f32.mxu0 0.0
      %3110 = vmatmul.mubr.f32.gmra.mrb[0].mxu0 %v2940
      %v3111 = vpop.f32.mrb[0].mxu0
      %v3112 = vadd.f32 0.0, %v3111
      %v3113 = vpop.f32.mrb[0].mxu0
      %3114 = vmatprep.mubr.f32.mxu0 0.0
      %3115 = vmatmul.mubr.f32.gmra.mrb[0].mxu0 %v2943
      %v3116 = vpop.f32.mrb[0].mxu0
      %v3117 = vadd.f32 0.0, %v3116
      %v3118 = vpop.f32.mrb[0].mxu0
      %3119 = vmatprep.mubr.f32.mxu0 0.0
      %3120 = vmatmul.mubr.f32.gmra.mrb[0].mxu0 %v2946
      %v3121 = vpop.f32.mrb[0].mxu0
      %v3122 = vadd.f32 0.0, %v3121
      %v3123 = vpop.f32.mrb[0].mxu0
      %3124 = vmatprep.mubr.f32.mxu0 0.0
      %3125 = vmatmul.mubr.f32.gmra.mrb[0].mxu0 %v2949
      %v3126 = vpop.f32.mrb[0].mxu0
      %v3127 = vadd.f32 0.0, %v3126
      %v3128 = vpop.f32.mrb[0].mxu0
      %3129 = vmatprep.mubr.f32.mxu0 0.0
      %3130 = vmatmul.mubr.f32.gmra.mrb[0].mxu0 %v2952
      %v3131 = vpop.f32.mrb[0].mxu0
      %v3132 = vadd.f32 0.0, %v3131
      %v3133 = vpop.f32.mrb[0].mxu0
      %3134 = vmatprep.mubr.f32.mxu0 0.0
      %3135 = vmatmul.mubr.f32.gmra.mrb[0].mxu0 %v2955
      %v3136 = vpop.f32.mrb[0].mxu0
      %v3137 = vadd.f32 0.0, %v3136
      %v3138 = vpop.f32.mrb[0].mxu0
      %3139 = vmatprep.mubr.f32.mxu0 0.0
      %3140 = vmatmul.mubr.f32.gmra.mrb[0].mxu0 %v2958
      %v3141 = vpop.f32.mrb[0].mxu0
      %v3142 = vadd.f32 0.0, %v3141
      %v3143 = vpop.f32.mrb[0].mxu0
      %3144 = vmatprep.mubr.f32.mxu0 0.0
      %3145 = vmatmul.mubr.f32.gmra.mrb[0].mxu0 %v2961
      %v3146 = vpop.f32.mrb[0].mxu0
      %v3147 = vadd.f32 0.0, %v3146
      %v3148 = vpop.f32.mrb[0].mxu0
      %3149 = vmatprep.mubr.f32.mxu0 0.0
      %3150 = vmatmul.mubr.f32.gmra.mrb[0].mxu0 %v2964
      %v3151 = vpop.f32.mrb[0].mxu0
      %v3152 = vadd.f32 0.0, %v3151
      %v3153 = vpop.f32.mrb[0].mxu0
      %3154 = vmatprep.mubr.f32.mxu0 0.0
      %3155 = vmatmul.mubr.f32.gmra.mrb[0].mxu0 %v2967
      %v3156 = vpop.f32.mrb[0].mxu0
      %v3157 = vadd.f32 0.0, %v3156
      %v3158 = vpop.f32.mrb[0].mxu0
      %3159 = vmatprep.mubr.f32.mxu0 0.0
      %3160 = vmatmul.mubr.f32.gmra.mrb[0].mxu0 %v2970
      %v3161 = vpop.f32.mrb[0].mxu0
      %v3162 = vadd.f32 0.0, %v3161
      %v3163 = vpop.f32.mrb[0].mxu0
      %3164 = vmatprep.mubr.f32.mxu0 0.0
      %3165 = vmatmul.mubr.f32.gmra.mrb[0].mxu0 %v2973
      %v3166 = vpop.f32.mrb[0].mxu0
      %v3167 = vadd.f32 0.0, %v3166
      %v3168 = vpop.f32.mrb[0].mxu0
      %3169 = vmatprep.mubr.f32.mxu0 0.0
      %3170 = vmatmul.mubr.f32.gmra.mrb[0].mxu0 %v2976
      %v3171 = vpop.f32.mrb[0].mxu0
      %v3172 = vadd.f32 0.0, %v3171
      %v3173 = vpop.f32.mrb[0].mxu0
      %3174 = vmatprep.mubr.f32.mxu0 0.0
      %3175 = vmatmul.mubr.f32.gmra.mrb[0].mxu0 %v2979
      %v3176 = vpop.f32.mrb[0].mxu0
      %v3177 = vadd.f32 0.0, %v3176
      %v3178 = vpop.f32.mrb[0].mxu0
      %3179 = vmatprep.mubr.f32.mxu0 0.0
      %3180 = vmatmul.mubr.f32.gmra.mrb[0].mxu0 %v2982
      %v3181 = vpop.f32.mrb[0].mxu0
      %v3182 = vadd.f32 0.0, %v3181
      %v3183 = vpop.f32.mrb[0].mxu0
      %3184 = vmatprep.mubr.f32.mxu0 0.0
      %3185 = vmatmul.mubr.f32.gmra.mrb[0].mxu0 %v2985
      %v3186 = vpop.f32.mrb[0].mxu0
      %v3187 = vadd.f32 0.0, %v3186
      %v3188 = vpop.f32.mrb[0].mxu0
      %3189 = vmatprep.mubr.f32.mxu0 0.0
      %3190 = vmatmul.mubr.f32.gmra.mrb[0].mxu0 %v2988
      %v3191 = vpop.f32.mrb[0].mxu0
      %v3192 = vadd.f32 0.0, %v3191
      %v3193 = vpop.f32.mrb[0].mxu0
      %3194 = vmatprep.mubr.f32.mxu0 0.0
      %3195 = vmatmul.mubr.f32.gmra.mrb[0].mxu0 %v2991
      %v3196 = vpop.f32.mrb[0].mxu0
      %v3197 = vadd.f32 0.0, %v3196
      %v3198 = vpop.f32.mrb[0].mxu0
      %3199 = vmatprep.mubr.f32.mxu0 0.0
      %3200 = vmatmul.mubr.f32.gmra.mrb[0].mxu0 %v2994
      %v3201 = vpop.f32.mrb[0].mxu0
      %v3202 = vadd.f32 0.0, %v3201
      %v3203 = vpop.f32.mrb[0].mxu0
      %3204 = vmatprep.mubr.f32.mxu0 0.0
      %3205 = vmatmul.mubr.f32.gmra.mrb[0].mxu0 %v2997
      %v3206 = vpop.f32.mrb[0].mxu0
      %v3207 = vadd.f32 0.0, %v3206
      %v3208 = vpop.f32.mrb[0].mxu0
      %3209 = vmatprep.mubr.f32.mxu0 0.0
      %3210 = vmatmul.mubr.f32.gmra.mrb[0].mxu0 %v3000
      %v3211 = vpop.f32.mrb[0].mxu0
      %v3212 = vadd.f32 0.0, %v3211
      %v3213 = vpop.f32.mrb[0].mxu0
      %3214 = vmatprep.mubr.f32.mxu0 0.0
      %3215 = vmatmul.mubr.f32.gmra.mrb[0].mxu0 %v3003
      %v3216 = vpop.f32.mrb[0].mxu0
      %v3217 = vadd.f32 0.0, %v3216
      %v3218 = vpop.f32.mrb[0].mxu0
      %3219 = vmatprep.mubr.f32.mxu0 0.0
      %3220 = vmatmul.mubr.f32.gmra.mrb[0].mxu0 %v3006
      %v3221 = vpop.f32.mrb[0].mxu0
      %v3222 = vadd.f32 0.0, %v3221
      %v3223 = vpop.f32.mrb[0].mxu0
      %3224 = vmatprep.mubr.f32.mxu0 0.0
      %3225 = vmatmul.mubr.f32.gmra.mrb[0].mxu0 %v3009
      %v3226 = vpop.f32.mrb[0].mxu0
      %v3227 = vadd.f32 0.0, %v3226
      %v3228 = vpop.f32.mrb[0].mxu0
      %3229 = vmatprep.mubr.f32.mxu0 0.0
      %3230 = vmatmul.mubr.f32.gmra.mrb[0].mxu0 %v3012
      %v3231 = vpop.f32.mrb[0].mxu0
      %v3232 = vadd.f32 0.0, %v3231
      %v3233 = vpop.f32.mrb[0].mxu0
      %3234 = vmatprep.mubr.f32.mxu0 0.0
      %3235 = vmatmul.mubr.f32.gmra.mrb[0].mxu0 %v3015
      %v3236 = vpop.f32.mrb[0].mxu0
      %v3237 = vadd.f32 0.0, %v3236
      %v3238 = vpop.f32.mrb[0].mxu0
      %3239 = vmatprep.mubr.f32.mxu0 0.0
      %3240 = vmatmul.mubr.f32.gmra.mrb[0].mxu0 %v3018
      %v3241 = vpop.f32.mrb[0].mxu0
      %v3242 = vadd.f32 0.0, %v3241
      %v3243 = vpop.f32.mrb[0].mxu0
      %3244 = vdwg.mxu0
      %v3245 = vadd.f32 %v2858, %v3087
      %v3246 = vadd.f32 %v2859, %v3092
      %v3247 = vadd.f32 %v2860, %v3097
      %v3248 = vadd.f32 %v2861, %v3102
      %v3249 = vadd.f32 %v2862, %v3107
      %v3250 = vadd.f32 %v2863, %v3112
      %v3251 = vadd.f32 %v2864, %v3117
      %v3252 = vadd.f32 %v2865, %v3122
      %v3253 = vadd.f32 %v2866, %v3127
      %v3254 = vadd.f32 %v2867, %v3132
      %v3255 = vadd.f32 %v2868, %v3137
      %v3256 = vadd.f32 %v2869, %v3142
      %v3257 = vadd.f32 %v2870, %v3147
      %v3258 = vadd.f32 %v2871, %v3152
      %v3259 = vadd.f32 %v2872, %v3157
      %v3260 = vadd.f32 %v2873, %v3162
      %v3261 = vadd.f32 %v2874, %v3167
      %v3262 = vadd.f32 %v2875, %v3172
      %v3263 = vadd.f32 %v2876, %v3177
      %v3264 = vadd.f32 %v2877, %v3182
      %v3265 = vadd.f32 %v2878, %v3187
      %v3266 = vadd.f32 %v2879, %v3192
      %v3267 = vadd.f32 %v2880, %v3197
      %v3268 = vadd.f32 %v2881, %v3202
      %v3269 = vadd.f32 %v2882, %v3207
      %v3270 = vadd.f32 %v2883, %v3212
      %v3271 = vadd.f32 %v2884, %v3217
      %v3272 = vadd.f32 %v2885, %v3222
      %v3273 = vadd.f32 %v2886, %v3227
      %v3274 = vadd.f32 %v2887, %v3232
      %v3275 = vadd.f32 %v2888, %v3237
      %v3276 = vadd.f32 %v2889, %v3242
      %v3277 = vld [vmem:[%s2502 + $0x2] sm:$0xff]
      %v3278 = vld [vmem:[%s2502 + $0xa] sm:$0xff]
      %v3279 = vld [vmem:[%s2502 + $0x1a] sm:$0xff]
      %v3280 = vld [vmem:[%s2502 + $0x22] sm:$0xff]
      %v3281 = vld [vmem:[%s2502 + $0x32] sm:$0xff]
      %v3282 = vld [vmem:[%s2502 + $0x3a] sm:$0xff]
      %v3283 = vld [vmem:[%s2502 + $0x4a] sm:$0xff]
      %v3284 = vld [vmem:[%s2502 + $0x52] sm:$0xff]
      %v3285 = vld [vmem:[%s2502 + $0x62] sm:$0xff]
      %v3286 = vld [vmem:[%s2502 + $0x6a] sm:$0xff]
      %v3287 = vld [vmem:[%s2502 + $0x7a] sm:$0xff]
      %v3288 = vld [vmem:[%s2502 + $0x82] sm:$0xff]
      %v3289 = vld [vmem:[%s2502 + $0x92] sm:$0xff]
      %v3290 = vld [vmem:[%s2502 + $0x9a] sm:$0xff]
      %v3291 = vld [vmem:[%s2502 + $0xaa] sm:$0xff]
      %v3292 = vld [vmem:[%s2502 + $0xb2] sm:$0xff]
      %v3293 = vld [vmem:[%s2502 + $0xc2] sm:$0xff]
      %v3294 = vld [vmem:[%s2502 + $0xca] sm:$0xff]
      %v3295 = vld [vmem:[%s2502 + $0xda] sm:$0xff]
      %v3296 = vld [vmem:[%s2502 + $0xe2] sm:$0xff]
      %v3297 = vld [vmem:[%s2502 + $0xf2] sm:$0xff]
      %v3298 = vld [vmem:[%s2502 + $0xfa] sm:$0xff]
      %v3299 = vld [vmem:[%s2502 + $0x10a] sm:$0xff]
      %v3300 = vld [vmem:[%s2502 + $0x112] sm:$0xff]
      %v3301 = vld [vmem:[%s2502 + $0x122] sm:$0xff]
      %v3302 = vld [vmem:[%s2502 + $0x12a] sm:$0xff]
      %v3303 = vld [vmem:[%s2502 + $0x13a] sm:$0xff]
      %v3304 = vld [vmem:[%s2502 + $0x142] sm:$0xff]
      %v3305 = vld [vmem:[%s2502 + $0x152] sm:$0xff]
      %v3306 = vld [vmem:[%s2502 + $0x15a] sm:$0xff]
      %v3307 = vld [vmem:[%s2502 + $0x16a] sm:$0xff]
      %v3308 = vld [vmem:[%s2502 + $0x172] sm:$0xff]
      %s3309 = scalar_lea.vmem %s1, 64
      %v3310 = vld [vmem:[%s3309] sm:$0xff]
      %v3312 = vsel %vm212, %v3277, 0
      %v3315 = vsel %vm212, %v3278, 0
      %v3318 = vsel %vm212, %v3279, 0
      %v3321 = vsel %vm212, %v3280, 0
      %v3324 = vsel %vm212, %v3281, 0
      %v3327 = vsel %vm212, %v3282, 0
      %v3330 = vsel %vm212, %v3283, 0
      %v3333 = vsel %vm212, %v3284, 0
      %v3336 = vsel %vm212, %v3285, 0
      %v3339 = vsel %vm212, %v3286, 0
      %v3342 = vsel %vm212, %v3287, 0
      %v3345 = vsel %vm212, %v3288, 0
      %v3348 = vsel %vm212, %v3289, 0
      %v3351 = vsel %vm212, %v3290, 0
      %v3354 = vsel %vm212, %v3291, 0
      %v3357 = vsel %vm212, %v3292, 0
      %v3360 = vsel %vm212, %v3293, 0
      %v3363 = vsel %vm212, %v3294, 0
      %v3366 = vsel %vm212, %v3295, 0
      %v3369 = vsel %vm212, %v3296, 0
      %v3372 = vsel %vm212, %v3297, 0
      %v3375 = vsel %vm212, %v3298, 0
      %v3378 = vsel %vm212, %v3299, 0
      %v3381 = vsel %vm212, %v3300, 0
      %v3384 = vsel %vm212, %v3301, 0
      %v3387 = vsel %vm212, %v3302, 0
      %v3390 = vsel %vm212, %v3303, 0
      %v3393 = vsel %vm212, %v3304, 0
      %v3396 = vsel %vm212, %v3305, 0
      %v3399 = vsel %vm212, %v3306, 0
      %v3402 = vsel %vm212, %v3307, 0
      %v3405 = vsel %vm212, %v3308, 0
      %3407 = vmatprep.subr.mxu0 0.0
      %3408 = vmatpush1.msra.mxu0 %v3310
      %3409 = vmatprep.subr.mxu0 0.0
      %3410 = vmatpush1.msra.mxu0 0.0
      %3411 = vmatprep.subr.mxu0 0.0
      %3412 = vmatpush1.msra.mxu0 0.0
      %3413 = vmatprep.subr.mxu0 0.0
      %3414 = vmatpush1.msra.mxu0 0.0
      %3415 = vmatprep.subr.mxu0 0.0
      %3416 = vmatpush1.msra.mxu0 0.0
      %3417 = vmatprep.subr.mxu0 0.0
      %3418 = vmatpush1.msra.mxu0 0.0
      %3419 = vmatprep.subr.mxu0 0.0
      %3420 = vmatpush1.msra.mxu0 0.0
      %3421 = vmatprep.subr.mxu0 0.0
      %3422 = vmatpush1.msra.mxu0 0.0
      %3423 = vmatprep.subr.mxu0 0.0
      %3424 = vmatpush1.msra.mxu0 0.0
      %3425 = vmatprep.subr.mxu0 0.0
      %3426 = vmatpush1.msra.mxu0 0.0
      %3427 = vmatprep.subr.mxu0 0.0
      %3428 = vmatpush1.msra.mxu0 0.0
      %3429 = vmatprep.subr.mxu0 0.0
      %3430 = vmatpush1.msra.mxu0 0.0
      %3431 = vmatprep.subr.mxu0 0.0
      %3432 = vmatpush1.msra.mxu0 0.0
      %3433 = vmatprep.subr.mxu0 0.0
      %3434 = vmatpush1.msra.mxu0 0.0
      %3435 = vmatprep.subr.mxu0 0.0
      %3436 = vmatpush1.msra.mxu0 0.0
      %3437 = vmatprep.subr.mxu0 0.0
      %3438 = vmatpush1.msra.mxu0 0.0
      %3439 = vmatprep.subr.mxu0 0.0
      %3440 = vmatpush1.msra.mxu0 0.0
      %3441 = vmatprep.subr.mxu0 0.0
      %3442 = vmatpush1.msra.mxu0 0.0
      %3443 = vmatprep.subr.mxu0 0.0
      %3444 = vmatpush1.msra.mxu0 0.0
      %3445 = vmatprep.subr.mxu0 0.0
      %3446 = vmatpush1.msra.mxu0 0.0
      %3447 = vmatprep.subr.mxu0 0.0
      %3448 = vmatpush1.msra.mxu0 0.0
      %3449 = vmatprep.subr.mxu0 0.0
      %3450 = vmatpush1.msra.mxu0 0.0
      %3451 = vmatprep.subr.mxu0 0.0
      %3452 = vmatpush1.msra.mxu0 0.0
      %3453 = vmatprep.subr.mxu0 0.0
      %3454 = vmatpush1.msra.mxu0 0.0
      %3455 = vmatprep.subr.mxu0 0.0
      %3456 = vmatpush1.msra.mxu0 0.0
      %3457 = vmatprep.subr.mxu0 0.0
      %3458 = vmatpush1.msra.mxu0 0.0
      %3459 = vmatprep.subr.mxu0 0.0
      %3460 = vmatpush1.msra.mxu0 0.0
      %3461 = vmatprep.subr.mxu0 0.0
      %3462 = vmatpush1.msra.mxu0 0.0
      %3463 = vmatprep.subr.mxu0 0.0
      %3464 = vmatpush1.msra.mxu0 0.0
      %3465 = vmatprep.subr.mxu0 0.0
      %3466 = vmatpush1.msra.mxu0 0.0
      %3467 = vmatprep.subr.mxu0 0.0
      %3468 = vmatpush1.msra.mxu0 0.0
      %3469 = vmatprep.subr.mxu0 0.0
      %3470 = vmatpush1.msra.mxu0 0.0
      %3471 = vmatprep.mubr.f32.mxu0 0.0
      %3472 = vmatmul.mubr.f32.gmra.mrb[0].mxu0 %v3312
      %v3473 = vpop.f32.mrb[0].mxu0
      %v3474 = vadd.f32 0.0, %v3473
      %v3475 = vpop.f32.mrb[0].mxu0
      %3476 = vmatprep.mubr.f32.mxu0 0.0
      %3477 = vmatmul.mubr.f32.gmra.mrb[0].mxu0 %v3315
      %v3478 = vpop.f32.mrb[0].mxu0
      %v3479 = vadd.f32 0.0, %v3478
      %v3480 = vpop.f32.mrb[0].mxu0
      %3481 = vmatprep.mubr.f32.mxu0 0.0
      %3482 = vmatmul.mubr.f32.gmra.mrb[0].mxu0 %v3318
      %v3483 = vpop.f32.mrb[0].mxu0
      %v3484 = vadd.f32 0.0, %v3483
      %v3485 = vpop.f32.mrb[0].mxu0
      %3486 = vmatprep.mubr.f32.mxu0 0.0
      %3487 = vmatmul.mubr.f32.gmra.mrb[0].mxu0 %v3321
      %v3488 = vpop.f32.mrb[0].mxu0
      %v3489 = vadd.f32 0.0, %v3488
      %v3490 = vpop.f32.mrb[0].mxu0
      %3491 = vmatprep.mubr.f32.mxu0 0.0
      %3492 = vmatmul.mubr.f32.gmra.mrb[0].mxu0 %v3324
      %v3493 = vpop.f32.mrb[0].mxu0
      %v3494 = vadd.f32 0.0, %v3493
      %v3495 = vpop.f32.mrb[0].mxu0
      %3496 = vmatprep.mubr.f32.mxu0 0.0
      %3497 = vmatmul.mubr.f32.gmra.mrb[0].mxu0 %v3327
      %v3498 = vpop.f32.mrb[0].mxu0
      %v3499 = vadd.f32 0.0, %v3498
      %v3500 = vpop.f32.mrb[0].mxu0
      %3501 = vmatprep.mubr.f32.mxu0 0.0
      %3502 = vmatmul.mubr.f32.gmra.mrb[0].mxu0 %v3330
      %v3503 = vpop.f32.mrb[0].mxu0
      %v3504 = vadd.f32 0.0, %v3503
      %v3505 = vpop.f32.mrb[0].mxu0
      %3506 = vmatprep.mubr.f32.mxu0 0.0
      %3507 = vmatmul.mubr.f32.gmra.mrb[0].mxu0 %v3333
      %v3508 = vpop.f32.mrb[0].mxu0
      %v3509 = vadd.f32 0.0, %v3508
      %v3510 = vpop.f32.mrb[0].mxu0
      %3511 = vmatprep.mubr.f32.mxu0 0.0
      %3512 = vmatmul.mubr.f32.gmra.mrb[0].mxu0 %v3336
      %v3513 = vpop.f32.mrb[0].mxu0
      %v3514 = vadd.f32 0.0, %v3513
      %v3515 = vpop.f32.mrb[0].mxu0
      %3516 = vmatprep.mubr.f32.mxu0 0.0
      %3517 = vmatmul.mubr.f32.gmra.mrb[0].mxu0 %v3339
      %v3518 = vpop.f32.mrb[0].mxu0
      %v3519 = vadd.f32 0.0, %v3518
      %v3520 = vpop.f32.mrb[0].mxu0
      %3521 = vmatprep.mubr.f32.mxu0 0.0
      %3522 = vmatmul.mubr.f32.gmra.mrb[0].mxu0 %v3342
      %v3523 = vpop.f32.mrb[0].mxu0
      %v3524 = vadd.f32 0.0, %v3523
      %v3525 = vpop.f32.mrb[0].mxu0
      %3526 = vmatprep.mubr.f32.mxu0 0.0
      %3527 = vmatmul.mubr.f32.gmra.mrb[0].mxu0 %v3345
      %v3528 = vpop.f32.mrb[0].mxu0
      %v3529 = vadd.f32 0.0, %v3528
      %v3530 = vpop.f32.mrb[0].mxu0
      %3531 = vmatprep.mubr.f32.mxu0 0.0
      %3532 = vmatmul.mubr.f32.gmra.mrb[0].mxu0 %v3348
      %v3533 = vpop.f32.mrb[0].mxu0
      %v3534 = vadd.f32 0.0, %v3533
      %v3535 = vpop.f32.mrb[0].mxu0
      %3536 = vmatprep.mubr.f32.mxu0 0.0
      %3537 = vmatmul.mubr.f32.gmra.mrb[0].mxu0 %v3351
      %v3538 = vpop.f32.mrb[0].mxu0
      %v3539 = vadd.f32 0.0, %v3538
      %v3540 = vpop.f32.mrb[0].mxu0
      %3541 = vmatprep.mubr.f32.mxu0 0.0
      %3542 = vmatmul.mubr.f32.gmra.mrb[0].mxu0 %v3354
      %v3543 = vpop.f32.mrb[0].mxu0
      %v3544 = vadd.f32 0.0, %v3543
      %v3545 = vpop.f32.mrb[0].mxu0
      %3546 = vmatprep.mubr.f32.mxu0 0.0
      %3547 = vmatmul.mubr.f32.gmra.mrb[0].mxu0 %v3357
      %v3548 = vpop.f32.mrb[0].mxu0
      %v3549 = vadd.f32 0.0, %v3548
      %v3550 = vpop.f32.mrb[0].mxu0
      %3551 = vmatprep.mubr.f32.mxu0 0.0
      %3552 = vmatmul.mubr.f32.gmra.mrb[0].mxu0 %v3360
      %v3553 = vpop.f32.mrb[0].mxu0
      %v3554 = vadd.f32 0.0, %v3553
      %v3555 = vpop.f32.mrb[0].mxu0
      %3556 = vmatprep.mubr.f32.mxu0 0.0
      %3557 = vmatmul.mubr.f32.gmra.mrb[0].mxu0 %v3363
      %v3558 = vpop.f32.mrb[0].mxu0
      %v3559 = vadd.f32 0.0, %v3558
      %v3560 = vpop.f32.mrb[0].mxu0
      %3561 = vmatprep.mubr.f32.mxu0 0.0
      %3562 = vmatmul.mubr.f32.gmra.mrb[0].mxu0 %v3366
      %v3563 = vpop.f32.mrb[0].mxu0
      %v3564 = vadd.f32 0.0, %v3563
      %v3565 = vpop.f32.mrb[0].mxu0
      %3566 = vmatprep.mubr.f32.mxu0 0.0
      %3567 = vmatmul.mubr.f32.gmra.mrb[0].mxu0 %v3369
      %v3568 = vpop.f32.mrb[0].mxu0
      %v3569 = vadd.f32 0.0, %v3568
      %v3570 = vpop.f32.mrb[0].mxu0
      %3571 = vmatprep.mubr.f32.mxu0 0.0
      %3572 = vmatmul.mubr.f32.gmra.mrb[0].mxu0 %v3372
      %v3573 = vpop.f32.mrb[0].mxu0
      %v3574 = vadd.f32 0.0, %v3573
      %v3575 = vpop.f32.mrb[0].mxu0
      %3576 = vmatprep.mubr.f32.mxu0 0.0
      %3577 = vmatmul.mubr.f32.gmra.mrb[0].mxu0 %v3375
      %v3578 = vpop.f32.mrb[0].mxu0
      %v3579 = vadd.f32 0.0, %v3578
      %v3580 = vpop.f32.mrb[0].mxu0
      %3581 = vmatprep.mubr.f32.mxu0 0.0
      %3582 = vmatmul.mubr.f32.gmra.mrb[0].mxu0 %v3378
      %v3583 = vpop.f32.mrb[0].mxu0
      %v3584 = vadd.f32 0.0, %v3583
      %v3585 = vpop.f32.mrb[0].mxu0
      %3586 = vmatprep.mubr.f32.mxu0 0.0
      %3587 = vmatmul.mubr.f32.gmra.mrb[0].mxu0 %v3381
      %v3588 = vpop.f32.mrb[0].mxu0
      %v3589 = vadd.f32 0.0, %v3588
      %v3590 = vpop.f32.mrb[0].mxu0
      %3591 = vmatprep.mubr.f32.mxu0 0.0
      %3592 = vmatmul.mubr.f32.gmra.mrb[0].mxu0 %v3384
      %v3593 = vpop.f32.mrb[0].mxu0
      %v3594 = vadd.f32 0.0, %v3593
      %v3595 = vpop.f32.mrb[0].mxu0
      %3596 = vmatprep.mubr.f32.mxu0 0.0
      %3597 = vmatmul.mubr.f32.gmra.mrb[0].mxu0 %v3387
      %v3598 = vpop.f32.mrb[0].mxu0
      %v3599 = vadd.f32 0.0, %v3598
      %v3600 = vpop.f32.mrb[0].mxu0
      %3601 = vmatprep.mubr.f32.mxu0 0.0
      %3602 = vmatmul.mubr.f32.gmra.mrb[0].mxu0 %v3390
      %v3603 = vpop.f32.mrb[0].mxu0
      %v3604 = vadd.f32 0.0, %v3603
      %v3605 = vpop.f32.mrb[0].mxu0
      %3606 = vmatprep.mubr.f32.mxu0 0.0
      %3607 = vmatmul.mubr.f32.gmra.mrb[0].mxu0 %v3393
      %v3608 = vpop.f32.mrb[0].mxu0
      %v3609 = vadd.f32 0.0, %v3608
      %v3610 = vpop.f32.mrb[0].mxu0
      %3611 = vmatprep.mubr.f32.mxu0 0.0
      %3612 = vmatmul.mubr.f32.gmra.mrb[0].mxu0 %v3396
      %v3613 = vpop.f32.mrb[0].mxu0
      %v3614 = vadd.f32 0.0, %v3613
      %v3615 = vpop.f32.mrb[0].mxu0
      %3616 = vmatprep.mubr.f32.mxu0 0.0
      %3617 = vmatmul.mubr.f32.gmra.mrb[0].mxu0 %v3399
      %v3618 = vpop.f32.mrb[0].mxu0
      %v3619 = vadd.f32 0.0, %v3618
      %v3620 = vpop.f32.mrb[0].mxu0
      %3621 = vmatprep.mubr.f32.mxu0 0.0
      %3622 = vmatmul.mubr.f32.gmra.mrb[0].mxu0 %v3402
      %v3623 = vpop.f32.mrb[0].mxu0
      %v3624 = vadd.f32 0.0, %v3623
      %v3625 = vpop.f32.mrb[0].mxu0
      %3626 = vmatprep.mubr.f32.mxu0 0.0
      %3627 = vmatmul.mubr.f32.gmra.mrb[0].mxu0 %v3405
      %v3628 = vpop.f32.mrb[0].mxu0
      %v3629 = vadd.f32 0.0, %v3628
      %v3630 = vpop.f32.mrb[0].mxu0
      %3631 = vdwg.mxu0
      %v3632 = vadd.f32 %v3245, %v3474
      %v3633 = vadd.f32 %v3246, %v3479
      %v3634 = vadd.f32 %v3247, %v3484
      %v3635 = vadd.f32 %v3248, %v3489
      %v3636 = vadd.f32 %v3249, %v3494
      %v3637 = vadd.f32 %v3250, %v3499
      %v3638 = vadd.f32 %v3251, %v3504
      %v3639 = vadd.f32 %v3252, %v3509
      %v3640 = vadd.f32 %v3253, %v3514
      %v3641 = vadd.f32 %v3254, %v3519
      %v3642 = vadd.f32 %v3255, %v3524
      %v3643 = vadd.f32 %v3256, %v3529
      %v3644 = vadd.f32 %v3257, %v3534
      %v3645 = vadd.f32 %v3258, %v3539
      %v3646 = vadd.f32 %v3259, %v3544
      %v3647 = vadd.f32 %v3260, %v3549
      %v3648 = vadd.f32 %v3261, %v3554
      %v3649 = vadd.f32 %v3262, %v3559
      %v3650 = vadd.f32 %v3263, %v3564
      %v3651 = vadd.f32 %v3264, %v3569
      %v3652 = vadd.f32 %v3265, %v3574
      %v3653 = vadd.f32 %v3266, %v3579
      %v3654 = vadd.f32 %v3267, %v3584
      %v3655 = vadd.f32 %v3268, %v3589
      %v3656 = vadd.f32 %v3269, %v3594
      %v3657 = vadd.f32 %v3270, %v3599
      %v3658 = vadd.f32 %v3271, %v3604
      %v3659 = vadd.f32 %v3272, %v3609
      %v3660 = vadd.f32 %v3273, %v3614
      %v3661 = vadd.f32 %v3274, %v3619
      %v3662 = vadd.f32 %v3275, %v3624
      %v3663 = vadd.f32 %v3276, %v3629
      %v3664 = vmax.f32 %v3632, 0.0
      %v3665 = vmax.f32 %v3633, 0.0
      %v3666 = vmax.f32 %v3634, 0.0
      %v3667 = vmax.f32 %v3635, 0.0
      %v3668 = vmax.f32 %v3636, 0.0
      %v3669 = vmax.f32 %v3637, 0.0
      %v3670 = vmax.f32 %v3638, 0.0
      %v3671 = vmax.f32 %v3639, 0.0
      %v3672 = vmax.f32 %v3640, 0.0
      %v3673 = vmax.f32 %v3641, 0.0
      %v3674 = vmax.f32 %v3642, 0.0
      %v3675 = vmax.f32 %v3643, 0.0
      %v3676 = vmax.f32 %v3644, 0.0
      %v3677 = vmax.f32 %v3645, 0.0
      %v3678 = vmax.f32 %v3646, 0.0
      %v3679 = vmax.f32 %v3647, 0.0
      %v3680 = vmax.f32 %v3648, 0.0
      %v3681 = vmax.f32 %v3649, 0.0
      %v3682 = vmax.f32 %v3650, 0.0
      %v3683 = vmax.f32 %v3651, 0.0
      %v3684 = vmax.f32 %v3652, 0.0
      %v3685 = vmax.f32 %v3653, 0.0
      %v3686 = vmax.f32 %v3654, 0.0
      %v3687 = vmax.f32 %v3655, 0.0
      %v3688 = vmax.f32 %v3656, 0.0
      %v3689 = vmax.f32 %v3657, 0.0
      %v3690 = vmax.f32 %v3658, 0.0
      %v3691 = vmax.f32 %v3659, 0.0
      %v3692 = vmax.f32 %v3660, 0.0
      %v3693 = vmax.f32 %v3661, 0.0
      %v3694 = vmax.f32 %v3662, 0.0
      %v3695 = vmax.f32 %v3663, 0.0
      %3696 = vst.msk [vmem:[%s170] sm:$0xff] %vm212, %v3664
      %3697 = vst.msk [vmem:[%s170 + $0x8] sm:$0xff] %vm212, %v3665
      %3698 = vst.msk [vmem:[%s170 + $0x10] sm:$0xff] %vm212, %v3666
      %3699 = vst.msk [vmem:[%s170 + $0x18] sm:$0xff] %vm212, %v3667
      %3700 = vst.msk [vmem:[%s170 + $0x20] sm:$0xff] %vm212, %v3668
      %3701 = vst.msk [vmem:[%s170 + $0x28] sm:$0xff] %vm212, %v3669
      %3702 = vst.msk [vmem:[%s170 + $0x30] sm:$0xff] %vm212, %v3670
      %3703 = vst.msk [vmem:[%s170 + $0x38] sm:$0xff] %vm212, %v3671
      %3704 = vst.msk [vmem:[%s170 + $0x40] sm:$0xff] %vm212, %v3672
      %3705 = vst.msk [vmem:[%s170 + $0x48] sm:$0xff] %vm212, %v3673
      %3706 = vst.msk [vmem:[%s170 + $0x50] sm:$0xff] %vm212, %v3674
      %3707 = vst.msk [vmem:[%s170 + $0x58] sm:$0xff] %vm212, %v3675
      %3708 = vst.msk [vmem:[%s170 + $0x60] sm:$0xff] %vm212, %v3676
      %3709 = vst.msk [vmem:[%s170 + $0x68] sm:$0xff] %vm212, %v3677
      %3710 = vst.msk [vmem:[%s170 + $0x70] sm:$0xff] %vm212, %v3678
      %3711 = vst.msk [vmem:[%s170 + $0x78] sm:$0xff] %vm212, %v3679
      %3712 = vst.msk [vmem:[%s170 + $0x80] sm:$0xff] %vm212, %v3680
      %3713 = vst.msk [vmem:[%s170 + $0x88] sm:$0xff] %vm212, %v3681
      %3714 = vst.msk [vmem:[%s170 + $0x90] sm:$0xff] %vm212, %v3682
      %3715 = vst.msk [vmem:[%s170 + $0x98] sm:$0xff] %vm212, %v3683
      %3716 = vst.msk [vmem:[%s170 + $0xa0] sm:$0xff] %vm212, %v3684
      %3717 = vst.msk [vmem:[%s170 + $0xa8] sm:$0xff] %vm212, %v3685
      %3718 = vst.msk [vmem:[%s170 + $0xb0] sm:$0xff] %vm212, %v3686
      %3719 = vst.msk [vmem:[%s170 + $0xb8] sm:$0xff] %vm212, %v3687
      %3720 = vst.msk [vmem:[%s170 + $0xc0] sm:$0xff] %vm212, %v3688
      %3721 = vst.msk [vmem:[%s170 + $0xc8] sm:$0xff] %vm212, %v3689
      %3722 = vst.msk [vmem:[%s170 + $0xd0] sm:$0xff] %vm212, %v3690
      %3723 = vst.msk [vmem:[%s170 + $0xd8] sm:$0xff] %vm212, %v3691
      %3724 = vst.msk [vmem:[%s170 + $0xe0] sm:$0xff] %vm212, %v3692
      %3725 = vst.msk [vmem:[%s170 + $0xe8] sm:$0xff] %vm212, %v3693
      %3726 = vst.msk [vmem:[%s170 + $0xf0] sm:$0xff] %vm212, %v3694
      %3727 = vst.msk [vmem:[%s170 + $0xf8] sm:$0xff] %vm212, %v3695
      %p3728 = scmp.lt.s32.totalorder %s14, 1
      %s3729 = scalar_select %p3728, %s14, 1
      %s3730 = smul.addr %s3729, 32
      %s3731 = smul.addr %s3730, 8
      %s3732 = scalar_lea.vmem %s3, %s3731
      // Predicated region
      $region33: #{conv_classifier_forward.6} parent=31 // pred_check
        %p3733 = pneg %p100
      $region34: #{conv_classifier_forward.6} parent=31 // pred_check_branch
        %3735 = sbr.rel (%p3733) target = $region36
      $region35: #{conv_classifier_forward.6} parent=31 // pred_region
        _
      $region36: #{conv_classifier_forward.6} parent=31 // pred_fallthru
        _
    $region32: #{conv_classifier_forward.6} parent=5 // pred_fallthru
      _
    %p3736 = scmp.le.s32.totalorder 2, %s9
    // Predicated region
    $region37: #{conv_classifier_forward.6} parent=5 // pred_check
      %p3737 = pneg %p3736
    $region38: #{conv_classifier_forward.6} parent=5 // pred_check_branch
      %3739 = sbr.rel (%p3737) target = $region40
    $region39: #{conv_classifier_forward.6} parent=5 // pred_region
      %s3740 = ssub.s32 %s9, 2
      // Predicated region
      $region41: #{conv_classifier_forward.6} parent=39 // pred_check
        %p3741 = pneg %p106
      $region42: #{conv_classifier_forward.6} parent=39 // pred_check_branch
        %3743 = sbr.rel (%p3741) target = $region44
      $region43: #{conv_classifier_forward.6} parent=39 // pred_region
        %p3744 = scmp.lt.s32.totalorder %s15, 1
        %s3745 = scalar_select %p3744, %s15, 1
        %s3746 = smul.addr %s3745, 32
        %s3747 = smul.addr %s3746, 8
        %s3748 = scalar_lea.vmem %s3, %s3747
      $region44: #{conv_classifier_forward.6} parent=39 // pred_fallthru
        _
    $region40: #{conv_classifier_forward.6} parent=5 // pred_fallthru
      _
  $region6: #{conv_classifier_forward.6} parent=0 // loop_footer
    %s13 = sadd.s32 1, %s9
  $region7: #{conv_classifier_forward.6} parent=0 // loop_footer_branch
    %8 = sbr.rel target = $region3
  $region8: #{conv_classifier_forward.6} parent=0 // loop_exit
    _

</llo_original>
